<compile_context>
chip_gen: v6e
topology: v6e:2x2x1
jax: 0.10.0
libtpu: 0.0.40
codegen_flags: <defaults>
</compile_context>

<pallas_src>
import functools

import jax
import jax.numpy as jnp
from jax import lax
from jax.experimental import pallas as pl
from jax.experimental.pallas import tpu as pltpu

BN_EPS = 1e-5
K1_PAD = 128          # conv1 im2col contraction (25*cin = 100) padded to 128 lanes
CONV_C = 64           # conv channel width of the module


# ---------------------------------------------------------------------------
# Fused kernel: conv1 -> conv2 -> flatten -> 3-layer MLP (single grid point)
# ---------------------------------------------------------------------------
def _fused_kernel(H, W,
                  p1_ref, w1c_ref, c1e_ref,
                  w2c_ref, c2e_ref,
                  w1m_ref, f1e_ref,
                  w2m_ref, f2e_ref,
                  w3m_ref, b3m_ref,
                  o_ref,
                  a1pad_ref, p2_ref, f_ref):
    bf16 = jnp.bfloat16
    NHW = p1_ref.shape[0]
    HW = H * W
    N = NHW // HW
    C = w1c_ref.shape[1]          # 64 conv channels

    # ---- conv1: one lane-dense im2col GEMM + f32 epilogue (bias/ReLU/BN) ----
    a1 = jnp.dot(p1_ref[...].astype(bf16), w1c_ref[...],
                 preferred_element_type=jnp.float32)
    b1c, s1c, t1c = c1e_ref[0:1, :], c1e_ref[1:2, :], c1e_ref[2:3, :]
    a1 = jnp.maximum(a1 + b1c, 0.0) * s1c + t1c                 # (NHW, C) f32

    # ---- zero-pad the conv1 activation spatially (border of 2) in VMEM -----
    a1pad_ref[...] = jnp.zeros(a1pad_ref.shape, a1pad_ref.dtype)
    a1pad_ref[:, 2:2 + H, 2:2 + W, :] = a1.reshape(N, H, W, C)

    # ---- conv2: in-kernel im2col (K = 25*C = 1600) -> one MXU GEMM ----------
    for dy in range(5):
        for dx in range(5):
            t = dy * 5 + dx
            tap = a1pad_ref[:, dy:dy + H, dx:dx + W, :].reshape(NHW, C)
            p2_ref[:, t * C:(t + 1) * C] = tap.astype(bf16)
    a2 = jnp.dot(p2_ref[...], w2c_ref[...], preferred_element_type=jnp.float32)
    b2c, s2c, t2c = c2e_ref[0:1, :], c2e_ref[1:2, :], c2e_ref[2:3, :]
    a2 = jnp.maximum(a2 + b2c, 0.0) * s2c + t2c                 # (NHW, C) f32

    # ---- flatten bridge: (N*H*W, C) rows -> (N, H*W*C) lanes ----------------
    # w1m rows were permuted wrapper-side, so this matches feats.view(N, -1).
    for r in range(NHW):
        n, pp = divmod(r, HW)
        f_ref[n:n + 1, pp * C:(pp + 1) * C] = a2[r:r + 1, :]

    # ---- regressor MLP: three bf16 GEMMs, f32 accumulate + f32 epilogues ----
    h = jnp.dot(f_ref[...].astype(bf16), w1m_ref[...],
                preferred_element_type=jnp.float32)
    b1m, s1m, t1m = f1e_ref[0:1, :], f1e_ref[1:2, :], f1e_ref[2:3, :]
    h = jnp.maximum(h + b1m, 0.0) * s1m + t1m

    h = jnp.dot(h.astype(bf16), w2m_ref[...], preferred_element_type=jnp.float32)
    b2m, s2m, t2m = f2e_ref[0:1, :], f2e_ref[1:2, :], f2e_ref[2:3, :]
    h = jnp.maximum(h + b2m, 0.0) * s2m + t2m

    out = jnp.dot(h.astype(bf16), w3m_ref[...], preferred_element_type=jnp.float32)
    out = out + b3m_ref[...]                                    # (N, 128)
    o_ref[...] = out[:, :o_ref.shape[1]]                        # keep first 3 cols


def _full(shape):
    return pl.BlockSpec(shape, lambda i: (0,) * len(shape))


@jax.jit
def regression_fc_forward(x_nchw, prep):
    """Fused Pallas forward.  x_nchw: (N, Cin, H, W) float32 (PyTorch layout)."""
    N, Cin, H, W = x_nchw.shape
    C = CONV_C

    # Wrapper-side im2col for conv1 (lane-dense: K = 25*Cin, zero-padded to 128).
    x = jnp.transpose(x_nchw, (0, 2, 3, 1))                       # NHWC
    xp = jnp.pad(x, ((0, 0), (2, 2), (2, 2), (0, 0)))
    taps = [xp[:, dy:dy + H, dx:dx + W, :]
            for dy in range(5) for dx in range(5)]
    p1 = jnp.concatenate(taps, axis=-1).reshape(N * H * W, 25 * Cin)
    p1 = jnp.pad(p1, ((0, 0), (0, K1_PAD - 25 * Cin)))

    args = (p1,
            prep["w1c"], prep["c1e"],
            prep["w2c"], prep["c2e"],
            prep["w1m"], prep["f1e"],
            prep["w2m"], prep["f2e"],
            prep["w3m"], prep["b3m"])

    return pl.pallas_call(
        functools.partial(_fused_kernel, H, W),
        out_shape=jax.ShapeDtypeStruct((N, 3), jnp.float32),
        grid=(1,),
        in_specs=[_full(a.shape) for a in args],
        out_specs=_full((N, 3)),
        scratch_shapes=[
            pltpu.VMEM((N, H + 4, W + 4, C), jnp.float32),        # padded conv1 act
            pltpu.VMEM((N * H * W, 25 * C), jnp.bfloat16),        # conv2 im2col
            pltpu.VMEM((N, H * W * C), jnp.float32),              # flattened feats
        ],
        compiler_params=pltpu.CompilerParams(
            dimension_semantics=("arbitrary",)),
    )(*args)


# ---------------------------------------------------------------------------
# Parameter construction (deterministic, synthetic) and offline weight prep
# ---------------------------------------------------------------------------
def fold_bn(gamma, beta, mean, var):
    scale = gamma / jnp.sqrt(var + BN_EPS)
    shift = beta - mean * scale
    return scale[None, :], shift[None, :]


def make_params(key, cin, dim_fc):
    keys = jax.random.split(key, 32)
    k = iter(keys)
    p = {}
    p["w_c1"] = jax.random.normal(next(k), (5, 5, cin, 64), jnp.float32) * 0.05
    p["b_c1"] = jax.random.normal(next(k), (1, 64), jnp.float32) * 0.05
    p["bn1"] = fold_bn(jax.random.uniform(next(k), (64,), minval=0.5, maxval=1.5),
                       jax.random.normal(next(k), (64,)) * 0.1,
                       jax.random.normal(next(k), (64,)) * 0.1,
                       jax.random.uniform(next(k), (64,), minval=0.5, maxval=1.5))
    p["w_c2"] = jax.random.normal(next(k), (5, 5, 64, 64), jnp.float32) * 0.02
    p["b_c2"] = jax.random.normal(next(k), (1, 64), jnp.float32) * 0.05
    p["bn2"] = fold_bn(jax.random.uniform(next(k), (64,), minval=0.5, maxval=1.5),
                       jax.random.normal(next(k), (64,)) * 0.1,
                       jax.random.normal(next(k), (64,)) * 0.1,
                       jax.random.uniform(next(k), (64,), minval=0.5, maxval=1.5))
    p["w1"] = jax.random.normal(next(k), (dim_fc, 128), jnp.float32) * 0.02
    p["b1"] = jax.random.normal(next(k), (1, 128), jnp.float32) * 0.05
    p["fbn1"] = fold_bn(jax.random.uniform(next(k), (128,), minval=0.5, maxval=1.5),
                        jax.random.normal(next(k), (128,)) * 0.1,
                        jax.random.normal(next(k), (128,)) * 0.1,
                        jax.random.uniform(next(k), (128,), minval=0.5, maxval=1.5))
    p["w2"] = jax.random.normal(next(k), (128, 128), jnp.float32) * 0.05
    p["b2"] = jax.random.normal(next(k), (1, 128), jnp.float32) * 0.05
    p["fbn2"] = fold_bn(jax.random.uniform(next(k), (128,), minval=0.5, maxval=1.5),
                        jax.random.normal(next(k), (128,)) * 0.1,
                        jax.random.normal(next(k), (128,)) * 0.1,
                        jax.random.uniform(next(k), (128,), minval=0.5, maxval=1.5))
    p["w3"] = jax.random.normal(next(k), (128, 3), jnp.float32) * 0.05
    p["b3"] = jax.random.normal(next(k), (1, 3), jnp.float32) * 0.05
    return p


def prepare_params(p, H, W):
    """One-time offline weight prep for the fused kernel:
      * conv weights reshaped to im2col GEMM matrices (conv1 K padded to 128),
      * first FC weight rows permuted from PyTorch NCHW-flatten order
        (c*H*W + y*W + x) to the kernel's NHWC order ((y*W + x)*C + c),
      * final FC padded from 3 to 128 output columns (sliced in-kernel),
      * all GEMM weights cast to bf16; bias / BN scale-shift stay f32 and are
        packed three-to-an-array to cut the number of tiny input DMAs."""
    C = CONV_C
    bf = jnp.bfloat16
    cin = p["w_c1"].shape[2]
    assert 25 * cin <= K1_PAD

    w1c = p["w_c1"].reshape(25 * cin, C)
    w1c = jnp.pad(w1c, ((0, K1_PAD - 25 * cin), (0, 0))).astype(bf)
    w2c = p["w_c2"].reshape(25 * C, C).astype(bf)

    n_hidden = p["w1"].shape[1]
    w1m = (p["w1"].reshape(C, H * W, n_hidden)      # rows were c*(H*W) + (y*W+x)
                  .transpose(1, 0, 2)               # -> ((y*W+x), c, j)
                  .reshape(H * W * C, n_hidden).astype(bf))
    w3m = jnp.pad(p["w3"], ((0, 0), (0, 128 - p["w3"].shape[1]))).astype(bf)
    b3m = jnp.pad(p["b3"], ((0, 0), (0, 128 - p["b3"].shape[1])))

    pack = lambda b, s, t: jnp.concatenate([b, s, t], axis=0)    # (3, C) f32
    return dict(
        w1c=w1c, c1e=pack(p["b_c1"], *p["bn1"]),
        w2c=w2c, c2e=pack(p["b_c2"], *p["bn2"]),
        w1m=w1m, f1e=pack(p["b1"], *p["fbn1"]),
        w2m=p["w2"].astype(bf), f2e=pack(p["b2"], *p["fbn2"]),
        w3m=w3m, b3m=b3m)


# ---------------------------------------------------------------------------
# Pure-JAX reference (same precision policy: bf16 GEMM operands, f32 accum)
# ---------------------------------------------------------------------------
def reference_forward(x_nchw, p):
    bf = lambda a: a.astype(jnp.bfloat16)
    x = jnp.transpose(x_nchw, (0, 2, 3, 1))

    def conv_block(h, w, b, scale, shift):
        y = lax.conv_general_dilated(
            bf(h), bf(w), window_strides=(1, 1), padding="SAME",
            dimension_numbers=("NHWC", "HWIO", "NHWC"),
            preferred_element_type=jnp.float32)
        y = jnp.maximum(y + b.reshape(1, 1, 1, -1), 0.0)
        return y * scale.reshape(1, 1, 1, -1) + shift.reshape(1, 1, 1, -1)

    f = conv_block(x, p["w_c1"], p["b_c1"], *p["bn1"])
    f = conv_block(f, p["w_c2"], p["b_c2"], *p["bn2"])
    # PyTorch flatten order: NHWC -> NCHW -> (N, C*H*W)
    f = jnp.transpose(f, (0, 3, 1, 2)).reshape(f.shape[0], -1)

    def dense(a, w):
        return jnp.dot(bf(a), bf(w), preferred_element_type=jnp.float32)

    h = jnp.maximum(dense(f, p["w1"]) + p["b1"], 0.0) * p["fbn1"][0] + p["fbn1"][1]
    h = jnp.maximum(dense(h, p["w2"]) + p["b2"], 0.0) * p["fbn2"][0] + p["fbn2"][1]
    return dense(h, p["w3"]) + p["b3"]


if __name__ == "__main__":
    # opt.d_branch = 2 -> in_channels = 4 ; spatial 8x8 -> opt.dim_fc = 64*8*8
    N, d_branch, H, W = 2, 2, 8, 8
    cin = d_branch * 2
    dim_fc = 64 * H * W

    key = jax.random.PRNGKey(0)
    kx, kp = jax.random.split(key)
    x = jax.random.normal(kx, (N, cin, H, W), jnp.float32)   # NCHW, like PyTorch
    params = make_params(kp, cin, dim_fc)
    prep = prepare_params(params, H, W)

    out = regression_fc_forward(x, prep)
    out = jax.block_until_ready(out)
    assert out.shape == (N, 3), out.shape

    ref = reference_forward(x, params)
    max_err = float(jnp.max(jnp.abs(out - ref)))
    assert jnp.allclose(out, ref, atol=2e-3, rtol=2e-3), max_err

    print("KERNEL_OK")
</pallas_src>

<mosaic_0001>
module attributes {stable_mosaic.version = 11 : i64} {
  func.func @_fused_kernel(%arg0: i32, %arg1: memref<128x128xf32, #tpu.memory_space<vmem>>, %arg2: memref<128x64xbf16, #tpu.memory_space<vmem>>, %arg3: memref<3x64xf32, #tpu.memory_space<vmem>>, %arg4: memref<1600x64xbf16, #tpu.memory_space<vmem>>, %arg5: memref<3x64xf32, #tpu.memory_space<vmem>>, %arg6: memref<4096x128xbf16, #tpu.memory_space<vmem>>, %arg7: memref<3x128xf32, #tpu.memory_space<vmem>>, %arg8: memref<128x128xbf16, #tpu.memory_space<vmem>>, %arg9: memref<3x128xf32, #tpu.memory_space<vmem>>, %arg10: memref<128x128xbf16, #tpu.memory_space<vmem>>, %arg11: memref<1x128xf32, #tpu.memory_space<vmem>>, %arg12: memref<2x3xf32, #tpu.memory_space<vmem>>, %arg13: memref<2x12x12x64xf32, #tpu.memory_space<vmem>>, %arg14: memref<128x1600xbf16, #tpu.memory_space<vmem>>, %arg15: memref<2x4096xf32, #tpu.memory_space<vmem>>) attributes {dimension_semantics = [#tpu.dimension_semantics<arbitrary>], iteration_bounds = array<i64: 1>, scalar_prefetch = 0 : i64, scratch_operands = 3 : i64, tpu.core_type = #tpu.core_type<tc>, window_params = [{pipeline_mode = #tpu.pipeline_mode<synchronous>, transform_indices = @transform_0, window_bounds = array<i64: 128, 128>}, {pipeline_mode = #tpu.pipeline_mode<synchronous>, transform_indices = @transform_1, window_bounds = array<i64: 128, 64>}, {pipeline_mode = #tpu.pipeline_mode<synchronous>, transform_indices = @transform_2, window_bounds = array<i64: 3, 64>}, {pipeline_mode = #tpu.pipeline_mode<synchronous>, transform_indices = @transform_3, window_bounds = array<i64: 1600, 64>}, {pipeline_mode = #tpu.pipeline_mode<synchronous>, transform_indices = @transform_4, window_bounds = array<i64: 3, 64>}, {pipeline_mode = #tpu.pipeline_mode<synchronous>, transform_indices = @transform_5, window_bounds = array<i64: 4096, 128>}, {pipeline_mode = #tpu.pipeline_mode<synchronous>, transform_indices = @transform_6, window_bounds = array<i64: 3, 128>}, {pipeline_mode = #tpu.pipeline_mode<synchronous>, transform_indices = @transform_7, window_bounds = array<i64: 128, 128>}, {pipeline_mode = #tpu.pipeline_mode<synchronous>, transform_indices = @transform_8, window_bounds = array<i64: 3, 128>}, {pipeline_mode = #tpu.pipeline_mode<synchronous>, transform_indices = @transform_9, window_bounds = array<i64: 128, 128>}, {pipeline_mode = #tpu.pipeline_mode<synchronous>, transform_indices = @transform_10, window_bounds = array<i64: 1, 128>}, {pipeline_mode = #tpu.pipeline_mode<synchronous>, transform_indices = @transform_11, window_bounds = array<i64: 2, 3>}]} {
    %c0 = arith.constant 0 : index
    %c0_0 = arith.constant 0 : index
    %0 = vector.load %arg1[%c0, %c0_0] : memref<128x128xf32, #tpu.memory_space<vmem>>, vector<128x128xf32>
    %1 = arith.truncf %0 : vector<128x128xf32> to vector<128x128xbf16>
    %c0_1 = arith.constant 0 : index
    %c0_2 = arith.constant 0 : index
    %2 = vector.load %arg2[%c0_1, %c0_2] : memref<128x64xbf16, #tpu.memory_space<vmem>>, vector<128x64xbf16>
    %cst = arith.constant dense<0.000000e+00> : vector<128x64xf32>
    %3 = tpu.matmul %1, %2, %cst {dimension_numbers = #tpu.dot_dimension_numbers<[1], [0], [0], [1], [0, 0, 1, 1], [], []>} : vector<128x128xbf16>, vector<128x64xbf16>, vector<128x64xf32> -> vector<128x64xf32>
    %c0_3 = arith.constant 0 : index
    %c0_4 = arith.constant 0 : index
    %4 = vector.load %arg3[%c0_3, %c0_4] : memref<3x64xf32, #tpu.memory_space<vmem>>, vector<1x64xf32>
    %c1 = arith.constant 1 : index
    %c0_5 = arith.constant 0 : index
    %5 = vector.load %arg3[%c1, %c0_5] : memref<3x64xf32, #tpu.memory_space<vmem>>, vector<1x64xf32>
    %c2 = arith.constant 2 : index
    %c0_6 = arith.constant 0 : index
    %6 = vector.load %arg3[%c2, %c0_6] : memref<3x64xf32, #tpu.memory_space<vmem>>, vector<1x64xf32>
    %7 = vector.broadcast %4 : vector<1x64xf32> to vector<128x64xf32>
    %8 = arith.addf %3, %7 : vector<128x64xf32>
    %cst_7 = arith.constant 0.000000e+00 : f32
    %9 = vector.broadcast %cst_7 : f32 to vector<128x64xf32>
    %10 = arith.maximumf %8, %9 : vector<128x64xf32>
    %11 = vector.broadcast %5 : vector<1x64xf32> to vector<128x64xf32>
    %12 = arith.mulf %10, %11 : vector<128x64xf32>
    %13 = vector.broadcast %6 : vector<1x64xf32> to vector<128x64xf32>
    %14 = arith.addf %12, %13 : vector<128x64xf32>
    %cst_8 = arith.constant 0.000000e+00 : f32
    %15 = vector.broadcast %cst_8 : f32 to vector<2x12x12x64xf32>
    %c0_9 = arith.constant 0 : index
    %c0_10 = arith.constant 0 : index
    %c0_11 = arith.constant 0 : index
    %c0_12 = arith.constant 0 : index
    %16 = vector.load %arg13[%c0_9, %c0_10, %c0_11, %c0_12] : memref<2x12x12x64xf32, #tpu.memory_space<vmem>>, vector<2x12x12x64xf32>
    tpu.vector_store %arg13[%c0_9, %c0_10, %c0_11, %c0_12], %15 {strides = array<i32>} : memref<2x12x12x64xf32, #tpu.memory_space<vmem>>, vector<2x12x12x64xf32>,
    %17 = vector.shape_cast %14 : vector<128x64xf32> to vector<2x8x8x64xf32>
    %c0_13 = arith.constant 0 : index
    %c2_14 = arith.constant 2 : index
    %c2_15 = arith.constant 2 : index
    %c0_16 = arith.constant 0 : index
    %18 = vector.load %arg13[%c0_13, %c2_14, %c2_15, %c0_16] : memref<2x12x12x64xf32, #tpu.memory_space<vmem>>, vector<2x8x8x64xf32>
    tpu.vector_store %arg13[%c0_13, %c2_14, %c2_15, %c0_16], %17 {strides = array<i32>} : memref<2x12x12x64xf32, #tpu.memory_space<vmem>>, vector<2x8x8x64xf32>,
    %c0_17 = arith.constant 0 : index
    %c0_18 = arith.constant 0 : index
    %c0_19 = arith.constant 0 : index
    %c0_20 = arith.constant 0 : index
    %19 = vector.load %arg13[%c0_17, %c0_18, %c0_19, %c0_20] : memref<2x12x12x64xf32, #tpu.memory_space<vmem>>, vector<2x8x8x64xf32>
    %20 = vector.shape_cast %19 : vector<2x8x8x64xf32> to vector<128x64xf32>
    %21 = arith.truncf %20 : vector<128x64xf32> to vector<128x64xbf16>
    %c0_21 = arith.constant 0 : index
    %c0_22 = arith.constant 0 : index
    %22 = vector.load %arg14[%c0_21, %c0_22] : memref<128x1600xbf16, #tpu.memory_space<vmem>>, vector<128x64xbf16>
    tpu.vector_store %arg14[%c0_21, %c0_22], %21 {strides = array<i32>} : memref<128x1600xbf16, #tpu.memory_space<vmem>>, vector<128x64xbf16>,
    %c0_23 = arith.constant 0 : index
    %c0_24 = arith.constant 0 : index
    %c1_25 = arith.constant 1 : index
    %c0_26 = arith.constant 0 : index
    %23 = vector.load %arg13[%c0_23, %c0_24, %c1_25, %c0_26] : memref<2x12x12x64xf32, #tpu.memory_space<vmem>>, vector<2x8x8x64xf32>
    %24 = vector.shape_cast %23 : vector<2x8x8x64xf32> to vector<128x64xf32>
    %25 = arith.truncf %24 : vector<128x64xf32> to vector<128x64xbf16>
    %c0_27 = arith.constant 0 : index
    %c64 = arith.constant 64 : index
    %26 = vector.load %arg14[%c0_27, %c64] : memref<128x1600xbf16, #tpu.memory_space<vmem>>, vector<128x64xbf16>
    tpu.vector_store %arg14[%c0_27, %c64], %25 {strides = array<i32>} : memref<128x1600xbf16, #tpu.memory_space<vmem>>, vector<128x64xbf16>,
    %c0_28 = arith.constant 0 : index
    %c0_29 = arith.constant 0 : index
    %c2_30 = arith.constant 2 : index
    %c0_31 = arith.constant 0 : index
    %27 = vector.load %arg13[%c0_28, %c0_29, %c2_30, %c0_31] : memref<2x12x12x64xf32, #tpu.memory_space<vmem>>, vector<2x8x8x64xf32>
    %28 = vector.shape_cast %27 : vector<2x8x8x64xf32> to vector<128x64xf32>
    %29 = arith.truncf %28 : vector<128x64xf32> to vector<128x64xbf16>
    %c0_32 = arith.constant 0 : index
    %c128 = arith.constant 128 : index
    %30 = vector.load %arg14[%c0_32, %c128] : memref<128x1600xbf16, #tpu.memory_space<vmem>>, vector<128x64xbf16>
    tpu.vector_store %arg14[%c0_32, %c128], %29 {strides = array<i32>} : memref<128x1600xbf16, #tpu.memory_space<vmem>>, vector<128x64xbf16>,
    %c0_33 = arith.constant 0 : index
    %c0_34 = arith.constant 0 : index
    %c3 = arith.constant 3 : index
    %c0_35 = arith.constant 0 : index
    %31 = vector.load %arg13[%c0_33, %c0_34, %c3, %c0_35] : memref<2x12x12x64xf32, #tpu.memory_space<vmem>>, vector<2x8x8x64xf32>
    %32 = vector.shape_cast %31 : vector<2x8x8x64xf32> to vector<128x64xf32>
    %33 = arith.truncf %32 : vector<128x64xf32> to vector<128x64xbf16>
    %c0_36 = arith.constant 0 : index
    %c192 = arith.constant 192 : index
    %34 = vector.load %arg14[%c0_36, %c192] : memref<128x1600xbf16, #tpu.memory_space<vmem>>, vector<128x64xbf16>
    tpu.vector_store %arg14[%c0_36, %c192], %33 {strides = array<i32>} : memref<128x1600xbf16, #tpu.memory_space<vmem>>, vector<128x64xbf16>,
    %c0_37 = arith.constant 0 : index
    %c0_38 = arith.constant 0 : index
    %c4 = arith.constant 4 : index
    %c0_39 = arith.constant 0 : index
    %35 = vector.load %arg13[%c0_37, %c0_38, %c4, %c0_39] : memref<2x12x12x64xf32, #tpu.memory_space<vmem>>, vector<2x8x8x64xf32>
    %36 = vector.shape_cast %35 : vector<2x8x8x64xf32> to vector<128x64xf32>
    %37 = arith.truncf %36 : vector<128x64xf32> to vector<128x64xbf16>
    %c0_40 = arith.constant 0 : index
    %c256 = arith.constant 256 : index
    %38 = vector.load %arg14[%c0_40, %c256] : memref<128x1600xbf16, #tpu.memory_space<vmem>>, vector<128x64xbf16>
    tpu.vector_store %arg14[%c0_40, %c256], %37 {strides = array<i32>} : memref<128x1600xbf16, #tpu.memory_space<vmem>>, vector<128x64xbf16>,
    %c0_41 = arith.constant 0 : index
    %c1_42 = arith.constant 1 : index
    %c0_43 = arith.constant 0 : index
    %c0_44 = arith.constant 0 : index
    %39 = vector.load %arg13[%c0_41, %c1_42, %c0_43, %c0_44] : memref<2x12x12x64xf32, #tpu.memory_space<vmem>>, vector<2x8x8x64xf32>
    %40 = vector.shape_cast %39 : vector<2x8x8x64xf32> to vector<128x64xf32>
    %41 = arith.truncf %40 : vector<128x64xf32> to vector<128x64xbf16>
    %c0_45 = arith.constant 0 : index
    %c320 = arith.constant 320 : index
    %42 = vector.load %arg14[%c0_45, %c320] : memref<128x1600xbf16, #tpu.memory_space<vmem>>, vector<128x64xbf16>
    tpu.vector_store %arg14[%c0_45, %c320], %41 {strides = array<i32>} : memref<128x1600xbf16, #tpu.memory_space<vmem>>, vector<128x64xbf16>,
    %c0_46 = arith.constant 0 : index
    %c1_47 = arith.constant 1 : index
    %c1_48 = arith.constant 1 : index
    %c0_49 = arith.constant 0 : index
    %43 = vector.load %arg13[%c0_46, %c1_47, %c1_48, %c0_49] : memref<2x12x12x64xf32, #tpu.memory_space<vmem>>, vector<2x8x8x64xf32>
    %44 = vector.shape_cast %43 : vector<2x8x8x64xf32> to vector<128x64xf32>
    %45 = arith.truncf %44 : vector<128x64xf32> to vector<128x64xbf16>
    %c0_50 = arith.constant 0 : index
    %c384 = arith.constant 384 : index
    %46 = vector.load %arg14[%c0_50, %c384] : memref<128x1600xbf16, #tpu.memory_space<vmem>>, vector<128x64xbf16>
    tpu.vector_store %arg14[%c0_50, %c384], %45 {strides = array<i32>} : memref<128x1600xbf16, #tpu.memory_space<vmem>>, vector<128x64xbf16>,
    %c0_51 = arith.constant 0 : index
    %c1_52 = arith.constant 1 : index
    %c2_53 = arith.constant 2 : index
    %c0_54 = arith.constant 0 : index
    %47 = vector.load %arg13[%c0_51, %c1_52, %c2_53, %c0_54] : memref<2x12x12x64xf32, #tpu.memory_space<vmem>>, vector<2x8x8x64xf32>
    %48 = vector.shape_cast %47 : vector<2x8x8x64xf32> to vector<128x64xf32>
    %49 = arith.truncf %48 : vector<128x64xf32> to vector<128x64xbf16>
    %c0_55 = arith.constant 0 : index
    %c448 = arith.constant 448 : index
    %50 = vector.load %arg14[%c0_55, %c448] : memref<128x1600xbf16, #tpu.memory_space<vmem>>, vector<128x64xbf16>
    tpu.vector_store %arg14[%c0_55, %c448], %49 {strides = array<i32>} : memref<128x1600xbf16, #tpu.memory_space<vmem>>, vector<128x64xbf16>,
    %c0_56 = arith.constant 0 : index
    %c1_57 = arith.constant 1 : index
    %c3_58 = arith.constant 3 : index
    %c0_59 = arith.constant 0 : index
    %51 = vector.load %arg13[%c0_56, %c1_57, %c3_58, %c0_59] : memref<2x12x12x64xf32, #tpu.memory_space<vmem>>, vector<2x8x8x64xf32>
    %52 = vector.shape_cast %51 : vector<2x8x8x64xf32> to vector<128x64xf32>
    %53 = arith.truncf %52 : vector<128x64xf32> to vector<128x64xbf16>
    %c0_60 = arith.constant 0 : index
    %c512 = arith.constant 512 : index
    %54 = vector.load %arg14[%c0_60, %c512] : memref<128x1600xbf16, #tpu.memory_space<vmem>>, vector<128x64xbf16>
    tpu.vector_store %arg14[%c0_60, %c512], %53 {strides = array<i32>} : memref<128x1600xbf16, #tpu.memory_space<vmem>>, vector<128x64xbf16>,
    %c0_61 = arith.constant 0 : index
    %c1_62 = arith.constant 1 : index
    %c4_63 = arith.constant 4 : index
    %c0_64 = arith.constant 0 : index
    %55 = vector.load %arg13[%c0_61, %c1_62, %c4_63, %c0_64] : memref<2x12x12x64xf32, #tpu.memory_space<vmem>>, vector<2x8x8x64xf32>
    %56 = vector.shape_cast %55 : vector<2x8x8x64xf32> to vector<128x64xf32>
    %57 = arith.truncf %56 : vector<128x64xf32> to vector<128x64xbf16>
    %c0_65 = arith.constant 0 : index
    %c576 = arith.constant 576 : index
    %58 = vector.load %arg14[%c0_65, %c576] : memref<128x1600xbf16, #tpu.memory_space<vmem>>, vector<128x64xbf16>
    tpu.vector_store %arg14[%c0_65, %c576], %57 {strides = array<i32>} : memref<128x1600xbf16, #tpu.memory_space<vmem>>, vector<128x64xbf16>,
    %c0_66 = arith.constant 0 : index
    %c2_67 = arith.constant 2 : index
    %c0_68 = arith.constant 0 : index
    %c0_69 = arith.constant 0 : index
    %59 = vector.load %arg13[%c0_66, %c2_67, %c0_68, %c0_69] : memref<2x12x12x64xf32, #tpu.memory_space<vmem>>, vector<2x8x8x64xf32>
    %60 = vector.shape_cast %59 : vector<2x8x8x64xf32> to vector<128x64xf32>
    %61 = arith.truncf %60 : vector<128x64xf32> to vector<128x64xbf16>
    %c0_70 = arith.constant 0 : index
    %c640 = arith.constant 640 : index
    %62 = vector.load %arg14[%c0_70, %c640] : memref<128x1600xbf16, #tpu.memory_space<vmem>>, vector<128x64xbf16>
    tpu.vector_store %arg14[%c0_70, %c640], %61 {strides = array<i32>} : memref<128x1600xbf16, #tpu.memory_space<vmem>>, vector<128x64xbf16>,
    %c0_71 = arith.constant 0 : index
    %c2_72 = arith.constant 2 : index
    %c1_73 = arith.constant 1 : index
    %c0_74 = arith.constant 0 : index
    %63 = vector.load %arg13[%c0_71, %c2_72, %c1_73, %c0_74] : memref<2x12x12x64xf32, #tpu.memory_space<vmem>>, vector<2x8x8x64xf32>
    %64 = vector.shape_cast %63 : vector<2x8x8x64xf32> to vector<128x64xf32>
    %65 = arith.truncf %64 : vector<128x64xf32> to vector<128x64xbf16>
    %c0_75 = arith.constant 0 : index
    %c704 = arith.constant 704 : index
    %66 = vector.load %arg14[%c0_75, %c704] : memref<128x1600xbf16, #tpu.memory_space<vmem>>, vector<128x64xbf16>
    tpu.vector_store %arg14[%c0_75, %c704], %65 {strides = array<i32>} : memref<128x1600xbf16, #tpu.memory_space<vmem>>, vector<128x64xbf16>,
    %c0_76 = arith.constant 0 : index
    %c2_77 = arith.constant 2 : index
    %c2_78 = arith.constant 2 : index
    %c0_79 = arith.constant 0 : index
    %67 = vector.load %arg13[%c0_76, %c2_77, %c2_78, %c0_79] : memref<2x12x12x64xf32, #tpu.memory_space<vmem>>, vector<2x8x8x64xf32>
    %68 = vector.shape_cast %67 : vector<2x8x8x64xf32> to vector<128x64xf32>
    %69 = arith.truncf %68 : vector<128x64xf32> to vector<128x64xbf16>
    %c0_80 = arith.constant 0 : index
    %c768 = arith.constant 768 : index
    %70 = vector.load %arg14[%c0_80, %c768] : memref<128x1600xbf16, #tpu.memory_space<vmem>>, vector<128x64xbf16>
    tpu.vector_store %arg14[%c0_80, %c768], %69 {strides = array<i32>} : memref<128x1600xbf16, #tpu.memory_space<vmem>>, vector<128x64xbf16>,
    %c0_81 = arith.constant 0 : index
    %c2_82 = arith.constant 2 : index
    %c3_83 = arith.constant 3 : index
    %c0_84 = arith.constant 0 : index
    %71 = vector.load %arg13[%c0_81, %c2_82, %c3_83, %c0_84] : memref<2x12x12x64xf32, #tpu.memory_space<vmem>>, vector<2x8x8x64xf32>
    %72 = vector.shape_cast %71 : vector<2x8x8x64xf32> to vector<128x64xf32>
    %73 = arith.truncf %72 : vector<128x64xf32> to vector<128x64xbf16>
    %c0_85 = arith.constant 0 : index
    %c832 = arith.constant 832 : index
    %74 = vector.load %arg14[%c0_85, %c832] : memref<128x1600xbf16, #tpu.memory_space<vmem>>, vector<128x64xbf16>
    tpu.vector_store %arg14[%c0_85, %c832], %73 {strides = array<i32>} : memref<128x1600xbf16, #tpu.memory_space<vmem>>, vector<128x64xbf16>,
    %c0_86 = arith.constant 0 : index
    %c2_87 = arith.constant 2 : index
    %c4_88 = arith.constant 4 : index
    %c0_89 = arith.constant 0 : index
    %75 = vector.load %arg13[%c0_86, %c2_87, %c4_88, %c0_89] : memref<2x12x12x64xf32, #tpu.memory_space<vmem>>, vector<2x8x8x64xf32>
    %76 = vector.shape_cast %75 : vector<2x8x8x64xf32> to vector<128x64xf32>
    %77 = arith.truncf %76 : vector<128x64xf32> to vector<128x64xbf16>
    %c0_90 = arith.constant 0 : index
    %c896 = arith.constant 896 : index
    %78 = vector.load %arg14[%c0_90, %c896] : memref<128x1600xbf16, #tpu.memory_space<vmem>>, vector<128x64xbf16>
    tpu.vector_store %arg14[%c0_90, %c896], %77 {strides = array<i32>} : memref<128x1600xbf16, #tpu.memory_space<vmem>>, vector<128x64xbf16>,
    %c0_91 = arith.constant 0 : index
    %c3_92 = arith.constant 3 : index
    %c0_93 = arith.constant 0 : index
    %c0_94 = arith.constant 0 : index
    %79 = vector.load %arg13[%c0_91, %c3_92, %c0_93, %c0_94] : memref<2x12x12x64xf32, #tpu.memory_space<vmem>>, vector<2x8x8x64xf32>
    %80 = vector.shape_cast %79 : vector<2x8x8x64xf32> to vector<128x64xf32>
    %81 = arith.truncf %80 : vector<128x64xf32> to vector<128x64xbf16>
    %c0_95 = arith.constant 0 : index
    %c960 = arith.constant 960 : index
    %82 = vector.load %arg14[%c0_95, %c960] : memref<128x1600xbf16, #tpu.memory_space<vmem>>, vector<128x64xbf16>
    tpu.vector_store %arg14[%c0_95, %c960], %81 {strides = array<i32>} : memref<128x1600xbf16, #tpu.memory_space<vmem>>, vector<128x64xbf16>,
    %c0_96 = arith.constant 0 : index
    %c3_97 = arith.constant 3 : index
    %c1_98 = arith.constant 1 : index
    %c0_99 = arith.constant 0 : index
    %83 = vector.load %arg13[%c0_96, %c3_97, %c1_98, %c0_99] : memref<2x12x12x64xf32, #tpu.memory_space<vmem>>, vector<2x8x8x64xf32>
    %84 = vector.shape_cast %83 : vector<2x8x8x64xf32> to vector<128x64xf32>
    %85 = arith.truncf %84 : vector<128x64xf32> to vector<128x64xbf16>
    %c0_100 = arith.constant 0 : index
    %c1024 = arith.constant 1024 : index
    %86 = vector.load %arg14[%c0_100, %c1024] : memref<128x1600xbf16, #tpu.memory_space<vmem>>, vector<128x64xbf16>
    tpu.vector_store %arg14[%c0_100, %c1024], %85 {strides = array<i32>} : memref<128x1600xbf16, #tpu.memory_space<vmem>>, vector<128x64xbf16>,
    %c0_101 = arith.constant 0 : index
    %c3_102 = arith.constant 3 : index
    %c2_103 = arith.constant 2 : index
    %c0_104 = arith.constant 0 : index
    %87 = vector.load %arg13[%c0_101, %c3_102, %c2_103, %c0_104] : memref<2x12x12x64xf32, #tpu.memory_space<vmem>>, vector<2x8x8x64xf32>
    %88 = vector.shape_cast %87 : vector<2x8x8x64xf32> to vector<128x64xf32>
    %89 = arith.truncf %88 : vector<128x64xf32> to vector<128x64xbf16>
    %c0_105 = arith.constant 0 : index
    %c1088 = arith.constant 1088 : index
    %90 = vector.load %arg14[%c0_105, %c1088] : memref<128x1600xbf16, #tpu.memory_space<vmem>>, vector<128x64xbf16>
    tpu.vector_store %arg14[%c0_105, %c1088], %89 {strides = array<i32>} : memref<128x1600xbf16, #tpu.memory_space<vmem>>, vector<128x64xbf16>,
    %c0_106 = arith.constant 0 : index
    %c3_107 = arith.constant 3 : index
    %c3_108 = arith.constant 3 : index
    %c0_109 = arith.constant 0 : index
    %91 = vector.load %arg13[%c0_106, %c3_107, %c3_108, %c0_109] : memref<2x12x12x64xf32, #tpu.memory_space<vmem>>, vector<2x8x8x64xf32>
    %92 = vector.shape_cast %91 : vector<2x8x8x64xf32> to vector<128x64xf32>
    %93 = arith.truncf %92 : vector<128x64xf32> to vector<128x64xbf16>
    %c0_110 = arith.constant 0 : index
    %c1152 = arith.constant 1152 : index
    %94 = vector.load %arg14[%c0_110, %c1152] : memref<128x1600xbf16, #tpu.memory_space<vmem>>, vector<128x64xbf16>
    tpu.vector_store %arg14[%c0_110, %c1152], %93 {strides = array<i32>} : memref<128x1600xbf16, #tpu.memory_space<vmem>>, vector<128x64xbf16>,
    %c0_111 = arith.constant 0 : index
    %c3_112 = arith.constant 3 : index
    %c4_113 = arith.constant 4 : index
    %c0_114 = arith.constant 0 : index
    %95 = vector.load %arg13[%c0_111, %c3_112, %c4_113, %c0_114] : memref<2x12x12x64xf32, #tpu.memory_space<vmem>>, vector<2x8x8x64xf32>
    %96 = vector.shape_cast %95 : vector<2x8x8x64xf32> to vector<128x64xf32>
    %97 = arith.truncf %96 : vector<128x64xf32> to vector<128x64xbf16>
    %c0_115 = arith.constant 0 : index
    %c1216 = arith.constant 1216 : index
    %98 = vector.load %arg14[%c0_115, %c1216] : memref<128x1600xbf16, #tpu.memory_space<vmem>>, vector<128x64xbf16>
    tpu.vector_store %arg14[%c0_115, %c1216], %97 {strides = array<i32>} : memref<128x1600xbf16, #tpu.memory_space<vmem>>, vector<128x64xbf16>,
    %c0_116 = arith.constant 0 : index
    %c4_117 = arith.constant 4 : index
    %c0_118 = arith.constant 0 : index
    %c0_119 = arith.constant 0 : index
    %99 = vector.load %arg13[%c0_116, %c4_117, %c0_118, %c0_119] : memref<2x12x12x64xf32, #tpu.memory_space<vmem>>, vector<2x8x8x64xf32>
    %100 = vector.shape_cast %99 : vector<2x8x8x64xf32> to vector<128x64xf32>
    %101 = arith.truncf %100 : vector<128x64xf32> to vector<128x64xbf16>
    %c0_120 = arith.constant 0 : index
    %c1280 = arith.constant 1280 : index
    %102 = vector.load %arg14[%c0_120, %c1280] : memref<128x1600xbf16, #tpu.memory_space<vmem>>, vector<128x64xbf16>
    tpu.vector_store %arg14[%c0_120, %c1280], %101 {strides = array<i32>} : memref<128x1600xbf16, #tpu.memory_space<vmem>>, vector<128x64xbf16>,
    %c0_121 = arith.constant 0 : index
    %c4_122 = arith.constant 4 : index
    %c1_123 = arith.constant 1 : index
    %c0_124 = arith.constant 0 : index
    %103 = vector.load %arg13[%c0_121, %c4_122, %c1_123, %c0_124] : memref<2x12x12x64xf32, #tpu.memory_space<vmem>>, vector<2x8x8x64xf32>
    %104 = vector.shape_cast %103 : vector<2x8x8x64xf32> to vector<128x64xf32>
    %105 = arith.truncf %104 : vector<128x64xf32> to vector<128x64xbf16>
    %c0_125 = arith.constant 0 : index
    %c1344 = arith.constant 1344 : index
    %106 = vector.load %arg14[%c0_125, %c1344] : memref<128x1600xbf16, #tpu.memory_space<vmem>>, vector<128x64xbf16>
    tpu.vector_store %arg14[%c0_125, %c1344], %105 {strides = array<i32>} : memref<128x1600xbf16, #tpu.memory_space<vmem>>, vector<128x64xbf16>,
    %c0_126 = arith.constant 0 : index
    %c4_127 = arith.constant 4 : index
    %c2_128 = arith.constant 2 : index
    %c0_129 = arith.constant 0 : index
    %107 = vector.load %arg13[%c0_126, %c4_127, %c2_128, %c0_129] : memref<2x12x12x64xf32, #tpu.memory_space<vmem>>, vector<2x8x8x64xf32>
    %108 = vector.shape_cast %107 : vector<2x8x8x64xf32> to vector<128x64xf32>
    %109 = arith.truncf %108 : vector<128x64xf32> to vector<128x64xbf16>
    %c0_130 = arith.constant 0 : index
    %c1408 = arith.constant 1408 : index
    %110 = vector.load %arg14[%c0_130, %c1408] : memref<128x1600xbf16, #tpu.memory_space<vmem>>, vector<128x64xbf16>
    tpu.vector_store %arg14[%c0_130, %c1408], %109 {strides = array<i32>} : memref<128x1600xbf16, #tpu.memory_space<vmem>>, vector<128x64xbf16>,
    %c0_131 = arith.constant 0 : index
    %c4_132 = arith.constant 4 : index
    %c3_133 = arith.constant 3 : index
    %c0_134 = arith.constant 0 : index
    %111 = vector.load %arg13[%c0_131, %c4_132, %c3_133, %c0_134] : memref<2x12x12x64xf32, #tpu.memory_space<vmem>>, vector<2x8x8x64xf32>
    %112 = vector.shape_cast %111 : vector<2x8x8x64xf32> to vector<128x64xf32>
    %113 = arith.truncf %112 : vector<128x64xf32> to vector<128x64xbf16>
    %c0_135 = arith.constant 0 : index
    %c1472 = arith.constant 1472 : index
    %114 = vector.load %arg14[%c0_135, %c1472] : memref<128x1600xbf16, #tpu.memory_space<vmem>>, vector<128x64xbf16>
    tpu.vector_store %arg14[%c0_135, %c1472], %113 {strides = array<i32>} : memref<128x1600xbf16, #tpu.memory_space<vmem>>, vector<128x64xbf16>,
    %c0_136 = arith.constant 0 : index
    %c4_137 = arith.constant 4 : index
    %c4_138 = arith.constant 4 : index
    %c0_139 = arith.constant 0 : index
    %115 = vector.load %arg13[%c0_136, %c4_137, %c4_138, %c0_139] : memref<2x12x12x64xf32, #tpu.memory_space<vmem>>, vector<2x8x8x64xf32>
    %116 = vector.shape_cast %115 : vector<2x8x8x64xf32> to vector<128x64xf32>
    %117 = arith.truncf %116 : vector<128x64xf32> to vector<128x64xbf16>
    %c0_140 = arith.constant 0 : index
    %c1536 = arith.constant 1536 : index
    %118 = vector.load %arg14[%c0_140, %c1536] : memref<128x1600xbf16, #tpu.memory_space<vmem>>, vector<128x64xbf16>
    tpu.vector_store %arg14[%c0_140, %c1536], %117 {strides = array<i32>} : memref<128x1600xbf16, #tpu.memory_space<vmem>>, vector<128x64xbf16>,
    %c0_141 = arith.constant 0 : index
    %c0_142 = arith.constant 0 : index
    %119 = vector.load %arg14[%c0_141, %c0_142] : memref<128x1600xbf16, #tpu.memory_space<vmem>>, vector<128x1600xbf16>
    %c0_143 = arith.constant 0 : index
    %c0_144 = arith.constant 0 : index
    %120 = vector.load %arg4[%c0_143, %c0_144] : memref<1600x64xbf16, #tpu.memory_space<vmem>>, vector<1600x64xbf16>
    %cst_145 = arith.constant dense<0.000000e+00> : vector<128x64xf32>
    %121 = tpu.matmul %119, %120, %cst_145 {dimension_numbers = #tpu.dot_dimension_numbers<[1], [0], [0], [1], [0, 0, 1, 1], [], []>} : vector<128x1600xbf16>, vector<1600x64xbf16>, vector<128x64xf32> -> vector<128x64xf32>
    %c0_146 = arith.constant 0 : index
    %c0_147 = arith.constant 0 : index
    %122 = vector.load %arg5[%c0_146, %c0_147] : memref<3x64xf32, #tpu.memory_space<vmem>>, vector<1x64xf32>
    %c1_148 = arith.constant 1 : index
    %c0_149 = arith.constant 0 : index
    %123 = vector.load %arg5[%c1_148, %c0_149] : memref<3x64xf32, #tpu.memory_space<vmem>>, vector<1x64xf32>
    %c2_150 = arith.constant 2 : index
    %c0_151 = arith.constant 0 : index
    %124 = vector.load %arg5[%c2_150, %c0_151] : memref<3x64xf32, #tpu.memory_space<vmem>>, vector<1x64xf32>
    %125 = vector.broadcast %122 : vector<1x64xf32> to vector<128x64xf32>
    %126 = arith.addf %121, %125 : vector<128x64xf32>
    %cst_152 = arith.constant 0.000000e+00 : f32
    %127 = vector.broadcast %cst_152 : f32 to vector<128x64xf32>
    %128 = arith.maximumf %126, %127 : vector<128x64xf32>
    %129 = vector.broadcast %123 : vector<1x64xf32> to vector<128x64xf32>
    %130 = arith.mulf %128, %129 : vector<128x64xf32>
    %131 = vector.broadcast %124 : vector<1x64xf32> to vector<128x64xf32>
    %132 = arith.addf %130, %131 : vector<128x64xf32>
    %133 = vector.extract_strided_slice %132 {offsets = [0, 0], sizes = [1, 64], strides = [1, 1]} : vector<128x64xf32> to vector<1x64xf32>
    %c0_153 = arith.constant 0 : index
    %c0_154 = arith.constant 0 : index
    %134 = vector.load %arg15[%c0_153, %c0_154] : memref<2x4096xf32, #tpu.memory_space<vmem>>, vector<1x64xf32>
    tpu.vector_store %arg15[%c0_153, %c0_154], %133 {strides = array<i32>} : memref<2x4096xf32, #tpu.memory_space<vmem>>, vector<1x64xf32>,
    %135 = vector.extract_strided_slice %132 {offsets = [1, 0], sizes = [1, 64], strides = [1, 1]} : vector<128x64xf32> to vector<1x64xf32>
    %c0_155 = arith.constant 0 : index
    %c64_156 = arith.constant 64 : index
    %136 = vector.load %arg15[%c0_155, %c64_156] : memref<2x4096xf32, #tpu.memory_space<vmem>>, vector<1x64xf32>
    tpu.vector_store %arg15[%c0_155, %c64_156], %135 {strides = array<i32>} : memref<2x4096xf32, #tpu.memory_space<vmem>>, vector<1x64xf32>,
    %137 = vector.extract_strided_slice %132 {offsets = [2, 0], sizes = [1, 64], strides = [1, 1]} : vector<128x64xf32> to vector<1x64xf32>
    %c0_157 = arith.constant 0 : index
    %c128_158 = arith.constant 128 : index
    %138 = vector.load %arg15[%c0_157, %c128_158] : memref<2x4096xf32, #tpu.memory_space<vmem>>, vector<1x64xf32>
    tpu.vector_store %arg15[%c0_157, %c128_158], %137 {strides = array<i32>} : memref<2x4096xf32, #tpu.memory_space<vmem>>, vector<1x64xf32>,
    %139 = vector.extract_strided_slice %132 {offsets = [3, 0], sizes = [1, 64], strides = [1, 1]} : vector<128x64xf32> to vector<1x64xf32>
    %c0_159 = arith.constant 0 : index
    %c192_160 = arith.constant 192 : index
    %140 = vector.load %arg15[%c0_159, %c192_160] : memref<2x4096xf32, #tpu.memory_space<vmem>>, vector<1x64xf32>
    tpu.vector_store %arg15[%c0_159, %c192_160], %139 {strides = array<i32>} : memref<2x4096xf32, #tpu.memory_space<vmem>>, vector<1x64xf32>,
    %141 = vector.extract_strided_slice %132 {offsets = [4, 0], sizes = [1, 64], strides = [1, 1]} : vector<128x64xf32> to vector<1x64xf32>
    %c0_161 = arith.constant 0 : index
    %c256_162 = arith.constant 256 : index
    %142 = vector.load %arg15[%c0_161, %c256_162] : memref<2x4096xf32, #tpu.memory_space<vmem>>, vector<1x64xf32>
    tpu.vector_store %arg15[%c0_161, %c256_162], %141 {strides = array<i32>} : memref<2x4096xf32, #tpu.memory_space<vmem>>, vector<1x64xf32>,
    %143 = vector.extract_strided_slice %132 {offsets = [5, 0], sizes = [1, 64], strides = [1, 1]} : vector<128x64xf32> to vector<1x64xf32>
    %c0_163 = arith.constant 0 : index
    %c320_164 = arith.constant 320 : index
    %144 = vector.load %arg15[%c0_163, %c320_164] : memref<2x4096xf32, #tpu.memory_space<vmem>>, vector<1x64xf32>
    tpu.vector_store %arg15[%c0_163, %c320_164], %143 {strides = array<i32>} : memref<2x4096xf32, #tpu.memory_space<vmem>>, vector<1x64xf32>,
    %145 = vector.extract_strided_slice %132 {offsets = [6, 0], sizes = [1, 64], strides = [1, 1]} : vector<128x64xf32> to vector<1x64xf32>
    %c0_165 = arith.constant 0 : index
    %c384_166 = arith.constant 384 : index
    %146 = vector.load %arg15[%c0_165, %c384_166] : memref<2x4096xf32, #tpu.memory_space<vmem>>, vector<1x64xf32>
    tpu.vector_store %arg15[%c0_165, %c384_166], %145 {strides = array<i32>} : memref<2x4096xf32, #tpu.memory_space<vmem>>, vector<1x64xf32>,
    %147 = vector.extract_strided_slice %132 {offsets = [7, 0], sizes = [1, 64], strides = [1, 1]} : vector<128x64xf32> to vector<1x64xf32>
    %c0_167 = arith.constant 0 : index
    %c448_168 = arith.constant 448 : index
    %148 = vector.load %arg15[%c0_167, %c448_168] : memref<2x4096xf32, #tpu.memory_space<vmem>>, vector<1x64xf32>
    tpu.vector_store %arg15[%c0_167, %c448_168], %147 {strides = array<i32>} : memref<2x4096xf32, #tpu.memory_space<vmem>>, vector<1x64xf32>,
    %149 = vector.extract_strided_slice %132 {offsets = [8, 0], sizes = [1, 64], strides = [1, 1]} : vector<128x64xf32> to vector<1x64xf32>
    %c0_169 = arith.constant 0 : index
    %c512_170 = arith.constant 512 : index
    %150 = vector.load %arg15[%c0_169, %c512_170] : memref<2x4096xf32, #tpu.memory_space<vmem>>, vector<1x64xf32>
    tpu.vector_store %arg15[%c0_169, %c512_170], %149 {strides = array<i32>} : memref<2x4096xf32, #tpu.memory_space<vmem>>, vector<1x64xf32>,
    %151 = vector.extract_strided_slice %132 {offsets = [9, 0], sizes = [1, 64], strides = [1, 1]} : vector<128x64xf32> to vector<1x64xf32>
    %c0_171 = arith.constant 0 : index
    %c576_172 = arith.constant 576 : index
    %152 = vector.load %arg15[%c0_171, %c576_172] : memref<2x4096xf32, #tpu.memory_space<vmem>>, vector<1x64xf32>
    tpu.vector_store %arg15[%c0_171, %c576_172], %151 {strides = array<i32>} : memref<2x4096xf32, #tpu.memory_space<vmem>>, vector<1x64xf32>,
    %153 = vector.extract_strided_slice %132 {offsets = [10, 0], sizes = [1, 64], strides = [1, 1]} : vector<128x64xf32> to vector<1x64xf32>
    %c0_173 = arith.constant 0 : index
    %c640_174 = arith.constant 640 : index
    %154 = vector.load %arg15[%c0_173, %c640_174] : memref<2x4096xf32, #tpu.memory_space<vmem>>, vector<1x64xf32>
    tpu.vector_store %arg15[%c0_173, %c640_174], %153 {strides = array<i32>} : memref<2x4096xf32, #tpu.memory_space<vmem>>, vector<1x64xf32>,
    %155 = vector.extract_strided_slice %132 {offsets = [11, 0], sizes = [1, 64], strides = [1, 1]} : vector<128x64xf32> to vector<1x64xf32>
    %c0_175 = arith.constant 0 : index
    %c704_176 = arith.constant 704 : index
    %156 = vector.load %arg15[%c0_175, %c704_176] : memref<2x4096xf32, #tpu.memory_space<vmem>>, vector<1x64xf32>
    tpu.vector_store %arg15[%c0_175, %c704_176], %155 {strides = array<i32>} : memref<2x4096xf32, #tpu.memory_space<vmem>>, vector<1x64xf32>,
    %157 = vector.extract_strided_slice %132 {offsets = [12, 0], sizes = [1, 64], strides = [1, 1]} : vector<128x64xf32> to vector<1x64xf32>
    %c0_177 = arith.constant 0 : index
    %c768_178 = arith.constant 768 : index
    %158 = vector.load %arg15[%c0_177, %c768_178] : memref<2x4096xf32, #tpu.memory_space<vmem>>, vector<1x64xf32>
    tpu.vector_store %arg15[%c0_177, %c768_178], %157 {strides = array<i32>} : memref<2x4096xf32, #tpu.memory_space<vmem>>, vector<1x64xf32>,
    %159 = vector.extract_strided_slice %132 {offsets = [13, 0], sizes = [1, 64], strides = [1, 1]} : vector<128x64xf32> to vector<1x64xf32>
    %c0_179 = arith.constant 0 : index
    %c832_180 = arith.constant 832 : index
    %160 = vector.load %arg15[%c0_179, %c832_180] : memref<2x4096xf32, #tpu.memory_space<vmem>>, vector<1x64xf32>
    tpu.vector_store %arg15[%c0_179, %c832_180], %159 {strides = array<i32>} : memref<2x4096xf32, #tpu.memory_space<vmem>>, vector<1x64xf32>,
    %161 = vector.extract_strided_slice %132 {offsets = [14, 0], sizes = [1, 64], strides = [1, 1]} : vector<128x64xf32> to vector<1x64xf32>
    %c0_181 = arith.constant 0 : index
    %c896_182 = arith.constant 896 : index
    %162 = vector.load %arg15[%c0_181, %c896_182] : memref<2x4096xf32, #tpu.memory_space<vmem>>, vector<1x64xf32>
    tpu.vector_store %arg15[%c0_181, %c896_182], %161 {strides = array<i32>} : memref<2x4096xf32, #tpu.memory_space<vmem>>, vector<1x64xf32>,
    %163 = vector.extract_strided_slice %132 {offsets = [15, 0], sizes = [1, 64], strides = [1, 1]} : vector<128x64xf32> to vector<1x64xf32>
    %c0_183 = arith.constant 0 : index
    %c960_184 = arith.constant 960 : index
    %164 = vector.load %arg15[%c0_183, %c960_184] : memref<2x4096xf32, #tpu.memory_space<vmem>>, vector<1x64xf32>
    tpu.vector_store %arg15[%c0_183, %c960_184], %163 {strides = array<i32>} : memref<2x4096xf32, #tpu.memory_space<vmem>>, vector<1x64xf32>,
    %165 = vector.extract_strided_slice %132 {offsets = [16, 0], sizes = [1, 64], strides = [1, 1]} : vector<128x64xf32> to vector<1x64xf32>
    %c0_185 = arith.constant 0 : index
    %c1024_186 = arith.constant 1024 : index
    %166 = vector.load %arg15[%c0_185, %c1024_186] : memref<2x4096xf32, #tpu.memory_space<vmem>>, vector<1x64xf32>
    tpu.vector_store %arg15[%c0_185, %c1024_186], %165 {strides = array<i32>} : memref<2x4096xf32, #tpu.memory_space<vmem>>, vector<1x64xf32>,
    %167 = vector.extract_strided_slice %132 {offsets = [17, 0], sizes = [1, 64], strides = [1, 1]} : vector<128x64xf32> to vector<1x64xf32>
    %c0_187 = arith.constant 0 : index
    %c1088_188 = arith.constant 1088 : index
    %168 = vector.load %arg15[%c0_187, %c1088_188] : memref<2x4096xf32, #tpu.memory_space<vmem>>, vector<1x64xf32>
    tpu.vector_store %arg15[%c0_187, %c1088_188], %167 {strides = array<i32>} : memref<2x4096xf32, #tpu.memory_space<vmem>>, vector<1x64xf32>,
    %169 = vector.extract_strided_slice %132 {offsets = [18, 0], sizes = [1, 64], strides = [1, 1]} : vector<128x64xf32> to vector<1x64xf32>
    %c0_189 = arith.constant 0 : index
    %c1152_190 = arith.constant 1152 : index
    %170 = vector.load %arg15[%c0_189, %c1152_190] : memref<2x4096xf32, #tpu.memory_space<vmem>>, vector<1x64xf32>
    tpu.vector_store %arg15[%c0_189, %c1152_190], %169 {strides = array<i32>} : memref<2x4096xf32, #tpu.memory_space<vmem>>, vector<1x64xf32>,
    %171 = vector.extract_strided_slice %132 {offsets = [19, 0], sizes = [1, 64], strides = [1, 1]} : vector<128x64xf32> to vector<1x64xf32>
    %c0_191 = arith.constant 0 : index
    %c1216_192 = arith.constant 1216 : index
    %172 = vector.load %arg15[%c0_191, %c1216_192] : memref<2x4096xf32, #tpu.memory_space<vmem>>, vector<1x64xf32>
    tpu.vector_store %arg15[%c0_191, %c1216_192], %171 {strides = array<i32>} : memref<2x4096xf32, #tpu.memory_space<vmem>>, vector<1x64xf32>,
    %173 = vector.extract_strided_slice %132 {offsets = [20, 0], sizes = [1, 64], strides = [1, 1]} : vector<128x64xf32> to vector<1x64xf32>
    %c0_193 = arith.constant 0 : index
    %c1280_194 = arith.constant 1280 : index
    %174 = vector.load %arg15[%c0_193, %c1280_194] : memref<2x4096xf32, #tpu.memory_space<vmem>>, vector<1x64xf32>
    tpu.vector_store %arg15[%c0_193, %c1280_194], %173 {strides = array<i32>} : memref<2x4096xf32, #tpu.memory_space<vmem>>, vector<1x64xf32>,
    %175 = vector.extract_strided_slice %132 {offsets = [21, 0], sizes = [1, 64], strides = [1, 1]} : vector<128x64xf32> to vector<1x64xf32>
    %c0_195 = arith.constant 0 : index
    %c1344_196 = arith.constant 1344 : index
    %176 = vector.load %arg15[%c0_195, %c1344_196] : memref<2x4096xf32, #tpu.memory_space<vmem>>, vector<1x64xf32>
    tpu.vector_store %arg15[%c0_195, %c1344_196], %175 {strides = array<i32>} : memref<2x4096xf32, #tpu.memory_space<vmem>>, vector<1x64xf32>,
    %177 = vector.extract_strided_slice %132 {offsets = [22, 0], sizes = [1, 64], strides = [1, 1]} : vector<128x64xf32> to vector<1x64xf32>
    %c0_197 = arith.constant 0 : index
    %c1408_198 = arith.constant 1408 : index
    %178 = vector.load %arg15[%c0_197, %c1408_198] : memref<2x4096xf32, #tpu.memory_space<vmem>>, vector<1x64xf32>
    tpu.vector_store %arg15[%c0_197, %c1408_198], %177 {strides = array<i32>} : memref<2x4096xf32, #tpu.memory_space<vmem>>, vector<1x64xf32>,
    %179 = vector.extract_strided_slice %132 {offsets = [23, 0], sizes = [1, 64], strides = [1, 1]} : vector<128x64xf32> to vector<1x64xf32>
    %c0_199 = arith.constant 0 : index
    %c1472_200 = arith.constant 1472 : index
    %180 = vector.load %arg15[%c0_199, %c1472_200] : memref<2x4096xf32, #tpu.memory_space<vmem>>, vector<1x64xf32>
    tpu.vector_store %arg15[%c0_199, %c1472_200], %179 {strides = array<i32>} : memref<2x4096xf32, #tpu.memory_space<vmem>>, vector<1x64xf32>,
    %181 = vector.extract_strided_slice %132 {offsets = [24, 0], sizes = [1, 64], strides = [1, 1]} : vector<128x64xf32> to vector<1x64xf32>
    %c0_201 = arith.constant 0 : index
    %c1536_202 = arith.constant 1536 : index
    %182 = vector.load %arg15[%c0_201, %c1536_202] : memref<2x4096xf32, #tpu.memory_space<vmem>>, vector<1x64xf32>
    tpu.vector_store %arg15[%c0_201, %c1536_202], %181 {strides = array<i32>} : memref<2x4096xf32, #tpu.memory_space<vmem>>, vector<1x64xf32>,
    %183 = vector.extract_strided_slice %132 {offsets = [25, 0], sizes = [1, 64], strides = [1, 1]} : vector<128x64xf32> to vector<1x64xf32>
    %c0_203 = arith.constant 0 : index
    %c1600 = arith.constant 1600 : index
    %184 = vector.load %arg15[%c0_203, %c1600] : memref<2x4096xf32, #tpu.memory_space<vmem>>, vector<1x64xf32>
    tpu.vector_store %arg15[%c0_203, %c1600], %183 {strides = array<i32>} : memref<2x4096xf32, #tpu.memory_space<vmem>>, vector<1x64xf32>,
    %185 = vector.extract_strided_slice %132 {offsets = [26, 0], sizes = [1, 64], strides = [1, 1]} : vector<128x64xf32> to vector<1x64xf32>
    %c0_204 = arith.constant 0 : index
    %c1664 = arith.constant 1664 : index
    %186 = vector.load %arg15[%c0_204, %c1664] : memref<2x4096xf32, #tpu.memory_space<vmem>>, vector<1x64xf32>
    tpu.vector_store %arg15[%c0_204, %c1664], %185 {strides = array<i32>} : memref<2x4096xf32, #tpu.memory_space<vmem>>, vector<1x64xf32>,
    %187 = vector.extract_strided_slice %132 {offsets = [27, 0], sizes = [1, 64], strides = [1, 1]} : vector<128x64xf32> to vector<1x64xf32>
    %c0_205 = arith.constant 0 : index
    %c1728 = arith.constant 1728 : index
    %188 = vector.load %arg15[%c0_205, %c1728] : memref<2x4096xf32, #tpu.memory_space<vmem>>, vector<1x64xf32>
    tpu.vector_store %arg15[%c0_205, %c1728], %187 {strides = array<i32>} : memref<2x4096xf32, #tpu.memory_space<vmem>>, vector<1x64xf32>,
    %189 = vector.extract_strided_slice %132 {offsets = [28, 0], sizes = [1, 64], strides = [1, 1]} : vector<128x64xf32> to vector<1x64xf32>
    %c0_206 = arith.constant 0 : index
    %c1792 = arith.constant 1792 : index
    %190 = vector.load %arg15[%c0_206, %c1792] : memref<2x4096xf32, #tpu.memory_space<vmem>>, vector<1x64xf32>
    tpu.vector_store %arg15[%c0_206, %c1792], %189 {strides = array<i32>} : memref<2x4096xf32, #tpu.memory_space<vmem>>, vector<1x64xf32>,
    %191 = vector.extract_strided_slice %132 {offsets = [29, 0], sizes = [1, 64], strides = [1, 1]} : vector<128x64xf32> to vector<1x64xf32>
    %c0_207 = arith.constant 0 : index
    %c1856 = arith.constant 1856 : index
    %192 = vector.load %arg15[%c0_207, %c1856] : memref<2x4096xf32, #tpu.memory_space<vmem>>, vector<1x64xf32>
    tpu.vector_store %arg15[%c0_207, %c1856], %191 {strides = array<i32>} : memref<2x4096xf32, #tpu.memory_space<vmem>>, vector<1x64xf32>,
    %193 = vector.extract_strided_slice %132 {offsets = [30, 0], sizes = [1, 64], strides = [1, 1]} : vector<128x64xf32> to vector<1x64xf32>
    %c0_208 = arith.constant 0 : index
    %c1920 = arith.constant 1920 : index
    %194 = vector.load %arg15[%c0_208, %c1920] : memref<2x4096xf32, #tpu.memory_space<vmem>>, vector<1x64xf32>
    tpu.vector_store %arg15[%c0_208, %c1920], %193 {strides = array<i32>} : memref<2x4096xf32, #tpu.memory_space<vmem>>, vector<1x64xf32>,
    %195 = vector.extract_strided_slice %132 {offsets = [31, 0], sizes = [1, 64], strides = [1, 1]} : vector<128x64xf32> to vector<1x64xf32>
    %c0_209 = arith.constant 0 : index
    %c1984 = arith.constant 1984 : index
    %196 = vector.load %arg15[%c0_209, %c1984] : memref<2x4096xf32, #tpu.memory_space<vmem>>, vector<1x64xf32>
    tpu.vector_store %arg15[%c0_209, %c1984], %195 {strides = array<i32>} : memref<2x4096xf32, #tpu.memory_space<vmem>>, vector<1x64xf32>,
    %197 = vector.extract_strided_slice %132 {offsets = [32, 0], sizes = [1, 64], strides = [1, 1]} : vector<128x64xf32> to vector<1x64xf32>
    %c0_210 = arith.constant 0 : index
    %c2048 = arith.constant 2048 : index
    %198 = vector.load %arg15[%c0_210, %c2048] : memref<2x4096xf32, #tpu.memory_space<vmem>>, vector<1x64xf32>
    tpu.vector_store %arg15[%c0_210, %c2048], %197 {strides = array<i32>} : memref<2x4096xf32, #tpu.memory_space<vmem>>, vector<1x64xf32>,
    %199 = vector.extract_strided_slice %132 {offsets = [33, 0], sizes = [1, 64], strides = [1, 1]} : vector<128x64xf32> to vector<1x64xf32>
    %c0_211 = arith.constant 0 : index
    %c2112 = arith.constant 2112 : index
    %200 = vector.load %arg15[%c0_211, %c2112] : memref<2x4096xf32, #tpu.memory_space<vmem>>, vector<1x64xf32>
    tpu.vector_store %arg15[%c0_211, %c2112], %199 {strides = array<i32>} : memref<2x4096xf32, #tpu.memory_space<vmem>>, vector<1x64xf32>,
    %201 = vector.extract_strided_slice %132 {offsets = [34, 0], sizes = [1, 64], strides = [1, 1]} : vector<128x64xf32> to vector<1x64xf32>
    %c0_212 = arith.constant 0 : index
    %c2176 = arith.constant 2176 : index
    %202 = vector.load %arg15[%c0_212, %c2176] : memref<2x4096xf32, #tpu.memory_space<vmem>>, vector<1x64xf32>
    tpu.vector_store %arg15[%c0_212, %c2176], %201 {strides = array<i32>} : memref<2x4096xf32, #tpu.memory_space<vmem>>, vector<1x64xf32>,
    %203 = vector.extract_strided_slice %132 {offsets = [35, 0], sizes = [1, 64], strides = [1, 1]} : vector<128x64xf32> to vector<1x64xf32>
    %c0_213 = arith.constant 0 : index
    %c2240 = arith.constant 2240 : index
    %204 = vector.load %arg15[%c0_213, %c2240] : memref<2x4096xf32, #tpu.memory_space<vmem>>, vector<1x64xf32>
    tpu.vector_store %arg15[%c0_213, %c2240], %203 {strides = array<i32>} : memref<2x4096xf32, #tpu.memory_space<vmem>>, vector<1x64xf32>,
    %205 = vector.extract_strided_slice %132 {offsets = [36, 0], sizes = [1, 64], strides = [1, 1]} : vector<128x64xf32> to vector<1x64xf32>
    %c0_214 = arith.constant 0 : index
    %c2304 = arith.constant 2304 : index
    %206 = vector.load %arg15[%c0_214, %c2304] : memref<2x4096xf32, #tpu.memory_space<vmem>>, vector<1x64xf32>
    tpu.vector_store %arg15[%c0_214, %c2304], %205 {strides = array<i32>} : memref<2x4096xf32, #tpu.memory_space<vmem>>, vector<1x64xf32>,
    %207 = vector.extract_strided_slice %132 {offsets = [37, 0], sizes = [1, 64], strides = [1, 1]} : vector<128x64xf32> to vector<1x64xf32>
    %c0_215 = arith.constant 0 : index
    %c2368 = arith.constant 2368 : index
    %208 = vector.load %arg15[%c0_215, %c2368] : memref<2x4096xf32, #tpu.memory_space<vmem>>, vector<1x64xf32>
    tpu.vector_store %arg15[%c0_215, %c2368], %207 {strides = array<i32>} : memref<2x4096xf32, #tpu.memory_space<vmem>>, vector<1x64xf32>,
    %209 = vector.extract_strided_slice %132 {offsets = [38, 0], sizes = [1, 64], strides = [1, 1]} : vector<128x64xf32> to vector<1x64xf32>
    %c0_216 = arith.constant 0 : index
    %c2432 = arith.constant 2432 : index
    %210 = vector.load %arg15[%c0_216, %c2432] : memref<2x4096xf32, #tpu.memory_space<vmem>>, vector<1x64xf32>
    tpu.vector_store %arg15[%c0_216, %c2432], %209 {strides = array<i32>} : memref<2x4096xf32, #tpu.memory_space<vmem>>, vector<1x64xf32>,
    %211 = vector.extract_strided_slice %132 {offsets = [39, 0], sizes = [1, 64], strides = [1, 1]} : vector<128x64xf32> to vector<1x64xf32>
    %c0_217 = arith.constant 0 : index
    %c2496 = arith.constant 2496 : index
    %212 = vector.load %arg15[%c0_217, %c2496] : memref<2x4096xf32, #tpu.memory_space<vmem>>, vector<1x64xf32>
    tpu.vector_store %arg15[%c0_217, %c2496], %211 {strides = array<i32>} : memref<2x4096xf32, #tpu.memory_space<vmem>>, vector<1x64xf32>,
    %213 = vector.extract_strided_slice %132 {offsets = [40, 0], sizes = [1, 64], strides = [1, 1]} : vector<128x64xf32> to vector<1x64xf32>
    %c0_218 = arith.constant 0 : index
    %c2560 = arith.constant 2560 : index
    %214 = vector.load %arg15[%c0_218, %c2560] : memref<2x4096xf32, #tpu.memory_space<vmem>>, vector<1x64xf32>
    tpu.vector_store %arg15[%c0_218, %c2560], %213 {strides = array<i32>} : memref<2x4096xf32, #tpu.memory_space<vmem>>, vector<1x64xf32>,
    %215 = vector.extract_strided_slice %132 {offsets = [41, 0], sizes = [1, 64], strides = [1, 1]} : vector<128x64xf32> to vector<1x64xf32>
    %c0_219 = arith.constant 0 : index
    %c2624 = arith.constant 2624 : index
    %216 = vector.load %arg15[%c0_219, %c2624] : memref<2x4096xf32, #tpu.memory_space<vmem>>, vector<1x64xf32>
    tpu.vector_store %arg15[%c0_219, %c2624], %215 {strides = array<i32>} : memref<2x4096xf32, #tpu.memory_space<vmem>>, vector<1x64xf32>,
    %217 = vector.extract_strided_slice %132 {offsets = [42, 0], sizes = [1, 64], strides = [1, 1]} : vector<128x64xf32> to vector<1x64xf32>
    %c0_220 = arith.constant 0 : index
    %c2688 = arith.constant 2688 : index
    %218 = vector.load %arg15[%c0_220, %c2688] : memref<2x4096xf32, #tpu.memory_space<vmem>>, vector<1x64xf32>
    tpu.vector_store %arg15[%c0_220, %c2688], %217 {strides = array<i32>} : memref<2x4096xf32, #tpu.memory_space<vmem>>, vector<1x64xf32>,
    %219 = vector.extract_strided_slice %132 {offsets = [43, 0], sizes = [1, 64], strides = [1, 1]} : vector<128x64xf32> to vector<1x64xf32>
    %c0_221 = arith.constant 0 : index
    %c2752 = arith.constant 2752 : index
    %220 = vector.load %arg15[%c0_221, %c2752] : memref<2x4096xf32, #tpu.memory_space<vmem>>, vector<1x64xf32>
    tpu.vector_store %arg15[%c0_221, %c2752], %219 {strides = array<i32>} : memref<2x4096xf32, #tpu.memory_space<vmem>>, vector<1x64xf32>,
    %221 = vector.extract_strided_slice %132 {offsets = [44, 0], sizes = [1, 64], strides = [1, 1]} : vector<128x64xf32> to vector<1x64xf32>
    %c0_222 = arith.constant 0 : index
    %c2816 = arith.constant 2816 : index
    %222 = vector.load %arg15[%c0_222, %c2816] : memref<2x4096xf32, #tpu.memory_space<vmem>>, vector<1x64xf32>
    tpu.vector_store %arg15[%c0_222, %c2816], %221 {strides = array<i32>} : memref<2x4096xf32, #tpu.memory_space<vmem>>, vector<1x64xf32>,
    %223 = vector.extract_strided_slice %132 {offsets = [45, 0], sizes = [1, 64], strides = [1, 1]} : vector<128x64xf32> to vector<1x64xf32>
    %c0_223 = arith.constant 0 : index
    %c2880 = arith.constant 2880 : index
    %224 = vector.load %arg15[%c0_223, %c2880] : memref<2x4096xf32, #tpu.memory_space<vmem>>, vector<1x64xf32>
    tpu.vector_store %arg15[%c0_223, %c2880], %223 {strides = array<i32>} : memref<2x4096xf32, #tpu.memory_space<vmem>>, vector<1x64xf32>,
    %225 = vector.extract_strided_slice %132 {offsets = [46, 0], sizes = [1, 64], strides = [1, 1]} : vector<128x64xf32> to vector<1x64xf32>
    %c0_224 = arith.constant 0 : index
    %c2944 = arith.constant 2944 : index
    %226 = vector.load %arg15[%c0_224, %c2944] : memref<2x4096xf32, #tpu.memory_space<vmem>>, vector<1x64xf32>
    tpu.vector_store %arg15[%c0_224, %c2944], %225 {strides = array<i32>} : memref<2x4096xf32, #tpu.memory_space<vmem>>, vector<1x64xf32>,
    %227 = vector.extract_strided_slice %132 {offsets = [47, 0], sizes = [1, 64], strides = [1, 1]} : vector<128x64xf32> to vector<1x64xf32>
    %c0_225 = arith.constant 0 : index
    %c3008 = arith.constant 3008 : index
    %228 = vector.load %arg15[%c0_225, %c3008] : memref<2x4096xf32, #tpu.memory_space<vmem>>, vector<1x64xf32>
    tpu.vector_store %arg15[%c0_225, %c3008], %227 {strides = array<i32>} : memref<2x4096xf32, #tpu.memory_space<vmem>>, vector<1x64xf32>,
    %229 = vector.extract_strided_slice %132 {offsets = [48, 0], sizes = [1, 64], strides = [1, 1]} : vector<128x64xf32> to vector<1x64xf32>
    %c0_226 = arith.constant 0 : index
    %c3072 = arith.constant 3072 : index
    %230 = vector.load %arg15[%c0_226, %c3072] : memref<2x4096xf32, #tpu.memory_space<vmem>>, vector<1x64xf32>
    tpu.vector_store %arg15[%c0_226, %c3072], %229 {strides = array<i32>} : memref<2x4096xf32, #tpu.memory_space<vmem>>, vector<1x64xf32>,
    %231 = vector.extract_strided_slice %132 {offsets = [49, 0], sizes = [1, 64], strides = [1, 1]} : vector<128x64xf32> to vector<1x64xf32>
    %c0_227 = arith.constant 0 : index
    %c3136 = arith.constant 3136 : index
    %232 = vector.load %arg15[%c0_227, %c3136] : memref<2x4096xf32, #tpu.memory_space<vmem>>, vector<1x64xf32>
    tpu.vector_store %arg15[%c0_227, %c3136], %231 {strides = array<i32>} : memref<2x4096xf32, #tpu.memory_space<vmem>>, vector<1x64xf32>,
    %233 = vector.extract_strided_slice %132 {offsets = [50, 0], sizes = [1, 64], strides = [1, 1]} : vector<128x64xf32> to vector<1x64xf32>
    %c0_228 = arith.constant 0 : index
    %c3200 = arith.constant 3200 : index
    %234 = vector.load %arg15[%c0_228, %c3200] : memref<2x4096xf32, #tpu.memory_space<vmem>>, vector<1x64xf32>
    tpu.vector_store %arg15[%c0_228, %c3200], %233 {strides = array<i32>} : memref<2x4096xf32, #tpu.memory_space<vmem>>, vector<1x64xf32>,
    %235 = vector.extract_strided_slice %132 {offsets = [51, 0], sizes = [1, 64], strides = [1, 1]} : vector<128x64xf32> to vector<1x64xf32>
    %c0_229 = arith.constant 0 : index
    %c3264 = arith.constant 3264 : index
    %236 = vector.load %arg15[%c0_229, %c3264] : memref<2x4096xf32, #tpu.memory_space<vmem>>, vector<1x64xf32>
    tpu.vector_store %arg15[%c0_229, %c3264], %235 {strides = array<i32>} : memref<2x4096xf32, #tpu.memory_space<vmem>>, vector<1x64xf32>,
    %237 = vector.extract_strided_slice %132 {offsets = [52, 0], sizes = [1, 64], strides = [1, 1]} : vector<128x64xf32> to vector<1x64xf32>
    %c0_230 = arith.constant 0 : index
    %c3328 = arith.constant 3328 : index
    %238 = vector.load %arg15[%c0_230, %c3328] : memref<2x4096xf32, #tpu.memory_space<vmem>>, vector<1x64xf32>
    tpu.vector_store %arg15[%c0_230, %c3328], %237 {strides = array<i32>} : memref<2x4096xf32, #tpu.memory_space<vmem>>, vector<1x64xf32>,
    %239 = vector.extract_strided_slice %132 {offsets = [53, 0], sizes = [1, 64], strides = [1, 1]} : vector<128x64xf32> to vector<1x64xf32>
    %c0_231 = arith.constant 0 : index
    %c3392 = arith.constant 3392 : index
    %240 = vector.load %arg15[%c0_231, %c3392] : memref<2x4096xf32, #tpu.memory_space<vmem>>, vector<1x64xf32>
    tpu.vector_store %arg15[%c0_231, %c3392], %239 {strides = array<i32>} : memref<2x4096xf32, #tpu.memory_space<vmem>>, vector<1x64xf32>,
    %241 = vector.extract_strided_slice %132 {offsets = [54, 0], sizes = [1, 64], strides = [1, 1]} : vector<128x64xf32> to vector<1x64xf32>
    %c0_232 = arith.constant 0 : index
    %c3456 = arith.constant 3456 : index
    %242 = vector.load %arg15[%c0_232, %c3456] : memref<2x4096xf32, #tpu.memory_space<vmem>>, vector<1x64xf32>
    tpu.vector_store %arg15[%c0_232, %c3456], %241 {strides = array<i32>} : memref<2x4096xf32, #tpu.memory_space<vmem>>, vector<1x64xf32>,
    %243 = vector.extract_strided_slice %132 {offsets = [55, 0], sizes = [1, 64], strides = [1, 1]} : vector<128x64xf32> to vector<1x64xf32>
    %c0_233 = arith.constant 0 : index
    %c3520 = arith.constant 3520 : index
    %244 = vector.load %arg15[%c0_233, %c3520] : memref<2x4096xf32, #tpu.memory_space<vmem>>, vector<1x64xf32>
    tpu.vector_store %arg15[%c0_233, %c3520], %243 {strides = array<i32>} : memref<2x4096xf32, #tpu.memory_space<vmem>>, vector<1x64xf32>,
    %245 = vector.extract_strided_slice %132 {offsets = [56, 0], sizes = [1, 64], strides = [1, 1]} : vector<128x64xf32> to vector<1x64xf32>
    %c0_234 = arith.constant 0 : index
    %c3584 = arith.constant 3584 : index
    %246 = vector.load %arg15[%c0_234, %c3584] : memref<2x4096xf32, #tpu.memory_space<vmem>>, vector<1x64xf32>
    tpu.vector_store %arg15[%c0_234, %c3584], %245 {strides = array<i32>} : memref<2x4096xf32, #tpu.memory_space<vmem>>, vector<1x64xf32>,
    %247 = vector.extract_strided_slice %132 {offsets = [57, 0], sizes = [1, 64], strides = [1, 1]} : vector<128x64xf32> to vector<1x64xf32>
    %c0_235 = arith.constant 0 : index
    %c3648 = arith.constant 3648 : index
    %248 = vector.load %arg15[%c0_235, %c3648] : memref<2x4096xf32, #tpu.memory_space<vmem>>, vector<1x64xf32>
    tpu.vector_store %arg15[%c0_235, %c3648], %247 {strides = array<i32>} : memref<2x4096xf32, #tpu.memory_space<vmem>>, vector<1x64xf32>,
    %249 = vector.extract_strided_slice %132 {offsets = [58, 0], sizes = [1, 64], strides = [1, 1]} : vector<128x64xf32> to vector<1x64xf32>
    %c0_236 = arith.constant 0 : index
    %c3712 = arith.constant 3712 : index
    %250 = vector.load %arg15[%c0_236, %c3712] : memref<2x4096xf32, #tpu.memory_space<vmem>>, vector<1x64xf32>
    tpu.vector_store %arg15[%c0_236, %c3712], %249 {strides = array<i32>} : memref<2x4096xf32, #tpu.memory_space<vmem>>, vector<1x64xf32>,
    %251 = vector.extract_strided_slice %132 {offsets = [59, 0], sizes = [1, 64], strides = [1, 1]} : vector<128x64xf32> to vector<1x64xf32>
    %c0_237 = arith.constant 0 : index
    %c3776 = arith.constant 3776 : index
    %252 = vector.load %arg15[%c0_237, %c3776] : memref<2x4096xf32, #tpu.memory_space<vmem>>, vector<1x64xf32>
    tpu.vector_store %arg15[%c0_237, %c3776], %251 {strides = array<i32>} : memref<2x4096xf32, #tpu.memory_space<vmem>>, vector<1x64xf32>,
    %253 = vector.extract_strided_slice %132 {offsets = [60, 0], sizes = [1, 64], strides = [1, 1]} : vector<128x64xf32> to vector<1x64xf32>
    %c0_238 = arith.constant 0 : index
    %c3840 = arith.constant 3840 : index
    %254 = vector.load %arg15[%c0_238, %c3840] : memref<2x4096xf32, #tpu.memory_space<vmem>>, vector<1x64xf32>
    tpu.vector_store %arg15[%c0_238, %c3840], %253 {strides = array<i32>} : memref<2x4096xf32, #tpu.memory_space<vmem>>, vector<1x64xf32>,
    %255 = vector.extract_strided_slice %132 {offsets = [61, 0], sizes = [1, 64], strides = [1, 1]} : vector<128x64xf32> to vector<1x64xf32>
    %c0_239 = arith.constant 0 : index
    %c3904 = arith.constant 3904 : index
    %256 = vector.load %arg15[%c0_239, %c3904] : memref<2x4096xf32, #tpu.memory_space<vmem>>, vector<1x64xf32>
    tpu.vector_store %arg15[%c0_239, %c3904], %255 {strides = array<i32>} : memref<2x4096xf32, #tpu.memory_space<vmem>>, vector<1x64xf32>,
    %257 = vector.extract_strided_slice %132 {offsets = [62, 0], sizes = [1, 64], strides = [1, 1]} : vector<128x64xf32> to vector<1x64xf32>
    %c0_240 = arith.constant 0 : index
    %c3968 = arith.constant 3968 : index
    %258 = vector.load %arg15[%c0_240, %c3968] : memref<2x4096xf32, #tpu.memory_space<vmem>>, vector<1x64xf32>
    tpu.vector_store %arg15[%c0_240, %c3968], %257 {strides = array<i32>} : memref<2x4096xf32, #tpu.memory_space<vmem>>, vector<1x64xf32>,
    %259 = vector.extract_strided_slice %132 {offsets = [63, 0], sizes = [1, 64], strides = [1, 1]} : vector<128x64xf32> to vector<1x64xf32>
    %c0_241 = arith.constant 0 : index
    %c4032 = arith.constant 4032 : index
    %260 = vector.load %arg15[%c0_241, %c4032] : memref<2x4096xf32, #tpu.memory_space<vmem>>, vector<1x64xf32>
    tpu.vector_store %arg15[%c0_241, %c4032], %259 {strides = array<i32>} : memref<2x4096xf32, #tpu.memory_space<vmem>>, vector<1x64xf32>,
    %261 = vector.extract_strided_slice %132 {offsets = [64, 0], sizes = [1, 64], strides = [1, 1]} : vector<128x64xf32> to vector<1x64xf32>
    %c1_242 = arith.constant 1 : index
    %c0_243 = arith.constant 0 : index
    %262 = vector.load %arg15[%c1_242, %c0_243] : memref<2x4096xf32, #tpu.memory_space<vmem>>, vector<1x64xf32>
    tpu.vector_store %arg15[%c1_242, %c0_243], %261 {strides = array<i32>} : memref<2x4096xf32, #tpu.memory_space<vmem>>, vector<1x64xf32>,
    %263 = vector.extract_strided_slice %132 {offsets = [65, 0], sizes = [1, 64], strides = [1, 1]} : vector<128x64xf32> to vector<1x64xf32>
    %c1_244 = arith.constant 1 : index
    %c64_245 = arith.constant 64 : index
    %264 = vector.load %arg15[%c1_244, %c64_245] : memref<2x4096xf32, #tpu.memory_space<vmem>>, vector<1x64xf32>
    tpu.vector_store %arg15[%c1_244, %c64_245], %263 {strides = array<i32>} : memref<2x4096xf32, #tpu.memory_space<vmem>>, vector<1x64xf32>,
    %265 = vector.extract_strided_slice %132 {offsets = [66, 0], sizes = [1, 64], strides = [1, 1]} : vector<128x64xf32> to vector<1x64xf32>
    %c1_246 = arith.constant 1 : index
    %c128_247 = arith.constant 128 : index
    %266 = vector.load %arg15[%c1_246, %c128_247] : memref<2x4096xf32, #tpu.memory_space<vmem>>, vector<1x64xf32>
    tpu.vector_store %arg15[%c1_246, %c128_247], %265 {strides = array<i32>} : memref<2x4096xf32, #tpu.memory_space<vmem>>, vector<1x64xf32>,
    %267 = vector.extract_strided_slice %132 {offsets = [67, 0], sizes = [1, 64], strides = [1, 1]} : vector<128x64xf32> to vector<1x64xf32>
    %c1_248 = arith.constant 1 : index
    %c192_249 = arith.constant 192 : index
    %268 = vector.load %arg15[%c1_248, %c192_249] : memref<2x4096xf32, #tpu.memory_space<vmem>>, vector<1x64xf32>
    tpu.vector_store %arg15[%c1_248, %c192_249], %267 {strides = array<i32>} : memref<2x4096xf32, #tpu.memory_space<vmem>>, vector<1x64xf32>,
    %269 = vector.extract_strided_slice %132 {offsets = [68, 0], sizes = [1, 64], strides = [1, 1]} : vector<128x64xf32> to vector<1x64xf32>
    %c1_250 = arith.constant 1 : index
    %c256_251 = arith.constant 256 : index
    %270 = vector.load %arg15[%c1_250, %c256_251] : memref<2x4096xf32, #tpu.memory_space<vmem>>, vector<1x64xf32>
    tpu.vector_store %arg15[%c1_250, %c256_251], %269 {strides = array<i32>} : memref<2x4096xf32, #tpu.memory_space<vmem>>, vector<1x64xf32>,
    %271 = vector.extract_strided_slice %132 {offsets = [69, 0], sizes = [1, 64], strides = [1, 1]} : vector<128x64xf32> to vector<1x64xf32>
    %c1_252 = arith.constant 1 : index
    %c320_253 = arith.constant 320 : index
    %272 = vector.load %arg15[%c1_252, %c320_253] : memref<2x4096xf32, #tpu.memory_space<vmem>>, vector<1x64xf32>
    tpu.vector_store %arg15[%c1_252, %c320_253], %271 {strides = array<i32>} : memref<2x4096xf32, #tpu.memory_space<vmem>>, vector<1x64xf32>,
    %273 = vector.extract_strided_slice %132 {offsets = [70, 0], sizes = [1, 64], strides = [1, 1]} : vector<128x64xf32> to vector<1x64xf32>
    %c1_254 = arith.constant 1 : index
    %c384_255 = arith.constant 384 : index
    %274 = vector.load %arg15[%c1_254, %c384_255] : memref<2x4096xf32, #tpu.memory_space<vmem>>, vector<1x64xf32>
    tpu.vector_store %arg15[%c1_254, %c384_255], %273 {strides = array<i32>} : memref<2x4096xf32, #tpu.memory_space<vmem>>, vector<1x64xf32>,
    %275 = vector.extract_strided_slice %132 {offsets = [71, 0], sizes = [1, 64], strides = [1, 1]} : vector<128x64xf32> to vector<1x64xf32>
    %c1_256 = arith.constant 1 : index
    %c448_257 = arith.constant 448 : index
    %276 = vector.load %arg15[%c1_256, %c448_257] : memref<2x4096xf32, #tpu.memory_space<vmem>>, vector<1x64xf32>
    tpu.vector_store %arg15[%c1_256, %c448_257], %275 {strides = array<i32>} : memref<2x4096xf32, #tpu.memory_space<vmem>>, vector<1x64xf32>,
    %277 = vector.extract_strided_slice %132 {offsets = [72, 0], sizes = [1, 64], strides = [1, 1]} : vector<128x64xf32> to vector<1x64xf32>
    %c1_258 = arith.constant 1 : index
    %c512_259 = arith.constant 512 : index
    %278 = vector.load %arg15[%c1_258, %c512_259] : memref<2x4096xf32, #tpu.memory_space<vmem>>, vector<1x64xf32>
    tpu.vector_store %arg15[%c1_258, %c512_259], %277 {strides = array<i32>} : memref<2x4096xf32, #tpu.memory_space<vmem>>, vector<1x64xf32>,
    %279 = vector.extract_strided_slice %132 {offsets = [73, 0], sizes = [1, 64], strides = [1, 1]} : vector<128x64xf32> to vector<1x64xf32>
    %c1_260 = arith.constant 1 : index
    %c576_261 = arith.constant 576 : index
    %280 = vector.load %arg15[%c1_260, %c576_261] : memref<2x4096xf32, #tpu.memory_space<vmem>>, vector<1x64xf32>
    tpu.vector_store %arg15[%c1_260, %c576_261], %279 {strides = array<i32>} : memref<2x4096xf32, #tpu.memory_space<vmem>>, vector<1x64xf32>,
    %281 = vector.extract_strided_slice %132 {offsets = [74, 0], sizes = [1, 64], strides = [1, 1]} : vector<128x64xf32> to vector<1x64xf32>
    %c1_262 = arith.constant 1 : index
    %c640_263 = arith.constant 640 : index
    %282 = vector.load %arg15[%c1_262, %c640_263] : memref<2x4096xf32, #tpu.memory_space<vmem>>, vector<1x64xf32>
    tpu.vector_store %arg15[%c1_262, %c640_263], %281 {strides = array<i32>} : memref<2x4096xf32, #tpu.memory_space<vmem>>, vector<1x64xf32>,
    %283 = vector.extract_strided_slice %132 {offsets = [75, 0], sizes = [1, 64], strides = [1, 1]} : vector<128x64xf32> to vector<1x64xf32>
    %c1_264 = arith.constant 1 : index
    %c704_265 = arith.constant 704 : index
    %284 = vector.load %arg15[%c1_264, %c704_265] : memref<2x4096xf32, #tpu.memory_space<vmem>>, vector<1x64xf32>
    tpu.vector_store %arg15[%c1_264, %c704_265], %283 {strides = array<i32>} : memref<2x4096xf32, #tpu.memory_space<vmem>>, vector<1x64xf32>,
    %285 = vector.extract_strided_slice %132 {offsets = [76, 0], sizes = [1, 64], strides = [1, 1]} : vector<128x64xf32> to vector<1x64xf32>
    %c1_266 = arith.constant 1 : index
    %c768_267 = arith.constant 768 : index
    %286 = vector.load %arg15[%c1_266, %c768_267] : memref<2x4096xf32, #tpu.memory_space<vmem>>, vector<1x64xf32>
    tpu.vector_store %arg15[%c1_266, %c768_267], %285 {strides = array<i32>} : memref<2x4096xf32, #tpu.memory_space<vmem>>, vector<1x64xf32>,
    %287 = vector.extract_strided_slice %132 {offsets = [77, 0], sizes = [1, 64], strides = [1, 1]} : vector<128x64xf32> to vector<1x64xf32>
    %c1_268 = arith.constant 1 : index
    %c832_269 = arith.constant 832 : index
    %288 = vector.load %arg15[%c1_268, %c832_269] : memref<2x4096xf32, #tpu.memory_space<vmem>>, vector<1x64xf32>
    tpu.vector_store %arg15[%c1_268, %c832_269], %287 {strides = array<i32>} : memref<2x4096xf32, #tpu.memory_space<vmem>>, vector<1x64xf32>,
    %289 = vector.extract_strided_slice %132 {offsets = [78, 0], sizes = [1, 64], strides = [1, 1]} : vector<128x64xf32> to vector<1x64xf32>
    %c1_270 = arith.constant 1 : index
    %c896_271 = arith.constant 896 : index
    %290 = vector.load %arg15[%c1_270, %c896_271] : memref<2x4096xf32, #tpu.memory_space<vmem>>, vector<1x64xf32>
    tpu.vector_store %arg15[%c1_270, %c896_271], %289 {strides = array<i32>} : memref<2x4096xf32, #tpu.memory_space<vmem>>, vector<1x64xf32>,
    %291 = vector.extract_strided_slice %132 {offsets = [79, 0], sizes = [1, 64], strides = [1, 1]} : vector<128x64xf32> to vector<1x64xf32>
    %c1_272 = arith.constant 1 : index
    %c960_273 = arith.constant 960 : index
    %292 = vector.load %arg15[%c1_272, %c960_273] : memref<2x4096xf32, #tpu.memory_space<vmem>>, vector<1x64xf32>
    tpu.vector_store %arg15[%c1_272, %c960_273], %291 {strides = array<i32>} : memref<2x4096xf32, #tpu.memory_space<vmem>>, vector<1x64xf32>,
    %293 = vector.extract_strided_slice %132 {offsets = [80, 0], sizes = [1, 64], strides = [1, 1]} : vector<128x64xf32> to vector<1x64xf32>
    %c1_274 = arith.constant 1 : index
    %c1024_275 = arith.constant 1024 : index
    %294 = vector.load %arg15[%c1_274, %c1024_275] : memref<2x4096xf32, #tpu.memory_space<vmem>>, vector<1x64xf32>
    tpu.vector_store %arg15[%c1_274, %c1024_275], %293 {strides = array<i32>} : memref<2x4096xf32, #tpu.memory_space<vmem>>, vector<1x64xf32>,
    %295 = vector.extract_strided_slice %132 {offsets = [81, 0], sizes = [1, 64], strides = [1, 1]} : vector<128x64xf32> to vector<1x64xf32>
    %c1_276 = arith.constant 1 : index
    %c1088_277 = arith.constant 1088 : index
    %296 = vector.load %arg15[%c1_276, %c1088_277] : memref<2x4096xf32, #tpu.memory_space<vmem>>, vector<1x64xf32>
    tpu.vector_store %arg15[%c1_276, %c1088_277], %295 {strides = array<i32>} : memref<2x4096xf32, #tpu.memory_space<vmem>>, vector<1x64xf32>,
    %297 = vector.extract_strided_slice %132 {offsets = [82, 0], sizes = [1, 64], strides = [1, 1]} : vector<128x64xf32> to vector<1x64xf32>
    %c1_278 = arith.constant 1 : index
    %c1152_279 = arith.constant 1152 : index
    %298 = vector.load %arg15[%c1_278, %c1152_279] : memref<2x4096xf32, #tpu.memory_space<vmem>>, vector<1x64xf32>
    tpu.vector_store %arg15[%c1_278, %c1152_279], %297 {strides = array<i32>} : memref<2x4096xf32, #tpu.memory_space<vmem>>, vector<1x64xf32>,
    %299 = vector.extract_strided_slice %132 {offsets = [83, 0], sizes = [1, 64], strides = [1, 1]} : vector<128x64xf32> to vector<1x64xf32>
    %c1_280 = arith.constant 1 : index
    %c1216_281 = arith.constant 1216 : index
    %300 = vector.load %arg15[%c1_280, %c1216_281] : memref<2x4096xf32, #tpu.memory_space<vmem>>, vector<1x64xf32>
    tpu.vector_store %arg15[%c1_280, %c1216_281], %299 {strides = array<i32>} : memref<2x4096xf32, #tpu.memory_space<vmem>>, vector<1x64xf32>,
    %301 = vector.extract_strided_slice %132 {offsets = [84, 0], sizes = [1, 64], strides = [1, 1]} : vector<128x64xf32> to vector<1x64xf32>
    %c1_282 = arith.constant 1 : index
    %c1280_283 = arith.constant 1280 : index
    %302 = vector.load %arg15[%c1_282, %c1280_283] : memref<2x4096xf32, #tpu.memory_space<vmem>>, vector<1x64xf32>
    tpu.vector_store %arg15[%c1_282, %c1280_283], %301 {strides = array<i32>} : memref<2x4096xf32, #tpu.memory_space<vmem>>, vector<1x64xf32>,
    %303 = vector.extract_strided_slice %132 {offsets = [85, 0], sizes = [1, 64], strides = [1, 1]} : vector<128x64xf32> to vector<1x64xf32>
    %c1_284 = arith.constant 1 : index
    %c1344_285 = arith.constant 1344 : index
    %304 = vector.load %arg15[%c1_284, %c1344_285] : memref<2x4096xf32, #tpu.memory_space<vmem>>, vector<1x64xf32>
    tpu.vector_store %arg15[%c1_284, %c1344_285], %303 {strides = array<i32>} : memref<2x4096xf32, #tpu.memory_space<vmem>>, vector<1x64xf32>,
    %305 = vector.extract_strided_slice %132 {offsets = [86, 0], sizes = [1, 64], strides = [1, 1]} : vector<128x64xf32> to vector<1x64xf32>
    %c1_286 = arith.constant 1 : index
    %c1408_287 = arith.constant 1408 : index
    %306 = vector.load %arg15[%c1_286, %c1408_287] : memref<2x4096xf32, #tpu.memory_space<vmem>>, vector<1x64xf32>
    tpu.vector_store %arg15[%c1_286, %c1408_287], %305 {strides = array<i32>} : memref<2x4096xf32, #tpu.memory_space<vmem>>, vector<1x64xf32>,
    %307 = vector.extract_strided_slice %132 {offsets = [87, 0], sizes = [1, 64], strides = [1, 1]} : vector<128x64xf32> to vector<1x64xf32>
    %c1_288 = arith.constant 1 : index
    %c1472_289 = arith.constant 1472 : index
    %308 = vector.load %arg15[%c1_288, %c1472_289] : memref<2x4096xf32, #tpu.memory_space<vmem>>, vector<1x64xf32>
    tpu.vector_store %arg15[%c1_288, %c1472_289], %307 {strides = array<i32>} : memref<2x4096xf32, #tpu.memory_space<vmem>>, vector<1x64xf32>,
    %309 = vector.extract_strided_slice %132 {offsets = [88, 0], sizes = [1, 64], strides = [1, 1]} : vector<128x64xf32> to vector<1x64xf32>
    %c1_290 = arith.constant 1 : index
    %c1536_291 = arith.constant 1536 : index
    %310 = vector.load %arg15[%c1_290, %c1536_291] : memref<2x4096xf32, #tpu.memory_space<vmem>>, vector<1x64xf32>
    tpu.vector_store %arg15[%c1_290, %c1536_291], %309 {strides = array<i32>} : memref<2x4096xf32, #tpu.memory_space<vmem>>, vector<1x64xf32>,
    %311 = vector.extract_strided_slice %132 {offsets = [89, 0], sizes = [1, 64], strides = [1, 1]} : vector<128x64xf32> to vector<1x64xf32>
    %c1_292 = arith.constant 1 : index
    %c1600_293 = arith.constant 1600 : index
    %312 = vector.load %arg15[%c1_292, %c1600_293] : memref<2x4096xf32, #tpu.memory_space<vmem>>, vector<1x64xf32>
    tpu.vector_store %arg15[%c1_292, %c1600_293], %311 {strides = array<i32>} : memref<2x4096xf32, #tpu.memory_space<vmem>>, vector<1x64xf32>,
    %313 = vector.extract_strided_slice %132 {offsets = [90, 0], sizes = [1, 64], strides = [1, 1]} : vector<128x64xf32> to vector<1x64xf32>
    %c1_294 = arith.constant 1 : index
    %c1664_295 = arith.constant 1664 : index
    %314 = vector.load %arg15[%c1_294, %c1664_295] : memref<2x4096xf32, #tpu.memory_space<vmem>>, vector<1x64xf32>
    tpu.vector_store %arg15[%c1_294, %c1664_295], %313 {strides = array<i32>} : memref<2x4096xf32, #tpu.memory_space<vmem>>, vector<1x64xf32>,
    %315 = vector.extract_strided_slice %132 {offsets = [91, 0], sizes = [1, 64], strides = [1, 1]} : vector<128x64xf32> to vector<1x64xf32>
    %c1_296 = arith.constant 1 : index
    %c1728_297 = arith.constant 1728 : index
    %316 = vector.load %arg15[%c1_296, %c1728_297] : memref<2x4096xf32, #tpu.memory_space<vmem>>, vector<1x64xf32>
    tpu.vector_store %arg15[%c1_296, %c1728_297], %315 {strides = array<i32>} : memref<2x4096xf32, #tpu.memory_space<vmem>>, vector<1x64xf32>,
    %317 = vector.extract_strided_slice %132 {offsets = [92, 0], sizes = [1, 64], strides = [1, 1]} : vector<128x64xf32> to vector<1x64xf32>
    %c1_298 = arith.constant 1 : index
    %c1792_299 = arith.constant 1792 : index
    %318 = vector.load %arg15[%c1_298, %c1792_299] : memref<2x4096xf32, #tpu.memory_space<vmem>>, vector<1x64xf32>
    tpu.vector_store %arg15[%c1_298, %c1792_299], %317 {strides = array<i32>} : memref<2x4096xf32, #tpu.memory_space<vmem>>, vector<1x64xf32>,
    %319 = vector.extract_strided_slice %132 {offsets = [93, 0], sizes = [1, 64], strides = [1, 1]} : vector<128x64xf32> to vector<1x64xf32>
    %c1_300 = arith.constant 1 : index
    %c1856_301 = arith.constant 1856 : index
    %320 = vector.load %arg15[%c1_300, %c1856_301] : memref<2x4096xf32, #tpu.memory_space<vmem>>, vector<1x64xf32>
    tpu.vector_store %arg15[%c1_300, %c1856_301], %319 {strides = array<i32>} : memref<2x4096xf32, #tpu.memory_space<vmem>>, vector<1x64xf32>,
    %321 = vector.extract_strided_slice %132 {offsets = [94, 0], sizes = [1, 64], strides = [1, 1]} : vector<128x64xf32> to vector<1x64xf32>
    %c1_302 = arith.constant 1 : index
    %c1920_303 = arith.constant 1920 : index
    %322 = vector.load %arg15[%c1_302, %c1920_303] : memref<2x4096xf32, #tpu.memory_space<vmem>>, vector<1x64xf32>
    tpu.vector_store %arg15[%c1_302, %c1920_303], %321 {strides = array<i32>} : memref<2x4096xf32, #tpu.memory_space<vmem>>, vector<1x64xf32>,
    %323 = vector.extract_strided_slice %132 {offsets = [95, 0], sizes = [1, 64], strides = [1, 1]} : vector<128x64xf32> to vector<1x64xf32>
    %c1_304 = arith.constant 1 : index
    %c1984_305 = arith.constant 1984 : index
    %324 = vector.load %arg15[%c1_304, %c1984_305] : memref<2x4096xf32, #tpu.memory_space<vmem>>, vector<1x64xf32>
    tpu.vector_store %arg15[%c1_304, %c1984_305], %323 {strides = array<i32>} : memref<2x4096xf32, #tpu.memory_space<vmem>>, vector<1x64xf32>,
    %325 = vector.extract_strided_slice %132 {offsets = [96, 0], sizes = [1, 64], strides = [1, 1]} : vector<128x64xf32> to vector<1x64xf32>
    %c1_306 = arith.constant 1 : index
    %c2048_307 = arith.constant 2048 : index
    %326 = vector.load %arg15[%c1_306, %c2048_307] : memref<2x4096xf32, #tpu.memory_space<vmem>>, vector<1x64xf32>
    tpu.vector_store %arg15[%c1_306, %c2048_307], %325 {strides = array<i32>} : memref<2x4096xf32, #tpu.memory_space<vmem>>, vector<1x64xf32>,
    %327 = vector.extract_strided_slice %132 {offsets = [97, 0], sizes = [1, 64], strides = [1, 1]} : vector<128x64xf32> to vector<1x64xf32>
    %c1_308 = arith.constant 1 : index
    %c2112_309 = arith.constant 2112 : index
    %328 = vector.load %arg15[%c1_308, %c2112_309] : memref<2x4096xf32, #tpu.memory_space<vmem>>, vector<1x64xf32>
    tpu.vector_store %arg15[%c1_308, %c2112_309], %327 {strides = array<i32>} : memref<2x4096xf32, #tpu.memory_space<vmem>>, vector<1x64xf32>,
    %329 = vector.extract_strided_slice %132 {offsets = [98, 0], sizes = [1, 64], strides = [1, 1]} : vector<128x64xf32> to vector<1x64xf32>
    %c1_310 = arith.constant 1 : index
    %c2176_311 = arith.constant 2176 : index
    %330 = vector.load %arg15[%c1_310, %c2176_311] : memref<2x4096xf32, #tpu.memory_space<vmem>>, vector<1x64xf32>
    tpu.vector_store %arg15[%c1_310, %c2176_311], %329 {strides = array<i32>} : memref<2x4096xf32, #tpu.memory_space<vmem>>, vector<1x64xf32>,
    %331 = vector.extract_strided_slice %132 {offsets = [99, 0], sizes = [1, 64], strides = [1, 1]} : vector<128x64xf32> to vector<1x64xf32>
    %c1_312 = arith.constant 1 : index
    %c2240_313 = arith.constant 2240 : index
    %332 = vector.load %arg15[%c1_312, %c2240_313] : memref<2x4096xf32, #tpu.memory_space<vmem>>, vector<1x64xf32>
    tpu.vector_store %arg15[%c1_312, %c2240_313], %331 {strides = array<i32>} : memref<2x4096xf32, #tpu.memory_space<vmem>>, vector<1x64xf32>,
    %333 = vector.extract_strided_slice %132 {offsets = [100, 0], sizes = [1, 64], strides = [1, 1]} : vector<128x64xf32> to vector<1x64xf32>
    %c1_314 = arith.constant 1 : index
    %c2304_315 = arith.constant 2304 : index
    %334 = vector.load %arg15[%c1_314, %c2304_315] : memref<2x4096xf32, #tpu.memory_space<vmem>>, vector<1x64xf32>
    tpu.vector_store %arg15[%c1_314, %c2304_315], %333 {strides = array<i32>} : memref<2x4096xf32, #tpu.memory_space<vmem>>, vector<1x64xf32>,
    %335 = vector.extract_strided_slice %132 {offsets = [101, 0], sizes = [1, 64], strides = [1, 1]} : vector<128x64xf32> to vector<1x64xf32>
    %c1_316 = arith.constant 1 : index
    %c2368_317 = arith.constant 2368 : index
    %336 = vector.load %arg15[%c1_316, %c2368_317] : memref<2x4096xf32, #tpu.memory_space<vmem>>, vector<1x64xf32>
    tpu.vector_store %arg15[%c1_316, %c2368_317], %335 {strides = array<i32>} : memref<2x4096xf32, #tpu.memory_space<vmem>>, vector<1x64xf32>,
    %337 = vector.extract_strided_slice %132 {offsets = [102, 0], sizes = [1, 64], strides = [1, 1]} : vector<128x64xf32> to vector<1x64xf32>
    %c1_318 = arith.constant 1 : index
    %c2432_319 = arith.constant 2432 : index
    %338 = vector.load %arg15[%c1_318, %c2432_319] : memref<2x4096xf32, #tpu.memory_space<vmem>>, vector<1x64xf32>
    tpu.vector_store %arg15[%c1_318, %c2432_319], %337 {strides = array<i32>} : memref<2x4096xf32, #tpu.memory_space<vmem>>, vector<1x64xf32>,
    %339 = vector.extract_strided_slice %132 {offsets = [103, 0], sizes = [1, 64], strides = [1, 1]} : vector<128x64xf32> to vector<1x64xf32>
    %c1_320 = arith.constant 1 : index
    %c2496_321 = arith.constant 2496 : index
    %340 = vector.load %arg15[%c1_320, %c2496_321] : memref<2x4096xf32, #tpu.memory_space<vmem>>, vector<1x64xf32>
    tpu.vector_store %arg15[%c1_320, %c2496_321], %339 {strides = array<i32>} : memref<2x4096xf32, #tpu.memory_space<vmem>>, vector<1x64xf32>,
    %341 = vector.extract_strided_slice %132 {offsets = [104, 0], sizes = [1, 64], strides = [1, 1]} : vector<128x64xf32> to vector<1x64xf32>
    %c1_322 = arith.constant 1 : index
    %c2560_323 = arith.constant 2560 : index
    %342 = vector.load %arg15[%c1_322, %c2560_323] : memref<2x4096xf32, #tpu.memory_space<vmem>>, vector<1x64xf32>
    tpu.vector_store %arg15[%c1_322, %c2560_323], %341 {strides = array<i32>} : memref<2x4096xf32, #tpu.memory_space<vmem>>, vector<1x64xf32>,
    %343 = vector.extract_strided_slice %132 {offsets = [105, 0], sizes = [1, 64], strides = [1, 1]} : vector<128x64xf32> to vector<1x64xf32>
    %c1_324 = arith.constant 1 : index
    %c2624_325 = arith.constant 2624 : index
    %344 = vector.load %arg15[%c1_324, %c2624_325] : memref<2x4096xf32, #tpu.memory_space<vmem>>, vector<1x64xf32>
    tpu.vector_store %arg15[%c1_324, %c2624_325], %343 {strides = array<i32>} : memref<2x4096xf32, #tpu.memory_space<vmem>>, vector<1x64xf32>,
    %345 = vector.extract_strided_slice %132 {offsets = [106, 0], sizes = [1, 64], strides = [1, 1]} : vector<128x64xf32> to vector<1x64xf32>
    %c1_326 = arith.constant 1 : index
    %c2688_327 = arith.constant 2688 : index
    %346 = vector.load %arg15[%c1_326, %c2688_327] : memref<2x4096xf32, #tpu.memory_space<vmem>>, vector<1x64xf32>
    tpu.vector_store %arg15[%c1_326, %c2688_327], %345 {strides = array<i32>} : memref<2x4096xf32, #tpu.memory_space<vmem>>, vector<1x64xf32>,
    %347 = vector.extract_strided_slice %132 {offsets = [107, 0], sizes = [1, 64], strides = [1, 1]} : vector<128x64xf32> to vector<1x64xf32>
    %c1_328 = arith.constant 1 : index
    %c2752_329 = arith.constant 2752 : index
    %348 = vector.load %arg15[%c1_328, %c2752_329] : memref<2x4096xf32, #tpu.memory_space<vmem>>, vector<1x64xf32>
    tpu.vector_store %arg15[%c1_328, %c2752_329], %347 {strides = array<i32>} : memref<2x4096xf32, #tpu.memory_space<vmem>>, vector<1x64xf32>,
    %349 = vector.extract_strided_slice %132 {offsets = [108, 0], sizes = [1, 64], strides = [1, 1]} : vector<128x64xf32> to vector<1x64xf32>
    %c1_330 = arith.constant 1 : index
    %c2816_331 = arith.constant 2816 : index
    %350 = vector.load %arg15[%c1_330, %c2816_331] : memref<2x4096xf32, #tpu.memory_space<vmem>>, vector<1x64xf32>
    tpu.vector_store %arg15[%c1_330, %c2816_331], %349 {strides = array<i32>} : memref<2x4096xf32, #tpu.memory_space<vmem>>, vector<1x64xf32>,
    %351 = vector.extract_strided_slice %132 {offsets = [109, 0], sizes = [1, 64], strides = [1, 1]} : vector<128x64xf32> to vector<1x64xf32>
    %c1_332 = arith.constant 1 : index
    %c2880_333 = arith.constant 2880 : index
    %352 = vector.load %arg15[%c1_332, %c2880_333] : memref<2x4096xf32, #tpu.memory_space<vmem>>, vector<1x64xf32>
    tpu.vector_store %arg15[%c1_332, %c2880_333], %351 {strides = array<i32>} : memref<2x4096xf32, #tpu.memory_space<vmem>>, vector<1x64xf32>,
    %353 = vector.extract_strided_slice %132 {offsets = [110, 0], sizes = [1, 64], strides = [1, 1]} : vector<128x64xf32> to vector<1x64xf32>
    %c1_334 = arith.constant 1 : index
    %c2944_335 = arith.constant 2944 : index
    %354 = vector.load %arg15[%c1_334, %c2944_335] : memref<2x4096xf32, #tpu.memory_space<vmem>>, vector<1x64xf32>
    tpu.vector_store %arg15[%c1_334, %c2944_335], %353 {strides = array<i32>} : memref<2x4096xf32, #tpu.memory_space<vmem>>, vector<1x64xf32>,
    %355 = vector.extract_strided_slice %132 {offsets = [111, 0], sizes = [1, 64], strides = [1, 1]} : vector<128x64xf32> to vector<1x64xf32>
    %c1_336 = arith.constant 1 : index
    %c3008_337 = arith.constant 3008 : index
    %356 = vector.load %arg15[%c1_336, %c3008_337] : memref<2x4096xf32, #tpu.memory_space<vmem>>, vector<1x64xf32>
    tpu.vector_store %arg15[%c1_336, %c3008_337], %355 {strides = array<i32>} : memref<2x4096xf32, #tpu.memory_space<vmem>>, vector<1x64xf32>,
    %357 = vector.extract_strided_slice %132 {offsets = [112, 0], sizes = [1, 64], strides = [1, 1]} : vector<128x64xf32> to vector<1x64xf32>
    %c1_338 = arith.constant 1 : index
    %c3072_339 = arith.constant 3072 : index
    %358 = vector.load %arg15[%c1_338, %c3072_339] : memref<2x4096xf32, #tpu.memory_space<vmem>>, vector<1x64xf32>
    tpu.vector_store %arg15[%c1_338, %c3072_339], %357 {strides = array<i32>} : memref<2x4096xf32, #tpu.memory_space<vmem>>, vector<1x64xf32>,
    %359 = vector.extract_strided_slice %132 {offsets = [113, 0], sizes = [1, 64], strides = [1, 1]} : vector<128x64xf32> to vector<1x64xf32>
    %c1_340 = arith.constant 1 : index
    %c3136_341 = arith.constant 3136 : index
    %360 = vector.load %arg15[%c1_340, %c3136_341] : memref<2x4096xf32, #tpu.memory_space<vmem>>, vector<1x64xf32>
    tpu.vector_store %arg15[%c1_340, %c3136_341], %359 {strides = array<i32>} : memref<2x4096xf32, #tpu.memory_space<vmem>>, vector<1x64xf32>,
    %361 = vector.extract_strided_slice %132 {offsets = [114, 0], sizes = [1, 64], strides = [1, 1]} : vector<128x64xf32> to vector<1x64xf32>
    %c1_342 = arith.constant 1 : index
    %c3200_343 = arith.constant 3200 : index
    %362 = vector.load %arg15[%c1_342, %c3200_343] : memref<2x4096xf32, #tpu.memory_space<vmem>>, vector<1x64xf32>
    tpu.vector_store %arg15[%c1_342, %c3200_343], %361 {strides = array<i32>} : memref<2x4096xf32, #tpu.memory_space<vmem>>, vector<1x64xf32>,
    %363 = vector.extract_strided_slice %132 {offsets = [115, 0], sizes = [1, 64], strides = [1, 1]} : vector<128x64xf32> to vector<1x64xf32>
    %c1_344 = arith.constant 1 : index
    %c3264_345 = arith.constant 3264 : index
    %364 = vector.load %arg15[%c1_344, %c3264_345] : memref<2x4096xf32, #tpu.memory_space<vmem>>, vector<1x64xf32>
    tpu.vector_store %arg15[%c1_344, %c3264_345], %363 {strides = array<i32>} : memref<2x4096xf32, #tpu.memory_space<vmem>>, vector<1x64xf32>,
    %365 = vector.extract_strided_slice %132 {offsets = [116, 0], sizes = [1, 64], strides = [1, 1]} : vector<128x64xf32> to vector<1x64xf32>
    %c1_346 = arith.constant 1 : index
    %c3328_347 = arith.constant 3328 : index
    %366 = vector.load %arg15[%c1_346, %c3328_347] : memref<2x4096xf32, #tpu.memory_space<vmem>>, vector<1x64xf32>
    tpu.vector_store %arg15[%c1_346, %c3328_347], %365 {strides = array<i32>} : memref<2x4096xf32, #tpu.memory_space<vmem>>, vector<1x64xf32>,
    %367 = vector.extract_strided_slice %132 {offsets = [117, 0], sizes = [1, 64], strides = [1, 1]} : vector<128x64xf32> to vector<1x64xf32>
    %c1_348 = arith.constant 1 : index
    %c3392_349 = arith.constant 3392 : index
    %368 = vector.load %arg15[%c1_348, %c3392_349] : memref<2x4096xf32, #tpu.memory_space<vmem>>, vector<1x64xf32>
    tpu.vector_store %arg15[%c1_348, %c3392_349], %367 {strides = array<i32>} : memref<2x4096xf32, #tpu.memory_space<vmem>>, vector<1x64xf32>,
    %369 = vector.extract_strided_slice %132 {offsets = [118, 0], sizes = [1, 64], strides = [1, 1]} : vector<128x64xf32> to vector<1x64xf32>
    %c1_350 = arith.constant 1 : index
    %c3456_351 = arith.constant 3456 : index
    %370 = vector.load %arg15[%c1_350, %c3456_351] : memref<2x4096xf32, #tpu.memory_space<vmem>>, vector<1x64xf32>
    tpu.vector_store %arg15[%c1_350, %c3456_351], %369 {strides = array<i32>} : memref<2x4096xf32, #tpu.memory_space<vmem>>, vector<1x64xf32>,
    %371 = vector.extract_strided_slice %132 {offsets = [119, 0], sizes = [1, 64], strides = [1, 1]} : vector<128x64xf32> to vector<1x64xf32>
    %c1_352 = arith.constant 1 : index
    %c3520_353 = arith.constant 3520 : index
    %372 = vector.load %arg15[%c1_352, %c3520_353] : memref<2x4096xf32, #tpu.memory_space<vmem>>, vector<1x64xf32>
    tpu.vector_store %arg15[%c1_352, %c3520_353], %371 {strides = array<i32>} : memref<2x4096xf32, #tpu.memory_space<vmem>>, vector<1x64xf32>,
    %373 = vector.extract_strided_slice %132 {offsets = [120, 0], sizes = [1, 64], strides = [1, 1]} : vector<128x64xf32> to vector<1x64xf32>
    %c1_354 = arith.constant 1 : index
    %c3584_355 = arith.constant 3584 : index
    %374 = vector.load %arg15[%c1_354, %c3584_355] : memref<2x4096xf32, #tpu.memory_space<vmem>>, vector<1x64xf32>
    tpu.vector_store %arg15[%c1_354, %c3584_355], %373 {strides = array<i32>} : memref<2x4096xf32, #tpu.memory_space<vmem>>, vector<1x64xf32>,
    %375 = vector.extract_strided_slice %132 {offsets = [121, 0], sizes = [1, 64], strides = [1, 1]} : vector<128x64xf32> to vector<1x64xf32>
    %c1_356 = arith.constant 1 : index
    %c3648_357 = arith.constant 3648 : index
    %376 = vector.load %arg15[%c1_356, %c3648_357] : memref<2x4096xf32, #tpu.memory_space<vmem>>, vector<1x64xf32>
    tpu.vector_store %arg15[%c1_356, %c3648_357], %375 {strides = array<i32>} : memref<2x4096xf32, #tpu.memory_space<vmem>>, vector<1x64xf32>,
    %377 = vector.extract_strided_slice %132 {offsets = [122, 0], sizes = [1, 64], strides = [1, 1]} : vector<128x64xf32> to vector<1x64xf32>
    %c1_358 = arith.constant 1 : index
    %c3712_359 = arith.constant 3712 : index
    %378 = vector.load %arg15[%c1_358, %c3712_359] : memref<2x4096xf32, #tpu.memory_space<vmem>>, vector<1x64xf32>
    tpu.vector_store %arg15[%c1_358, %c3712_359], %377 {strides = array<i32>} : memref<2x4096xf32, #tpu.memory_space<vmem>>, vector<1x64xf32>,
    %379 = vector.extract_strided_slice %132 {offsets = [123, 0], sizes = [1, 64], strides = [1, 1]} : vector<128x64xf32> to vector<1x64xf32>
    %c1_360 = arith.constant 1 : index
    %c3776_361 = arith.constant 3776 : index
    %380 = vector.load %arg15[%c1_360, %c3776_361] : memref<2x4096xf32, #tpu.memory_space<vmem>>, vector<1x64xf32>
    tpu.vector_store %arg15[%c1_360, %c3776_361], %379 {strides = array<i32>} : memref<2x4096xf32, #tpu.memory_space<vmem>>, vector<1x64xf32>,
    %381 = vector.extract_strided_slice %132 {offsets = [124, 0], sizes = [1, 64], strides = [1, 1]} : vector<128x64xf32> to vector<1x64xf32>
    %c1_362 = arith.constant 1 : index
    %c3840_363 = arith.constant 3840 : index
    %382 = vector.load %arg15[%c1_362, %c3840_363] : memref<2x4096xf32, #tpu.memory_space<vmem>>, vector<1x64xf32>
    tpu.vector_store %arg15[%c1_362, %c3840_363], %381 {strides = array<i32>} : memref<2x4096xf32, #tpu.memory_space<vmem>>, vector<1x64xf32>,
    %383 = vector.extract_strided_slice %132 {offsets = [125, 0], sizes = [1, 64], strides = [1, 1]} : vector<128x64xf32> to vector<1x64xf32>
    %c1_364 = arith.constant 1 : index
    %c3904_365 = arith.constant 3904 : index
    %384 = vector.load %arg15[%c1_364, %c3904_365] : memref<2x4096xf32, #tpu.memory_space<vmem>>, vector<1x64xf32>
    tpu.vector_store %arg15[%c1_364, %c3904_365], %383 {strides = array<i32>} : memref<2x4096xf32, #tpu.memory_space<vmem>>, vector<1x64xf32>,
    %385 = vector.extract_strided_slice %132 {offsets = [126, 0], sizes = [1, 64], strides = [1, 1]} : vector<128x64xf32> to vector<1x64xf32>
    %c1_366 = arith.constant 1 : index
    %c3968_367 = arith.constant 3968 : index
    %386 = vector.load %arg15[%c1_366, %c3968_367] : memref<2x4096xf32, #tpu.memory_space<vmem>>, vector<1x64xf32>
    tpu.vector_store %arg15[%c1_366, %c3968_367], %385 {strides = array<i32>} : memref<2x4096xf32, #tpu.memory_space<vmem>>, vector<1x64xf32>,
    %387 = vector.extract_strided_slice %132 {offsets = [127, 0], sizes = [1, 64], strides = [1, 1]} : vector<128x64xf32> to vector<1x64xf32>
    %c1_368 = arith.constant 1 : index
    %c4032_369 = arith.constant 4032 : index
    %388 = vector.load %arg15[%c1_368, %c4032_369] : memref<2x4096xf32, #tpu.memory_space<vmem>>, vector<1x64xf32>
    tpu.vector_store %arg15[%c1_368, %c4032_369], %387 {strides = array<i32>} : memref<2x4096xf32, #tpu.memory_space<vmem>>, vector<1x64xf32>,
    %c0_370 = arith.constant 0 : index
    %c0_371 = arith.constant 0 : index
    %389 = vector.load %arg15[%c0_370, %c0_371] : memref<2x4096xf32, #tpu.memory_space<vmem>>, vector<2x4096xf32>
    %390 = arith.truncf %389 : vector<2x4096xf32> to vector<2x4096xbf16>
    %c0_372 = arith.constant 0 : index
    %c0_373 = arith.constant 0 : index
    %391 = vector.load %arg6[%c0_372, %c0_373] : memref<4096x128xbf16, #tpu.memory_space<vmem>>, vector<4096x128xbf16>
    %cst_374 = arith.constant dense<0.000000e+00> : vector<2x128xf32>
    %392 = tpu.matmul %390, %391, %cst_374 {dimension_numbers = #tpu.dot_dimension_numbers<[1], [0], [0], [1], [0, 0, 1, 1], [], []>} : vector<2x4096xbf16>, vector<4096x128xbf16>, vector<2x128xf32> -> vector<2x128xf32>
    %c0_375 = arith.constant 0 : index
    %c0_376 = arith.constant 0 : index
    %393 = vector.load %arg7[%c0_375, %c0_376] : memref<3x128xf32, #tpu.memory_space<vmem>>, vector<1x128xf32>
    %c1_377 = arith.constant 1 : index
    %c0_378 = arith.constant 0 : index
    %394 = vector.load %arg7[%c1_377, %c0_378] : memref<3x128xf32, #tpu.memory_space<vmem>>, vector<1x128xf32>
    %c2_379 = arith.constant 2 : index
    %c0_380 = arith.constant 0 : index
    %395 = vector.load %arg7[%c2_379, %c0_380] : memref<3x128xf32, #tpu.memory_space<vmem>>, vector<1x128xf32>
    %396 = vector.broadcast %393 : vector<1x128xf32> to vector<2x128xf32>
    %397 = arith.addf %392, %396 : vector<2x128xf32>
    %cst_381 = arith.constant 0.000000e+00 : f32
    %398 = vector.broadcast %cst_381 : f32 to vector<2x128xf32>
    %399 = arith.maximumf %397, %398 : vector<2x128xf32>
    %400 = vector.broadcast %394 : vector<1x128xf32> to vector<2x128xf32>
    %401 = arith.mulf %399, %400 : vector<2x128xf32>
    %402 = vector.broadcast %395 : vector<1x128xf32> to vector<2x128xf32>
    %403 = arith.addf %401, %402 : vector<2x128xf32>
    %404 = arith.truncf %403 : vector<2x128xf32> to vector<2x128xbf16>
    %c0_382 = arith.constant 0 : index
    %c0_383 = arith.constant 0 : index
    %405 = vector.load %arg8[%c0_382, %c0_383] : memref<128x128xbf16, #tpu.memory_space<vmem>>, vector<128x128xbf16>
    %cst_384 = arith.constant dense<0.000000e+00> : vector<2x128xf32>
    %406 = tpu.matmul %404, %405, %cst_384 {dimension_numbers = #tpu.dot_dimension_numbers<[1], [0], [0], [1], [0, 0, 1, 1], [], []>} : vector<2x128xbf16>, vector<128x128xbf16>, vector<2x128xf32> -> vector<2x128xf32>
    %c0_385 = arith.constant 0 : index
    %c0_386 = arith.constant 0 : index
    %407 = vector.load %arg9[%c0_385, %c0_386] : memref<3x128xf32, #tpu.memory_space<vmem>>, vector<1x128xf32>
    %c1_387 = arith.constant 1 : index
    %c0_388 = arith.constant 0 : index
    %408 = vector.load %arg9[%c1_387, %c0_388] : memref<3x128xf32, #tpu.memory_space<vmem>>, vector<1x128xf32>
    %c2_389 = arith.constant 2 : index
    %c0_390 = arith.constant 0 : index
    %409 = vector.load %arg9[%c2_389, %c0_390] : memref<3x128xf32, #tpu.memory_space<vmem>>, vector<1x128xf32>
    %410 = vector.broadcast %407 : vector<1x128xf32> to vector<2x128xf32>
    %411 = arith.addf %406, %410 : vector<2x128xf32>
    %cst_391 = arith.constant 0.000000e+00 : f32
    %412 = vector.broadcast %cst_391 : f32 to vector<2x128xf32>
    %413 = arith.maximumf %411, %412 : vector<2x128xf32>
    %414 = vector.broadcast %408 : vector<1x128xf32> to vector<2x128xf32>
    %415 = arith.mulf %413, %414 : vector<2x128xf32>
    %416 = vector.broadcast %409 : vector<1x128xf32> to vector<2x128xf32>
    %417 = arith.addf %415, %416 : vector<2x128xf32>
    %418 = arith.truncf %417 : vector<2x128xf32> to vector<2x128xbf16>
    %c0_392 = arith.constant 0 : index
    %c0_393 = arith.constant 0 : index
    %419 = vector.load %arg10[%c0_392, %c0_393] : memref<128x128xbf16, #tpu.memory_space<vmem>>, vector<128x128xbf16>
    %cst_394 = arith.constant dense<0.000000e+00> : vector<2x128xf32>
    %420 = tpu.matmul %418, %419, %cst_394 {dimension_numbers = #tpu.dot_dimension_numbers<[1], [0], [0], [1], [0, 0, 1, 1], [], []>} : vector<2x128xbf16>, vector<128x128xbf16>, vector<2x128xf32> -> vector<2x128xf32>
    %c0_395 = arith.constant 0 : index
    %c0_396 = arith.constant 0 : index
    %421 = vector.load %arg11[%c0_395, %c0_396] : memref<1x128xf32, #tpu.memory_space<vmem>>, vector<1x128xf32>
    %422 = vector.broadcast %421 : vector<1x128xf32> to vector<2x128xf32>
    %423 = arith.addf %420, %422 : vector<2x128xf32>
    %424 = vector.extract_strided_slice %423 {offsets = [0, 0], sizes = [2, 3], strides = [1, 1]} : vector<2x128xf32> to vector<2x3xf32>
    %c0_397 = arith.constant 0 : index
    %c0_398 = arith.constant 0 : index
    %425 = vector.load %arg12[%c0_397, %c0_398] : memref<2x3xf32, #tpu.memory_space<vmem>>, vector<2x3xf32>
    tpu.vector_store %arg12[%c0_397, %c0_398], %424 {strides = array<i32>} : memref<2x3xf32, #tpu.memory_space<vmem>>, vector<2x3xf32>,
    return
  }
  func.func @transform_0(%arg0: i32) -> (i32, i32) {
    %c0_i32 = arith.constant 0 : i32
    %c0_i32_0 = arith.constant 0 : i32
    %c0_i32_1 = arith.constant 0 : i32
    return %c0_i32, %c0_i32_0 : i32, i32
  }
  func.func @transform_1(%arg0: i32) -> (i32, i32) {
    %c0_i32 = arith.constant 0 : i32
    %c0_i32_0 = arith.constant 0 : i32
    %c0_i32_1 = arith.constant 0 : i32
    return %c0_i32, %c0_i32_0 : i32, i32
  }
  func.func @transform_2(%arg0: i32) -> (i32, i32) {
    %c0_i32 = arith.constant 0 : i32
    %c0_i32_0 = arith.constant 0 : i32
    %c0_i32_1 = arith.constant 0 : i32
    return %c0_i32, %c0_i32_0 : i32, i32
  }
  func.func @transform_3(%arg0: i32) -> (i32, i32) {
    %c0_i32 = arith.constant 0 : i32
    %c0_i32_0 = arith.constant 0 : i32
    %c0_i32_1 = arith.constant 0 : i32
    return %c0_i32, %c0_i32_0 : i32, i32
  }
  func.func @transform_4(%arg0: i32) -> (i32, i32) {
    %c0_i32 = arith.constant 0 : i32
    %c0_i32_0 = arith.constant 0 : i32
    %c0_i32_1 = arith.constant 0 : i32
    return %c0_i32, %c0_i32_0 : i32, i32
  }
  func.func @transform_5(%arg0: i32) -> (i32, i32) {
    %c0_i32 = arith.constant 0 : i32
    %c0_i32_0 = arith.constant 0 : i32
    %c0_i32_1 = arith.constant 0 : i32
    return %c0_i32, %c0_i32_0 : i32, i32
  }
  func.func @transform_6(%arg0: i32) -> (i32, i32) {
    %c0_i32 = arith.constant 0 : i32
    %c0_i32_0 = arith.constant 0 : i32
    %c0_i32_1 = arith.constant 0 : i32
    return %c0_i32, %c0_i32_0 : i32, i32
  }
  func.func @transform_7(%arg0: i32) -> (i32, i32) {
    %c0_i32 = arith.constant 0 : i32
    %c0_i32_0 = arith.constant 0 : i32
    %c0_i32_1 = arith.constant 0 : i32
    return %c0_i32, %c0_i32_0 : i32, i32
  }
  func.func @transform_8(%arg0: i32) -> (i32, i32) {
    %c0_i32 = arith.constant 0 : i32
    %c0_i32_0 = arith.constant 0 : i32
    %c0_i32_1 = arith.constant 0 : i32
    return %c0_i32, %c0_i32_0 : i32, i32
  }
  func.func @transform_9(%arg0: i32) -> (i32, i32) {
    %c0_i32 = arith.constant 0 : i32
    %c0_i32_0 = arith.constant 0 : i32
    %c0_i32_1 = arith.constant 0 : i32
    return %c0_i32, %c0_i32_0 : i32, i32
  }
  func.func @transform_10(%arg0: i32) -> (i32, i32) {
    %c0_i32 = arith.constant 0 : i32
    %c0_i32_0 = arith.constant 0 : i32
    %c0_i32_1 = arith.constant 0 : i32
    return %c0_i32, %c0_i32_0 : i32, i32
  }
  func.func @transform_11(%arg0: i32) -> (i32, i32) {
    %c0_i32 = arith.constant 0 : i32
    %c0_i32_0 = arith.constant 0 : i32
    %c0_i32_1 = arith.constant 0 : i32
    return %c0_i32, %c0_i32_0 : i32, i32
  }
}

</mosaic_0001>

<llo_original>
// kernel: regression_fc_forward.1
$region0: #{regression_fc_forward.1}
  #allocation0 [shape = 'u32[]', space=smem, size = 0x4, offset = 0x4, fixed_abs, tag = 'smem constant byte address 0x4 - core index']
  #allocation1 [shape = 'u32[144,128]{1,0:T(1,128)}', space=vmem, size = 0x12000, scoped, tag = 'internal scratch']
  #allocation2 [shape = 'f32[2,12,12,64]{3,2,1,0:T(8,128)}', space=vmem, size = 0x30000, scoped, tag = 'scratch operand']
  #allocation3 [shape = 'bf16[128,1600]{1,0:T(8,128)(2,1)}', space=vmem, size = 0x68000, scoped, tag = 'scratch operand']
  #allocation4 [shape = 'f32[2,4096]{1,0:T(2,128)}', space=vmem, size = 0x8000, scoped, tag = 'scratch operand']
  %s0 = inlined_call_operand.vmem [shape: f32[128,128], index: 0, kind: input, shape index: {}]
  %s1 = inlined_call_operand.vmem [shape: bf16[128,64], index: 1, kind: input, shape index: {}]
  %s2 = inlined_call_operand.vmem [shape: f32[3,64], index: 2, kind: input, shape index: {}]
  %s3 = inlined_call_operand.vmem [shape: bf16[1600,64], index: 3, kind: input, shape index: {}]
  %s4 = inlined_call_operand.vmem [shape: f32[3,64], index: 4, kind: input, shape index: {}]
  %s5 = inlined_call_operand.vmem [shape: bf16[4096,128], index: 5, kind: input, shape index: {}]
  %s6 = inlined_call_operand.vmem [shape: f32[3,128], index: 6, kind: input, shape index: {}]
  %s7 = inlined_call_operand.vmem [shape: bf16[128,128], index: 7, kind: input, shape index: {}]
  %s8 = inlined_call_operand.vmem [shape: f32[3,128], index: 8, kind: input, shape index: {}]
  %s9 = inlined_call_operand.vmem [shape: bf16[128,128], index: 9, kind: input, shape index: {}]
  %s10 = inlined_call_operand.vmem [shape: f32[1,128], index: 10, kind: input, shape index: {}]
  %s11 = inlined_call_operand.hbm [shape: f32[2,3], index: 11, kind: output, shape index: {}]
  %s12 = sld [smem:[#allocation0]]
  $region54: #{regression_fc_forward.1} parent=0
    _
  %s14 = ssub.s32 1, %s12
  %s15 = scalar_select 0, %s14, %s12
  $region1: #{regression_fc_forward.1} parent=0
    #allocation5 [shape = 'u8[1024]{0}', space=vmem, size = 0x400, scoped, tag = 'output window, operand 0, single buffered']
    #allocation6 [shape = 's32[1]{0}', space=sflag, size = 0x4, scoped, tag = 'scoped memory for regression_fc_forward.1']
    %16 = vsyncpa [#allocation6], 0
    // Predicated region
    $region2: #{regression_fc_forward.1} parent=1 // pred_check
      _
    $region3: #{regression_fc_forward.1} parent=1 // pred_check_branch
      %18 = sbr.rel (0) target = $region5
    $region4: #{regression_fc_forward.1} parent=1 // pred_region
      _
    $region5: #{regression_fc_forward.1} parent=1 // pred_fallthru
      _
    // Predicated region
    $region6: #{regression_fc_forward.1} parent=1 // pred_check
      _
    $region7: #{regression_fc_forward.1} parent=1 // pred_check_branch
      %20 = sbr.rel (0) target = $region9
    $region8: #{regression_fc_forward.1} parent=1 // pred_region
      _
    $region9: #{regression_fc_forward.1} parent=1 // pred_fallthru
      _
    // Predicated region
    $region10: #{regression_fc_forward.1} parent=1 // pred_check
      _
    $region11: #{regression_fc_forward.1} parent=1 // pred_check_branch
      %22 = sbr.rel (0) target = $region13
    $region12: #{regression_fc_forward.1} parent=1 // pred_region
      _
    $region13: #{regression_fc_forward.1} parent=1 // pred_fallthru
      _
    // Predicated region
    $region14: #{regression_fc_forward.1} parent=1 // pred_check
      _
    $region15: #{regression_fc_forward.1} parent=1 // pred_check_branch
      %24 = sbr.rel (0) target = $region17
    $region16: #{regression_fc_forward.1} parent=1 // pred_region
      _
    $region17: #{regression_fc_forward.1} parent=1 // pred_fallthru
      _
    // Predicated region
    $region18: #{regression_fc_forward.1} parent=1 // pred_check
      _
    $region19: #{regression_fc_forward.1} parent=1 // pred_check_branch
      %26 = sbr.rel (0) target = $region21
    $region20: #{regression_fc_forward.1} parent=1 // pred_region
      _
    $region21: #{regression_fc_forward.1} parent=1 // pred_fallthru
      _
    // Predicated region
    $region22: #{regression_fc_forward.1} parent=1 // pred_check
      _
    $region23: #{regression_fc_forward.1} parent=1 // pred_check_branch
      %28 = sbr.rel (0) target = $region25
    $region24: #{regression_fc_forward.1} parent=1 // pred_region
      _
    $region25: #{regression_fc_forward.1} parent=1 // pred_fallthru
      _
    // Predicated region
    $region26: #{regression_fc_forward.1} parent=1 // pred_check
      _
    $region27: #{regression_fc_forward.1} parent=1 // pred_check_branch
      %30 = sbr.rel (0) target = $region29
    $region28: #{regression_fc_forward.1} parent=1 // pred_region
      _
    $region29: #{regression_fc_forward.1} parent=1 // pred_fallthru
      _
    // Predicated region
    $region30: #{regression_fc_forward.1} parent=1 // pred_check
      _
    $region31: #{regression_fc_forward.1} parent=1 // pred_check_branch
      %32 = sbr.rel (0) target = $region33
    $region32: #{regression_fc_forward.1} parent=1 // pred_region
      _
    $region33: #{regression_fc_forward.1} parent=1 // pred_fallthru
      _
    // Predicated region
    $region34: #{regression_fc_forward.1} parent=1 // pred_check
      _
    $region35: #{regression_fc_forward.1} parent=1 // pred_check_branch
      %34 = sbr.rel (0) target = $region37
    $region36: #{regression_fc_forward.1} parent=1 // pred_region
      _
    $region37: #{regression_fc_forward.1} parent=1 // pred_fallthru
      _
    // Predicated region
    $region38: #{regression_fc_forward.1} parent=1 // pred_check
      _
    $region39: #{regression_fc_forward.1} parent=1 // pred_check_branch
      %36 = sbr.rel (0) target = $region41
    $region40: #{regression_fc_forward.1} parent=1 // pred_region
      _
    $region41: #{regression_fc_forward.1} parent=1 // pred_fallthru
      _
    // Predicated region
    $region42: #{regression_fc_forward.1} parent=1 // pred_check
      _
    $region43: #{regression_fc_forward.1} parent=1 // pred_check_branch
      %38 = sbr.rel (0) target = $region45
    $region44: #{regression_fc_forward.1} parent=1 // pred_region
      _
    $region45: #{regression_fc_forward.1} parent=1 // pred_fallthru
      _
    %v40 = vld [vmem:[%s0] sm:$0xff]
    %v41 = vld [vmem:[%s0 + $0x8] sm:$0xff]
    %v42 = vld [vmem:[%s0 + $0x10] sm:$0xff]
    %v43 = vld [vmem:[%s0 + $0x18] sm:$0xff]
    %v44 = vld [vmem:[%s0 + $0x20] sm:$0xff]
    %v45 = vld [vmem:[%s0 + $0x28] sm:$0xff]
    %v46 = vld [vmem:[%s0 + $0x30] sm:$0xff]
    %v47 = vld [vmem:[%s0 + $0x38] sm:$0xff]
    %v48 = vld [vmem:[%s0 + $0x40] sm:$0xff]
    %v49 = vld [vmem:[%s0 + $0x48] sm:$0xff]
    %v50 = vld [vmem:[%s0 + $0x50] sm:$0xff]
    %v51 = vld [vmem:[%s0 + $0x58] sm:$0xff]
    %v52 = vld [vmem:[%s0 + $0x60] sm:$0xff]
    %v53 = vld [vmem:[%s0 + $0x68] sm:$0xff]
    %v54 = vld [vmem:[%s0 + $0x70] sm:$0xff]
    %v55 = vld [vmem:[%s0 + $0x78] sm:$0xff]
    %v56 = vpack.c.bf16 %v41, %v40
    %v57 = vpack.c.bf16 %v43, %v42
    %v58 = vpack.c.bf16 %v45, %v44
    %v59 = vpack.c.bf16 %v47, %v46
    %v60 = vpack.c.bf16 %v49, %v48
    %v61 = vpack.c.bf16 %v51, %v50
    %v62 = vpack.c.bf16 %v53, %v52
    %v63 = vpack.c.bf16 %v55, %v54
    %v64 = vld [vmem:[%s1] sm:$0xf]
    %v65 = vld [vmem:[%s1 + $0x4] sm:$0xf]
    %v66 = vld [vmem:[%s1 + $0x8] sm:$0xf]
    %v67 = vld [vmem:[%s1 + $0xc] sm:$0xf]
    %v68 = vld [vmem:[%s1 + $0x10] sm:$0xf]
    %v69 = vld [vmem:[%s1 + $0x14] sm:$0xf]
    %v70 = vld [vmem:[%s1 + $0x18] sm:$0xf]
    %v71 = vld [vmem:[%s1 + $0x1c] sm:$0xf]
    %v72 = vld [vmem:[%s1 + $0x20] sm:$0xf]
    %v73 = vld [vmem:[%s1 + $0x24] sm:$0xf]
    %v74 = vld [vmem:[%s1 + $0x28] sm:$0xf]
    %v75 = vld [vmem:[%s1 + $0x2c] sm:$0xf]
    %v76 = vld [vmem:[%s1 + $0x30] sm:$0xf]
    %v77 = vld [vmem:[%s1 + $0x34] sm:$0xf]
    %v78 = vld [vmem:[%s1 + $0x38] sm:$0xf]
    %v79 = vld [vmem:[%s1 + $0x3c] sm:$0xf]
    %v80 = vld [vmem:[%s2] sm:$0x1]
    %v81 = vld [vmem:[%s2 + $0x1] sm:$0x1]
    %v82 = vld [vmem:[%s2 + $0x2] sm:$0x1]
    %v83 = vlaneseq
    %v84 = vshrl.u32 %v83, 7
    %v85 = vsub.s32 0, %v84
    %v86 = vrot.slane %v80, %v85
    %v103 = vunpack.c.l.b16 %v64
    %v104 = vunpack.c.l.b16 %v65
    %v105 = vunpack.c.l.b16 %v66
    %v106 = vunpack.c.l.b16 %v67
    %v107 = vunpack.c.l.b16 %v68
    %v108 = vunpack.c.l.b16 %v69
    %v109 = vunpack.c.l.b16 %v70
    %v110 = vunpack.c.l.b16 %v71
    %v111 = vunpack.c.l.b16 %v72
    %v112 = vunpack.c.l.b16 %v73
    %v113 = vunpack.c.l.b16 %v74
    %v114 = vunpack.c.l.b16 %v75
    %v115 = vunpack.c.l.b16 %v76
    %v116 = vunpack.c.l.b16 %v77
    %v117 = vunpack.c.l.b16 %v78
    %v118 = vunpack.c.l.b16 %v79
    %v119 = vpack.c.b16 %v104, %v103
    %v120 = vpack.c.b16 %v106, %v105
    %v121 = vpack.c.b16 %v108, %v107
    %v122 = vpack.c.b16 %v110, %v109
    %v123 = vpack.c.b16 %v112, %v111
    %v124 = vpack.c.b16 %v114, %v113
    %v125 = vpack.c.b16 %v116, %v115
    %v126 = vpack.c.b16 %v118, %v117
    %135 = vmatprep.subr.bf16.mxu0 0
    %136 = vmatpush1.bf16.msra.mxu0 %v126
    %137 = vmatprep.subr.bf16.mxu0 0
    %138 = vmatpush1.bf16.msra.mxu0 %v125
    %139 = vmatprep.subr.bf16.mxu0 0
    %140 = vmatpush1.bf16.msra.mxu0 %v124
    %141 = vmatprep.subr.bf16.mxu0 0
    %142 = vmatpush1.bf16.msra.mxu0 %v123
    %143 = vmatprep.subr.bf16.mxu0 0
    %144 = vmatpush1.bf16.msra.mxu0 %v122
    %145 = vmatprep.subr.bf16.mxu0 0
    %146 = vmatpush1.bf16.msra.mxu0 %v121
    %147 = vmatprep.subr.bf16.mxu0 0
    %148 = vmatpush1.bf16.msra.mxu0 %v120
    %149 = vmatprep.subr.bf16.mxu0 0
    %150 = vmatpush1.bf16.msra.mxu0 %v119
    %151 = vmatprep.subr.bf16.mxu0 0
    %152 = vmatpush2.bf16.msra.mxu0 0
    %153 = vmatprep.subr.bf16.mxu0 0
    %154 = vmatpush2.bf16.msra.mxu0 0
    %155 = vmatprep.subr.bf16.mxu0 0
    %156 = vmatpush2.bf16.msra.mxu0 0
    %157 = vmatprep.subr.bf16.mxu0 0
    %158 = vmatpush2.bf16.msra.mxu0 0
    %159 = vmatprep.subr.bf16.mxu0 0
    %160 = vmatpush2.bf16.msra.mxu0 0
    %161 = vmatprep.subr.bf16.mxu0 0
    %162 = vmatpush2.bf16.msra.mxu0 0
    %163 = vmatprep.subr.bf16.mxu0 0
    %164 = vmatpush2.bf16.msra.mxu0 0
    %165 = vmatprep.subr.bf16.mxu0 0
    %166 = vmatpush2.bf16.msra.mxu0 0
    %167 = vmatprep.mubr.bf16.mxu0 0
    %168 = vmatmul.mubr.bf16.gmra.mxu0 %v56
    %v169 = vpop.f32.mrf.mxu0
    %v170 = vadd.f32 %v86, %v169
    %v171 = vpop.f32.mrf.mxu0
    %v172 = vpop.f32.mrf.mxu0
    %v173 = vadd.f32 %v86, %v172
    %v174 = vpop.f32.mrf.mxu0
    %175 = vmatprep.mubr.bf16.mxu0 0
    %176 = vmatmul.mubr.bf16.gmra.mxu0 %v57
    %v177 = vpop.f32.mrf.mxu0
    %v178 = vadd.f32 %v86, %v177
    %v179 = vpop.f32.mrf.mxu0
    %v180 = vpop.f32.mrf.mxu0
    %v181 = vadd.f32 %v86, %v180
    %v182 = vpop.f32.mrf.mxu0
    %183 = vmatprep.mubr.bf16.mxu0 0
    %184 = vmatmul.mubr.bf16.gmra.mxu0 %v58
    %v185 = vpop.f32.mrf.mxu0
    %v186 = vadd.f32 %v86, %v185
    %v187 = vpop.f32.mrf.mxu0
    %v188 = vpop.f32.mrf.mxu0
    %v189 = vadd.f32 %v86, %v188
    %v190 = vpop.f32.mrf.mxu0
    %191 = vmatprep.mubr.bf16.mxu0 0
    %192 = vmatmul.mubr.bf16.gmra.mxu0 %v59
    %v193 = vpop.f32.mrf.mxu0
    %v194 = vadd.f32 %v86, %v193
    %v195 = vpop.f32.mrf.mxu0
    %v196 = vpop.f32.mrf.mxu0
    %v197 = vadd.f32 %v86, %v196
    %v198 = vpop.f32.mrf.mxu0
    %199 = vmatprep.mubr.bf16.mxu0 0
    %200 = vmatmul.mubr.bf16.gmra.mxu0 %v60
    %v201 = vpop.f32.mrf.mxu0
    %v202 = vadd.f32 %v86, %v201
    %v203 = vpop.f32.mrf.mxu0
    %v204 = vpop.f32.mrf.mxu0
    %v205 = vadd.f32 %v86, %v204
    %v206 = vpop.f32.mrf.mxu0
    %207 = vmatprep.mubr.bf16.mxu0 0
    %208 = vmatmul.mubr.bf16.gmra.mxu0 %v61
    %v209 = vpop.f32.mrf.mxu0
    %v210 = vadd.f32 %v86, %v209
    %v211 = vpop.f32.mrf.mxu0
    %v212 = vpop.f32.mrf.mxu0
    %v213 = vadd.f32 %v86, %v212
    %v214 = vpop.f32.mrf.mxu0
    %215 = vmatprep.mubr.bf16.mxu0 0
    %216 = vmatmul.mubr.bf16.gmra.mxu0 %v62
    %v217 = vpop.f32.mrf.mxu0
    %v218 = vadd.f32 %v86, %v217
    %v219 = vpop.f32.mrf.mxu0
    %v220 = vpop.f32.mrf.mxu0
    %v221 = vadd.f32 %v86, %v220
    %v222 = vpop.f32.mrf.mxu0
    %223 = vmatprep.mubr.bf16.mxu0 0
    %224 = vmatmul.mubr.bf16.gmra.mxu0 %v63
    %v225 = vpop.f32.mrf.mxu0
    %v226 = vadd.f32 %v86, %v225
    %v227 = vpop.f32.mrf.mxu0
    %v228 = vpop.f32.mrf.mxu0
    %v229 = vadd.f32 %v86, %v228
    %v230 = vpop.f32.mrf.mxu0
    %231 = vdwg.mxu0
    %v232 = vmax.f32 %v170, 0.0
    %v233 = vmax.f32 %v173, 0.0
    %v234 = vmax.f32 %v178, 0.0
    %v235 = vmax.f32 %v181, 0.0
    %v236 = vmax.f32 %v186, 0.0
    %v237 = vmax.f32 %v189, 0.0
    %v238 = vmax.f32 %v194, 0.0
    %v239 = vmax.f32 %v197, 0.0
    %v240 = vmax.f32 %v202, 0.0
    %v241 = vmax.f32 %v205, 0.0
    %v242 = vmax.f32 %v210, 0.0
    %v243 = vmax.f32 %v213, 0.0
    %v244 = vmax.f32 %v218, 0.0
    %v245 = vmax.f32 %v221, 0.0
    %v246 = vmax.f32 %v226, 0.0
    %v247 = vmax.f32 %v229, 0.0
    %v248 = vlaneseq
    %v249 = vshrl.u32 %v248, 7
    %v250 = vsub.s32 0, %v249
    %v251 = vrot.slane %v81, %v250
    %v252 = vmul.f32 %v232, %v251
    %v253 = vmul.f32 %v233, %v251
    %v254 = vmul.f32 %v234, %v251
    %v255 = vmul.f32 %v235, %v251
    %v256 = vmul.f32 %v236, %v251
    %v257 = vmul.f32 %v237, %v251
    %v258 = vmul.f32 %v238, %v251
    %v259 = vmul.f32 %v239, %v251
    %v260 = vmul.f32 %v240, %v251
    %v261 = vmul.f32 %v241, %v251
    %v262 = vmul.f32 %v242, %v251
    %v263 = vmul.f32 %v243, %v251
    %v264 = vmul.f32 %v244, %v251
    %v265 = vmul.f32 %v245, %v251
    %v266 = vmul.f32 %v246, %v251
    %v267 = vmul.f32 %v247, %v251
    %v268 = vlaneseq
    %v269 = vshrl.u32 %v268, 7
    %v270 = vsub.s32 0, %v269
    %v271 = vrot.slane %v82, %v270
    %v272 = vadd.f32 %v252, %v271
    %v273 = vadd.f32 %v253, %v271
    %v274 = vadd.f32 %v254, %v271
    %v275 = vadd.f32 %v255, %v271
    %v276 = vadd.f32 %v256, %v271
    %v277 = vadd.f32 %v257, %v271
    %v278 = vadd.f32 %v258, %v271
    %v279 = vadd.f32 %v259, %v271
    %v280 = vadd.f32 %v260, %v271
    %v281 = vadd.f32 %v261, %v271
    %v282 = vadd.f32 %v262, %v271
    %v283 = vadd.f32 %v263, %v271
    %v284 = vadd.f32 %v264, %v271
    %v285 = vadd.f32 %v265, %v271
    %v286 = vadd.f32 %v266, %v271
    %v287 = vadd.f32 %v267, %v271
    %vm288 = vcmask 523264
    %289 = vst.msk [vmem:[#allocation2] sm:$0xff] %vm288, 0.0
    %vm290 = vcmask 519168
    %291 = vst.msk [vmem:[#allocation2 + $0x8] sm:$0xf] %vm290, 0.0
    %292 = vst.msk [vmem:[#allocation2 + $0x10] sm:$0xff] %vm288, 0.0
    %293 = vst.msk [vmem:[#allocation2 + $0x18] sm:$0xf] %vm290, 0.0
    %294 = vst.msk [vmem:[#allocation2 + $0x20] sm:$0xff] %vm288, 0.0
    %295 = vst.msk [vmem:[#allocation2 + $0x28] sm:$0xf] %vm290, 0.0
    %296 = vst.msk [vmem:[#allocation2 + $0x30] sm:$0xff] %vm288, 0.0
    %297 = vst.msk [vmem:[#allocation2 + $0x38] sm:$0xf] %vm290, 0.0
    %298 = vst.msk [vmem:[#allocation2 + $0x40] sm:$0xff] %vm288, 0.0
    %299 = vst.msk [vmem:[#allocation2 + $0x48] sm:$0xf] %vm290, 0.0
    %300 = vst.msk [vmem:[#allocation2 + $0x50] sm:$0xff] %vm288, 0.0
    %301 = vst.msk [vmem:[#allocation2 + $0x58] sm:$0xf] %vm290, 0.0
    %302 = vst.msk [vmem:[#allocation2 + $0x60] sm:$0xff] %vm288, 0.0
    %303 = vst.msk [vmem:[#allocation2 + $0x68] sm:$0xf] %vm290, 0.0
    %304 = vst.msk [vmem:[#allocation2 + $0x70] sm:$0xff] %vm288, 0.0
    %305 = vst.msk [vmem:[#allocation2 + $0x78] sm:$0xf] %vm290, 0.0
    %306 = vst.msk [vmem:[#allocation2 + $0x80] sm:$0xff] %vm288, 0.0
    %307 = vst.msk [vmem:[#allocation2 + $0x88] sm:$0xf] %vm290, 0.0
    %308 = vst.msk [vmem:[#allocation2 + $0x90] sm:$0xff] %vm288, 0.0
    %309 = vst.msk [vmem:[#allocation2 + $0x98] sm:$0xf] %vm290, 0.0
    %310 = vst.msk [vmem:[#allocation2 + $0xa0] sm:$0xff] %vm288, 0.0
    %311 = vst.msk [vmem:[#allocation2 + $0xa8] sm:$0xf] %vm290, 0.0
    %312 = vst.msk [vmem:[#allocation2 + $0xb0] sm:$0xff] %vm288, 0.0
    %313 = vst.msk [vmem:[#allocation2 + $0xb8] sm:$0xf] %vm290, 0.0
    %314 = vst.msk [vmem:[#allocation2 + $0xc0] sm:$0xff] %vm288, 0.0
    %315 = vst.msk [vmem:[#allocation2 + $0xc8] sm:$0xf] %vm290, 0.0
    %316 = vst.msk [vmem:[#allocation2 + $0xd0] sm:$0xff] %vm288, 0.0
    %317 = vst.msk [vmem:[#allocation2 + $0xd8] sm:$0xf] %vm290, 0.0
    %318 = vst.msk [vmem:[#allocation2 + $0xe0] sm:$0xff] %vm288, 0.0
    %319 = vst.msk [vmem:[#allocation2 + $0xe8] sm:$0xf] %vm290, 0.0
    %320 = vst.msk [vmem:[#allocation2 + $0xf0] sm:$0xff] %vm288, 0.0
    %321 = vst.msk [vmem:[#allocation2 + $0xf8] sm:$0xf] %vm290, 0.0
    %322 = vst.msk [vmem:[#allocation2 + $0x100] sm:$0xff] %vm288, 0.0
    %323 = vst.msk [vmem:[#allocation2 + $0x108] sm:$0xf] %vm290, 0.0
    %324 = vst.msk [vmem:[#allocation2 + $0x110] sm:$0xff] %vm288, 0.0
    %325 = vst.msk [vmem:[#allocation2 + $0x118] sm:$0xf] %vm290, 0.0
    %326 = vst.msk [vmem:[#allocation2 + $0x120] sm:$0xff] %vm288, 0.0
    %327 = vst.msk [vmem:[#allocation2 + $0x128] sm:$0xf] %vm290, 0.0
    %328 = vst.msk [vmem:[#allocation2 + $0x130] sm:$0xff] %vm288, 0.0
    %329 = vst.msk [vmem:[#allocation2 + $0x138] sm:$0xf] %vm290, 0.0
    %330 = vst.msk [vmem:[#allocation2 + $0x140] sm:$0xff] %vm288, 0.0
    %331 = vst.msk [vmem:[#allocation2 + $0x148] sm:$0xf] %vm290, 0.0
    %332 = vst.msk [vmem:[#allocation2 + $0x150] sm:$0xff] %vm288, 0.0
    %333 = vst.msk [vmem:[#allocation2 + $0x158] sm:$0xf] %vm290, 0.0
    %334 = vst.msk [vmem:[#allocation2 + $0x160] sm:$0xff] %vm288, 0.0
    %335 = vst.msk [vmem:[#allocation2 + $0x168] sm:$0xf] %vm290, 0.0
    %336 = vst.msk [vmem:[#allocation2 + $0x170] sm:$0xff] %vm288, 0.0
    %337 = vst.msk [vmem:[#allocation2 + $0x178] sm:$0xf] %vm290, 0.0
    %s338 = scalar_lea.vmem [#allocation2], 32
    %339 = vst.msk [vmem:[%s338 + $0x2] sm:$0xff] %vm288, %v272
    %340 = vst.msk [vmem:[%s338 + $0x12] sm:$0xff] %vm288, %v273
    %341 = vst.msk [vmem:[%s338 + $0x22] sm:$0xff] %vm288, %v274
    %342 = vst.msk [vmem:[%s338 + $0x32] sm:$0xff] %vm288, %v275
    %343 = vst.msk [vmem:[%s338 + $0x42] sm:$0xff] %vm288, %v276
    %344 = vst.msk [vmem:[%s338 + $0x52] sm:$0xff] %vm288, %v277
    %345 = vst.msk [vmem:[%s338 + $0x62] sm:$0xff] %vm288, %v278
    %346 = vst.msk [vmem:[%s338 + $0x72] sm:$0xff] %vm288, %v279
    %347 = vst.msk [vmem:[%s338 + $0xc2] sm:$0xff] %vm288, %v280
    %348 = vst.msk [vmem:[%s338 + $0xd2] sm:$0xff] %vm288, %v281
    %349 = vst.msk [vmem:[%s338 + $0xe2] sm:$0xff] %vm288, %v282
    %350 = vst.msk [vmem:[%s338 + $0xf2] sm:$0xff] %vm288, %v283
    %351 = vst.msk [vmem:[%s338 + $0x102] sm:$0xff] %vm288, %v284
    %352 = vst.msk [vmem:[%s338 + $0x112] sm:$0xff] %vm288, %v285
    %353 = vst.msk [vmem:[%s338 + $0x122] sm:$0xff] %vm288, %v286
    %354 = vst.msk [vmem:[%s338 + $0x132] sm:$0xff] %vm288, %v287
    %v355 = vld [vmem:[#allocation2] sm:$0xff]
    %v356 = vld [vmem:[#allocation2 + $0x10] sm:$0xff]
    %v357 = vld [vmem:[#allocation2 + $0x20] sm:$0xff]
    %v358 = vld [vmem:[#allocation2 + $0x30] sm:$0xff]
    %v359 = vld [vmem:[#allocation2 + $0x40] sm:$0xff]
    %v360 = vld [vmem:[#allocation2 + $0x50] sm:$0xff]
    %v361 = vld [vmem:[#allocation2 + $0x60] sm:$0xff]
    %v362 = vld [vmem:[#allocation2 + $0x70] sm:$0xff]
    %v363 = vld [vmem:[#allocation2 + $0xc0] sm:$0xff]
    %v364 = vld [vmem:[#allocation2 + $0xd0] sm:$0xff]
    %v365 = vld [vmem:[#allocation2 + $0xe0] sm:$0xff]
    %v366 = vld [vmem:[#allocation2 + $0xf0] sm:$0xff]
    %v367 = vld [vmem:[#allocation2 + $0x100] sm:$0xff]
    %v368 = vld [vmem:[#allocation2 + $0x110] sm:$0xff]
    %v369 = vld [vmem:[#allocation2 + $0x120] sm:$0xff]
    %v370 = vld [vmem:[#allocation2 + $0x130] sm:$0xff]
    %v371 = vpack.c.bf16 %v356, %v355
    %v372 = vpack.c.bf16 %v358, %v357
    %v373 = vpack.c.bf16 %v360, %v359
    %v374 = vpack.c.bf16 %v362, %v361
    %v375 = vpack.c.bf16 %v364, %v363
    %v376 = vpack.c.bf16 %v366, %v365
    %v377 = vpack.c.bf16 %v368, %v367
    %v378 = vpack.c.bf16 %v370, %v369
    %v387 = vunpack.c.l.b16 %v371
    %v388 = vunpack.c.h.b16 %v371
    %v389 = vunpack.c.l.b16 %v372
    %v390 = vunpack.c.h.b16 %v372
    %v391 = vunpack.c.l.b16 %v373
    %v392 = vunpack.c.h.b16 %v373
    %v393 = vunpack.c.l.b16 %v374
    %v394 = vunpack.c.h.b16 %v374
    %v395 = vunpack.c.l.b16 %v375
    %v396 = vunpack.c.h.b16 %v375
    %v397 = vunpack.c.l.b16 %v376
    %v398 = vunpack.c.h.b16 %v376
    %v399 = vunpack.c.l.b16 %v377
    %v400 = vunpack.c.h.b16 %v377
    %v401 = vunpack.c.l.b16 %v378
    %v402 = vunpack.c.h.b16 %v378
    %v403 = vpack.c.b16 %v387, %v387
    %v404 = vpack.c.b16 %v388, %v388
    %v405 = vpack.c.b16 %v389, %v389
    %v406 = vpack.c.b16 %v390, %v390
    %v407 = vpack.c.b16 %v391, %v391
    %v408 = vpack.c.b16 %v392, %v392
    %v409 = vpack.c.b16 %v393, %v393
    %v410 = vpack.c.b16 %v394, %v394
    %v411 = vpack.c.b16 %v395, %v395
    %v412 = vpack.c.b16 %v396, %v396
    %v413 = vpack.c.b16 %v397, %v397
    %v414 = vpack.c.b16 %v398, %v398
    %v415 = vpack.c.b16 %v399, %v399
    %v416 = vpack.c.b16 %v400, %v400
    %v417 = vpack.c.b16 %v401, %v401
    %v418 = vpack.c.b16 %v402, %v402
    %435 = vst.msk [vmem:[#allocation3] sm:$0xf] %vm290, %v403
    %436 = vst.msk [vmem:[#allocation3 + $0x34] sm:$0xf] %vm290, %v404
    %437 = vst.msk [vmem:[#allocation3 + $0x68] sm:$0xf] %vm290, %v405
    %438 = vst.msk [vmem:[#allocation3 + $0x9c] sm:$0xf] %vm290, %v406
    %439 = vst.msk [vmem:[#allocation3 + $0xd0] sm:$0xf] %vm290, %v407
    %440 = vst.msk [vmem:[#allocation3 + $0x104] sm:$0xf] %vm290, %v408
    %441 = vst.msk [vmem:[#allocation3 + $0x138] sm:$0xf] %vm290, %v409
    %442 = vst.msk [vmem:[#allocation3 + $0x16c] sm:$0xf] %vm290, %v410
    %443 = vst.msk [vmem:[#allocation3 + $0x1a0] sm:$0xf] %vm290, %v411
    %444 = vst.msk [vmem:[#allocation3 + $0x1d4] sm:$0xf] %vm290, %v412
    %445 = vst.msk [vmem:[#allocation3 + $0x208] sm:$0xf] %vm290, %v413
    %446 = vst.msk [vmem:[#allocation3 + $0x23c] sm:$0xf] %vm290, %v414
    %447 = vst.msk [vmem:[#allocation3 + $0x270] sm:$0xf] %vm290, %v415
    %448 = vst.msk [vmem:[#allocation3 + $0x2a4] sm:$0xf] %vm290, %v416
    %449 = vst.msk [vmem:[#allocation3 + $0x2d8] sm:$0xf] %vm290, %v417
    %450 = vst.msk [vmem:[#allocation3 + $0x30c] sm:$0xf] %vm290, %v418
    %v451 = vld [vmem:[#allocation2 + $0x1] sm:$0xff]
    %v452 = vld [vmem:[#allocation2 + $0x11] sm:$0xff]
    %v453 = vld [vmem:[#allocation2 + $0x21] sm:$0xff]
    %v454 = vld [vmem:[#allocation2 + $0x31] sm:$0xff]
    %v455 = vld [vmem:[#allocation2 + $0x41] sm:$0xff]
    %v456 = vld [vmem:[#allocation2 + $0x51] sm:$0xff]
    %v457 = vld [vmem:[#allocation2 + $0x61] sm:$0xff]
    %v458 = vld [vmem:[#allocation2 + $0x71] sm:$0xff]
    %v459 = vld [vmem:[#allocation2 + $0xc1] sm:$0xff]
    %v460 = vld [vmem:[#allocation2 + $0xd1] sm:$0xff]
    %v461 = vld [vmem:[#allocation2 + $0xe1] sm:$0xff]
    %v462 = vld [vmem:[#allocation2 + $0xf1] sm:$0xff]
    %v463 = vld [vmem:[#allocation2 + $0x101] sm:$0xff]
    %v464 = vld [vmem:[#allocation2 + $0x111] sm:$0xff]
    %v465 = vld [vmem:[#allocation2 + $0x121] sm:$0xff]
    %v466 = vld [vmem:[#allocation2 + $0x131] sm:$0xff]
    %v467 = vpack.c.bf16 %v452, %v451
    %v468 = vpack.c.bf16 %v454, %v453
    %v469 = vpack.c.bf16 %v456, %v455
    %v470 = vpack.c.bf16 %v458, %v457
    %v471 = vpack.c.bf16 %v460, %v459
    %v472 = vpack.c.bf16 %v462, %v461
    %v473 = vpack.c.bf16 %v464, %v463
    %v474 = vpack.c.bf16 %v466, %v465
    %v483 = vunpack.c.l.b16 %v467
    %v484 = vunpack.c.h.b16 %v467
    %v485 = vunpack.c.l.b16 %v468
    %v486 = vunpack.c.h.b16 %v468
    %v487 = vunpack.c.l.b16 %v469
    %v488 = vunpack.c.h.b16 %v469
    %v489 = vunpack.c.l.b16 %v470
    %v490 = vunpack.c.h.b16 %v470
    %v491 = vunpack.c.l.b16 %v471
    %v492 = vunpack.c.h.b16 %v471
    %v493 = vunpack.c.l.b16 %v472
    %v494 = vunpack.c.h.b16 %v472
    %v495 = vunpack.c.l.b16 %v473
    %v496 = vunpack.c.h.b16 %v473
    %v497 = vunpack.c.l.b16 %v474
    %v498 = vunpack.c.h.b16 %v474
    %v499 = vpack.c.b16 %v483, %v483
    %v500 = vpack.c.b16 %v484, %v484
    %v501 = vpack.c.b16 %v485, %v485
    %v502 = vpack.c.b16 %v486, %v486
    %v503 = vpack.c.b16 %v487, %v487
    %v504 = vpack.c.b16 %v488, %v488
    %v505 = vpack.c.b16 %v489, %v489
    %v506 = vpack.c.b16 %v490, %v490
    %v507 = vpack.c.b16 %v491, %v491
    %v508 = vpack.c.b16 %v492, %v492
    %v509 = vpack.c.b16 %v493, %v493
    %v510 = vpack.c.b16 %v494, %v494
    %v511 = vpack.c.b16 %v495, %v495
    %v512 = vpack.c.b16 %v496, %v496
    %v513 = vpack.c.b16 %v497, %v497
    %v514 = vpack.c.b16 %v498, %v498
    %515 = vrot.lane.b32.xlu0 %v499, 64
    %v516 = vpop.permute.xlu0 %515
    %517 = vrot.lane.b32.xlu0 %v500, 64
    %v518 = vpop.permute.xlu0 %517
    %519 = vrot.lane.b32.xlu0 %v501, 64
    %v520 = vpop.permute.xlu0 %519
    %521 = vrot.lane.b32.xlu0 %v502, 64
    %v522 = vpop.permute.xlu0 %521
    %523 = vrot.lane.b32.xlu0 %v503, 64
    %v524 = vpop.permute.xlu0 %523
    %525 = vrot.lane.b32.xlu0 %v504, 64
    %v526 = vpop.permute.xlu0 %525
    %527 = vrot.lane.b32.xlu0 %v505, 64
    %v528 = vpop.permute.xlu0 %527
    %529 = vrot.lane.b32.xlu0 %v506, 64
    %v530 = vpop.permute.xlu0 %529
    %531 = vrot.lane.b32.xlu0 %v507, 64
    %v532 = vpop.permute.xlu0 %531
    %533 = vrot.lane.b32.xlu0 %v508, 64
    %v534 = vpop.permute.xlu0 %533
    %535 = vrot.lane.b32.xlu0 %v509, 64
    %v536 = vpop.permute.xlu0 %535
    %537 = vrot.lane.b32.xlu0 %v510, 64
    %v538 = vpop.permute.xlu0 %537
    %539 = vrot.lane.b32.xlu0 %v511, 64
    %v540 = vpop.permute.xlu0 %539
    %541 = vrot.lane.b32.xlu0 %v512, 64
    %v542 = vpop.permute.xlu0 %541
    %543 = vrot.lane.b32.xlu0 %v513, 64
    %v544 = vpop.permute.xlu0 %543
    %545 = vrot.lane.b32.xlu0 %v514, 64
    %v546 = vpop.permute.xlu0 %545
    %vm563 = vcmask 1043968
    %564 = vst.msk [vmem:[#allocation3] sm:$0xf] %vm563, %v516
    %565 = vst.msk [vmem:[#allocation3 + $0x34] sm:$0xf] %vm563, %v518
    %566 = vst.msk [vmem:[#allocation3 + $0x68] sm:$0xf] %vm563, %v520
    %567 = vst.msk [vmem:[#allocation3 + $0x9c] sm:$0xf] %vm563, %v522
    %568 = vst.msk [vmem:[#allocation3 + $0xd0] sm:$0xf] %vm563, %v524
    %569 = vst.msk [vmem:[#allocation3 + $0x104] sm:$0xf] %vm563, %v526
    %570 = vst.msk [vmem:[#allocation3 + $0x138] sm:$0xf] %vm563, %v528
    %571 = vst.msk [vmem:[#allocation3 + $0x16c] sm:$0xf] %vm563, %v530
    %572 = vst.msk [vmem:[#allocation3 + $0x1a0] sm:$0xf] %vm563, %v532
    %573 = vst.msk [vmem:[#allocation3 + $0x1d4] sm:$0xf] %vm563, %v534
    %574 = vst.msk [vmem:[#allocation3 + $0x208] sm:$0xf] %vm563, %v536
    %575 = vst.msk [vmem:[#allocation3 + $0x23c] sm:$0xf] %vm563, %v538
    %576 = vst.msk [vmem:[#allocation3 + $0x270] sm:$0xf] %vm563, %v540
    %577 = vst.msk [vmem:[#allocation3 + $0x2a4] sm:$0xf] %vm563, %v542
    %578 = vst.msk [vmem:[#allocation3 + $0x2d8] sm:$0xf] %vm563, %v544
    %579 = vst.msk [vmem:[#allocation3 + $0x30c] sm:$0xf] %vm563, %v546
    %v580 = vld [vmem:[#allocation2 + $0x2] sm:$0xff]
    %v581 = vld [vmem:[#allocation2 + $0x12] sm:$0xff]
    %v582 = vld [vmem:[#allocation2 + $0x22] sm:$0xff]
    %v583 = vld [vmem:[#allocation2 + $0x32] sm:$0xff]
    %v584 = vld [vmem:[#allocation2 + $0x42] sm:$0xff]
    %v585 = vld [vmem:[#allocation2 + $0x52] sm:$0xff]
    %v586 = vld [vmem:[#allocation2 + $0x62] sm:$0xff]
    %v587 = vld [vmem:[#allocation2 + $0x72] sm:$0xff]
    %v588 = vld [vmem:[#allocation2 + $0xc2] sm:$0xff]
    %v589 = vld [vmem:[#allocation2 + $0xd2] sm:$0xff]
    %v590 = vld [vmem:[#allocation2 + $0xe2] sm:$0xff]
    %v591 = vld [vmem:[#allocation2 + $0xf2] sm:$0xff]
    %v592 = vld [vmem:[#allocation2 + $0x102] sm:$0xff]
    %v593 = vld [vmem:[#allocation2 + $0x112] sm:$0xff]
    %v594 = vld [vmem:[#allocation2 + $0x122] sm:$0xff]
    %v595 = vld [vmem:[#allocation2 + $0x132] sm:$0xff]
    %v596 = vpack.c.bf16 %v581, %v580
    %v597 = vpack.c.bf16 %v583, %v582
    %v598 = vpack.c.bf16 %v585, %v584
    %v599 = vpack.c.bf16 %v587, %v586
    %v600 = vpack.c.bf16 %v589, %v588
    %v601 = vpack.c.bf16 %v591, %v590
    %v602 = vpack.c.bf16 %v593, %v592
    %v603 = vpack.c.bf16 %v595, %v594
    %v612 = vunpack.c.l.b16 %v596
    %v613 = vunpack.c.h.b16 %v596
    %v614 = vunpack.c.l.b16 %v597
    %v615 = vunpack.c.h.b16 %v597
    %v616 = vunpack.c.l.b16 %v598
    %v617 = vunpack.c.h.b16 %v598
    %v618 = vunpack.c.l.b16 %v599
    %v619 = vunpack.c.h.b16 %v599
    %v620 = vunpack.c.l.b16 %v600
    %v621 = vunpack.c.h.b16 %v600
    %v622 = vunpack.c.l.b16 %v601
    %v623 = vunpack.c.h.b16 %v601
    %v624 = vunpack.c.l.b16 %v602
    %v625 = vunpack.c.h.b16 %v602
    %v626 = vunpack.c.l.b16 %v603
    %v627 = vunpack.c.h.b16 %v603
    %v628 = vpack.c.b16 %v612, %v612
    %v629 = vpack.c.b16 %v613, %v613
    %v630 = vpack.c.b16 %v614, %v614
    %v631 = vpack.c.b16 %v615, %v615
    %v632 = vpack.c.b16 %v616, %v616
    %v633 = vpack.c.b16 %v617, %v617
    %v634 = vpack.c.b16 %v618, %v618
    %v635 = vpack.c.b16 %v619, %v619
    %v636 = vpack.c.b16 %v620, %v620
    %v637 = vpack.c.b16 %v621, %v621
    %v638 = vpack.c.b16 %v622, %v622
    %v639 = vpack.c.b16 %v623, %v623
    %v640 = vpack.c.b16 %v624, %v624
    %v641 = vpack.c.b16 %v625, %v625
    %v642 = vpack.c.b16 %v626, %v626
    %v643 = vpack.c.b16 %v627, %v627
    %660 = vst.msk [vmem:[#allocation3 + $0x4] sm:$0xf] %vm290, %v628
    %661 = vst.msk [vmem:[#allocation3 + $0x38] sm:$0xf] %vm290, %v629
    %662 = vst.msk [vmem:[#allocation3 + $0x6c] sm:$0xf] %vm290, %v630
    %663 = vst.msk [vmem:[#allocation3 + $0xa0] sm:$0xf] %vm290, %v631
    %664 = vst.msk [vmem:[#allocation3 + $0xd4] sm:$0xf] %vm290, %v632
    %665 = vst.msk [vmem:[#allocation3 + $0x108] sm:$0xf] %vm290, %v633
    %666 = vst.msk [vmem:[#allocation3 + $0x13c] sm:$0xf] %vm290, %v634
    %667 = vst.msk [vmem:[#allocation3 + $0x170] sm:$0xf] %vm290, %v635
    %668 = vst.msk [vmem:[#allocation3 + $0x1a4] sm:$0xf] %vm290, %v636
    %669 = vst.msk [vmem:[#allocation3 + $0x1d8] sm:$0xf] %vm290, %v637
    %670 = vst.msk [vmem:[#allocation3 + $0x20c] sm:$0xf] %vm290, %v638
    %671 = vst.msk [vmem:[#allocation3 + $0x240] sm:$0xf] %vm290, %v639
    %672 = vst.msk [vmem:[#allocation3 + $0x274] sm:$0xf] %vm290, %v640
    %673 = vst.msk [vmem:[#allocation3 + $0x2a8] sm:$0xf] %vm290, %v641
    %674 = vst.msk [vmem:[#allocation3 + $0x2dc] sm:$0xf] %vm290, %v642
    %675 = vst.msk [vmem:[#allocation3 + $0x310] sm:$0xf] %vm290, %v643
    %v676 = vld [vmem:[#allocation2 + $0x3] sm:$0xff]
    %v677 = vld [vmem:[#allocation2 + $0x13] sm:$0xff]
    %v678 = vld [vmem:[#allocation2 + $0x23] sm:$0xff]
    %v679 = vld [vmem:[#allocation2 + $0x33] sm:$0xff]
    %v680 = vld [vmem:[#allocation2 + $0x43] sm:$0xff]
    %v681 = vld [vmem:[#allocation2 + $0x53] sm:$0xff]
    %v682 = vld [vmem:[#allocation2 + $0x63] sm:$0xff]
    %v683 = vld [vmem:[#allocation2 + $0x73] sm:$0xff]
    %v684 = vld [vmem:[#allocation2 + $0xc3] sm:$0xff]
    %v685 = vld [vmem:[#allocation2 + $0xd3] sm:$0xff]
    %v686 = vld [vmem:[#allocation2 + $0xe3] sm:$0xff]
    %v687 = vld [vmem:[#allocation2 + $0xf3] sm:$0xff]
    %v688 = vld [vmem:[#allocation2 + $0x103] sm:$0xff]
    %v689 = vld [vmem:[#allocation2 + $0x113] sm:$0xff]
    %v690 = vld [vmem:[#allocation2 + $0x123] sm:$0xff]
    %v691 = vld [vmem:[#allocation2 + $0x133] sm:$0xff]
    %v692 = vpack.c.bf16 %v677, %v676
    %v693 = vpack.c.bf16 %v679, %v678
    %v694 = vpack.c.bf16 %v681, %v680
    %v695 = vpack.c.bf16 %v683, %v682
    %v696 = vpack.c.bf16 %v685, %v684
    %v697 = vpack.c.bf16 %v687, %v686
    %v698 = vpack.c.bf16 %v689, %v688
    %v699 = vpack.c.bf16 %v691, %v690
    %v708 = vunpack.c.l.b16 %v692
    %v709 = vunpack.c.h.b16 %v692
    %v710 = vunpack.c.l.b16 %v693
    %v711 = vunpack.c.h.b16 %v693
    %v712 = vunpack.c.l.b16 %v694
    %v713 = vunpack.c.h.b16 %v694
    %v714 = vunpack.c.l.b16 %v695
    %v715 = vunpack.c.h.b16 %v695
    %v716 = vunpack.c.l.b16 %v696
    %v717 = vunpack.c.h.b16 %v696
    %v718 = vunpack.c.l.b16 %v697
    %v719 = vunpack.c.h.b16 %v697
    %v720 = vunpack.c.l.b16 %v698
    %v721 = vunpack.c.h.b16 %v698
    %v722 = vunpack.c.l.b16 %v699
    %v723 = vunpack.c.h.b16 %v699
    %v724 = vpack.c.b16 %v708, %v708
    %v725 = vpack.c.b16 %v709, %v709
    %v726 = vpack.c.b16 %v710, %v710
    %v727 = vpack.c.b16 %v711, %v711
    %v728 = vpack.c.b16 %v712, %v712
    %v729 = vpack.c.b16 %v713, %v713
    %v730 = vpack.c.b16 %v714, %v714
    %v731 = vpack.c.b16 %v715, %v715
    %v732 = vpack.c.b16 %v716, %v716
    %v733 = vpack.c.b16 %v717, %v717
    %v734 = vpack.c.b16 %v718, %v718
    %v735 = vpack.c.b16 %v719, %v719
    %v736 = vpack.c.b16 %v720, %v720
    %v737 = vpack.c.b16 %v721, %v721
    %v738 = vpack.c.b16 %v722, %v722
    %v739 = vpack.c.b16 %v723, %v723
    %740 = vrot.lane.b32.xlu0 %v724, 64
    %v741 = vpop.permute.xlu0 %740
    %742 = vrot.lane.b32.xlu0 %v725, 64
    %v743 = vpop.permute.xlu0 %742
    %744 = vrot.lane.b32.xlu0 %v726, 64
    %v745 = vpop.permute.xlu0 %744
    %746 = vrot.lane.b32.xlu0 %v727, 64
    %v747 = vpop.permute.xlu0 %746
    %748 = vrot.lane.b32.xlu0 %v728, 64
    %v749 = vpop.permute.xlu0 %748
    %750 = vrot.lane.b32.xlu0 %v729, 64
    %v751 = vpop.permute.xlu0 %750
    %752 = vrot.lane.b32.xlu0 %v730, 64
    %v753 = vpop.permute.xlu0 %752
    %754 = vrot.lane.b32.xlu0 %v731, 64
    %v755 = vpop.permute.xlu0 %754
    %756 = vrot.lane.b32.xlu0 %v732, 64
    %v757 = vpop.permute.xlu0 %756
    %758 = vrot.lane.b32.xlu0 %v733, 64
    %v759 = vpop.permute.xlu0 %758
    %760 = vrot.lane.b32.xlu0 %v734, 64
    %v761 = vpop.permute.xlu0 %760
    %762 = vrot.lane.b32.xlu0 %v735, 64
    %v763 = vpop.permute.xlu0 %762
    %764 = vrot.lane.b32.xlu0 %v736, 64
    %v765 = vpop.permute.xlu0 %764
    %766 = vrot.lane.b32.xlu0 %v737, 64
    %v767 = vpop.permute.xlu0 %766
    %768 = vrot.lane.b32.xlu0 %v738, 64
    %v769 = vpop.permute.xlu0 %768
    %770 = vrot.lane.b32.xlu0 %v739, 64
    %v771 = vpop.permute.xlu0 %770
    %788 = vst.msk [vmem:[#allocation3 + $0x4] sm:$0xf] %vm563, %v741
    %789 = vst.msk [vmem:[#allocation3 + $0x38] sm:$0xf] %vm563, %v743
    %790 = vst.msk [vmem:[#allocation3 + $0x6c] sm:$0xf] %vm563, %v745
    %791 = vst.msk [vmem:[#allocation3 + $0xa0] sm:$0xf] %vm563, %v747
    %792 = vst.msk [vmem:[#allocation3 + $0xd4] sm:$0xf] %vm563, %v749
    %793 = vst.msk [vmem:[#allocation3 + $0x108] sm:$0xf] %vm563, %v751
    %794 = vst.msk [vmem:[#allocation3 + $0x13c] sm:$0xf] %vm563, %v753
    %795 = vst.msk [vmem:[#allocation3 + $0x170] sm:$0xf] %vm563, %v755
    %796 = vst.msk [vmem:[#allocation3 + $0x1a4] sm:$0xf] %vm563, %v757
    %797 = vst.msk [vmem:[#allocation3 + $0x1d8] sm:$0xf] %vm563, %v759
    %798 = vst.msk [vmem:[#allocation3 + $0x20c] sm:$0xf] %vm563, %v761
    %799 = vst.msk [vmem:[#allocation3 + $0x240] sm:$0xf] %vm563, %v763
    %800 = vst.msk [vmem:[#allocation3 + $0x274] sm:$0xf] %vm563, %v765
    %801 = vst.msk [vmem:[#allocation3 + $0x2a8] sm:$0xf] %vm563, %v767
    %802 = vst.msk [vmem:[#allocation3 + $0x2dc] sm:$0xf] %vm563, %v769
    %803 = vst.msk [vmem:[#allocation3 + $0x310] sm:$0xf] %vm563, %v771
    %v804 = vld [vmem:[#allocation2 + $0x4] sm:$0xff]
    %v805 = vld [vmem:[#allocation2 + $0x14] sm:$0xff]
    %v806 = vld [vmem:[#allocation2 + $0x24] sm:$0xff]
    %v807 = vld [vmem:[#allocation2 + $0x34] sm:$0xff]
    %v808 = vld [vmem:[#allocation2 + $0x44] sm:$0xff]
    %v809 = vld [vmem:[#allocation2 + $0x54] sm:$0xff]
    %v810 = vld [vmem:[#allocation2 + $0x64] sm:$0xff]
    %v811 = vld [vmem:[#allocation2 + $0x74] sm:$0xff]
    %v812 = vld [vmem:[#allocation2 + $0xc4] sm:$0xff]
    %v813 = vld [vmem:[#allocation2 + $0xd4] sm:$0xff]
    %v814 = vld [vmem:[#allocation2 + $0xe4] sm:$0xff]
    %v815 = vld [vmem:[#allocation2 + $0xf4] sm:$0xff]
    %v816 = vld [vmem:[#allocation2 + $0x104] sm:$0xff]
    %v817 = vld [vmem:[#allocation2 + $0x114] sm:$0xff]
    %v818 = vld [vmem:[#allocation2 + $0x124] sm:$0xff]
    %v819 = vld [vmem:[#allocation2 + $0x134] sm:$0xff]
    %v820 = vpack.c.bf16 %v805, %v804
    %v821 = vpack.c.bf16 %v807, %v806
    %v822 = vpack.c.bf16 %v809, %v808
    %v823 = vpack.c.bf16 %v811, %v810
    %v824 = vpack.c.bf16 %v813, %v812
    %v825 = vpack.c.bf16 %v815, %v814
    %v826 = vpack.c.bf16 %v817, %v816
    %v827 = vpack.c.bf16 %v819, %v818
    %v836 = vunpack.c.l.b16 %v820
    %v837 = vunpack.c.h.b16 %v820
    %v838 = vunpack.c.l.b16 %v821
    %v839 = vunpack.c.h.b16 %v821
    %v840 = vunpack.c.l.b16 %v822
    %v841 = vunpack.c.h.b16 %v822
    %v842 = vunpack.c.l.b16 %v823
    %v843 = vunpack.c.h.b16 %v823
    %v844 = vunpack.c.l.b16 %v824
    %v845 = vunpack.c.h.b16 %v824
    %v846 = vunpack.c.l.b16 %v825
    %v847 = vunpack.c.h.b16 %v825
    %v848 = vunpack.c.l.b16 %v826
    %v849 = vunpack.c.h.b16 %v826
    %v850 = vunpack.c.l.b16 %v827
    %v851 = vunpack.c.h.b16 %v827
    %v852 = vpack.c.b16 %v836, %v836
    %v853 = vpack.c.b16 %v837, %v837
    %v854 = vpack.c.b16 %v838, %v838
    %v855 = vpack.c.b16 %v839, %v839
    %v856 = vpack.c.b16 %v840, %v840
    %v857 = vpack.c.b16 %v841, %v841
    %v858 = vpack.c.b16 %v842, %v842
    %v859 = vpack.c.b16 %v843, %v843
    %v860 = vpack.c.b16 %v844, %v844
    %v861 = vpack.c.b16 %v845, %v845
    %v862 = vpack.c.b16 %v846, %v846
    %v863 = vpack.c.b16 %v847, %v847
    %v864 = vpack.c.b16 %v848, %v848
    %v865 = vpack.c.b16 %v849, %v849
    %v866 = vpack.c.b16 %v850, %v850
    %v867 = vpack.c.b16 %v851, %v851
    %884 = vst.msk [vmem:[#allocation3 + $0x8] sm:$0xf] %vm290, %v852
    %885 = vst.msk [vmem:[#allocation3 + $0x3c] sm:$0xf] %vm290, %v853
    %886 = vst.msk [vmem:[#allocation3 + $0x70] sm:$0xf] %vm290, %v854
    %887 = vst.msk [vmem:[#allocation3 + $0xa4] sm:$0xf] %vm290, %v855
    %888 = vst.msk [vmem:[#allocation3 + $0xd8] sm:$0xf] %vm290, %v856
    %889 = vst.msk [vmem:[#allocation3 + $0x10c] sm:$0xf] %vm290, %v857
    %890 = vst.msk [vmem:[#allocation3 + $0x140] sm:$0xf] %vm290, %v858
    %891 = vst.msk [vmem:[#allocation3 + $0x174] sm:$0xf] %vm290, %v859
    %892 = vst.msk [vmem:[#allocation3 + $0x1a8] sm:$0xf] %vm290, %v860
    %893 = vst.msk [vmem:[#allocation3 + $0x1dc] sm:$0xf] %vm290, %v861
    %894 = vst.msk [vmem:[#allocation3 + $0x210] sm:$0xf] %vm290, %v862
    %895 = vst.msk [vmem:[#allocation3 + $0x244] sm:$0xf] %vm290, %v863
    %896 = vst.msk [vmem:[#allocation3 + $0x278] sm:$0xf] %vm290, %v864
    %897 = vst.msk [vmem:[#allocation3 + $0x2ac] sm:$0xf] %vm290, %v865
    %898 = vst.msk [vmem:[#allocation3 + $0x2e0] sm:$0xf] %vm290, %v866
    %899 = vst.msk [vmem:[#allocation3 + $0x314] sm:$0xf] %vm290, %v867
    %s900 = scalar_lea.vmem [#allocation2], 16
    %v901 = vld [vmem:[%s900] sm:$0xff]
    %v902 = vld [vmem:[%s900 + $0x10] sm:$0xff]
    %v903 = vld [vmem:[%s900 + $0x20] sm:$0xff]
    %v904 = vld [vmem:[%s900 + $0x30] sm:$0xff]
    %v905 = vld [vmem:[%s900 + $0x40] sm:$0xff]
    %v906 = vld [vmem:[%s900 + $0x50] sm:$0xff]
    %v907 = vld [vmem:[%s900 + $0x60] sm:$0xff]
    %v908 = vld [vmem:[%s900 + $0x70] sm:$0xff]
    %v909 = vld [vmem:[%s900 + $0xc0] sm:$0xff]
    %v910 = vld [vmem:[%s900 + $0xd0] sm:$0xff]
    %v911 = vld [vmem:[%s900 + $0xe0] sm:$0xff]
    %v912 = vld [vmem:[%s900 + $0xf0] sm:$0xff]
    %v913 = vld [vmem:[%s900 + $0x100] sm:$0xff]
    %v914 = vld [vmem:[%s900 + $0x110] sm:$0xff]
    %v915 = vld [vmem:[%s900 + $0x120] sm:$0xff]
    %v916 = vld [vmem:[%s900 + $0x130] sm:$0xff]
    %v917 = vpack.c.bf16 %v902, %v901
    %v918 = vpack.c.bf16 %v904, %v903
    %v919 = vpack.c.bf16 %v906, %v905
    %v920 = vpack.c.bf16 %v908, %v907
    %v921 = vpack.c.bf16 %v910, %v909
    %v922 = vpack.c.bf16 %v912, %v911
    %v923 = vpack.c.bf16 %v914, %v913
    %v924 = vpack.c.bf16 %v916, %v915
    %v933 = vunpack.c.l.b16 %v917
    %v934 = vunpack.c.h.b16 %v917
    %v935 = vunpack.c.l.b16 %v918
    %v936 = vunpack.c.h.b16 %v918
    %v937 = vunpack.c.l.b16 %v919
    %v938 = vunpack.c.h.b16 %v919
    %v939 = vunpack.c.l.b16 %v920
    %v940 = vunpack.c.h.b16 %v920
    %v941 = vunpack.c.l.b16 %v921
    %v942 = vunpack.c.h.b16 %v921
    %v943 = vunpack.c.l.b16 %v922
    %v944 = vunpack.c.h.b16 %v922
    %v945 = vunpack.c.l.b16 %v923
    %v946 = vunpack.c.h.b16 %v923
    %v947 = vunpack.c.l.b16 %v924
    %v948 = vunpack.c.h.b16 %v924
    %v949 = vpack.c.b16 %v933, %v933
    %v950 = vpack.c.b16 %v934, %v934
    %v951 = vpack.c.b16 %v935, %v935
    %v952 = vpack.c.b16 %v936, %v936
    %v953 = vpack.c.b16 %v937, %v937
    %v954 = vpack.c.b16 %v938, %v938
    %v955 = vpack.c.b16 %v939, %v939
    %v956 = vpack.c.b16 %v940, %v940
    %v957 = vpack.c.b16 %v941, %v941
    %v958 = vpack.c.b16 %v942, %v942
    %v959 = vpack.c.b16 %v943, %v943
    %v960 = vpack.c.b16 %v944, %v944
    %v961 = vpack.c.b16 %v945, %v945
    %v962 = vpack.c.b16 %v946, %v946
    %v963 = vpack.c.b16 %v947, %v947
    %v964 = vpack.c.b16 %v948, %v948
    %965 = vrot.lane.b32.xlu0 %v949, 64
    %v966 = vpop.permute.xlu0 %965
    %967 = vrot.lane.b32.xlu0 %v950, 64
    %v968 = vpop.permute.xlu0 %967
    %969 = vrot.lane.b32.xlu0 %v951, 64
    %v970 = vpop.permute.xlu0 %969
    %971 = vrot.lane.b32.xlu0 %v952, 64
    %v972 = vpop.permute.xlu0 %971
    %973 = vrot.lane.b32.xlu0 %v953, 64
    %v974 = vpop.permute.xlu0 %973
    %975 = vrot.lane.b32.xlu0 %v954, 64
    %v976 = vpop.permute.xlu0 %975
    %977 = vrot.lane.b32.xlu0 %v955, 64
    %v978 = vpop.permute.xlu0 %977
    %979 = vrot.lane.b32.xlu0 %v956, 64
    %v980 = vpop.permute.xlu0 %979
    %981 = vrot.lane.b32.xlu0 %v957, 64
    %v982 = vpop.permute.xlu0 %981
    %983 = vrot.lane.b32.xlu0 %v958, 64
    %v984 = vpop.permute.xlu0 %983
    %985 = vrot.lane.b32.xlu0 %v959, 64
    %v986 = vpop.permute.xlu0 %985
    %987 = vrot.lane.b32.xlu0 %v960, 64
    %v988 = vpop.permute.xlu0 %987
    %989 = vrot.lane.b32.xlu0 %v961, 64
    %v990 = vpop.permute.xlu0 %989
    %991 = vrot.lane.b32.xlu0 %v962, 64
    %v992 = vpop.permute.xlu0 %991
    %993 = vrot.lane.b32.xlu0 %v963, 64
    %v994 = vpop.permute.xlu0 %993
    %995 = vrot.lane.b32.xlu0 %v964, 64
    %v996 = vpop.permute.xlu0 %995
    %1013 = vst.msk [vmem:[#allocation3 + $0x8] sm:$0xf] %vm563, %v966
    %1014 = vst.msk [vmem:[#allocation3 + $0x3c] sm:$0xf] %vm563, %v968
    %1015 = vst.msk [vmem:[#allocation3 + $0x70] sm:$0xf] %vm563, %v970
    %1016 = vst.msk [vmem:[#allocation3 + $0xa4] sm:$0xf] %vm563, %v972
    %1017 = vst.msk [vmem:[#allocation3 + $0xd8] sm:$0xf] %vm563, %v974
    %1018 = vst.msk [vmem:[#allocation3 + $0x10c] sm:$0xf] %vm563, %v976
    %1019 = vst.msk [vmem:[#allocation3 + $0x140] sm:$0xf] %vm563, %v978
    %1020 = vst.msk [vmem:[#allocation3 + $0x174] sm:$0xf] %vm563, %v980
    %1021 = vst.msk [vmem:[#allocation3 + $0x1a8] sm:$0xf] %vm563, %v982
    %1022 = vst.msk [vmem:[#allocation3 + $0x1dc] sm:$0xf] %vm563, %v984
    %1023 = vst.msk [vmem:[#allocation3 + $0x210] sm:$0xf] %vm563, %v986
    %1024 = vst.msk [vmem:[#allocation3 + $0x244] sm:$0xf] %vm563, %v988
    %1025 = vst.msk [vmem:[#allocation3 + $0x278] sm:$0xf] %vm563, %v990
    %1026 = vst.msk [vmem:[#allocation3 + $0x2ac] sm:$0xf] %vm563, %v992
    %1027 = vst.msk [vmem:[#allocation3 + $0x2e0] sm:$0xf] %vm563, %v994
    %1028 = vst.msk [vmem:[#allocation3 + $0x314] sm:$0xf] %vm563, %v996
    %v1029 = vld [vmem:[%s900 + $0x1] sm:$0xff]
    %v1030 = vld [vmem:[%s900 + $0x11] sm:$0xff]
    %v1031 = vld [vmem:[%s900 + $0x21] sm:$0xff]
    %v1032 = vld [vmem:[%s900 + $0x31] sm:$0xff]
    %v1033 = vld [vmem:[%s900 + $0x41] sm:$0xff]
    %v1034 = vld [vmem:[%s900 + $0x51] sm:$0xff]
    %v1035 = vld [vmem:[%s900 + $0x61] sm:$0xff]
    %v1036 = vld [vmem:[%s900 + $0x71] sm:$0xff]
    %v1037 = vld [vmem:[%s900 + $0xc1] sm:$0xff]
    %v1038 = vld [vmem:[%s900 + $0xd1] sm:$0xff]
    %v1039 = vld [vmem:[%s900 + $0xe1] sm:$0xff]
    %v1040 = vld [vmem:[%s900 + $0xf1] sm:$0xff]
    %v1041 = vld [vmem:[%s900 + $0x101] sm:$0xff]
    %v1042 = vld [vmem:[%s900 + $0x111] sm:$0xff]
    %v1043 = vld [vmem:[%s900 + $0x121] sm:$0xff]
    %v1044 = vld [vmem:[%s900 + $0x131] sm:$0xff]
    %v1045 = vpack.c.bf16 %v1030, %v1029
    %v1046 = vpack.c.bf16 %v1032, %v1031
    %v1047 = vpack.c.bf16 %v1034, %v1033
    %v1048 = vpack.c.bf16 %v1036, %v1035
    %v1049 = vpack.c.bf16 %v1038, %v1037
    %v1050 = vpack.c.bf16 %v1040, %v1039
    %v1051 = vpack.c.bf16 %v1042, %v1041
    %v1052 = vpack.c.bf16 %v1044, %v1043
    %v1061 = vunpack.c.l.b16 %v1045
    %v1062 = vunpack.c.h.b16 %v1045
    %v1063 = vunpack.c.l.b16 %v1046
    %v1064 = vunpack.c.h.b16 %v1046
    %v1065 = vunpack.c.l.b16 %v1047
    %v1066 = vunpack.c.h.b16 %v1047
    %v1067 = vunpack.c.l.b16 %v1048
    %v1068 = vunpack.c.h.b16 %v1048
    %v1069 = vunpack.c.l.b16 %v1049
    %v1070 = vunpack.c.h.b16 %v1049
    %v1071 = vunpack.c.l.b16 %v1050
    %v1072 = vunpack.c.h.b16 %v1050
    %v1073 = vunpack.c.l.b16 %v1051
    %v1074 = vunpack.c.h.b16 %v1051
    %v1075 = vunpack.c.l.b16 %v1052
    %v1076 = vunpack.c.h.b16 %v1052
    %v1077 = vpack.c.b16 %v1061, %v1061
    %v1078 = vpack.c.b16 %v1062, %v1062
    %v1079 = vpack.c.b16 %v1063, %v1063
    %v1080 = vpack.c.b16 %v1064, %v1064
    %v1081 = vpack.c.b16 %v1065, %v1065
    %v1082 = vpack.c.b16 %v1066, %v1066
    %v1083 = vpack.c.b16 %v1067, %v1067
    %v1084 = vpack.c.b16 %v1068, %v1068
    %v1085 = vpack.c.b16 %v1069, %v1069
    %v1086 = vpack.c.b16 %v1070, %v1070
    %v1087 = vpack.c.b16 %v1071, %v1071
    %v1088 = vpack.c.b16 %v1072, %v1072
    %v1089 = vpack.c.b16 %v1073, %v1073
    %v1090 = vpack.c.b16 %v1074, %v1074
    %v1091 = vpack.c.b16 %v1075, %v1075
    %v1092 = vpack.c.b16 %v1076, %v1076
    %1109 = vst.msk [vmem:[#allocation3 + $0xc] sm:$0xf] %vm290, %v1077
    %1110 = vst.msk [vmem:[#allocation3 + $0x40] sm:$0xf] %vm290, %v1078
    %1111 = vst.msk [vmem:[#allocation3 + $0x74] sm:$0xf] %vm290, %v1079
    %1112 = vst.msk [vmem:[#allocation3 + $0xa8] sm:$0xf] %vm290, %v1080
    %1113 = vst.msk [vmem:[#allocation3 + $0xdc] sm:$0xf] %vm290, %v1081
    %1114 = vst.msk [vmem:[#allocation3 + $0x110] sm:$0xf] %vm290, %v1082
    %1115 = vst.msk [vmem:[#allocation3 + $0x144] sm:$0xf] %vm290, %v1083
    %1116 = vst.msk [vmem:[#allocation3 + $0x178] sm:$0xf] %vm290, %v1084
    %1117 = vst.msk [vmem:[#allocation3 + $0x1ac] sm:$0xf] %vm290, %v1085
    %1118 = vst.msk [vmem:[#allocation3 + $0x1e0] sm:$0xf] %vm290, %v1086
    %1119 = vst.msk [vmem:[#allocation3 + $0x214] sm:$0xf] %vm290, %v1087
    %1120 = vst.msk [vmem:[#allocation3 + $0x248] sm:$0xf] %vm290, %v1088
    %1121 = vst.msk [vmem:[#allocation3 + $0x27c] sm:$0xf] %vm290, %v1089
    %1122 = vst.msk [vmem:[#allocation3 + $0x2b0] sm:$0xf] %vm290, %v1090
    %1123 = vst.msk [vmem:[#allocation3 + $0x2e4] sm:$0xf] %vm290, %v1091
    %1124 = vst.msk [vmem:[#allocation3 + $0x318] sm:$0xf] %vm290, %v1092
    %v1125 = vld [vmem:[%s900 + $0x2] sm:$0xff]
    %v1126 = vld [vmem:[%s900 + $0x12] sm:$0xff]
    %v1127 = vld [vmem:[%s900 + $0x22] sm:$0xff]
    %v1128 = vld [vmem:[%s900 + $0x32] sm:$0xff]
    %v1129 = vld [vmem:[%s900 + $0x42] sm:$0xff]
    %v1130 = vld [vmem:[%s900 + $0x52] sm:$0xff]
    %v1131 = vld [vmem:[%s900 + $0x62] sm:$0xff]
    %v1132 = vld [vmem:[%s900 + $0x72] sm:$0xff]
    %v1133 = vld [vmem:[%s900 + $0xc2] sm:$0xff]
    %v1134 = vld [vmem:[%s900 + $0xd2] sm:$0xff]
    %v1135 = vld [vmem:[%s900 + $0xe2] sm:$0xff]
    %v1136 = vld [vmem:[%s900 + $0xf2] sm:$0xff]
    %v1137 = vld [vmem:[%s900 + $0x102] sm:$0xff]
    %v1138 = vld [vmem:[%s900 + $0x112] sm:$0xff]
    %v1139 = vld [vmem:[%s900 + $0x122] sm:$0xff]
    %v1140 = vld [vmem:[%s900 + $0x132] sm:$0xff]
    %v1141 = vpack.c.bf16 %v1126, %v1125
    %v1142 = vpack.c.bf16 %v1128, %v1127
    %v1143 = vpack.c.bf16 %v1130, %v1129
    %v1144 = vpack.c.bf16 %v1132, %v1131
    %v1145 = vpack.c.bf16 %v1134, %v1133
    %v1146 = vpack.c.bf16 %v1136, %v1135
    %v1147 = vpack.c.bf16 %v1138, %v1137
    %v1148 = vpack.c.bf16 %v1140, %v1139
    %v1157 = vunpack.c.l.b16 %v1141
    %v1158 = vunpack.c.h.b16 %v1141
    %v1159 = vunpack.c.l.b16 %v1142
    %v1160 = vunpack.c.h.b16 %v1142
    %v1161 = vunpack.c.l.b16 %v1143
    %v1162 = vunpack.c.h.b16 %v1143
    %v1163 = vunpack.c.l.b16 %v1144
    %v1164 = vunpack.c.h.b16 %v1144
    %v1165 = vunpack.c.l.b16 %v1145
    %v1166 = vunpack.c.h.b16 %v1145
    %v1167 = vunpack.c.l.b16 %v1146
    %v1168 = vunpack.c.h.b16 %v1146
    %v1169 = vunpack.c.l.b16 %v1147
    %v1170 = vunpack.c.h.b16 %v1147
    %v1171 = vunpack.c.l.b16 %v1148
    %v1172 = vunpack.c.h.b16 %v1148
    %v1173 = vpack.c.b16 %v1157, %v1157
    %v1174 = vpack.c.b16 %v1158, %v1158
    %v1175 = vpack.c.b16 %v1159, %v1159
    %v1176 = vpack.c.b16 %v1160, %v1160
    %v1177 = vpack.c.b16 %v1161, %v1161
    %v1178 = vpack.c.b16 %v1162, %v1162
    %v1179 = vpack.c.b16 %v1163, %v1163
    %v1180 = vpack.c.b16 %v1164, %v1164
    %v1181 = vpack.c.b16 %v1165, %v1165
    %v1182 = vpack.c.b16 %v1166, %v1166
    %v1183 = vpack.c.b16 %v1167, %v1167
    %v1184 = vpack.c.b16 %v1168, %v1168
    %v1185 = vpack.c.b16 %v1169, %v1169
    %v1186 = vpack.c.b16 %v1170, %v1170
    %v1187 = vpack.c.b16 %v1171, %v1171
    %v1188 = vpack.c.b16 %v1172, %v1172
    %1189 = vrot.lane.b32.xlu0 %v1173, 64
    %v1190 = vpop.permute.xlu0 %1189
    %1191 = vrot.lane.b32.xlu0 %v1174, 64
    %v1192 = vpop.permute.xlu0 %1191
    %1193 = vrot.lane.b32.xlu0 %v1175, 64
    %v1194 = vpop.permute.xlu0 %1193
    %1195 = vrot.lane.b32.xlu0 %v1176, 64
    %v1196 = vpop.permute.xlu0 %1195
    %1197 = vrot.lane.b32.xlu0 %v1177, 64
    %v1198 = vpop.permute.xlu0 %1197
    %1199 = vrot.lane.b32.xlu0 %v1178, 64
    %v1200 = vpop.permute.xlu0 %1199
    %1201 = vrot.lane.b32.xlu0 %v1179, 64
    %v1202 = vpop.permute.xlu0 %1201
    %1203 = vrot.lane.b32.xlu0 %v1180, 64
    %v1204 = vpop.permute.xlu0 %1203
    %1205 = vrot.lane.b32.xlu0 %v1181, 64
    %v1206 = vpop.permute.xlu0 %1205
    %1207 = vrot.lane.b32.xlu0 %v1182, 64
    %v1208 = vpop.permute.xlu0 %1207
    %1209 = vrot.lane.b32.xlu0 %v1183, 64
    %v1210 = vpop.permute.xlu0 %1209
    %1211 = vrot.lane.b32.xlu0 %v1184, 64
    %v1212 = vpop.permute.xlu0 %1211
    %1213 = vrot.lane.b32.xlu0 %v1185, 64
    %v1214 = vpop.permute.xlu0 %1213
    %1215 = vrot.lane.b32.xlu0 %v1186, 64
    %v1216 = vpop.permute.xlu0 %1215
    %1217 = vrot.lane.b32.xlu0 %v1187, 64
    %v1218 = vpop.permute.xlu0 %1217
    %1219 = vrot.lane.b32.xlu0 %v1188, 64
    %v1220 = vpop.permute.xlu0 %1219
    %1237 = vst.msk [vmem:[#allocation3 + $0xc] sm:$0xf] %vm563, %v1190
    %1238 = vst.msk [vmem:[#allocation3 + $0x40] sm:$0xf] %vm563, %v1192
    %1239 = vst.msk [vmem:[#allocation3 + $0x74] sm:$0xf] %vm563, %v1194
    %1240 = vst.msk [vmem:[#allocation3 + $0xa8] sm:$0xf] %vm563, %v1196
    %1241 = vst.msk [vmem:[#allocation3 + $0xdc] sm:$0xf] %vm563, %v1198
    %1242 = vst.msk [vmem:[#allocation3 + $0x110] sm:$0xf] %vm563, %v1200
    %1243 = vst.msk [vmem:[#allocation3 + $0x144] sm:$0xf] %vm563, %v1202
    %1244 = vst.msk [vmem:[#allocation3 + $0x178] sm:$0xf] %vm563, %v1204
    %1245 = vst.msk [vmem:[#allocation3 + $0x1ac] sm:$0xf] %vm563, %v1206
    %1246 = vst.msk [vmem:[#allocation3 + $0x1e0] sm:$0xf] %vm563, %v1208
    %1247 = vst.msk [vmem:[#allocation3 + $0x214] sm:$0xf] %vm563, %v1210
    %1248 = vst.msk [vmem:[#allocation3 + $0x248] sm:$0xf] %vm563, %v1212
    %1249 = vst.msk [vmem:[#allocation3 + $0x27c] sm:$0xf] %vm563, %v1214
    %1250 = vst.msk [vmem:[#allocation3 + $0x2b0] sm:$0xf] %vm563, %v1216
    %1251 = vst.msk [vmem:[#allocation3 + $0x2e4] sm:$0xf] %vm563, %v1218
    %1252 = vst.msk [vmem:[#allocation3 + $0x318] sm:$0xf] %vm563, %v1220
    %v1253 = vld [vmem:[%s900 + $0x3] sm:$0xff]
    %v1254 = vld [vmem:[%s900 + $0x13] sm:$0xff]
    %v1255 = vld [vmem:[%s900 + $0x23] sm:$0xff]
    %v1256 = vld [vmem:[%s900 + $0x33] sm:$0xff]
    %v1257 = vld [vmem:[%s900 + $0x43] sm:$0xff]
    %v1258 = vld [vmem:[%s900 + $0x53] sm:$0xff]
    %v1259 = vld [vmem:[%s900 + $0x63] sm:$0xff]
    %v1260 = vld [vmem:[%s900 + $0x73] sm:$0xff]
    %v1261 = vld [vmem:[%s900 + $0xc3] sm:$0xff]
    %v1262 = vld [vmem:[%s900 + $0xd3] sm:$0xff]
    %v1263 = vld [vmem:[%s900 + $0xe3] sm:$0xff]
    %v1264 = vld [vmem:[%s900 + $0xf3] sm:$0xff]
    %v1265 = vld [vmem:[%s900 + $0x103] sm:$0xff]
    %v1266 = vld [vmem:[%s900 + $0x113] sm:$0xff]
    %v1267 = vld [vmem:[%s900 + $0x123] sm:$0xff]
    %v1268 = vld [vmem:[%s900 + $0x133] sm:$0xff]
    %v1269 = vpack.c.bf16 %v1254, %v1253
    %v1270 = vpack.c.bf16 %v1256, %v1255
    %v1271 = vpack.c.bf16 %v1258, %v1257
    %v1272 = vpack.c.bf16 %v1260, %v1259
    %v1273 = vpack.c.bf16 %v1262, %v1261
    %v1274 = vpack.c.bf16 %v1264, %v1263
    %v1275 = vpack.c.bf16 %v1266, %v1265
    %v1276 = vpack.c.bf16 %v1268, %v1267
    %v1285 = vunpack.c.l.b16 %v1269
    %v1286 = vunpack.c.h.b16 %v1269
    %v1287 = vunpack.c.l.b16 %v1270
    %v1288 = vunpack.c.h.b16 %v1270
    %v1289 = vunpack.c.l.b16 %v1271
    %v1290 = vunpack.c.h.b16 %v1271
    %v1291 = vunpack.c.l.b16 %v1272
    %v1292 = vunpack.c.h.b16 %v1272
    %v1293 = vunpack.c.l.b16 %v1273
    %v1294 = vunpack.c.h.b16 %v1273
    %v1295 = vunpack.c.l.b16 %v1274
    %v1296 = vunpack.c.h.b16 %v1274
    %v1297 = vunpack.c.l.b16 %v1275
    %v1298 = vunpack.c.h.b16 %v1275
    %v1299 = vunpack.c.l.b16 %v1276
    %v1300 = vunpack.c.h.b16 %v1276
    %v1301 = vpack.c.b16 %v1285, %v1285
    %v1302 = vpack.c.b16 %v1286, %v1286
    %v1303 = vpack.c.b16 %v1287, %v1287
    %v1304 = vpack.c.b16 %v1288, %v1288
    %v1305 = vpack.c.b16 %v1289, %v1289
    %v1306 = vpack.c.b16 %v1290, %v1290
    %v1307 = vpack.c.b16 %v1291, %v1291
    %v1308 = vpack.c.b16 %v1292, %v1292
    %v1309 = vpack.c.b16 %v1293, %v1293
    %v1310 = vpack.c.b16 %v1294, %v1294
    %v1311 = vpack.c.b16 %v1295, %v1295
    %v1312 = vpack.c.b16 %v1296, %v1296
    %v1313 = vpack.c.b16 %v1297, %v1297
    %v1314 = vpack.c.b16 %v1298, %v1298
    %v1315 = vpack.c.b16 %v1299, %v1299
    %v1316 = vpack.c.b16 %v1300, %v1300
    %1333 = vst.msk [vmem:[#allocation3 + $0x10] sm:$0xf] %vm290, %v1301
    %1334 = vst.msk [vmem:[#allocation3 + $0x44] sm:$0xf] %vm290, %v1302
    %1335 = vst.msk [vmem:[#allocation3 + $0x78] sm:$0xf] %vm290, %v1303
    %1336 = vst.msk [vmem:[#allocation3 + $0xac] sm:$0xf] %vm290, %v1304
    %1337 = vst.msk [vmem:[#allocation3 + $0xe0] sm:$0xf] %vm290, %v1305
    %1338 = vst.msk [vmem:[#allocation3 + $0x114] sm:$0xf] %vm290, %v1306
    %1339 = vst.msk [vmem:[#allocation3 + $0x148] sm:$0xf] %vm290, %v1307
    %1340 = vst.msk [vmem:[#allocation3 + $0x17c] sm:$0xf] %vm290, %v1308
    %1341 = vst.msk [vmem:[#allocation3 + $0x1b0] sm:$0xf] %vm290, %v1309
    %1342 = vst.msk [vmem:[#allocation3 + $0x1e4] sm:$0xf] %vm290, %v1310
    %1343 = vst.msk [vmem:[#allocation3 + $0x218] sm:$0xf] %vm290, %v1311
    %1344 = vst.msk [vmem:[#allocation3 + $0x24c] sm:$0xf] %vm290, %v1312
    %1345 = vst.msk [vmem:[#allocation3 + $0x280] sm:$0xf] %vm290, %v1313
    %1346 = vst.msk [vmem:[#allocation3 + $0x2b4] sm:$0xf] %vm290, %v1314
    %1347 = vst.msk [vmem:[#allocation3 + $0x2e8] sm:$0xf] %vm290, %v1315
    %1348 = vst.msk [vmem:[#allocation3 + $0x31c] sm:$0xf] %vm290, %v1316
    %v1349 = vld [vmem:[%s900 + $0x4] sm:$0xff]
    %v1350 = vld [vmem:[%s900 + $0x14] sm:$0xff]
    %v1351 = vld [vmem:[%s900 + $0x24] sm:$0xff]
    %v1352 = vld [vmem:[%s900 + $0x34] sm:$0xff]
    %v1353 = vld [vmem:[%s900 + $0x44] sm:$0xff]
    %v1354 = vld [vmem:[%s900 + $0x54] sm:$0xff]
    %v1355 = vld [vmem:[%s900 + $0x64] sm:$0xff]
    %v1356 = vld [vmem:[%s900 + $0x74] sm:$0xff]
    %v1357 = vld [vmem:[%s900 + $0xc4] sm:$0xff]
    %v1358 = vld [vmem:[%s900 + $0xd4] sm:$0xff]
    %v1359 = vld [vmem:[%s900 + $0xe4] sm:$0xff]
    %v1360 = vld [vmem:[%s900 + $0xf4] sm:$0xff]
    %v1361 = vld [vmem:[%s900 + $0x104] sm:$0xff]
    %v1362 = vld [vmem:[%s900 + $0x114] sm:$0xff]
    %v1363 = vld [vmem:[%s900 + $0x124] sm:$0xff]
    %v1364 = vld [vmem:[%s900 + $0x134] sm:$0xff]
    %v1365 = vpack.c.bf16 %v1350, %v1349
    %v1366 = vpack.c.bf16 %v1352, %v1351
    %v1367 = vpack.c.bf16 %v1354, %v1353
    %v1368 = vpack.c.bf16 %v1356, %v1355
    %v1369 = vpack.c.bf16 %v1358, %v1357
    %v1370 = vpack.c.bf16 %v1360, %v1359
    %v1371 = vpack.c.bf16 %v1362, %v1361
    %v1372 = vpack.c.bf16 %v1364, %v1363
    %v1381 = vunpack.c.l.b16 %v1365
    %v1382 = vunpack.c.h.b16 %v1365
    %v1383 = vunpack.c.l.b16 %v1366
    %v1384 = vunpack.c.h.b16 %v1366
    %v1385 = vunpack.c.l.b16 %v1367
    %v1386 = vunpack.c.h.b16 %v1367
    %v1387 = vunpack.c.l.b16 %v1368
    %v1388 = vunpack.c.h.b16 %v1368
    %v1389 = vunpack.c.l.b16 %v1369
    %v1390 = vunpack.c.h.b16 %v1369
    %v1391 = vunpack.c.l.b16 %v1370
    %v1392 = vunpack.c.h.b16 %v1370
    %v1393 = vunpack.c.l.b16 %v1371
    %v1394 = vunpack.c.h.b16 %v1371
    %v1395 = vunpack.c.l.b16 %v1372
    %v1396 = vunpack.c.h.b16 %v1372
    %v1397 = vpack.c.b16 %v1381, %v1381
    %v1398 = vpack.c.b16 %v1382, %v1382
    %v1399 = vpack.c.b16 %v1383, %v1383
    %v1400 = vpack.c.b16 %v1384, %v1384
    %v1401 = vpack.c.b16 %v1385, %v1385
    %v1402 = vpack.c.b16 %v1386, %v1386
    %v1403 = vpack.c.b16 %v1387, %v1387
    %v1404 = vpack.c.b16 %v1388, %v1388
    %v1405 = vpack.c.b16 %v1389, %v1389
    %v1406 = vpack.c.b16 %v1390, %v1390
    %v1407 = vpack.c.b16 %v1391, %v1391
    %v1408 = vpack.c.b16 %v1392, %v1392
    %v1409 = vpack.c.b16 %v1393, %v1393
    %v1410 = vpack.c.b16 %v1394, %v1394
    %v1411 = vpack.c.b16 %v1395, %v1395
    %v1412 = vpack.c.b16 %v1396, %v1396
    %1413 = vrot.lane.b32.xlu0 %v1397, 64
    %v1414 = vpop.permute.xlu0 %1413
    %1415 = vrot.lane.b32.xlu0 %v1398, 64
    %v1416 = vpop.permute.xlu0 %1415
    %1417 = vrot.lane.b32.xlu0 %v1399, 64
    %v1418 = vpop.permute.xlu0 %1417
    %1419 = vrot.lane.b32.xlu0 %v1400, 64
    %v1420 = vpop.permute.xlu0 %1419
    %1421 = vrot.lane.b32.xlu0 %v1401, 64
    %v1422 = vpop.permute.xlu0 %1421
    %1423 = vrot.lane.b32.xlu0 %v1402, 64
    %v1424 = vpop.permute.xlu0 %1423
    %1425 = vrot.lane.b32.xlu0 %v1403, 64
    %v1426 = vpop.permute.xlu0 %1425
    %1427 = vrot.lane.b32.xlu0 %v1404, 64
    %v1428 = vpop.permute.xlu0 %1427
    %1429 = vrot.lane.b32.xlu0 %v1405, 64
    %v1430 = vpop.permute.xlu0 %1429
    %1431 = vrot.lane.b32.xlu0 %v1406, 64
    %v1432 = vpop.permute.xlu0 %1431
    %1433 = vrot.lane.b32.xlu0 %v1407, 64
    %v1434 = vpop.permute.xlu0 %1433
    %1435 = vrot.lane.b32.xlu0 %v1408, 64
    %v1436 = vpop.permute.xlu0 %1435
    %1437 = vrot.lane.b32.xlu0 %v1409, 64
    %v1438 = vpop.permute.xlu0 %1437
    %1439 = vrot.lane.b32.xlu0 %v1410, 64
    %v1440 = vpop.permute.xlu0 %1439
    %1441 = vrot.lane.b32.xlu0 %v1411, 64
    %v1442 = vpop.permute.xlu0 %1441
    %1443 = vrot.lane.b32.xlu0 %v1412, 64
    %v1444 = vpop.permute.xlu0 %1443
    %1461 = vst.msk [vmem:[#allocation3 + $0x10] sm:$0xf] %vm563, %v1414
    %1462 = vst.msk [vmem:[#allocation3 + $0x44] sm:$0xf] %vm563, %v1416
    %1463 = vst.msk [vmem:[#allocation3 + $0x78] sm:$0xf] %vm563, %v1418
    %1464 = vst.msk [vmem:[#allocation3 + $0xac] sm:$0xf] %vm563, %v1420
    %1465 = vst.msk [vmem:[#allocation3 + $0xe0] sm:$0xf] %vm563, %v1422
    %1466 = vst.msk [vmem:[#allocation3 + $0x114] sm:$0xf] %vm563, %v1424
    %1467 = vst.msk [vmem:[#allocation3 + $0x148] sm:$0xf] %vm563, %v1426
    %1468 = vst.msk [vmem:[#allocation3 + $0x17c] sm:$0xf] %vm563, %v1428
    %1469 = vst.msk [vmem:[#allocation3 + $0x1b0] sm:$0xf] %vm563, %v1430
    %1470 = vst.msk [vmem:[#allocation3 + $0x1e4] sm:$0xf] %vm563, %v1432
    %1471 = vst.msk [vmem:[#allocation3 + $0x218] sm:$0xf] %vm563, %v1434
    %1472 = vst.msk [vmem:[#allocation3 + $0x24c] sm:$0xf] %vm563, %v1436
    %1473 = vst.msk [vmem:[#allocation3 + $0x280] sm:$0xf] %vm563, %v1438
    %1474 = vst.msk [vmem:[#allocation3 + $0x2b4] sm:$0xf] %vm563, %v1440
    %1475 = vst.msk [vmem:[#allocation3 + $0x2e8] sm:$0xf] %vm563, %v1442
    %1476 = vst.msk [vmem:[#allocation3 + $0x31c] sm:$0xf] %vm563, %v1444
    %v1477 = vld [vmem:[%s338] sm:$0xff]
    %v1478 = vld [vmem:[%s338 + $0x10] sm:$0xff]
    %v1479 = vld [vmem:[%s338 + $0x20] sm:$0xff]
    %v1480 = vld [vmem:[%s338 + $0x30] sm:$0xff]
    %v1481 = vld [vmem:[%s338 + $0x40] sm:$0xff]
    %v1482 = vld [vmem:[%s338 + $0x50] sm:$0xff]
    %v1483 = vld [vmem:[%s338 + $0x60] sm:$0xff]
    %v1484 = vld [vmem:[%s338 + $0x70] sm:$0xff]
    %v1485 = vld [vmem:[%s338 + $0xc0] sm:$0xff]
    %v1486 = vld [vmem:[%s338 + $0xd0] sm:$0xff]
    %v1487 = vld [vmem:[%s338 + $0xe0] sm:$0xff]
    %v1488 = vld [vmem:[%s338 + $0xf0] sm:$0xff]
    %v1489 = vld [vmem:[%s338 + $0x100] sm:$0xff]
    %v1490 = vld [vmem:[%s338 + $0x110] sm:$0xff]
    %v1491 = vld [vmem:[%s338 + $0x120] sm:$0xff]
    %v1492 = vld [vmem:[%s338 + $0x130] sm:$0xff]
    %v1493 = vpack.c.bf16 %v1478, %v1477
    %v1494 = vpack.c.bf16 %v1480, %v1479
    %v1495 = vpack.c.bf16 %v1482, %v1481
    %v1496 = vpack.c.bf16 %v1484, %v1483
    %v1497 = vpack.c.bf16 %v1486, %v1485
    %v1498 = vpack.c.bf16 %v1488, %v1487
    %v1499 = vpack.c.bf16 %v1490, %v1489
    %v1500 = vpack.c.bf16 %v1492, %v1491
    %v1509 = vunpack.c.l.b16 %v1493
    %v1510 = vunpack.c.h.b16 %v1493
    %v1511 = vunpack.c.l.b16 %v1494
    %v1512 = vunpack.c.h.b16 %v1494
    %v1513 = vunpack.c.l.b16 %v1495
    %v1514 = vunpack.c.h.b16 %v1495
    %v1515 = vunpack.c.l.b16 %v1496
    %v1516 = vunpack.c.h.b16 %v1496
    %v1517 = vunpack.c.l.b16 %v1497
    %v1518 = vunpack.c.h.b16 %v1497
    %v1519 = vunpack.c.l.b16 %v1498
    %v1520 = vunpack.c.h.b16 %v1498
    %v1521 = vunpack.c.l.b16 %v1499
    %v1522 = vunpack.c.h.b16 %v1499
    %v1523 = vunpack.c.l.b16 %v1500
    %v1524 = vunpack.c.h.b16 %v1500
    %v1525 = vpack.c.b16 %v1509, %v1509
    %v1526 = vpack.c.b16 %v1510, %v1510
    %v1527 = vpack.c.b16 %v1511, %v1511
    %v1528 = vpack.c.b16 %v1512, %v1512
    %v1529 = vpack.c.b16 %v1513, %v1513
    %v1530 = vpack.c.b16 %v1514, %v1514
    %v1531 = vpack.c.b16 %v1515, %v1515
    %v1532 = vpack.c.b16 %v1516, %v1516
    %v1533 = vpack.c.b16 %v1517, %v1517
    %v1534 = vpack.c.b16 %v1518, %v1518
    %v1535 = vpack.c.b16 %v1519, %v1519
    %v1536 = vpack.c.b16 %v1520, %v1520
    %v1537 = vpack.c.b16 %v1521, %v1521
    %v1538 = vpack.c.b16 %v1522, %v1522
    %v1539 = vpack.c.b16 %v1523, %v1523
    %v1540 = vpack.c.b16 %v1524, %v1524
    %1557 = vst.msk [vmem:[#allocation3 + $0x14] sm:$0xf] %vm290, %v1525
    %1558 = vst.msk [vmem:[#allocation3 + $0x48] sm:$0xf] %vm290, %v1526
    %1559 = vst.msk [vmem:[#allocation3 + $0x7c] sm:$0xf] %vm290, %v1527
    %1560 = vst.msk [vmem:[#allocation3 + $0xb0] sm:$0xf] %vm290, %v1528
    %1561 = vst.msk [vmem:[#allocation3 + $0xe4] sm:$0xf] %vm290, %v1529
    %1562 = vst.msk [vmem:[#allocation3 + $0x118] sm:$0xf] %vm290, %v1530
    %1563 = vst.msk [vmem:[#allocation3 + $0x14c] sm:$0xf] %vm290, %v1531
    %1564 = vst.msk [vmem:[#allocation3 + $0x180] sm:$0xf] %vm290, %v1532
    %1565 = vst.msk [vmem:[#allocation3 + $0x1b4] sm:$0xf] %vm290, %v1533
    %1566 = vst.msk [vmem:[#allocation3 + $0x1e8] sm:$0xf] %vm290, %v1534
    %1567 = vst.msk [vmem:[#allocation3 + $0x21c] sm:$0xf] %vm290, %v1535
    %1568 = vst.msk [vmem:[#allocation3 + $0x250] sm:$0xf] %vm290, %v1536
    %1569 = vst.msk [vmem:[#allocation3 + $0x284] sm:$0xf] %vm290, %v1537
    %1570 = vst.msk [vmem:[#allocation3 + $0x2b8] sm:$0xf] %vm290, %v1538
    %1571 = vst.msk [vmem:[#allocation3 + $0x2ec] sm:$0xf] %vm290, %v1539
    %1572 = vst.msk [vmem:[#allocation3 + $0x320] sm:$0xf] %vm290, %v1540
    %v1573 = vld [vmem:[%s338 + $0x1] sm:$0xff]
    %v1574 = vld [vmem:[%s338 + $0x11] sm:$0xff]
    %v1575 = vld [vmem:[%s338 + $0x21] sm:$0xff]
    %v1576 = vld [vmem:[%s338 + $0x31] sm:$0xff]
    %v1577 = vld [vmem:[%s338 + $0x41] sm:$0xff]
    %v1578 = vld [vmem:[%s338 + $0x51] sm:$0xff]
    %v1579 = vld [vmem:[%s338 + $0x61] sm:$0xff]
    %v1580 = vld [vmem:[%s338 + $0x71] sm:$0xff]
    %v1581 = vld [vmem:[%s338 + $0xc1] sm:$0xff]
    %v1582 = vld [vmem:[%s338 + $0xd1] sm:$0xff]
    %v1583 = vld [vmem:[%s338 + $0xe1] sm:$0xff]
    %v1584 = vld [vmem:[%s338 + $0xf1] sm:$0xff]
    %v1585 = vld [vmem:[%s338 + $0x101] sm:$0xff]
    %v1586 = vld [vmem:[%s338 + $0x111] sm:$0xff]
    %v1587 = vld [vmem:[%s338 + $0x121] sm:$0xff]
    %v1588 = vld [vmem:[%s338 + $0x131] sm:$0xff]
    %v1589 = vpack.c.bf16 %v1574, %v1573
    %v1590 = vpack.c.bf16 %v1576, %v1575
    %v1591 = vpack.c.bf16 %v1578, %v1577
    %v1592 = vpack.c.bf16 %v1580, %v1579
    %v1593 = vpack.c.bf16 %v1582, %v1581
    %v1594 = vpack.c.bf16 %v1584, %v1583
    %v1595 = vpack.c.bf16 %v1586, %v1585
    %v1596 = vpack.c.bf16 %v1588, %v1587
    %v1605 = vunpack.c.l.b16 %v1589
    %v1606 = vunpack.c.h.b16 %v1589
    %v1607 = vunpack.c.l.b16 %v1590
    %v1608 = vunpack.c.h.b16 %v1590
    %v1609 = vunpack.c.l.b16 %v1591
    %v1610 = vunpack.c.h.b16 %v1591
    %v1611 = vunpack.c.l.b16 %v1592
    %v1612 = vunpack.c.h.b16 %v1592
    %v1613 = vunpack.c.l.b16 %v1593
    %v1614 = vunpack.c.h.b16 %v1593
    %v1615 = vunpack.c.l.b16 %v1594
    %v1616 = vunpack.c.h.b16 %v1594
    %v1617 = vunpack.c.l.b16 %v1595
    %v1618 = vunpack.c.h.b16 %v1595
    %v1619 = vunpack.c.l.b16 %v1596
    %v1620 = vunpack.c.h.b16 %v1596
    %v1621 = vpack.c.b16 %v1605, %v1605
    %v1622 = vpack.c.b16 %v1606, %v1606
    %v1623 = vpack.c.b16 %v1607, %v1607
    %v1624 = vpack.c.b16 %v1608, %v1608
    %v1625 = vpack.c.b16 %v1609, %v1609
    %v1626 = vpack.c.b16 %v1610, %v1610
    %v1627 = vpack.c.b16 %v1611, %v1611
    %v1628 = vpack.c.b16 %v1612, %v1612
    %v1629 = vpack.c.b16 %v1613, %v1613
    %v1630 = vpack.c.b16 %v1614, %v1614
    %v1631 = vpack.c.b16 %v1615, %v1615
    %v1632 = vpack.c.b16 %v1616, %v1616
    %v1633 = vpack.c.b16 %v1617, %v1617
    %v1634 = vpack.c.b16 %v1618, %v1618
    %v1635 = vpack.c.b16 %v1619, %v1619
    %v1636 = vpack.c.b16 %v1620, %v1620
    %1637 = vrot.lane.b32.xlu0 %v1621, 64
    %v1638 = vpop.permute.xlu0 %1637
    %1639 = vrot.lane.b32.xlu0 %v1622, 64
    %v1640 = vpop.permute.xlu0 %1639
    %1641 = vrot.lane.b32.xlu0 %v1623, 64
    %v1642 = vpop.permute.xlu0 %1641
    %1643 = vrot.lane.b32.xlu0 %v1624, 64
    %v1644 = vpop.permute.xlu0 %1643
    %1645 = vrot.lane.b32.xlu0 %v1625, 64
    %v1646 = vpop.permute.xlu0 %1645
    %1647 = vrot.lane.b32.xlu0 %v1626, 64
    %v1648 = vpop.permute.xlu0 %1647
    %1649 = vrot.lane.b32.xlu0 %v1627, 64
    %v1650 = vpop.permute.xlu0 %1649
    %1651 = vrot.lane.b32.xlu0 %v1628, 64
    %v1652 = vpop.permute.xlu0 %1651
    %1653 = vrot.lane.b32.xlu0 %v1629, 64
    %v1654 = vpop.permute.xlu0 %1653
    %1655 = vrot.lane.b32.xlu0 %v1630, 64
    %v1656 = vpop.permute.xlu0 %1655
    %1657 = vrot.lane.b32.xlu0 %v1631, 64
    %v1658 = vpop.permute.xlu0 %1657
    %1659 = vrot.lane.b32.xlu0 %v1632, 64
    %v1660 = vpop.permute.xlu0 %1659
    %1661 = vrot.lane.b32.xlu0 %v1633, 64
    %v1662 = vpop.permute.xlu0 %1661
    %1663 = vrot.lane.b32.xlu0 %v1634, 64
    %v1664 = vpop.permute.xlu0 %1663
    %1665 = vrot.lane.b32.xlu0 %v1635, 64
    %v1666 = vpop.permute.xlu0 %1665
    %1667 = vrot.lane.b32.xlu0 %v1636, 64
    %v1668 = vpop.permute.xlu0 %1667
    %1685 = vst.msk [vmem:[#allocation3 + $0x14] sm:$0xf] %vm563, %v1638
    %1686 = vst.msk [vmem:[#allocation3 + $0x48] sm:$0xf] %vm563, %v1640
    %1687 = vst.msk [vmem:[#allocation3 + $0x7c] sm:$0xf] %vm563, %v1642
    %1688 = vst.msk [vmem:[#allocation3 + $0xb0] sm:$0xf] %vm563, %v1644
    %1689 = vst.msk [vmem:[#allocation3 + $0xe4] sm:$0xf] %vm563, %v1646
    %1690 = vst.msk [vmem:[#allocation3 + $0x118] sm:$0xf] %vm563, %v1648
    %1691 = vst.msk [vmem:[#allocation3 + $0x14c] sm:$0xf] %vm563, %v1650
    %1692 = vst.msk [vmem:[#allocation3 + $0x180] sm:$0xf] %vm563, %v1652
    %1693 = vst.msk [vmem:[#allocation3 + $0x1b4] sm:$0xf] %vm563, %v1654
    %1694 = vst.msk [vmem:[#allocation3 + $0x1e8] sm:$0xf] %vm563, %v1656
    %1695 = vst.msk [vmem:[#allocation3 + $0x21c] sm:$0xf] %vm563, %v1658
    %1696 = vst.msk [vmem:[#allocation3 + $0x250] sm:$0xf] %vm563, %v1660
    %1697 = vst.msk [vmem:[#allocation3 + $0x284] sm:$0xf] %vm563, %v1662
    %1698 = vst.msk [vmem:[#allocation3 + $0x2b8] sm:$0xf] %vm563, %v1664
    %1699 = vst.msk [vmem:[#allocation3 + $0x2ec] sm:$0xf] %vm563, %v1666
    %1700 = vst.msk [vmem:[#allocation3 + $0x320] sm:$0xf] %vm563, %v1668
    %v1701 = vld [vmem:[%s338 + $0x2] sm:$0xff]
    %v1702 = vld [vmem:[%s338 + $0x12] sm:$0xff]
    %v1703 = vld [vmem:[%s338 + $0x22] sm:$0xff]
    %v1704 = vld [vmem:[%s338 + $0x32] sm:$0xff]
    %v1705 = vld [vmem:[%s338 + $0x42] sm:$0xff]
    %v1706 = vld [vmem:[%s338 + $0x52] sm:$0xff]
    %v1707 = vld [vmem:[%s338 + $0x62] sm:$0xff]
    %v1708 = vld [vmem:[%s338 + $0x72] sm:$0xff]
    %v1709 = vld [vmem:[%s338 + $0xc2] sm:$0xff]
    %v1710 = vld [vmem:[%s338 + $0xd2] sm:$0xff]
    %v1711 = vld [vmem:[%s338 + $0xe2] sm:$0xff]
    %v1712 = vld [vmem:[%s338 + $0xf2] sm:$0xff]
    %v1713 = vld [vmem:[%s338 + $0x102] sm:$0xff]
    %v1714 = vld [vmem:[%s338 + $0x112] sm:$0xff]
    %v1715 = vld [vmem:[%s338 + $0x122] sm:$0xff]
    %v1716 = vld [vmem:[%s338 + $0x132] sm:$0xff]
    %v1717 = vpack.c.bf16 %v1702, %v1701
    %v1718 = vpack.c.bf16 %v1704, %v1703
    %v1719 = vpack.c.bf16 %v1706, %v1705
    %v1720 = vpack.c.bf16 %v1708, %v1707
    %v1721 = vpack.c.bf16 %v1710, %v1709
    %v1722 = vpack.c.bf16 %v1712, %v1711
    %v1723 = vpack.c.bf16 %v1714, %v1713
    %v1724 = vpack.c.bf16 %v1716, %v1715
    %v1733 = vunpack.c.l.b16 %v1717
    %v1734 = vunpack.c.h.b16 %v1717
    %v1735 = vunpack.c.l.b16 %v1718
    %v1736 = vunpack.c.h.b16 %v1718
    %v1737 = vunpack.c.l.b16 %v1719
    %v1738 = vunpack.c.h.b16 %v1719
    %v1739 = vunpack.c.l.b16 %v1720
    %v1740 = vunpack.c.h.b16 %v1720
    %v1741 = vunpack.c.l.b16 %v1721
    %v1742 = vunpack.c.h.b16 %v1721
    %v1743 = vunpack.c.l.b16 %v1722
    %v1744 = vunpack.c.h.b16 %v1722
    %v1745 = vunpack.c.l.b16 %v1723
    %v1746 = vunpack.c.h.b16 %v1723
    %v1747 = vunpack.c.l.b16 %v1724
    %v1748 = vunpack.c.h.b16 %v1724
    %v1749 = vpack.c.b16 %v1733, %v1733
    %v1750 = vpack.c.b16 %v1734, %v1734
    %v1751 = vpack.c.b16 %v1735, %v1735
    %v1752 = vpack.c.b16 %v1736, %v1736
    %v1753 = vpack.c.b16 %v1737, %v1737
    %v1754 = vpack.c.b16 %v1738, %v1738
    %v1755 = vpack.c.b16 %v1739, %v1739
    %v1756 = vpack.c.b16 %v1740, %v1740
    %v1757 = vpack.c.b16 %v1741, %v1741
    %v1758 = vpack.c.b16 %v1742, %v1742
    %v1759 = vpack.c.b16 %v1743, %v1743
    %v1760 = vpack.c.b16 %v1744, %v1744
    %v1761 = vpack.c.b16 %v1745, %v1745
    %v1762 = vpack.c.b16 %v1746, %v1746
    %v1763 = vpack.c.b16 %v1747, %v1747
    %v1764 = vpack.c.b16 %v1748, %v1748
    %1781 = vst.msk [vmem:[#allocation3 + $0x18] sm:$0xf] %vm290, %v1749
    %1782 = vst.msk [vmem:[#allocation3 + $0x4c] sm:$0xf] %vm290, %v1750
    %1783 = vst.msk [vmem:[#allocation3 + $0x80] sm:$0xf] %vm290, %v1751
    %1784 = vst.msk [vmem:[#allocation3 + $0xb4] sm:$0xf] %vm290, %v1752
    %1785 = vst.msk [vmem:[#allocation3 + $0xe8] sm:$0xf] %vm290, %v1753
    %1786 = vst.msk [vmem:[#allocation3 + $0x11c] sm:$0xf] %vm290, %v1754
    %1787 = vst.msk [vmem:[#allocation3 + $0x150] sm:$0xf] %vm290, %v1755
    %1788 = vst.msk [vmem:[#allocation3 + $0x184] sm:$0xf] %vm290, %v1756
    %1789 = vst.msk [vmem:[#allocation3 + $0x1b8] sm:$0xf] %vm290, %v1757
    %1790 = vst.msk [vmem:[#allocation3 + $0x1ec] sm:$0xf] %vm290, %v1758
    %1791 = vst.msk [vmem:[#allocation3 + $0x220] sm:$0xf] %vm290, %v1759
    %1792 = vst.msk [vmem:[#allocation3 + $0x254] sm:$0xf] %vm290, %v1760
    %1793 = vst.msk [vmem:[#allocation3 + $0x288] sm:$0xf] %vm290, %v1761
    %1794 = vst.msk [vmem:[#allocation3 + $0x2bc] sm:$0xf] %vm290, %v1762
    %1795 = vst.msk [vmem:[#allocation3 + $0x2f0] sm:$0xf] %vm290, %v1763
    %1796 = vst.msk [vmem:[#allocation3 + $0x324] sm:$0xf] %vm290, %v1764
    %v1797 = vld [vmem:[%s338 + $0x3] sm:$0xff]
    %v1798 = vld [vmem:[%s338 + $0x13] sm:$0xff]
    %v1799 = vld [vmem:[%s338 + $0x23] sm:$0xff]
    %v1800 = vld [vmem:[%s338 + $0x33] sm:$0xff]
    %v1801 = vld [vmem:[%s338 + $0x43] sm:$0xff]
    %v1802 = vld [vmem:[%s338 + $0x53] sm:$0xff]
    %v1803 = vld [vmem:[%s338 + $0x63] sm:$0xff]
    %v1804 = vld [vmem:[%s338 + $0x73] sm:$0xff]
    %v1805 = vld [vmem:[%s338 + $0xc3] sm:$0xff]
    %v1806 = vld [vmem:[%s338 + $0xd3] sm:$0xff]
    %v1807 = vld [vmem:[%s338 + $0xe3] sm:$0xff]
    %v1808 = vld [vmem:[%s338 + $0xf3] sm:$0xff]
    %v1809 = vld [vmem:[%s338 + $0x103] sm:$0xff]
    %v1810 = vld [vmem:[%s338 + $0x113] sm:$0xff]
    %v1811 = vld [vmem:[%s338 + $0x123] sm:$0xff]
    %v1812 = vld [vmem:[%s338 + $0x133] sm:$0xff]
    %v1813 = vpack.c.bf16 %v1798, %v1797
    %v1814 = vpack.c.bf16 %v1800, %v1799
    %v1815 = vpack.c.bf16 %v1802, %v1801
    %v1816 = vpack.c.bf16 %v1804, %v1803
    %v1817 = vpack.c.bf16 %v1806, %v1805
    %v1818 = vpack.c.bf16 %v1808, %v1807
    %v1819 = vpack.c.bf16 %v1810, %v1809
    %v1820 = vpack.c.bf16 %v1812, %v1811
    %v1829 = vunpack.c.l.b16 %v1813
    %v1830 = vunpack.c.h.b16 %v1813
    %v1831 = vunpack.c.l.b16 %v1814
    %v1832 = vunpack.c.h.b16 %v1814
    %v1833 = vunpack.c.l.b16 %v1815
    %v1834 = vunpack.c.h.b16 %v1815
    %v1835 = vunpack.c.l.b16 %v1816
    %v1836 = vunpack.c.h.b16 %v1816
    %v1837 = vunpack.c.l.b16 %v1817
    %v1838 = vunpack.c.h.b16 %v1817
    %v1839 = vunpack.c.l.b16 %v1818
    %v1840 = vunpack.c.h.b16 %v1818
    %v1841 = vunpack.c.l.b16 %v1819
    %v1842 = vunpack.c.h.b16 %v1819
    %v1843 = vunpack.c.l.b16 %v1820
    %v1844 = vunpack.c.h.b16 %v1820
    %v1845 = vpack.c.b16 %v1829, %v1829
    %v1846 = vpack.c.b16 %v1830, %v1830
    %v1847 = vpack.c.b16 %v1831, %v1831
    %v1848 = vpack.c.b16 %v1832, %v1832
    %v1849 = vpack.c.b16 %v1833, %v1833
    %v1850 = vpack.c.b16 %v1834, %v1834
    %v1851 = vpack.c.b16 %v1835, %v1835
    %v1852 = vpack.c.b16 %v1836, %v1836
    %v1853 = vpack.c.b16 %v1837, %v1837
    %v1854 = vpack.c.b16 %v1838, %v1838
    %v1855 = vpack.c.b16 %v1839, %v1839
    %v1856 = vpack.c.b16 %v1840, %v1840
    %v1857 = vpack.c.b16 %v1841, %v1841
    %v1858 = vpack.c.b16 %v1842, %v1842
    %v1859 = vpack.c.b16 %v1843, %v1843
    %v1860 = vpack.c.b16 %v1844, %v1844
    %1861 = vrot.lane.b32.xlu0 %v1845, 64
    %v1862 = vpop.permute.xlu0 %1861
    %1863 = vrot.lane.b32.xlu0 %v1846, 64
    %v1864 = vpop.permute.xlu0 %1863
    %1865 = vrot.lane.b32.xlu0 %v1847, 64
    %v1866 = vpop.permute.xlu0 %1865
    %1867 = vrot.lane.b32.xlu0 %v1848, 64
    %v1868 = vpop.permute.xlu0 %1867
    %1869 = vrot.lane.b32.xlu0 %v1849, 64
    %v1870 = vpop.permute.xlu0 %1869
    %1871 = vrot.lane.b32.xlu0 %v1850, 64
    %v1872 = vpop.permute.xlu0 %1871
    %1873 = vrot.lane.b32.xlu0 %v1851, 64
    %v1874 = vpop.permute.xlu0 %1873
    %1875 = vrot.lane.b32.xlu0 %v1852, 64
    %v1876 = vpop.permute.xlu0 %1875
    %1877 = vrot.lane.b32.xlu0 %v1853, 64
    %v1878 = vpop.permute.xlu0 %1877
    %1879 = vrot.lane.b32.xlu0 %v1854, 64
    %v1880 = vpop.permute.xlu0 %1879
    %1881 = vrot.lane.b32.xlu0 %v1855, 64
    %v1882 = vpop.permute.xlu0 %1881
    %1883 = vrot.lane.b32.xlu0 %v1856, 64
    %v1884 = vpop.permute.xlu0 %1883
    %1885 = vrot.lane.b32.xlu0 %v1857, 64
    %v1886 = vpop.permute.xlu0 %1885
    %1887 = vrot.lane.b32.xlu0 %v1858, 64
    %v1888 = vpop.permute.xlu0 %1887
    %1889 = vrot.lane.b32.xlu0 %v1859, 64
    %v1890 = vpop.permute.xlu0 %1889
    %1891 = vrot.lane.b32.xlu0 %v1860, 64
    %v1892 = vpop.permute.xlu0 %1891
    %1909 = vst.msk [vmem:[#allocation3 + $0x18] sm:$0xf] %vm563, %v1862
    %1910 = vst.msk [vmem:[#allocation3 + $0x4c] sm:$0xf] %vm563, %v1864
    %1911 = vst.msk [vmem:[#allocation3 + $0x80] sm:$0xf] %vm563, %v1866
    %1912 = vst.msk [vmem:[#allocation3 + $0xb4] sm:$0xf] %vm563, %v1868
    %1913 = vst.msk [vmem:[#allocation3 + $0xe8] sm:$0xf] %vm563, %v1870
    %1914 = vst.msk [vmem:[#allocation3 + $0x11c] sm:$0xf] %vm563, %v1872
    %1915 = vst.msk [vmem:[#allocation3 + $0x150] sm:$0xf] %vm563, %v1874
    %1916 = vst.msk [vmem:[#allocation3 + $0x184] sm:$0xf] %vm563, %v1876
    %1917 = vst.msk [vmem:[#allocation3 + $0x1b8] sm:$0xf] %vm563, %v1878
    %1918 = vst.msk [vmem:[#allocation3 + $0x1ec] sm:$0xf] %vm563, %v1880
    %1919 = vst.msk [vmem:[#allocation3 + $0x220] sm:$0xf] %vm563, %v1882
    %1920 = vst.msk [vmem:[#allocation3 + $0x254] sm:$0xf] %vm563, %v1884
    %1921 = vst.msk [vmem:[#allocation3 + $0x288] sm:$0xf] %vm563, %v1886
    %1922 = vst.msk [vmem:[#allocation3 + $0x2bc] sm:$0xf] %vm563, %v1888
    %1923 = vst.msk [vmem:[#allocation3 + $0x2f0] sm:$0xf] %vm563, %v1890
    %1924 = vst.msk [vmem:[#allocation3 + $0x324] sm:$0xf] %vm563, %v1892
    %v1925 = vld [vmem:[%s338 + $0x4] sm:$0xff]
    %v1926 = vld [vmem:[%s338 + $0x14] sm:$0xff]
    %v1927 = vld [vmem:[%s338 + $0x24] sm:$0xff]
    %v1928 = vld [vmem:[%s338 + $0x34] sm:$0xff]
    %v1929 = vld [vmem:[%s338 + $0x44] sm:$0xff]
    %v1930 = vld [vmem:[%s338 + $0x54] sm:$0xff]
    %v1931 = vld [vmem:[%s338 + $0x64] sm:$0xff]
    %v1932 = vld [vmem:[%s338 + $0x74] sm:$0xff]
    %v1933 = vld [vmem:[%s338 + $0xc4] sm:$0xff]
    %v1934 = vld [vmem:[%s338 + $0xd4] sm:$0xff]
    %v1935 = vld [vmem:[%s338 + $0xe4] sm:$0xff]
    %v1936 = vld [vmem:[%s338 + $0xf4] sm:$0xff]
    %v1937 = vld [vmem:[%s338 + $0x104] sm:$0xff]
    %v1938 = vld [vmem:[%s338 + $0x114] sm:$0xff]
    %v1939 = vld [vmem:[%s338 + $0x124] sm:$0xff]
    %v1940 = vld [vmem:[%s338 + $0x134] sm:$0xff]
    %v1941 = vpack.c.bf16 %v1926, %v1925
    %v1942 = vpack.c.bf16 %v1928, %v1927
    %v1943 = vpack.c.bf16 %v1930, %v1929
    %v1944 = vpack.c.bf16 %v1932, %v1931
    %v1945 = vpack.c.bf16 %v1934, %v1933
    %v1946 = vpack.c.bf16 %v1936, %v1935
    %v1947 = vpack.c.bf16 %v1938, %v1937
    %v1948 = vpack.c.bf16 %v1940, %v1939
    %v1957 = vunpack.c.l.b16 %v1941
    %v1958 = vunpack.c.h.b16 %v1941
    %v1959 = vunpack.c.l.b16 %v1942
    %v1960 = vunpack.c.h.b16 %v1942
    %v1961 = vunpack.c.l.b16 %v1943
    %v1962 = vunpack.c.h.b16 %v1943
    %v1963 = vunpack.c.l.b16 %v1944
    %v1964 = vunpack.c.h.b16 %v1944
    %v1965 = vunpack.c.l.b16 %v1945
    %v1966 = vunpack.c.h.b16 %v1945
    %v1967 = vunpack.c.l.b16 %v1946
    %v1968 = vunpack.c.h.b16 %v1946
    %v1969 = vunpack.c.l.b16 %v1947
    %v1970 = vunpack.c.h.b16 %v1947
    %v1971 = vunpack.c.l.b16 %v1948
    %v1972 = vunpack.c.h.b16 %v1948
    %v1973 = vpack.c.b16 %v1957, %v1957
    %v1974 = vpack.c.b16 %v1958, %v1958
    %v1975 = vpack.c.b16 %v1959, %v1959
    %v1976 = vpack.c.b16 %v1960, %v1960
    %v1977 = vpack.c.b16 %v1961, %v1961
    %v1978 = vpack.c.b16 %v1962, %v1962
    %v1979 = vpack.c.b16 %v1963, %v1963
    %v1980 = vpack.c.b16 %v1964, %v1964
    %v1981 = vpack.c.b16 %v1965, %v1965
    %v1982 = vpack.c.b16 %v1966, %v1966
    %v1983 = vpack.c.b16 %v1967, %v1967
    %v1984 = vpack.c.b16 %v1968, %v1968
    %v1985 = vpack.c.b16 %v1969, %v1969
    %v1986 = vpack.c.b16 %v1970, %v1970
    %v1987 = vpack.c.b16 %v1971, %v1971
    %v1988 = vpack.c.b16 %v1972, %v1972
    %2005 = vst.msk [vmem:[#allocation3 + $0x1c] sm:$0xf] %vm290, %v1973
    %2006 = vst.msk [vmem:[#allocation3 + $0x50] sm:$0xf] %vm290, %v1974
    %2007 = vst.msk [vmem:[#allocation3 + $0x84] sm:$0xf] %vm290, %v1975
    %2008 = vst.msk [vmem:[#allocation3 + $0xb8] sm:$0xf] %vm290, %v1976
    %2009 = vst.msk [vmem:[#allocation3 + $0xec] sm:$0xf] %vm290, %v1977
    %2010 = vst.msk [vmem:[#allocation3 + $0x120] sm:$0xf] %vm290, %v1978
    %2011 = vst.msk [vmem:[#allocation3 + $0x154] sm:$0xf] %vm290, %v1979
    %2012 = vst.msk [vmem:[#allocation3 + $0x188] sm:$0xf] %vm290, %v1980
    %2013 = vst.msk [vmem:[#allocation3 + $0x1bc] sm:$0xf] %vm290, %v1981
    %2014 = vst.msk [vmem:[#allocation3 + $0x1f0] sm:$0xf] %vm290, %v1982
    %2015 = vst.msk [vmem:[#allocation3 + $0x224] sm:$0xf] %vm290, %v1983
    %2016 = vst.msk [vmem:[#allocation3 + $0x258] sm:$0xf] %vm290, %v1984
    %2017 = vst.msk [vmem:[#allocation3 + $0x28c] sm:$0xf] %vm290, %v1985
    %2018 = vst.msk [vmem:[#allocation3 + $0x2c0] sm:$0xf] %vm290, %v1986
    %2019 = vst.msk [vmem:[#allocation3 + $0x2f4] sm:$0xf] %vm290, %v1987
    %2020 = vst.msk [vmem:[#allocation3 + $0x328] sm:$0xf] %vm290, %v1988
    %s2021 = scalar_lea.vmem [#allocation2], 48
    %v2022 = vld [vmem:[%s2021] sm:$0xff]
    %v2023 = vld [vmem:[%s2021 + $0x10] sm:$0xff]
    %v2024 = vld [vmem:[%s2021 + $0x20] sm:$0xff]
    %v2025 = vld [vmem:[%s2021 + $0x30] sm:$0xff]
    %v2026 = vld [vmem:[%s2021 + $0x40] sm:$0xff]
    %v2027 = vld [vmem:[%s2021 + $0x50] sm:$0xff]
    %v2028 = vld [vmem:[%s2021 + $0x60] sm:$0xff]
    %v2029 = vld [vmem:[%s2021 + $0x70] sm:$0xff]
    %v2030 = vld [vmem:[%s2021 + $0xc0] sm:$0xff]
    %v2031 = vld [vmem:[%s2021 + $0xd0] sm:$0xff]
    %v2032 = vld [vmem:[%s2021 + $0xe0] sm:$0xff]
    %v2033 = vld [vmem:[%s2021 + $0xf0] sm:$0xff]
    %v2034 = vld [vmem:[%s2021 + $0x100] sm:$0xff]
    %v2035 = vld [vmem:[%s2021 + $0x110] sm:$0xff]
    %v2036 = vld [vmem:[%s2021 + $0x120] sm:$0xff]
    %v2037 = vld [vmem:[%s2021 + $0x130] sm:$0xff]
    %v2038 = vpack.c.bf16 %v2023, %v2022
    %v2039 = vpack.c.bf16 %v2025, %v2024
    %v2040 = vpack.c.bf16 %v2027, %v2026
    %v2041 = vpack.c.bf16 %v2029, %v2028
    %v2042 = vpack.c.bf16 %v2031, %v2030
    %v2043 = vpack.c.bf16 %v2033, %v2032
    %v2044 = vpack.c.bf16 %v2035, %v2034
    %v2045 = vpack.c.bf16 %v2037, %v2036
    %v2054 = vunpack.c.l.b16 %v2038
    %v2055 = vunpack.c.h.b16 %v2038
    %v2056 = vunpack.c.l.b16 %v2039
    %v2057 = vunpack.c.h.b16 %v2039
    %v2058 = vunpack.c.l.b16 %v2040
    %v2059 = vunpack.c.h.b16 %v2040
    %v2060 = vunpack.c.l.b16 %v2041
    %v2061 = vunpack.c.h.b16 %v2041
    %v2062 = vunpack.c.l.b16 %v2042
    %v2063 = vunpack.c.h.b16 %v2042
    %v2064 = vunpack.c.l.b16 %v2043
    %v2065 = vunpack.c.h.b16 %v2043
    %v2066 = vunpack.c.l.b16 %v2044
    %v2067 = vunpack.c.h.b16 %v2044
    %v2068 = vunpack.c.l.b16 %v2045
    %v2069 = vunpack.c.h.b16 %v2045
    %v2070 = vpack.c.b16 %v2054, %v2054
    %v2071 = vpack.c.b16 %v2055, %v2055
    %v2072 = vpack.c.b16 %v2056, %v2056
    %v2073 = vpack.c.b16 %v2057, %v2057
    %v2074 = vpack.c.b16 %v2058, %v2058
    %v2075 = vpack.c.b16 %v2059, %v2059
    %v2076 = vpack.c.b16 %v2060, %v2060
    %v2077 = vpack.c.b16 %v2061, %v2061
    %v2078 = vpack.c.b16 %v2062, %v2062
    %v2079 = vpack.c.b16 %v2063, %v2063
    %v2080 = vpack.c.b16 %v2064, %v2064
    %v2081 = vpack.c.b16 %v2065, %v2065
    %v2082 = vpack.c.b16 %v2066, %v2066
    %v2083 = vpack.c.b16 %v2067, %v2067
    %v2084 = vpack.c.b16 %v2068, %v2068
    %v2085 = vpack.c.b16 %v2069, %v2069
    %2086 = vrot.lane.b32.xlu0 %v2070, 64
    %v2087 = vpop.permute.xlu0 %2086
    %2088 = vrot.lane.b32.xlu0 %v2071, 64
    %v2089 = vpop.permute.xlu0 %2088
    %2090 = vrot.lane.b32.xlu0 %v2072, 64
    %v2091 = vpop.permute.xlu0 %2090
    %2092 = vrot.lane.b32.xlu0 %v2073, 64
    %v2093 = vpop.permute.xlu0 %2092
    %2094 = vrot.lane.b32.xlu0 %v2074, 64
    %v2095 = vpop.permute.xlu0 %2094
    %2096 = vrot.lane.b32.xlu0 %v2075, 64
    %v2097 = vpop.permute.xlu0 %2096
    %2098 = vrot.lane.b32.xlu0 %v2076, 64
    %v2099 = vpop.permute.xlu0 %2098
    %2100 = vrot.lane.b32.xlu0 %v2077, 64
    %v2101 = vpop.permute.xlu0 %2100
    %2102 = vrot.lane.b32.xlu0 %v2078, 64
    %v2103 = vpop.permute.xlu0 %2102
    %2104 = vrot.lane.b32.xlu0 %v2079, 64
    %v2105 = vpop.permute.xlu0 %2104
    %2106 = vrot.lane.b32.xlu0 %v2080, 64
    %v2107 = vpop.permute.xlu0 %2106
    %2108 = vrot.lane.b32.xlu0 %v2081, 64
    %v2109 = vpop.permute.xlu0 %2108
    %2110 = vrot.lane.b32.xlu0 %v2082, 64
    %v2111 = vpop.permute.xlu0 %2110
    %2112 = vrot.lane.b32.xlu0 %v2083, 64
    %v2113 = vpop.permute.xlu0 %2112
    %2114 = vrot.lane.b32.xlu0 %v2084, 64
    %v2115 = vpop.permute.xlu0 %2114
    %2116 = vrot.lane.b32.xlu0 %v2085, 64
    %v2117 = vpop.permute.xlu0 %2116
    %2134 = vst.msk [vmem:[#allocation3 + $0x1c] sm:$0xf] %vm563, %v2087
    %2135 = vst.msk [vmem:[#allocation3 + $0x50] sm:$0xf] %vm563, %v2089
    %2136 = vst.msk [vmem:[#allocation3 + $0x84] sm:$0xf] %vm563, %v2091
    %2137 = vst.msk [vmem:[#allocation3 + $0xb8] sm:$0xf] %vm563, %v2093
    %2138 = vst.msk [vmem:[#allocation3 + $0xec] sm:$0xf] %vm563, %v2095
    %2139 = vst.msk [vmem:[#allocation3 + $0x120] sm:$0xf] %vm563, %v2097
    %2140 = vst.msk [vmem:[#allocation3 + $0x154] sm:$0xf] %vm563, %v2099
    %2141 = vst.msk [vmem:[#allocation3 + $0x188] sm:$0xf] %vm563, %v2101
    %2142 = vst.msk [vmem:[#allocation3 + $0x1bc] sm:$0xf] %vm563, %v2103
    %2143 = vst.msk [vmem:[#allocation3 + $0x1f0] sm:$0xf] %vm563, %v2105
    %2144 = vst.msk [vmem:[#allocation3 + $0x224] sm:$0xf] %vm563, %v2107
    %2145 = vst.msk [vmem:[#allocation3 + $0x258] sm:$0xf] %vm563, %v2109
    %2146 = vst.msk [vmem:[#allocation3 + $0x28c] sm:$0xf] %vm563, %v2111
    %2147 = vst.msk [vmem:[#allocation3 + $0x2c0] sm:$0xf] %vm563, %v2113
    %2148 = vst.msk [vmem:[#allocation3 + $0x2f4] sm:$0xf] %vm563, %v2115
    %2149 = vst.msk [vmem:[#allocation3 + $0x328] sm:$0xf] %vm563, %v2117
    %v2150 = vld [vmem:[%s2021 + $0x1] sm:$0xff]
    %v2151 = vld [vmem:[%s2021 + $0x11] sm:$0xff]
    %v2152 = vld [vmem:[%s2021 + $0x21] sm:$0xff]
    %v2153 = vld [vmem:[%s2021 + $0x31] sm:$0xff]
    %v2154 = vld [vmem:[%s2021 + $0x41] sm:$0xff]
    %v2155 = vld [vmem:[%s2021 + $0x51] sm:$0xff]
    %v2156 = vld [vmem:[%s2021 + $0x61] sm:$0xff]
    %v2157 = vld [vmem:[%s2021 + $0x71] sm:$0xff]
    %v2158 = vld [vmem:[%s2021 + $0xc1] sm:$0xff]
    %v2159 = vld [vmem:[%s2021 + $0xd1] sm:$0xff]
    %v2160 = vld [vmem:[%s2021 + $0xe1] sm:$0xff]
    %v2161 = vld [vmem:[%s2021 + $0xf1] sm:$0xff]
    %v2162 = vld [vmem:[%s2021 + $0x101] sm:$0xff]
    %v2163 = vld [vmem:[%s2021 + $0x111] sm:$0xff]
    %v2164 = vld [vmem:[%s2021 + $0x121] sm:$0xff]
    %v2165 = vld [vmem:[%s2021 + $0x131] sm:$0xff]
    %v2166 = vpack.c.bf16 %v2151, %v2150
    %v2167 = vpack.c.bf16 %v2153, %v2152
    %v2168 = vpack.c.bf16 %v2155, %v2154
    %v2169 = vpack.c.bf16 %v2157, %v2156
    %v2170 = vpack.c.bf16 %v2159, %v2158
    %v2171 = vpack.c.bf16 %v2161, %v2160
    %v2172 = vpack.c.bf16 %v2163, %v2162
    %v2173 = vpack.c.bf16 %v2165, %v2164
    %v2182 = vunpack.c.l.b16 %v2166
    %v2183 = vunpack.c.h.b16 %v2166
    %v2184 = vunpack.c.l.b16 %v2167
    %v2185 = vunpack.c.h.b16 %v2167
    %v2186 = vunpack.c.l.b16 %v2168
    %v2187 = vunpack.c.h.b16 %v2168
    %v2188 = vunpack.c.l.b16 %v2169
    %v2189 = vunpack.c.h.b16 %v2169
    %v2190 = vunpack.c.l.b16 %v2170
    %v2191 = vunpack.c.h.b16 %v2170
    %v2192 = vunpack.c.l.b16 %v2171
    %v2193 = vunpack.c.h.b16 %v2171
    %v2194 = vunpack.c.l.b16 %v2172
    %v2195 = vunpack.c.h.b16 %v2172
    %v2196 = vunpack.c.l.b16 %v2173
    %v2197 = vunpack.c.h.b16 %v2173
    %v2198 = vpack.c.b16 %v2182, %v2182
    %v2199 = vpack.c.b16 %v2183, %v2183
    %v2200 = vpack.c.b16 %v2184, %v2184
    %v2201 = vpack.c.b16 %v2185, %v2185
    %v2202 = vpack.c.b16 %v2186, %v2186
    %v2203 = vpack.c.b16 %v2187, %v2187
    %v2204 = vpack.c.b16 %v2188, %v2188
    %v2205 = vpack.c.b16 %v2189, %v2189
    %v2206 = vpack.c.b16 %v2190, %v2190
    %v2207 = vpack.c.b16 %v2191, %v2191
    %v2208 = vpack.c.b16 %v2192, %v2192
    %v2209 = vpack.c.b16 %v2193, %v2193
    %v2210 = vpack.c.b16 %v2194, %v2194
    %v2211 = vpack.c.b16 %v2195, %v2195
    %v2212 = vpack.c.b16 %v2196, %v2196
    %v2213 = vpack.c.b16 %v2197, %v2197
    %2230 = vst.msk [vmem:[#allocation3 + $0x20] sm:$0xf] %vm290, %v2198
    %2231 = vst.msk [vmem:[#allocation3 + $0x54] sm:$0xf] %vm290, %v2199
    %2232 = vst.msk [vmem:[#allocation3 + $0x88] sm:$0xf] %vm290, %v2200
    %2233 = vst.msk [vmem:[#allocation3 + $0xbc] sm:$0xf] %vm290, %v2201
    %2234 = vst.msk [vmem:[#allocation3 + $0xf0] sm:$0xf] %vm290, %v2202
    %2235 = vst.msk [vmem:[#allocation3 + $0x124] sm:$0xf] %vm290, %v2203
    %2236 = vst.msk [vmem:[#allocation3 + $0x158] sm:$0xf] %vm290, %v2204
    %2237 = vst.msk [vmem:[#allocation3 + $0x18c] sm:$0xf] %vm290, %v2205
    %2238 = vst.msk [vmem:[#allocation3 + $0x1c0] sm:$0xf] %vm290, %v2206
    %2239 = vst.msk [vmem:[#allocation3 + $0x1f4] sm:$0xf] %vm290, %v2207
    %2240 = vst.msk [vmem:[#allocation3 + $0x228] sm:$0xf] %vm290, %v2208
    %2241 = vst.msk [vmem:[#allocation3 + $0x25c] sm:$0xf] %vm290, %v2209
    %2242 = vst.msk [vmem:[#allocation3 + $0x290] sm:$0xf] %vm290, %v2210
    %2243 = vst.msk [vmem:[#allocation3 + $0x2c4] sm:$0xf] %vm290, %v2211
    %2244 = vst.msk [vmem:[#allocation3 + $0x2f8] sm:$0xf] %vm290, %v2212
    %2245 = vst.msk [vmem:[#allocation3 + $0x32c] sm:$0xf] %vm290, %v2213
    %v2246 = vld [vmem:[%s2021 + $0x2] sm:$0xff]
    %v2247 = vld [vmem:[%s2021 + $0x12] sm:$0xff]
    %v2248 = vld [vmem:[%s2021 + $0x22] sm:$0xff]
    %v2249 = vld [vmem:[%s2021 + $0x32] sm:$0xff]
    %v2250 = vld [vmem:[%s2021 + $0x42] sm:$0xff]
    %v2251 = vld [vmem:[%s2021 + $0x52] sm:$0xff]
    %v2252 = vld [vmem:[%s2021 + $0x62] sm:$0xff]
    %v2253 = vld [vmem:[%s2021 + $0x72] sm:$0xff]
    %v2254 = vld [vmem:[%s2021 + $0xc2] sm:$0xff]
    %v2255 = vld [vmem:[%s2021 + $0xd2] sm:$0xff]
    %v2256 = vld [vmem:[%s2021 + $0xe2] sm:$0xff]
    %v2257 = vld [vmem:[%s2021 + $0xf2] sm:$0xff]
    %v2258 = vld [vmem:[%s2021 + $0x102] sm:$0xff]
    %v2259 = vld [vmem:[%s2021 + $0x112] sm:$0xff]
    %v2260 = vld [vmem:[%s2021 + $0x122] sm:$0xff]
    %v2261 = vld [vmem:[%s2021 + $0x132] sm:$0xff]
    %v2262 = vpack.c.bf16 %v2247, %v2246
    %v2263 = vpack.c.bf16 %v2249, %v2248
    %v2264 = vpack.c.bf16 %v2251, %v2250
    %v2265 = vpack.c.bf16 %v2253, %v2252
    %v2266 = vpack.c.bf16 %v2255, %v2254
    %v2267 = vpack.c.bf16 %v2257, %v2256
    %v2268 = vpack.c.bf16 %v2259, %v2258
    %v2269 = vpack.c.bf16 %v2261, %v2260
    %v2278 = vunpack.c.l.b16 %v2262
    %v2279 = vunpack.c.h.b16 %v2262
    %v2280 = vunpack.c.l.b16 %v2263
    %v2281 = vunpack.c.h.b16 %v2263
    %v2282 = vunpack.c.l.b16 %v2264
    %v2283 = vunpack.c.h.b16 %v2264
    %v2284 = vunpack.c.l.b16 %v2265
    %v2285 = vunpack.c.h.b16 %v2265
    %v2286 = vunpack.c.l.b16 %v2266
    %v2287 = vunpack.c.h.b16 %v2266
    %v2288 = vunpack.c.l.b16 %v2267
    %v2289 = vunpack.c.h.b16 %v2267
    %v2290 = vunpack.c.l.b16 %v2268
    %v2291 = vunpack.c.h.b16 %v2268
    %v2292 = vunpack.c.l.b16 %v2269
    %v2293 = vunpack.c.h.b16 %v2269
    %v2294 = vpack.c.b16 %v2278, %v2278
    %v2295 = vpack.c.b16 %v2279, %v2279
    %v2296 = vpack.c.b16 %v2280, %v2280
    %v2297 = vpack.c.b16 %v2281, %v2281
    %v2298 = vpack.c.b16 %v2282, %v2282
    %v2299 = vpack.c.b16 %v2283, %v2283
    %v2300 = vpack.c.b16 %v2284, %v2284
    %v2301 = vpack.c.b16 %v2285, %v2285
    %v2302 = vpack.c.b16 %v2286, %v2286
    %v2303 = vpack.c.b16 %v2287, %v2287
    %v2304 = vpack.c.b16 %v2288, %v2288
    %v2305 = vpack.c.b16 %v2289, %v2289
    %v2306 = vpack.c.b16 %v2290, %v2290
    %v2307 = vpack.c.b16 %v2291, %v2291
    %v2308 = vpack.c.b16 %v2292, %v2292
    %v2309 = vpack.c.b16 %v2293, %v2293
    %2310 = vrot.lane.b32.xlu0 %v2294, 64
    %v2311 = vpop.permute.xlu0 %2310
    %2312 = vrot.lane.b32.xlu0 %v2295, 64
    %v2313 = vpop.permute.xlu0 %2312
    %2314 = vrot.lane.b32.xlu0 %v2296, 64
    %v2315 = vpop.permute.xlu0 %2314
    %2316 = vrot.lane.b32.xlu0 %v2297, 64
    %v2317 = vpop.permute.xlu0 %2316
    %2318 = vrot.lane.b32.xlu0 %v2298, 64
    %v2319 = vpop.permute.xlu0 %2318
    %2320 = vrot.lane.b32.xlu0 %v2299, 64
    %v2321 = vpop.permute.xlu0 %2320
    %2322 = vrot.lane.b32.xlu0 %v2300, 64
    %v2323 = vpop.permute.xlu0 %2322
    %2324 = vrot.lane.b32.xlu0 %v2301, 64
    %v2325 = vpop.permute.xlu0 %2324
    %2326 = vrot.lane.b32.xlu0 %v2302, 64
    %v2327 = vpop.permute.xlu0 %2326
    %2328 = vrot.lane.b32.xlu0 %v2303, 64
    %v2329 = vpop.permute.xlu0 %2328
    %2330 = vrot.lane.b32.xlu0 %v2304, 64
    %v2331 = vpop.permute.xlu0 %2330
    %2332 = vrot.lane.b32.xlu0 %v2305, 64
    %v2333 = vpop.permute.xlu0 %2332
    %2334 = vrot.lane.b32.xlu0 %v2306, 64
    %v2335 = vpop.permute.xlu0 %2334
    %2336 = vrot.lane.b32.xlu0 %v2307, 64
    %v2337 = vpop.permute.xlu0 %2336
    %2338 = vrot.lane.b32.xlu0 %v2308, 64
    %v2339 = vpop.permute.xlu0 %2338
    %2340 = vrot.lane.b32.xlu0 %v2309, 64
    %v2341 = vpop.permute.xlu0 %2340
    %2358 = vst.msk [vmem:[#allocation3 + $0x20] sm:$0xf] %vm563, %v2311
    %2359 = vst.msk [vmem:[#allocation3 + $0x54] sm:$0xf] %vm563, %v2313
    %2360 = vst.msk [vmem:[#allocation3 + $0x88] sm:$0xf] %vm563, %v2315
    %2361 = vst.msk [vmem:[#allocation3 + $0xbc] sm:$0xf] %vm563, %v2317
    %2362 = vst.msk [vmem:[#allocation3 + $0xf0] sm:$0xf] %vm563, %v2319
    %2363 = vst.msk [vmem:[#allocation3 + $0x124] sm:$0xf] %vm563, %v2321
    %2364 = vst.msk [vmem:[#allocation3 + $0x158] sm:$0xf] %vm563, %v2323
    %2365 = vst.msk [vmem:[#allocation3 + $0x18c] sm:$0xf] %vm563, %v2325
    %2366 = vst.msk [vmem:[#allocation3 + $0x1c0] sm:$0xf] %vm563, %v2327
    %2367 = vst.msk [vmem:[#allocation3 + $0x1f4] sm:$0xf] %vm563, %v2329
    %2368 = vst.msk [vmem:[#allocation3 + $0x228] sm:$0xf] %vm563, %v2331
    %2369 = vst.msk [vmem:[#allocation3 + $0x25c] sm:$0xf] %vm563, %v2333
    %2370 = vst.msk [vmem:[#allocation3 + $0x290] sm:$0xf] %vm563, %v2335
    %2371 = vst.msk [vmem:[#allocation3 + $0x2c4] sm:$0xf] %vm563, %v2337
    %2372 = vst.msk [vmem:[#allocation3 + $0x2f8] sm:$0xf] %vm563, %v2339
    %2373 = vst.msk [vmem:[#allocation3 + $0x32c] sm:$0xf] %vm563, %v2341
    %v2374 = vld [vmem:[%s2021 + $0x3] sm:$0xff]
    %v2375 = vld [vmem:[%s2021 + $0x13] sm:$0xff]
    %v2376 = vld [vmem:[%s2021 + $0x23] sm:$0xff]
    %v2377 = vld [vmem:[%s2021 + $0x33] sm:$0xff]
    %v2378 = vld [vmem:[%s2021 + $0x43] sm:$0xff]
    %v2379 = vld [vmem:[%s2021 + $0x53] sm:$0xff]
    %v2380 = vld [vmem:[%s2021 + $0x63] sm:$0xff]
    %v2381 = vld [vmem:[%s2021 + $0x73] sm:$0xff]
    %v2382 = vld [vmem:[%s2021 + $0xc3] sm:$0xff]
    %v2383 = vld [vmem:[%s2021 + $0xd3] sm:$0xff]
    %v2384 = vld [vmem:[%s2021 + $0xe3] sm:$0xff]
    %v2385 = vld [vmem:[%s2021 + $0xf3] sm:$0xff]
    %v2386 = vld [vmem:[%s2021 + $0x103] sm:$0xff]
    %v2387 = vld [vmem:[%s2021 + $0x113] sm:$0xff]
    %v2388 = vld [vmem:[%s2021 + $0x123] sm:$0xff]
    %v2389 = vld [vmem:[%s2021 + $0x133] sm:$0xff]
    %v2390 = vpack.c.bf16 %v2375, %v2374
    %v2391 = vpack.c.bf16 %v2377, %v2376
    %v2392 = vpack.c.bf16 %v2379, %v2378
    %v2393 = vpack.c.bf16 %v2381, %v2380
    %v2394 = vpack.c.bf16 %v2383, %v2382
    %v2395 = vpack.c.bf16 %v2385, %v2384
    %v2396 = vpack.c.bf16 %v2387, %v2386
    %v2397 = vpack.c.bf16 %v2389, %v2388
    %v2406 = vunpack.c.l.b16 %v2390
    %v2407 = vunpack.c.h.b16 %v2390
    %v2408 = vunpack.c.l.b16 %v2391
    %v2409 = vunpack.c.h.b16 %v2391
    %v2410 = vunpack.c.l.b16 %v2392
    %v2411 = vunpack.c.h.b16 %v2392
    %v2412 = vunpack.c.l.b16 %v2393
    %v2413 = vunpack.c.h.b16 %v2393
    %v2414 = vunpack.c.l.b16 %v2394
    %v2415 = vunpack.c.h.b16 %v2394
    %v2416 = vunpack.c.l.b16 %v2395
    %v2417 = vunpack.c.h.b16 %v2395
    %v2418 = vunpack.c.l.b16 %v2396
    %v2419 = vunpack.c.h.b16 %v2396
    %v2420 = vunpack.c.l.b16 %v2397
    %v2421 = vunpack.c.h.b16 %v2397
    %v2422 = vpack.c.b16 %v2406, %v2406
    %v2423 = vpack.c.b16 %v2407, %v2407
    %v2424 = vpack.c.b16 %v2408, %v2408
    %v2425 = vpack.c.b16 %v2409, %v2409
    %v2426 = vpack.c.b16 %v2410, %v2410
    %v2427 = vpack.c.b16 %v2411, %v2411
    %v2428 = vpack.c.b16 %v2412, %v2412
    %v2429 = vpack.c.b16 %v2413, %v2413
    %v2430 = vpack.c.b16 %v2414, %v2414
    %v2431 = vpack.c.b16 %v2415, %v2415
    %v2432 = vpack.c.b16 %v2416, %v2416
    %v2433 = vpack.c.b16 %v2417, %v2417
    %v2434 = vpack.c.b16 %v2418, %v2418
    %v2435 = vpack.c.b16 %v2419, %v2419
    %v2436 = vpack.c.b16 %v2420, %v2420
    %v2437 = vpack.c.b16 %v2421, %v2421
    %2454 = vst.msk [vmem:[#allocation3 + $0x24] sm:$0xf] %vm290, %v2422
    %2455 = vst.msk [vmem:[#allocation3 + $0x58] sm:$0xf] %vm290, %v2423
    %2456 = vst.msk [vmem:[#allocation3 + $0x8c] sm:$0xf] %vm290, %v2424
    %2457 = vst.msk [vmem:[#allocation3 + $0xc0] sm:$0xf] %vm290, %v2425
    %2458 = vst.msk [vmem:[#allocation3 + $0xf4] sm:$0xf] %vm290, %v2426
    %2459 = vst.msk [vmem:[#allocation3 + $0x128] sm:$0xf] %vm290, %v2427
    %2460 = vst.msk [vmem:[#allocation3 + $0x15c] sm:$0xf] %vm290, %v2428
    %2461 = vst.msk [vmem:[#allocation3 + $0x190] sm:$0xf] %vm290, %v2429
    %2462 = vst.msk [vmem:[#allocation3 + $0x1c4] sm:$0xf] %vm290, %v2430
    %2463 = vst.msk [vmem:[#allocation3 + $0x1f8] sm:$0xf] %vm290, %v2431
    %2464 = vst.msk [vmem:[#allocation3 + $0x22c] sm:$0xf] %vm290, %v2432
    %2465 = vst.msk [vmem:[#allocation3 + $0x260] sm:$0xf] %vm290, %v2433
    %2466 = vst.msk [vmem:[#allocation3 + $0x294] sm:$0xf] %vm290, %v2434
    %2467 = vst.msk [vmem:[#allocation3 + $0x2c8] sm:$0xf] %vm290, %v2435
    %2468 = vst.msk [vmem:[#allocation3 + $0x2fc] sm:$0xf] %vm290, %v2436
    %2469 = vst.msk [vmem:[#allocation3 + $0x330] sm:$0xf] %vm290, %v2437
    %v2470 = vld [vmem:[%s2021 + $0x4] sm:$0xff]
    %v2471 = vld [vmem:[%s2021 + $0x14] sm:$0xff]
    %v2472 = vld [vmem:[%s2021 + $0x24] sm:$0xff]
    %v2473 = vld [vmem:[%s2021 + $0x34] sm:$0xff]
    %v2474 = vld [vmem:[%s2021 + $0x44] sm:$0xff]
    %v2475 = vld [vmem:[%s2021 + $0x54] sm:$0xff]
    %v2476 = vld [vmem:[%s2021 + $0x64] sm:$0xff]
    %v2477 = vld [vmem:[%s2021 + $0x74] sm:$0xff]
    %v2478 = vld [vmem:[%s2021 + $0xc4] sm:$0xff]
    %v2479 = vld [vmem:[%s2021 + $0xd4] sm:$0xff]
    %v2480 = vld [vmem:[%s2021 + $0xe4] sm:$0xff]
    %v2481 = vld [vmem:[%s2021 + $0xf4] sm:$0xff]
    %v2482 = vld [vmem:[%s2021 + $0x104] sm:$0xff]
    %v2483 = vld [vmem:[%s2021 + $0x114] sm:$0xff]
    %v2484 = vld [vmem:[%s2021 + $0x124] sm:$0xff]
    %v2485 = vld [vmem:[%s2021 + $0x134] sm:$0xff]
    %v2486 = vpack.c.bf16 %v2471, %v2470
    %v2487 = vpack.c.bf16 %v2473, %v2472
    %v2488 = vpack.c.bf16 %v2475, %v2474
    %v2489 = vpack.c.bf16 %v2477, %v2476
    %v2490 = vpack.c.bf16 %v2479, %v2478
    %v2491 = vpack.c.bf16 %v2481, %v2480
    %v2492 = vpack.c.bf16 %v2483, %v2482
    %v2493 = vpack.c.bf16 %v2485, %v2484
    %v2502 = vunpack.c.l.b16 %v2486
    %v2503 = vunpack.c.h.b16 %v2486
    %v2504 = vunpack.c.l.b16 %v2487
    %v2505 = vunpack.c.h.b16 %v2487
    %v2506 = vunpack.c.l.b16 %v2488
    %v2507 = vunpack.c.h.b16 %v2488
    %v2508 = vunpack.c.l.b16 %v2489
    %v2509 = vunpack.c.h.b16 %v2489
    %v2510 = vunpack.c.l.b16 %v2490
    %v2511 = vunpack.c.h.b16 %v2490
    %v2512 = vunpack.c.l.b16 %v2491
    %v2513 = vunpack.c.h.b16 %v2491
    %v2514 = vunpack.c.l.b16 %v2492
    %v2515 = vunpack.c.h.b16 %v2492
    %v2516 = vunpack.c.l.b16 %v2493
    %v2517 = vunpack.c.h.b16 %v2493
    %v2518 = vpack.c.b16 %v2502, %v2502
    %v2519 = vpack.c.b16 %v2503, %v2503
    %v2520 = vpack.c.b16 %v2504, %v2504
    %v2521 = vpack.c.b16 %v2505, %v2505
    %v2522 = vpack.c.b16 %v2506, %v2506
    %v2523 = vpack.c.b16 %v2507, %v2507
    %v2524 = vpack.c.b16 %v2508, %v2508
    %v2525 = vpack.c.b16 %v2509, %v2509
    %v2526 = vpack.c.b16 %v2510, %v2510
    %v2527 = vpack.c.b16 %v2511, %v2511
    %v2528 = vpack.c.b16 %v2512, %v2512
    %v2529 = vpack.c.b16 %v2513, %v2513
    %v2530 = vpack.c.b16 %v2514, %v2514
    %v2531 = vpack.c.b16 %v2515, %v2515
    %v2532 = vpack.c.b16 %v2516, %v2516
    %v2533 = vpack.c.b16 %v2517, %v2517
    %2534 = vrot.lane.b32.xlu0 %v2518, 64
    %v2535 = vpop.permute.xlu0 %2534
    %2536 = vrot.lane.b32.xlu0 %v2519, 64
    %v2537 = vpop.permute.xlu0 %2536
    %2538 = vrot.lane.b32.xlu0 %v2520, 64
    %v2539 = vpop.permute.xlu0 %2538
    %2540 = vrot.lane.b32.xlu0 %v2521, 64
    %v2541 = vpop.permute.xlu0 %2540
    %2542 = vrot.lane.b32.xlu0 %v2522, 64
    %v2543 = vpop.permute.xlu0 %2542
    %2544 = vrot.lane.b32.xlu0 %v2523, 64
    %v2545 = vpop.permute.xlu0 %2544
    %2546 = vrot.lane.b32.xlu0 %v2524, 64
    %v2547 = vpop.permute.xlu0 %2546
    %2548 = vrot.lane.b32.xlu0 %v2525, 64
    %v2549 = vpop.permute.xlu0 %2548
    %2550 = vrot.lane.b32.xlu0 %v2526, 64
    %v2551 = vpop.permute.xlu0 %2550
    %2552 = vrot.lane.b32.xlu0 %v2527, 64
    %v2553 = vpop.permute.xlu0 %2552
    %2554 = vrot.lane.b32.xlu0 %v2528, 64
    %v2555 = vpop.permute.xlu0 %2554
    %2556 = vrot.lane.b32.xlu0 %v2529, 64
    %v2557 = vpop.permute.xlu0 %2556
    %2558 = vrot.lane.b32.xlu0 %v2530, 64
    %v2559 = vpop.permute.xlu0 %2558
    %2560 = vrot.lane.b32.xlu0 %v2531, 64
    %v2561 = vpop.permute.xlu0 %2560
    %2562 = vrot.lane.b32.xlu0 %v2532, 64
    %v2563 = vpop.permute.xlu0 %2562
    %2564 = vrot.lane.b32.xlu0 %v2533, 64
    %v2565 = vpop.permute.xlu0 %2564
    %2582 = vst.msk [vmem:[#allocation3 + $0x24] sm:$0xf] %vm563, %v2535
    %2583 = vst.msk [vmem:[#allocation3 + $0x58] sm:$0xf] %vm563, %v2537
    %2584 = vst.msk [vmem:[#allocation3 + $0x8c] sm:$0xf] %vm563, %v2539
    %2585 = vst.msk [vmem:[#allocation3 + $0xc0] sm:$0xf] %vm563, %v2541
    %2586 = vst.msk [vmem:[#allocation3 + $0xf4] sm:$0xf] %vm563, %v2543
    %2587 = vst.msk [vmem:[#allocation3 + $0x128] sm:$0xf] %vm563, %v2545
    %2588 = vst.msk [vmem:[#allocation3 + $0x15c] sm:$0xf] %vm563, %v2547
    %2589 = vst.msk [vmem:[#allocation3 + $0x190] sm:$0xf] %vm563, %v2549
    %2590 = vst.msk [vmem:[#allocation3 + $0x1c4] sm:$0xf] %vm563, %v2551
    %2591 = vst.msk [vmem:[#allocation3 + $0x1f8] sm:$0xf] %vm563, %v2553
    %2592 = vst.msk [vmem:[#allocation3 + $0x22c] sm:$0xf] %vm563, %v2555
    %2593 = vst.msk [vmem:[#allocation3 + $0x260] sm:$0xf] %vm563, %v2557
    %2594 = vst.msk [vmem:[#allocation3 + $0x294] sm:$0xf] %vm563, %v2559
    %2595 = vst.msk [vmem:[#allocation3 + $0x2c8] sm:$0xf] %vm563, %v2561
    %2596 = vst.msk [vmem:[#allocation3 + $0x2fc] sm:$0xf] %vm563, %v2563
    %2597 = vst.msk [vmem:[#allocation3 + $0x330] sm:$0xf] %vm563, %v2565
    %s2598 = scalar_lea.vmem [#allocation2], 64
    %v2599 = vld [vmem:[%s2598] sm:$0xff]
    %v2600 = vld [vmem:[%s2598 + $0x10] sm:$0xff]
    %v2601 = vld [vmem:[%s2598 + $0x20] sm:$0xff]
    %v2602 = vld [vmem:[%s2598 + $0x30] sm:$0xff]
    %v2603 = vld [vmem:[%s2598 + $0x40] sm:$0xff]
    %v2604 = vld [vmem:[%s2598 + $0x50] sm:$0xff]
    %v2605 = vld [vmem:[%s2598 + $0x60] sm:$0xff]
    %v2606 = vld [vmem:[%s2598 + $0x70] sm:$0xff]
    %v2607 = vld [vmem:[%s2598 + $0xc0] sm:$0xff]
    %v2608 = vld [vmem:[%s2598 + $0xd0] sm:$0xff]
    %v2609 = vld [vmem:[%s2598 + $0xe0] sm:$0xff]
    %v2610 = vld [vmem:[%s2598 + $0xf0] sm:$0xff]
    %v2611 = vld [vmem:[%s2598 + $0x100] sm:$0xff]
    %v2612 = vld [vmem:[%s2598 + $0x110] sm:$0xff]
    %v2613 = vld [vmem:[%s2598 + $0x120] sm:$0xff]
    %v2614 = vld [vmem:[%s2598 + $0x130] sm:$0xff]
    %v2615 = vpack.c.bf16 %v2600, %v2599
    %v2616 = vpack.c.bf16 %v2602, %v2601
    %v2617 = vpack.c.bf16 %v2604, %v2603
    %v2618 = vpack.c.bf16 %v2606, %v2605
    %v2619 = vpack.c.bf16 %v2608, %v2607
    %v2620 = vpack.c.bf16 %v2610, %v2609
    %v2621 = vpack.c.bf16 %v2612, %v2611
    %v2622 = vpack.c.bf16 %v2614, %v2613
    %v2631 = vunpack.c.l.b16 %v2615
    %v2632 = vunpack.c.h.b16 %v2615
    %v2633 = vunpack.c.l.b16 %v2616
    %v2634 = vunpack.c.h.b16 %v2616
    %v2635 = vunpack.c.l.b16 %v2617
    %v2636 = vunpack.c.h.b16 %v2617
    %v2637 = vunpack.c.l.b16 %v2618
    %v2638 = vunpack.c.h.b16 %v2618
    %v2639 = vunpack.c.l.b16 %v2619
    %v2640 = vunpack.c.h.b16 %v2619
    %v2641 = vunpack.c.l.b16 %v2620
    %v2642 = vunpack.c.h.b16 %v2620
    %v2643 = vunpack.c.l.b16 %v2621
    %v2644 = vunpack.c.h.b16 %v2621
    %v2645 = vunpack.c.l.b16 %v2622
    %v2646 = vunpack.c.h.b16 %v2622
    %v2647 = vpack.c.b16 %v2631, %v2631
    %v2648 = vpack.c.b16 %v2632, %v2632
    %v2649 = vpack.c.b16 %v2633, %v2633
    %v2650 = vpack.c.b16 %v2634, %v2634
    %v2651 = vpack.c.b16 %v2635, %v2635
    %v2652 = vpack.c.b16 %v2636, %v2636
    %v2653 = vpack.c.b16 %v2637, %v2637
    %v2654 = vpack.c.b16 %v2638, %v2638
    %v2655 = vpack.c.b16 %v2639, %v2639
    %v2656 = vpack.c.b16 %v2640, %v2640
    %v2657 = vpack.c.b16 %v2641, %v2641
    %v2658 = vpack.c.b16 %v2642, %v2642
    %v2659 = vpack.c.b16 %v2643, %v2643
    %v2660 = vpack.c.b16 %v2644, %v2644
    %v2661 = vpack.c.b16 %v2645, %v2645
    %v2662 = vpack.c.b16 %v2646, %v2646
    %2679 = vst.msk [vmem:[#allocation3 + $0x28] sm:$0xf] %vm290, %v2647
    %2680 = vst.msk [vmem:[#allocation3 + $0x5c] sm:$0xf] %vm290, %v2648
    %2681 = vst.msk [vmem:[#allocation3 + $0x90] sm:$0xf] %vm290, %v2649
    %2682 = vst.msk [vmem:[#allocation3 + $0xc4] sm:$0xf] %vm290, %v2650
    %2683 = vst.msk [vmem:[#allocation3 + $0xf8] sm:$0xf] %vm290, %v2651
    %2684 = vst.msk [vmem:[#allocation3 + $0x12c] sm:$0xf] %vm290, %v2652
    %2685 = vst.msk [vmem:[#allocation3 + $0x160] sm:$0xf] %vm290, %v2653
    %2686 = vst.msk [vmem:[#allocation3 + $0x194] sm:$0xf] %vm290, %v2654
    %2687 = vst.msk [vmem:[#allocation3 + $0x1c8] sm:$0xf] %vm290, %v2655
    %2688 = vst.msk [vmem:[#allocation3 + $0x1fc] sm:$0xf] %vm290, %v2656
    %2689 = vst.msk [vmem:[#allocation3 + $0x230] sm:$0xf] %vm290, %v2657
    %2690 = vst.msk [vmem:[#allocation3 + $0x264] sm:$0xf] %vm290, %v2658
    %2691 = vst.msk [vmem:[#allocation3 + $0x298] sm:$0xf] %vm290, %v2659
    %2692 = vst.msk [vmem:[#allocation3 + $0x2cc] sm:$0xf] %vm290, %v2660
    %2693 = vst.msk [vmem:[#allocation3 + $0x300] sm:$0xf] %vm290, %v2661
    %2694 = vst.msk [vmem:[#allocation3 + $0x334] sm:$0xf] %vm290, %v2662
    %v2695 = vld [vmem:[%s2598 + $0x1] sm:$0xff]
    %v2696 = vld [vmem:[%s2598 + $0x11] sm:$0xff]
    %v2697 = vld [vmem:[%s2598 + $0x21] sm:$0xff]
    %v2698 = vld [vmem:[%s2598 + $0x31] sm:$0xff]
    %v2699 = vld [vmem:[%s2598 + $0x41] sm:$0xff]
    %v2700 = vld [vmem:[%s2598 + $0x51] sm:$0xff]
    %v2701 = vld [vmem:[%s2598 + $0x61] sm:$0xff]
    %v2702 = vld [vmem:[%s2598 + $0x71] sm:$0xff]
    %v2703 = vld [vmem:[%s2598 + $0xc1] sm:$0xff]
    %v2704 = vld [vmem:[%s2598 + $0xd1] sm:$0xff]
    %v2705 = vld [vmem:[%s2598 + $0xe1] sm:$0xff]
    %v2706 = vld [vmem:[%s2598 + $0xf1] sm:$0xff]
    %v2707 = vld [vmem:[%s2598 + $0x101] sm:$0xff]
    %v2708 = vld [vmem:[%s2598 + $0x111] sm:$0xff]
    %v2709 = vld [vmem:[%s2598 + $0x121] sm:$0xff]
    %v2710 = vld [vmem:[%s2598 + $0x131] sm:$0xff]
    %v2711 = vpack.c.bf16 %v2696, %v2695
    %v2712 = vpack.c.bf16 %v2698, %v2697
    %v2713 = vpack.c.bf16 %v2700, %v2699
    %v2714 = vpack.c.bf16 %v2702, %v2701
    %v2715 = vpack.c.bf16 %v2704, %v2703
    %v2716 = vpack.c.bf16 %v2706, %v2705
    %v2717 = vpack.c.bf16 %v2708, %v2707
    %v2718 = vpack.c.bf16 %v2710, %v2709
    %v2727 = vunpack.c.l.b16 %v2711
    %v2728 = vunpack.c.h.b16 %v2711
    %v2729 = vunpack.c.l.b16 %v2712
    %v2730 = vunpack.c.h.b16 %v2712
    %v2731 = vunpack.c.l.b16 %v2713
    %v2732 = vunpack.c.h.b16 %v2713
    %v2733 = vunpack.c.l.b16 %v2714
    %v2734 = vunpack.c.h.b16 %v2714
    %v2735 = vunpack.c.l.b16 %v2715
    %v2736 = vunpack.c.h.b16 %v2715
    %v2737 = vunpack.c.l.b16 %v2716
    %v2738 = vunpack.c.h.b16 %v2716
    %v2739 = vunpack.c.l.b16 %v2717
    %v2740 = vunpack.c.h.b16 %v2717
    %v2741 = vunpack.c.l.b16 %v2718
    %v2742 = vunpack.c.h.b16 %v2718
    %v2743 = vpack.c.b16 %v2727, %v2727
    %v2744 = vpack.c.b16 %v2728, %v2728
    %v2745 = vpack.c.b16 %v2729, %v2729
    %v2746 = vpack.c.b16 %v2730, %v2730
    %v2747 = vpack.c.b16 %v2731, %v2731
    %v2748 = vpack.c.b16 %v2732, %v2732
    %v2749 = vpack.c.b16 %v2733, %v2733
    %v2750 = vpack.c.b16 %v2734, %v2734
    %v2751 = vpack.c.b16 %v2735, %v2735
    %v2752 = vpack.c.b16 %v2736, %v2736
    %v2753 = vpack.c.b16 %v2737, %v2737
    %v2754 = vpack.c.b16 %v2738, %v2738
    %v2755 = vpack.c.b16 %v2739, %v2739
    %v2756 = vpack.c.b16 %v2740, %v2740
    %v2757 = vpack.c.b16 %v2741, %v2741
    %v2758 = vpack.c.b16 %v2742, %v2742
    %2759 = vrot.lane.b32.xlu0 %v2743, 64
    %v2760 = vpop.permute.xlu0 %2759
    %2761 = vrot.lane.b32.xlu0 %v2744, 64
    %v2762 = vpop.permute.xlu0 %2761
    %2763 = vrot.lane.b32.xlu0 %v2745, 64
    %v2764 = vpop.permute.xlu0 %2763
    %2765 = vrot.lane.b32.xlu0 %v2746, 64
    %v2766 = vpop.permute.xlu0 %2765
    %2767 = vrot.lane.b32.xlu0 %v2747, 64
    %v2768 = vpop.permute.xlu0 %2767
    %2769 = vrot.lane.b32.xlu0 %v2748, 64
    %v2770 = vpop.permute.xlu0 %2769
    %2771 = vrot.lane.b32.xlu0 %v2749, 64
    %v2772 = vpop.permute.xlu0 %2771
    %2773 = vrot.lane.b32.xlu0 %v2750, 64
    %v2774 = vpop.permute.xlu0 %2773
    %2775 = vrot.lane.b32.xlu0 %v2751, 64
    %v2776 = vpop.permute.xlu0 %2775
    %2777 = vrot.lane.b32.xlu0 %v2752, 64
    %v2778 = vpop.permute.xlu0 %2777
    %2779 = vrot.lane.b32.xlu0 %v2753, 64
    %v2780 = vpop.permute.xlu0 %2779
    %2781 = vrot.lane.b32.xlu0 %v2754, 64
    %v2782 = vpop.permute.xlu0 %2781
    %2783 = vrot.lane.b32.xlu0 %v2755, 64
    %v2784 = vpop.permute.xlu0 %2783
    %2785 = vrot.lane.b32.xlu0 %v2756, 64
    %v2786 = vpop.permute.xlu0 %2785
    %2787 = vrot.lane.b32.xlu0 %v2757, 64
    %v2788 = vpop.permute.xlu0 %2787
    %2789 = vrot.lane.b32.xlu0 %v2758, 64
    %v2790 = vpop.permute.xlu0 %2789
    %2807 = vst.msk [vmem:[#allocation3 + $0x28] sm:$0xf] %vm563, %v2760
    %2808 = vst.msk [vmem:[#allocation3 + $0x5c] sm:$0xf] %vm563, %v2762
    %2809 = vst.msk [vmem:[#allocation3 + $0x90] sm:$0xf] %vm563, %v2764
    %2810 = vst.msk [vmem:[#allocation3 + $0xc4] sm:$0xf] %vm563, %v2766
    %2811 = vst.msk [vmem:[#allocation3 + $0xf8] sm:$0xf] %vm563, %v2768
    %2812 = vst.msk [vmem:[#allocation3 + $0x12c] sm:$0xf] %vm563, %v2770
    %2813 = vst.msk [vmem:[#allocation3 + $0x160] sm:$0xf] %vm563, %v2772
    %2814 = vst.msk [vmem:[#allocation3 + $0x194] sm:$0xf] %vm563, %v2774
    %2815 = vst.msk [vmem:[#allocation3 + $0x1c8] sm:$0xf] %vm563, %v2776
    %2816 = vst.msk [vmem:[#allocation3 + $0x1fc] sm:$0xf] %vm563, %v2778
    %2817 = vst.msk [vmem:[#allocation3 + $0x230] sm:$0xf] %vm563, %v2780
    %2818 = vst.msk [vmem:[#allocation3 + $0x264] sm:$0xf] %vm563, %v2782
    %2819 = vst.msk [vmem:[#allocation3 + $0x298] sm:$0xf] %vm563, %v2784
    %2820 = vst.msk [vmem:[#allocation3 + $0x2cc] sm:$0xf] %vm563, %v2786
    %2821 = vst.msk [vmem:[#allocation3 + $0x300] sm:$0xf] %vm563, %v2788
    %2822 = vst.msk [vmem:[#allocation3 + $0x334] sm:$0xf] %vm563, %v2790
    %v2823 = vld [vmem:[%s2598 + $0x2] sm:$0xff]
    %v2824 = vld [vmem:[%s2598 + $0x12] sm:$0xff]
    %v2825 = vld [vmem:[%s2598 + $0x22] sm:$0xff]
    %v2826 = vld [vmem:[%s2598 + $0x32] sm:$0xff]
    %v2827 = vld [vmem:[%s2598 + $0x42] sm:$0xff]
    %v2828 = vld [vmem:[%s2598 + $0x52] sm:$0xff]
    %v2829 = vld [vmem:[%s2598 + $0x62] sm:$0xff]
    %v2830 = vld [vmem:[%s2598 + $0x72] sm:$0xff]
    %v2831 = vld [vmem:[%s2598 + $0xc2] sm:$0xff]
    %v2832 = vld [vmem:[%s2598 + $0xd2] sm:$0xff]
    %v2833 = vld [vmem:[%s2598 + $0xe2] sm:$0xff]
    %v2834 = vld [vmem:[%s2598 + $0xf2] sm:$0xff]
    %v2835 = vld [vmem:[%s2598 + $0x102] sm:$0xff]
    %v2836 = vld [vmem:[%s2598 + $0x112] sm:$0xff]
    %v2837 = vld [vmem:[%s2598 + $0x122] sm:$0xff]
    %v2838 = vld [vmem:[%s2598 + $0x132] sm:$0xff]
    %v2839 = vpack.c.bf16 %v2824, %v2823
    %v2840 = vpack.c.bf16 %v2826, %v2825
    %v2841 = vpack.c.bf16 %v2828, %v2827
    %v2842 = vpack.c.bf16 %v2830, %v2829
    %v2843 = vpack.c.bf16 %v2832, %v2831
    %v2844 = vpack.c.bf16 %v2834, %v2833
    %v2845 = vpack.c.bf16 %v2836, %v2835
    %v2846 = vpack.c.bf16 %v2838, %v2837
    %v2855 = vunpack.c.l.b16 %v2839
    %v2856 = vunpack.c.h.b16 %v2839
    %v2857 = vunpack.c.l.b16 %v2840
    %v2858 = vunpack.c.h.b16 %v2840
    %v2859 = vunpack.c.l.b16 %v2841
    %v2860 = vunpack.c.h.b16 %v2841
    %v2861 = vunpack.c.l.b16 %v2842
    %v2862 = vunpack.c.h.b16 %v2842
    %v2863 = vunpack.c.l.b16 %v2843
    %v2864 = vunpack.c.h.b16 %v2843
    %v2865 = vunpack.c.l.b16 %v2844
    %v2866 = vunpack.c.h.b16 %v2844
    %v2867 = vunpack.c.l.b16 %v2845
    %v2868 = vunpack.c.h.b16 %v2845
    %v2869 = vunpack.c.l.b16 %v2846
    %v2870 = vunpack.c.h.b16 %v2846
    %v2871 = vpack.c.b16 %v2855, %v2855
    %v2872 = vpack.c.b16 %v2856, %v2856
    %v2873 = vpack.c.b16 %v2857, %v2857
    %v2874 = vpack.c.b16 %v2858, %v2858
    %v2875 = vpack.c.b16 %v2859, %v2859
    %v2876 = vpack.c.b16 %v2860, %v2860
    %v2877 = vpack.c.b16 %v2861, %v2861
    %v2878 = vpack.c.b16 %v2862, %v2862
    %v2879 = vpack.c.b16 %v2863, %v2863
    %v2880 = vpack.c.b16 %v2864, %v2864
    %v2881 = vpack.c.b16 %v2865, %v2865
    %v2882 = vpack.c.b16 %v2866, %v2866
    %v2883 = vpack.c.b16 %v2867, %v2867
    %v2884 = vpack.c.b16 %v2868, %v2868
    %v2885 = vpack.c.b16 %v2869, %v2869
    %v2886 = vpack.c.b16 %v2870, %v2870
    %2903 = vst.msk [vmem:[#allocation3 + $0x2c] sm:$0xf] %vm290, %v2871
    %2904 = vst.msk [vmem:[#allocation3 + $0x60] sm:$0xf] %vm290, %v2872
    %2905 = vst.msk [vmem:[#allocation3 + $0x94] sm:$0xf] %vm290, %v2873
    %2906 = vst.msk [vmem:[#allocation3 + $0xc8] sm:$0xf] %vm290, %v2874
    %2907 = vst.msk [vmem:[#allocation3 + $0xfc] sm:$0xf] %vm290, %v2875
    %2908 = vst.msk [vmem:[#allocation3 + $0x130] sm:$0xf] %vm290, %v2876
    %2909 = vst.msk [vmem:[#allocation3 + $0x164] sm:$0xf] %vm290, %v2877
    %2910 = vst.msk [vmem:[#allocation3 + $0x198] sm:$0xf] %vm290, %v2878
    %2911 = vst.msk [vmem:[#allocation3 + $0x1cc] sm:$0xf] %vm290, %v2879
    %2912 = vst.msk [vmem:[#allocation3 + $0x200] sm:$0xf] %vm290, %v2880
    %2913 = vst.msk [vmem:[#allocation3 + $0x234] sm:$0xf] %vm290, %v2881
    %2914 = vst.msk [vmem:[#allocation3 + $0x268] sm:$0xf] %vm290, %v2882
    %2915 = vst.msk [vmem:[#allocation3 + $0x29c] sm:$0xf] %vm290, %v2883
    %2916 = vst.msk [vmem:[#allocation3 + $0x2d0] sm:$0xf] %vm290, %v2884
    %2917 = vst.msk [vmem:[#allocation3 + $0x304] sm:$0xf] %vm290, %v2885
    %2918 = vst.msk [vmem:[#allocation3 + $0x338] sm:$0xf] %vm290, %v2886
    %v2919 = vld [vmem:[%s2598 + $0x3] sm:$0xff]
    %v2920 = vld [vmem:[%s2598 + $0x13] sm:$0xff]
    %v2921 = vld [vmem:[%s2598 + $0x23] sm:$0xff]
    %v2922 = vld [vmem:[%s2598 + $0x33] sm:$0xff]
    %v2923 = vld [vmem:[%s2598 + $0x43] sm:$0xff]
    %v2924 = vld [vmem:[%s2598 + $0x53] sm:$0xff]
    %v2925 = vld [vmem:[%s2598 + $0x63] sm:$0xff]
    %v2926 = vld [vmem:[%s2598 + $0x73] sm:$0xff]
    %v2927 = vld [vmem:[%s2598 + $0xc3] sm:$0xff]
    %v2928 = vld [vmem:[%s2598 + $0xd3] sm:$0xff]
    %v2929 = vld [vmem:[%s2598 + $0xe3] sm:$0xff]
    %v2930 = vld [vmem:[%s2598 + $0xf3] sm:$0xff]
    %v2931 = vld [vmem:[%s2598 + $0x103] sm:$0xff]
    %v2932 = vld [vmem:[%s2598 + $0x113] sm:$0xff]
    %v2933 = vld [vmem:[%s2598 + $0x123] sm:$0xff]
    %v2934 = vld [vmem:[%s2598 + $0x133] sm:$0xff]
    %v2935 = vpack.c.bf16 %v2920, %v2919
    %v2936 = vpack.c.bf16 %v2922, %v2921
    %v2937 = vpack.c.bf16 %v2924, %v2923
    %v2938 = vpack.c.bf16 %v2926, %v2925
    %v2939 = vpack.c.bf16 %v2928, %v2927
    %v2940 = vpack.c.bf16 %v2930, %v2929
    %v2941 = vpack.c.bf16 %v2932, %v2931
    %v2942 = vpack.c.bf16 %v2934, %v2933
    %v2951 = vunpack.c.l.b16 %v2935
    %v2952 = vunpack.c.h.b16 %v2935
    %v2953 = vunpack.c.l.b16 %v2936
    %v2954 = vunpack.c.h.b16 %v2936
    %v2955 = vunpack.c.l.b16 %v2937
    %v2956 = vunpack.c.h.b16 %v2937
    %v2957 = vunpack.c.l.b16 %v2938
    %v2958 = vunpack.c.h.b16 %v2938
    %v2959 = vunpack.c.l.b16 %v2939
    %v2960 = vunpack.c.h.b16 %v2939
    %v2961 = vunpack.c.l.b16 %v2940
    %v2962 = vunpack.c.h.b16 %v2940
    %v2963 = vunpack.c.l.b16 %v2941
    %v2964 = vunpack.c.h.b16 %v2941
    %v2965 = vunpack.c.l.b16 %v2942
    %v2966 = vunpack.c.h.b16 %v2942
    %v2967 = vpack.c.b16 %v2951, %v2951
    %v2968 = vpack.c.b16 %v2952, %v2952
    %v2969 = vpack.c.b16 %v2953, %v2953
    %v2970 = vpack.c.b16 %v2954, %v2954
    %v2971 = vpack.c.b16 %v2955, %v2955
    %v2972 = vpack.c.b16 %v2956, %v2956
    %v2973 = vpack.c.b16 %v2957, %v2957
    %v2974 = vpack.c.b16 %v2958, %v2958
    %v2975 = vpack.c.b16 %v2959, %v2959
    %v2976 = vpack.c.b16 %v2960, %v2960
    %v2977 = vpack.c.b16 %v2961, %v2961
    %v2978 = vpack.c.b16 %v2962, %v2962
    %v2979 = vpack.c.b16 %v2963, %v2963
    %v2980 = vpack.c.b16 %v2964, %v2964
    %v2981 = vpack.c.b16 %v2965, %v2965
    %v2982 = vpack.c.b16 %v2966, %v2966
    %2983 = vrot.lane.b32.xlu0 %v2967, 64
    %v2984 = vpop.permute.xlu0 %2983
    %2985 = vrot.lane.b32.xlu0 %v2968, 64
    %v2986 = vpop.permute.xlu0 %2985
    %2987 = vrot.lane.b32.xlu0 %v2969, 64
    %v2988 = vpop.permute.xlu0 %2987
    %2989 = vrot.lane.b32.xlu0 %v2970, 64
    %v2990 = vpop.permute.xlu0 %2989
    %2991 = vrot.lane.b32.xlu0 %v2971, 64
    %v2992 = vpop.permute.xlu0 %2991
    %2993 = vrot.lane.b32.xlu0 %v2972, 64
    %v2994 = vpop.permute.xlu0 %2993
    %2995 = vrot.lane.b32.xlu0 %v2973, 64
    %v2996 = vpop.permute.xlu0 %2995
    %2997 = vrot.lane.b32.xlu0 %v2974, 64
    %v2998 = vpop.permute.xlu0 %2997
    %2999 = vrot.lane.b32.xlu0 %v2975, 64
    %v3000 = vpop.permute.xlu0 %2999
    %3001 = vrot.lane.b32.xlu0 %v2976, 64
    %v3002 = vpop.permute.xlu0 %3001
    %3003 = vrot.lane.b32.xlu0 %v2977, 64
    %v3004 = vpop.permute.xlu0 %3003
    %3005 = vrot.lane.b32.xlu0 %v2978, 64
    %v3006 = vpop.permute.xlu0 %3005
    %3007 = vrot.lane.b32.xlu0 %v2979, 64
    %v3008 = vpop.permute.xlu0 %3007
    %3009 = vrot.lane.b32.xlu0 %v2980, 64
    %v3010 = vpop.permute.xlu0 %3009
    %3011 = vrot.lane.b32.xlu0 %v2981, 64
    %v3012 = vpop.permute.xlu0 %3011
    %3013 = vrot.lane.b32.xlu0 %v2982, 64
    %v3014 = vpop.permute.xlu0 %3013
    %3031 = vst.msk [vmem:[#allocation3 + $0x2c] sm:$0xf] %vm563, %v2984
    %3032 = vst.msk [vmem:[#allocation3 + $0x60] sm:$0xf] %vm563, %v2986
    %3033 = vst.msk [vmem:[#allocation3 + $0x94] sm:$0xf] %vm563, %v2988
    %3034 = vst.msk [vmem:[#allocation3 + $0xc8] sm:$0xf] %vm563, %v2990
    %3035 = vst.msk [vmem:[#allocation3 + $0xfc] sm:$0xf] %vm563, %v2992
    %3036 = vst.msk [vmem:[#allocation3 + $0x130] sm:$0xf] %vm563, %v2994
    %3037 = vst.msk [vmem:[#allocation3 + $0x164] sm:$0xf] %vm563, %v2996
    %3038 = vst.msk [vmem:[#allocation3 + $0x198] sm:$0xf] %vm563, %v2998
    %3039 = vst.msk [vmem:[#allocation3 + $0x1cc] sm:$0xf] %vm563, %v3000
    %3040 = vst.msk [vmem:[#allocation3 + $0x200] sm:$0xf] %vm563, %v3002
    %3041 = vst.msk [vmem:[#allocation3 + $0x234] sm:$0xf] %vm563, %v3004
    %3042 = vst.msk [vmem:[#allocation3 + $0x268] sm:$0xf] %vm563, %v3006
    %3043 = vst.msk [vmem:[#allocation3 + $0x29c] sm:$0xf] %vm563, %v3008
    %3044 = vst.msk [vmem:[#allocation3 + $0x2d0] sm:$0xf] %vm563, %v3010
    %3045 = vst.msk [vmem:[#allocation3 + $0x304] sm:$0xf] %vm563, %v3012
    %3046 = vst.msk [vmem:[#allocation3 + $0x338] sm:$0xf] %vm563, %v3014
    %v3047 = vld [vmem:[%s2598 + $0x4] sm:$0xff]
    %v3048 = vld [vmem:[%s2598 + $0x14] sm:$0xff]
    %v3049 = vld [vmem:[%s2598 + $0x24] sm:$0xff]
    %v3050 = vld [vmem:[%s2598 + $0x34] sm:$0xff]
    %v3051 = vld [vmem:[%s2598 + $0x44] sm:$0xff]
    %v3052 = vld [vmem:[%s2598 + $0x54] sm:$0xff]
    %v3053 = vld [vmem:[%s2598 + $0x64] sm:$0xff]
    %v3054 = vld [vmem:[%s2598 + $0x74] sm:$0xff]
    %v3055 = vld [vmem:[%s2598 + $0xc4] sm:$0xff]
    %v3056 = vld [vmem:[%s2598 + $0xd4] sm:$0xff]
    %v3057 = vld [vmem:[%s2598 + $0xe4] sm:$0xff]
    %v3058 = vld [vmem:[%s2598 + $0xf4] sm:$0xff]
    %v3059 = vld [vmem:[%s2598 + $0x104] sm:$0xff]
    %v3060 = vld [vmem:[%s2598 + $0x114] sm:$0xff]
    %v3061 = vld [vmem:[%s2598 + $0x124] sm:$0xff]
    %v3062 = vld [vmem:[%s2598 + $0x134] sm:$0xff]
    %v3063 = vpack.c.bf16 %v3048, %v3047
    %v3064 = vpack.c.bf16 %v3050, %v3049
    %v3065 = vpack.c.bf16 %v3052, %v3051
    %v3066 = vpack.c.bf16 %v3054, %v3053
    %v3067 = vpack.c.bf16 %v3056, %v3055
    %v3068 = vpack.c.bf16 %v3058, %v3057
    %v3069 = vpack.c.bf16 %v3060, %v3059
    %v3070 = vpack.c.bf16 %v3062, %v3061
    %v3079 = vunpack.c.l.b16 %v3063
    %v3080 = vunpack.c.h.b16 %v3063
    %v3081 = vunpack.c.l.b16 %v3064
    %v3082 = vunpack.c.h.b16 %v3064
    %v3083 = vunpack.c.l.b16 %v3065
    %v3084 = vunpack.c.h.b16 %v3065
    %v3085 = vunpack.c.l.b16 %v3066
    %v3086 = vunpack.c.h.b16 %v3066
    %v3087 = vunpack.c.l.b16 %v3067
    %v3088 = vunpack.c.h.b16 %v3067
    %v3089 = vunpack.c.l.b16 %v3068
    %v3090 = vunpack.c.h.b16 %v3068
    %v3091 = vunpack.c.l.b16 %v3069
    %v3092 = vunpack.c.h.b16 %v3069
    %v3093 = vunpack.c.l.b16 %v3070
    %v3094 = vunpack.c.h.b16 %v3070
    %v3095 = vpack.c.b16 %v3079, %v3079
    %v3096 = vpack.c.b16 %v3080, %v3080
    %v3097 = vpack.c.b16 %v3081, %v3081
    %v3098 = vpack.c.b16 %v3082, %v3082
    %v3099 = vpack.c.b16 %v3083, %v3083
    %v3100 = vpack.c.b16 %v3084, %v3084
    %v3101 = vpack.c.b16 %v3085, %v3085
    %v3102 = vpack.c.b16 %v3086, %v3086
    %v3103 = vpack.c.b16 %v3087, %v3087
    %v3104 = vpack.c.b16 %v3088, %v3088
    %v3105 = vpack.c.b16 %v3089, %v3089
    %v3106 = vpack.c.b16 %v3090, %v3090
    %v3107 = vpack.c.b16 %v3091, %v3091
    %v3108 = vpack.c.b16 %v3092, %v3092
    %v3109 = vpack.c.b16 %v3093, %v3093
    %v3110 = vpack.c.b16 %v3094, %v3094
    %3127 = vst.msk [vmem:[#allocation3 + $0x30] sm:$0xf] %vm290, %v3095
    %3128 = vst.msk [vmem:[#allocation3 + $0x64] sm:$0xf] %vm290, %v3096
    %3129 = vst.msk [vmem:[#allocation3 + $0x98] sm:$0xf] %vm290, %v3097
    %3130 = vst.msk [vmem:[#allocation3 + $0xcc] sm:$0xf] %vm290, %v3098
    %3131 = vst.msk [vmem:[#allocation3 + $0x100] sm:$0xf] %vm290, %v3099
    %3132 = vst.msk [vmem:[#allocation3 + $0x134] sm:$0xf] %vm290, %v3100
    %3133 = vst.msk [vmem:[#allocation3 + $0x168] sm:$0xf] %vm290, %v3101
    %3134 = vst.msk [vmem:[#allocation3 + $0x19c] sm:$0xf] %vm290, %v3102
    %3135 = vst.msk [vmem:[#allocation3 + $0x1d0] sm:$0xf] %vm290, %v3103
    %3136 = vst.msk [vmem:[#allocation3 + $0x204] sm:$0xf] %vm290, %v3104
    %3137 = vst.msk [vmem:[#allocation3 + $0x238] sm:$0xf] %vm290, %v3105
    %3138 = vst.msk [vmem:[#allocation3 + $0x26c] sm:$0xf] %vm290, %v3106
    %3139 = vst.msk [vmem:[#allocation3 + $0x2a0] sm:$0xf] %vm290, %v3107
    %3140 = vst.msk [vmem:[#allocation3 + $0x2d4] sm:$0xf] %vm290, %v3108
    %3141 = vst.msk [vmem:[#allocation3 + $0x308] sm:$0xf] %vm290, %v3109
    %3142 = vst.msk [vmem:[#allocation3 + $0x33c] sm:$0xf] %vm290, %v3110
    %v3143 = vld [vmem:[#allocation3] sm:$0xff]
    %v3144 = vld [vmem:[#allocation3 + $0x8] sm:$0xff]
    %v3145 = vld [vmem:[#allocation3 + $0x10] sm:$0xff]
    %v3146 = vld [vmem:[#allocation3 + $0x18] sm:$0xff]
    %v3147 = vld [vmem:[#allocation3 + $0x20] sm:$0xff]
    %v3148 = vld [vmem:[#allocation3 + $0x28] sm:$0xff]
    %v3149 = vld [vmem:[#allocation3 + $0x30] sm:$0xf]
    %v3150 = vld [vmem:[#allocation3 + $0x34] sm:$0xff]
    %v3151 = vld [vmem:[#allocation3 + $0x3c] sm:$0xff]
    %v3152 = vld [vmem:[#allocation3 + $0x44] sm:$0xff]
    %v3153 = vld [vmem:[#allocation3 + $0x4c] sm:$0xff]
    %v3154 = vld [vmem:[#allocation3 + $0x54] sm:$0xff]
    %v3155 = vld [vmem:[#allocation3 + $0x5c] sm:$0xff]
    %v3156 = vld [vmem:[#allocation3 + $0x64] sm:$0xf]
    %v3157 = vld [vmem:[#allocation3 + $0x68] sm:$0xff]
    %v3158 = vld [vmem:[#allocation3 + $0x70] sm:$0xff]
    %v3159 = vld [vmem:[#allocation3 + $0x78] sm:$0xff]
    %v3160 = vld [vmem:[#allocation3 + $0x80] sm:$0xff]
    %v3161 = vld [vmem:[#allocation3 + $0x88] sm:$0xff]
    %v3162 = vld [vmem:[#allocation3 + $0x90] sm:$0xff]
    %v3163 = vld [vmem:[#allocation3 + $0x98] sm:$0xf]
    %v3164 = vld [vmem:[#allocation3 + $0x9c] sm:$0xff]
    %v3165 = vld [vmem:[#allocation3 + $0xa4] sm:$0xff]
    %v3166 = vld [vmem:[#allocation3 + $0xac] sm:$0xff]
    %v3167 = vld [vmem:[#allocation3 + $0xb4] sm:$0xff]
    %v3168 = vld [vmem:[#allocation3 + $0xbc] sm:$0xff]
    %v3169 = vld [vmem:[#allocation3 + $0xc4] sm:$0xff]
    %v3170 = vld [vmem:[#allocation3 + $0xcc] sm:$0xf]
    %v3171 = vld [vmem:[#allocation3 + $0xd0] sm:$0xff]
    %v3172 = vld [vmem:[#allocation3 + $0xd8] sm:$0xff]
    %v3173 = vld [vmem:[#allocation3 + $0xe0] sm:$0xff]
    %v3174 = vld [vmem:[#allocation3 + $0xe8] sm:$0xff]
    %v3175 = vld [vmem:[#allocation3 + $0xf0] sm:$0xff]
    %v3176 = vld [vmem:[#allocation3 + $0xf8] sm:$0xff]
    %v3177 = vld [vmem:[#allocation3 + $0x100] sm:$0xf]
    %v3178 = vld [vmem:[#allocation3 + $0x104] sm:$0xff]
    %v3179 = vld [vmem:[#allocation3 + $0x10c] sm:$0xff]
    %v3180 = vld [vmem:[#allocation3 + $0x114] sm:$0xff]
    %v3181 = vld [vmem:[#allocation3 + $0x11c] sm:$0xff]
    %v3182 = vld [vmem:[#allocation3 + $0x124] sm:$0xff]
    %v3183 = vld [vmem:[#allocation3 + $0x12c] sm:$0xff]
    %v3184 = vld [vmem:[#allocation3 + $0x134] sm:$0xf]
    %v3185 = vld [vmem:[#allocation3 + $0x138] sm:$0xff]
    %v3186 = vld [vmem:[#allocation3 + $0x140] sm:$0xff]
    %v3187 = vld [vmem:[#allocation3 + $0x148] sm:$0xff]
    %v3188 = vld [vmem:[#allocation3 + $0x150] sm:$0xff]
    %v3189 = vld [vmem:[#allocation3 + $0x158] sm:$0xff]
    %v3190 = vld [vmem:[#allocation3 + $0x160] sm:$0xff]
    %v3191 = vld [vmem:[#allocation3 + $0x168] sm:$0xf]
    %v3192 = vld [vmem:[#allocation3 + $0x16c] sm:$0xff]
    %v3193 = vld [vmem:[#allocation3 + $0x174] sm:$0xff]
    %v3194 = vld [vmem:[#allocation3 + $0x17c] sm:$0xff]
    %v3195 = vld [vmem:[#allocation3 + $0x184] sm:$0xff]
    %v3196 = vld [vmem:[#allocation3 + $0x18c] sm:$0xff]
    %v3197 = vld [vmem:[#allocation3 + $0x194] sm:$0xff]
    %v3198 = vld [vmem:[#allocation3 + $0x19c] sm:$0xf]
    %v3199 = vld [vmem:[#allocation3 + $0x1a0] sm:$0xff]
    %v3200 = vld [vmem:[#allocation3 + $0x1a8] sm:$0xff]
    %v3201 = vld [vmem:[#allocation3 + $0x1b0] sm:$0xff]
    %v3202 = vld [vmem:[#allocation3 + $0x1b8] sm:$0xff]
    %v3203 = vld [vmem:[#allocation3 + $0x1c0] sm:$0xff]
    %v3204 = vld [vmem:[#allocation3 + $0x1c8] sm:$0xff]
    %v3205 = vld [vmem:[#allocation3 + $0x1d0] sm:$0xf]
    %v3206 = vld [vmem:[#allocation3 + $0x1d4] sm:$0xff]
    %v3207 = vld [vmem:[#allocation3 + $0x1dc] sm:$0xff]
    %v3208 = vld [vmem:[#allocation3 + $0x1e4] sm:$0xff]
    %v3209 = vld [vmem:[#allocation3 + $0x1ec] sm:$0xff]
    %v3210 = vld [vmem:[#allocation3 + $0x1f4] sm:$0xff]
    %v3211 = vld [vmem:[#allocation3 + $0x1fc] sm:$0xff]
    %v3212 = vld [vmem:[#allocation3 + $0x204] sm:$0xf]
    %v3213 = vld [vmem:[#allocation3 + $0x208] sm:$0xff]
    %v3214 = vld [vmem:[#allocation3 + $0x210] sm:$0xff]
    %v3215 = vld [vmem:[#allocation3 + $0x218] sm:$0xff]
    %v3216 = vld [vmem:[#allocation3 + $0x220] sm:$0xff]
    %v3217 = vld [vmem:[#allocation3 + $0x228] sm:$0xff]
    %v3218 = vld [vmem:[#allocation3 + $0x230] sm:$0xff]
    %v3219 = vld [vmem:[#allocation3 + $0x238] sm:$0xf]
    %v3220 = vld [vmem:[#allocation3 + $0x23c] sm:$0xff]
    %v3221 = vld [vmem:[#allocation3 + $0x244] sm:$0xff]
    %v3222 = vld [vmem:[#allocation3 + $0x24c] sm:$0xff]
    %v3223 = vld [vmem:[#allocation3 + $0x254] sm:$0xff]
    %v3224 = vld [vmem:[#allocation3 + $0x25c] sm:$0xff]
    %v3225 = vld [vmem:[#allocation3 + $0x264] sm:$0xff]
    %v3226 = vld [vmem:[#allocation3 + $0x26c] sm:$0xf]
    %v3227 = vld [vmem:[#allocation3 + $0x270] sm:$0xff]
    %v3228 = vld [vmem:[#allocation3 + $0x278] sm:$0xff]
    %v3229 = vld [vmem:[#allocation3 + $0x280] sm:$0xff]
    %v3230 = vld [vmem:[#allocation3 + $0x288] sm:$0xff]
    %v3231 = vld [vmem:[#allocation3 + $0x290] sm:$0xff]
    %v3232 = vld [vmem:[#allocation3 + $0x298] sm:$0xff]
    %v3233 = vld [vmem:[#allocation3 + $0x2a0] sm:$0xf]
    %v3234 = vld [vmem:[#allocation3 + $0x2a4] sm:$0xff]
    %v3235 = vld [vmem:[#allocation3 + $0x2ac] sm:$0xff]
    %v3236 = vld [vmem:[#allocation3 + $0x2b4] sm:$0xff]
    %v3237 = vld [vmem:[#allocation3 + $0x2bc] sm:$0xff]
    %v3238 = vld [vmem:[#allocation3 + $0x2c4] sm:$0xff]
    %v3239 = vld [vmem:[#allocation3 + $0x2cc] sm:$0xff]
    %v3240 = vld [vmem:[#allocation3 + $0x2d4] sm:$0xf]
    %v3241 = vld [vmem:[#allocation3 + $0x2d8] sm:$0xff]
    %v3242 = vld [vmem:[#allocation3 + $0x2e0] sm:$0xff]
    %v3243 = vld [vmem:[#allocation3 + $0x2e8] sm:$0xff]
    %v3244 = vld [vmem:[#allocation3 + $0x2f0] sm:$0xff]
    %v3245 = vld [vmem:[#allocation3 + $0x2f8] sm:$0xff]
    %v3246 = vld [vmem:[#allocation3 + $0x300] sm:$0xff]
    %v3247 = vld [vmem:[#allocation3 + $0x308] sm:$0xf]
    %v3248 = vld [vmem:[#allocation3 + $0x30c] sm:$0xff]
    %v3249 = vld [vmem:[#allocation3 + $0x314] sm:$0xff]
    %v3250 = vld [vmem:[#allocation3 + $0x31c] sm:$0xff]
    %v3251 = vld [vmem:[#allocation3 + $0x324] sm:$0xff]
    %v3252 = vld [vmem:[#allocation3 + $0x32c] sm:$0xff]
    %v3253 = vld [vmem:[#allocation3 + $0x334] sm:$0xff]
    %v3254 = vld [vmem:[#allocation3 + $0x33c] sm:$0xf]
    %v3255 = vld [vmem:[%s3] sm:$0xf]
    %v3256 = vld [vmem:[%s3 + $0x4] sm:$0xf]
    %v3257 = vld [vmem:[%s3 + $0x8] sm:$0xf]
    %v3258 = vld [vmem:[%s3 + $0xc] sm:$0xf]
    %v3259 = vld [vmem:[%s3 + $0x10] sm:$0xf]
    %v3260 = vld [vmem:[%s3 + $0x14] sm:$0xf]
    %v3261 = vld [vmem:[%s3 + $0x18] sm:$0xf]
    %v3262 = vld [vmem:[%s3 + $0x1c] sm:$0xf]
    %v3263 = vld [vmem:[%s3 + $0x20] sm:$0xf]
    %v3264 = vld [vmem:[%s3 + $0x24] sm:$0xf]
    %v3265 = vld [vmem:[%s3 + $0x28] sm:$0xf]
    %v3266 = vld [vmem:[%s3 + $0x2c] sm:$0xf]
    %v3267 = vld [vmem:[%s3 + $0x30] sm:$0xf]
    %v3268 = vld [vmem:[%s3 + $0x34] sm:$0xf]
    %v3269 = vld [vmem:[%s3 + $0x38] sm:$0xf]
    %v3270 = vld [vmem:[%s3 + $0x3c] sm:$0xf]
    %v3271 = vld [vmem:[%s3 + $0x40] sm:$0xf]
    %v3272 = vld [vmem:[%s3 + $0x44] sm:$0xf]
    %v3273 = vld [vmem:[%s3 + $0x48] sm:$0xf]
    %v3274 = vld [vmem:[%s3 + $0x4c] sm:$0xf]
    %v3275 = vld [vmem:[%s3 + $0x50] sm:$0xf]
    %v3276 = vld [vmem:[%s3 + $0x54] sm:$0xf]
    %v3277 = vld [vmem:[%s3 + $0x58] sm:$0xf]
    %v3278 = vld [vmem:[%s3 + $0x5c] sm:$0xf]
    %v3279 = vld [vmem:[%s3 + $0x60] sm:$0xf]
    %v3280 = vld [vmem:[%s3 + $0x64] sm:$0xf]
    %v3281 = vld [vmem:[%s3 + $0x68] sm:$0xf]
    %v3282 = vld [vmem:[%s3 + $0x6c] sm:$0xf]
    %v3283 = vld [vmem:[%s3 + $0x70] sm:$0xf]
    %v3284 = vld [vmem:[%s3 + $0x74] sm:$0xf]
    %v3285 = vld [vmem:[%s3 + $0x78] sm:$0xf]
    %v3286 = vld [vmem:[%s3 + $0x7c] sm:$0xf]
    %v3287 = vld [vmem:[%s3 + $0x80] sm:$0xf]
    %v3288 = vld [vmem:[%s3 + $0x84] sm:$0xf]
    %v3289 = vld [vmem:[%s3 + $0x88] sm:$0xf]
    %v3290 = vld [vmem:[%s3 + $0x8c] sm:$0xf]
    %v3291 = vld [vmem:[%s3 + $0x90] sm:$0xf]
    %v3292 = vld [vmem:[%s3 + $0x94] sm:$0xf]
    %v3293 = vld [vmem:[%s3 + $0x98] sm:$0xf]
    %v3294 = vld [vmem:[%s3 + $0x9c] sm:$0xf]
    %v3295 = vld [vmem:[%s3 + $0xa0] sm:$0xf]
    %v3296 = vld [vmem:[%s3 + $0xa4] sm:$0xf]
    %v3297 = vld [vmem:[%s3 + $0xa8] sm:$0xf]
    %v3298 = vld [vmem:[%s3 + $0xac] sm:$0xf]
    %v3299 = vld [vmem:[%s3 + $0xb0] sm:$0xf]
    %v3300 = vld [vmem:[%s3 + $0xb4] sm:$0xf]
    %v3301 = vld [vmem:[%s3 + $0xb8] sm:$0xf]
    %v3302 = vld [vmem:[%s3 + $0xbc] sm:$0xf]
    %v3303 = vld [vmem:[%s3 + $0xc0] sm:$0xf]
    %v3304 = vld [vmem:[%s3 + $0xc4] sm:$0xf]
    %v3305 = vld [vmem:[%s3 + $0xc8] sm:$0xf]
    %v3306 = vld [vmem:[%s3 + $0xcc] sm:$0xf]
    %v3307 = vld [vmem:[%s3 + $0xd0] sm:$0xf]
    %v3308 = vld [vmem:[%s3 + $0xd4] sm:$0xf]
    %v3309 = vld [vmem:[%s3 + $0xd8] sm:$0xf]
    %v3310 = vld [vmem:[%s3 + $0xdc] sm:$0xf]
    %v3311 = vld [vmem:[%s3 + $0xe0] sm:$0xf]
    %v3312 = vld [vmem:[%s3 + $0xe4] sm:$0xf]
    %v3313 = vld [vmem:[%s3 + $0xe8] sm:$0xf]
    %v3314 = vld [vmem:[%s3 + $0xec] sm:$0xf]
    %v3315 = vld [vmem:[%s3 + $0xf0] sm:$0xf]
    %v3316 = vld [vmem:[%s3 + $0xf4] sm:$0xf]
    %v3317 = vld [vmem:[%s3 + $0xf8] sm:$0xf]
    %v3318 = vld [vmem:[%s3 + $0xfc] sm:$0xf]
    %v3319 = vld [vmem:[%s3 + $0x100] sm:$0xf]
    %v3320 = vld [vmem:[%s3 + $0x104] sm:$0xf]
    %v3321 = vld [vmem:[%s3 + $0x108] sm:$0xf]
    %v3322 = vld [vmem:[%s3 + $0x10c] sm:$0xf]
    %v3323 = vld [vmem:[%s3 + $0x110] sm:$0xf]
    %v3324 = vld [vmem:[%s3 + $0x114] sm:$0xf]
    %v3325 = vld [vmem:[%s3 + $0x118] sm:$0xf]
    %v3326 = vld [vmem:[%s3 + $0x11c] sm:$0xf]
    %v3327 = vld [vmem:[%s3 + $0x120] sm:$0xf]
    %v3328 = vld [vmem:[%s3 + $0x124] sm:$0xf]
    %v3329 = vld [vmem:[%s3 + $0x128] sm:$0xf]
    %v3330 = vld [vmem:[%s3 + $0x12c] sm:$0xf]
    %v3331 = vld [vmem:[%s3 + $0x130] sm:$0xf]
    %v3332 = vld [vmem:[%s3 + $0x134] sm:$0xf]
    %v3333 = vld [vmem:[%s3 + $0x138] sm:$0xf]
    %v3334 = vld [vmem:[%s3 + $0x13c] sm:$0xf]
    %v3335 = vld [vmem:[%s3 + $0x140] sm:$0xf]
    %v3336 = vld [vmem:[%s3 + $0x144] sm:$0xf]
    %v3337 = vld [vmem:[%s3 + $0x148] sm:$0xf]
    %v3338 = vld [vmem:[%s3 + $0x14c] sm:$0xf]
    %v3339 = vld [vmem:[%s3 + $0x150] sm:$0xf]
    %v3340 = vld [vmem:[%s3 + $0x154] sm:$0xf]
    %v3341 = vld [vmem:[%s3 + $0x158] sm:$0xf]
    %v3342 = vld [vmem:[%s3 + $0x15c] sm:$0xf]
    %v3343 = vld [vmem:[%s3 + $0x160] sm:$0xf]
    %v3344 = vld [vmem:[%s3 + $0x164] sm:$0xf]
    %v3345 = vld [vmem:[%s3 + $0x168] sm:$0xf]
    %v3346 = vld [vmem:[%s3 + $0x16c] sm:$0xf]
    %v3347 = vld [vmem:[%s3 + $0x170] sm:$0xf]
    %v3348 = vld [vmem:[%s3 + $0x174] sm:$0xf]
    %v3349 = vld [vmem:[%s3 + $0x178] sm:$0xf]
    %v3350 = vld [vmem:[%s3 + $0x17c] sm:$0xf]
    %v3351 = vld [vmem:[%s3 + $0x180] sm:$0xf]
    %v3352 = vld [vmem:[%s3 + $0x184] sm:$0xf]
    %v3353 = vld [vmem:[%s3 + $0x188] sm:$0xf]
    %v3354 = vld [vmem:[%s3 + $0x18c] sm:$0xf]
    %v3355 = vld [vmem:[%s3 + $0x190] sm:$0xf]
    %v3356 = vld [vmem:[%s3 + $0x194] sm:$0xf]
    %v3357 = vld [vmem:[%s3 + $0x198] sm:$0xf]
    %v3358 = vld [vmem:[%s3 + $0x19c] sm:$0xf]
    %v3359 = vld [vmem:[%s3 + $0x1a0] sm:$0xf]
    %v3360 = vld [vmem:[%s3 + $0x1a4] sm:$0xf]
    %v3361 = vld [vmem:[%s3 + $0x1a8] sm:$0xf]
    %v3362 = vld [vmem:[%s3 + $0x1ac] sm:$0xf]
    %v3363 = vld [vmem:[%s3 + $0x1b0] sm:$0xf]
    %v3364 = vld [vmem:[%s3 + $0x1b4] sm:$0xf]
    %v3365 = vld [vmem:[%s3 + $0x1b8] sm:$0xf]
    %v3366 = vld [vmem:[%s3 + $0x1bc] sm:$0xf]
    %v3367 = vld [vmem:[%s3 + $0x1c0] sm:$0xf]
    %v3368 = vld [vmem:[%s3 + $0x1c4] sm:$0xf]
    %v3369 = vld [vmem:[%s3 + $0x1c8] sm:$0xf]
    %v3370 = vld [vmem:[%s3 + $0x1cc] sm:$0xf]
    %v3371 = vld [vmem:[%s3 + $0x1d0] sm:$0xf]
    %v3372 = vld [vmem:[%s3 + $0x1d4] sm:$0xf]
    %v3373 = vld [vmem:[%s3 + $0x1d8] sm:$0xf]
    %v3374 = vld [vmem:[%s3 + $0x1dc] sm:$0xf]
    %v3375 = vld [vmem:[%s3 + $0x1e0] sm:$0xf]
    %v3376 = vld [vmem:[%s3 + $0x1e4] sm:$0xf]
    %v3377 = vld [vmem:[%s3 + $0x1e8] sm:$0xf]
    %v3378 = vld [vmem:[%s3 + $0x1ec] sm:$0xf]
    %v3379 = vld [vmem:[%s3 + $0x1f0] sm:$0xf]
    %v3380 = vld [vmem:[%s3 + $0x1f4] sm:$0xf]
    %v3381 = vld [vmem:[%s3 + $0x1f8] sm:$0xf]
    %v3382 = vld [vmem:[%s3 + $0x1fc] sm:$0xf]
    %v3383 = vld [vmem:[%s3 + $0x200] sm:$0xf]
    %v3384 = vld [vmem:[%s3 + $0x204] sm:$0xf]
    %v3385 = vld [vmem:[%s3 + $0x208] sm:$0xf]
    %v3386 = vld [vmem:[%s3 + $0x20c] sm:$0xf]
    %v3387 = vld [vmem:[%s3 + $0x210] sm:$0xf]
    %v3388 = vld [vmem:[%s3 + $0x214] sm:$0xf]
    %v3389 = vld [vmem:[%s3 + $0x218] sm:$0xf]
    %v3390 = vld [vmem:[%s3 + $0x21c] sm:$0xf]
    %v3391 = vld [vmem:[%s3 + $0x220] sm:$0xf]
    %v3392 = vld [vmem:[%s3 + $0x224] sm:$0xf]
    %v3393 = vld [vmem:[%s3 + $0x228] sm:$0xf]
    %v3394 = vld [vmem:[%s3 + $0x22c] sm:$0xf]
    %v3395 = vld [vmem:[%s3 + $0x230] sm:$0xf]
    %v3396 = vld [vmem:[%s3 + $0x234] sm:$0xf]
    %v3397 = vld [vmem:[%s3 + $0x238] sm:$0xf]
    %v3398 = vld [vmem:[%s3 + $0x23c] sm:$0xf]
    %v3399 = vld [vmem:[%s3 + $0x240] sm:$0xf]
    %v3400 = vld [vmem:[%s3 + $0x244] sm:$0xf]
    %v3401 = vld [vmem:[%s3 + $0x248] sm:$0xf]
    %v3402 = vld [vmem:[%s3 + $0x24c] sm:$0xf]
    %v3403 = vld [vmem:[%s3 + $0x250] sm:$0xf]
    %v3404 = vld [vmem:[%s3 + $0x254] sm:$0xf]
    %v3405 = vld [vmem:[%s3 + $0x258] sm:$0xf]
    %v3406 = vld [vmem:[%s3 + $0x25c] sm:$0xf]
    %v3407 = vld [vmem:[%s3 + $0x260] sm:$0xf]
    %v3408 = vld [vmem:[%s3 + $0x264] sm:$0xf]
    %v3409 = vld [vmem:[%s3 + $0x268] sm:$0xf]
    %v3410 = vld [vmem:[%s3 + $0x26c] sm:$0xf]
    %v3411 = vld [vmem:[%s3 + $0x270] sm:$0xf]
    %v3412 = vld [vmem:[%s3 + $0x274] sm:$0xf]
    %v3413 = vld [vmem:[%s3 + $0x278] sm:$0xf]
    %v3414 = vld [vmem:[%s3 + $0x27c] sm:$0xf]
    %v3415 = vld [vmem:[%s3 + $0x280] sm:$0xf]
    %v3416 = vld [vmem:[%s3 + $0x284] sm:$0xf]
    %v3417 = vld [vmem:[%s3 + $0x288] sm:$0xf]
    %v3418 = vld [vmem:[%s3 + $0x28c] sm:$0xf]
    %v3419 = vld [vmem:[%s3 + $0x290] sm:$0xf]
    %v3420 = vld [vmem:[%s3 + $0x294] sm:$0xf]
    %v3421 = vld [vmem:[%s3 + $0x298] sm:$0xf]
    %v3422 = vld [vmem:[%s3 + $0x29c] sm:$0xf]
    %v3423 = vld [vmem:[%s3 + $0x2a0] sm:$0xf]
    %v3424 = vld [vmem:[%s3 + $0x2a4] sm:$0xf]
    %v3425 = vld [vmem:[%s3 + $0x2a8] sm:$0xf]
    %v3426 = vld [vmem:[%s3 + $0x2ac] sm:$0xf]
    %v3427 = vld [vmem:[%s3 + $0x2b0] sm:$0xf]
    %v3428 = vld [vmem:[%s3 + $0x2b4] sm:$0xf]
    %v3429 = vld [vmem:[%s3 + $0x2b8] sm:$0xf]
    %v3430 = vld [vmem:[%s3 + $0x2bc] sm:$0xf]
    %v3431 = vld [vmem:[%s3 + $0x2c0] sm:$0xf]
    %v3432 = vld [vmem:[%s3 + $0x2c4] sm:$0xf]
    %v3433 = vld [vmem:[%s3 + $0x2c8] sm:$0xf]
    %v3434 = vld [vmem:[%s3 + $0x2cc] sm:$0xf]
    %v3435 = vld [vmem:[%s3 + $0x2d0] sm:$0xf]
    %v3436 = vld [vmem:[%s3 + $0x2d4] sm:$0xf]
    %v3437 = vld [vmem:[%s3 + $0x2d8] sm:$0xf]
    %v3438 = vld [vmem:[%s3 + $0x2dc] sm:$0xf]
    %v3439 = vld [vmem:[%s3 + $0x2e0] sm:$0xf]
    %v3440 = vld [vmem:[%s3 + $0x2e4] sm:$0xf]
    %v3441 = vld [vmem:[%s3 + $0x2e8] sm:$0xf]
    %v3442 = vld [vmem:[%s3 + $0x2ec] sm:$0xf]
    %v3443 = vld [vmem:[%s3 + $0x2f0] sm:$0xf]
    %v3444 = vld [vmem:[%s3 + $0x2f4] sm:$0xf]
    %v3445 = vld [vmem:[%s3 + $0x2f8] sm:$0xf]
    %v3446 = vld [vmem:[%s3 + $0x2fc] sm:$0xf]
    %v3447 = vld [vmem:[%s3 + $0x300] sm:$0xf]
    %v3448 = vld [vmem:[%s3 + $0x304] sm:$0xf]
    %v3449 = vld [vmem:[%s3 + $0x308] sm:$0xf]
    %v3450 = vld [vmem:[%s3 + $0x30c] sm:$0xf]
    %v3451 = vld [vmem:[%s3 + $0x310] sm:$0xf]
    %v3452 = vld [vmem:[%s3 + $0x314] sm:$0xf]
    %v3453 = vld [vmem:[%s3 + $0x318] sm:$0xf]
    %v3454 = vld [vmem:[%s3 + $0x31c] sm:$0xf]
    %v3455 = vld [vmem:[%s4] sm:$0x1]
    %v3456 = vld [vmem:[%s4 + $0x1] sm:$0x1]
    %v3457 = vld [vmem:[%s4 + $0x2] sm:$0x1]
    %v3458 = vlaneseq
    %v3459 = vshrl.u32 %v3458, 7
    %v3460 = vsub.s32 0, %v3459
    %v3461 = vrot.slane %v3455, %v3460
    %v3574 = vunpack.c.l.b16 %v3143
    %v3575 = vunpack.c.h.b16 %v3143
    %v3576 = vunpack.c.l.b16 %v3144
    %v3577 = vunpack.c.h.b16 %v3144
    %v3578 = vunpack.c.l.b16 %v3145
    %v3579 = vunpack.c.h.b16 %v3145
    %v3580 = vunpack.c.l.b16 %v3146
    %v3581 = vunpack.c.h.b16 %v3146
    %v3582 = vunpack.c.l.b16 %v3147
    %v3583 = vunpack.c.h.b16 %v3147
    %v3584 = vunpack.c.l.b16 %v3148
    %v3585 = vunpack.c.h.b16 %v3148
    %v3586 = vunpack.c.l.b16 %v3149
    %v3587 = vunpack.c.l.b16 %v3150
    %v3588 = vunpack.c.h.b16 %v3150
    %v3589 = vunpack.c.l.b16 %v3151
    %v3590 = vunpack.c.h.b16 %v3151
    %v3591 = vunpack.c.l.b16 %v3152
    %v3592 = vunpack.c.h.b16 %v3152
    %v3593 = vunpack.c.l.b16 %v3153
    %v3594 = vunpack.c.h.b16 %v3153
    %v3595 = vunpack.c.l.b16 %v3154
    %v3596 = vunpack.c.h.b16 %v3154
    %v3597 = vunpack.c.l.b16 %v3155
    %v3598 = vunpack.c.h.b16 %v3155
    %v3599 = vunpack.c.l.b16 %v3156
    %v3600 = vunpack.c.l.b16 %v3157
    %v3601 = vunpack.c.h.b16 %v3157
    %v3602 = vunpack.c.l.b16 %v3158
    %v3603 = vunpack.c.h.b16 %v3158
    %v3604 = vunpack.c.l.b16 %v3159
    %v3605 = vunpack.c.h.b16 %v3159
    %v3606 = vunpack.c.l.b16 %v3160
    %v3607 = vunpack.c.h.b16 %v3160
    %v3608 = vunpack.c.l.b16 %v3161
    %v3609 = vunpack.c.h.b16 %v3161
    %v3610 = vunpack.c.l.b16 %v3162
    %v3611 = vunpack.c.h.b16 %v3162
    %v3612 = vunpack.c.l.b16 %v3163
    %v3613 = vunpack.c.l.b16 %v3164
    %v3614 = vunpack.c.h.b16 %v3164
    %v3615 = vunpack.c.l.b16 %v3165
    %v3616 = vunpack.c.h.b16 %v3165
    %v3617 = vunpack.c.l.b16 %v3166
    %v3618 = vunpack.c.h.b16 %v3166
    %v3619 = vunpack.c.l.b16 %v3167
    %v3620 = vunpack.c.h.b16 %v3167
    %v3621 = vunpack.c.l.b16 %v3168
    %v3622 = vunpack.c.h.b16 %v3168
    %v3623 = vunpack.c.l.b16 %v3169
    %v3624 = vunpack.c.h.b16 %v3169
    %v3625 = vunpack.c.l.b16 %v3170
    %v3626 = vunpack.c.l.b16 %v3171
    %v3627 = vunpack.c.h.b16 %v3171
    %v3628 = vunpack.c.l.b16 %v3172
    %v3629 = vunpack.c.h.b16 %v3172
    %v3630 = vunpack.c.l.b16 %v3173
    %v3631 = vunpack.c.h.b16 %v3173
    %v3632 = vunpack.c.l.b16 %v3174
    %v3633 = vunpack.c.h.b16 %v3174
    %v3634 = vunpack.c.l.b16 %v3175
    %v3635 = vunpack.c.h.b16 %v3175
    %v3636 = vunpack.c.l.b16 %v3176
    %v3637 = vunpack.c.h.b16 %v3176
    %v3638 = vunpack.c.l.b16 %v3177
    %v3639 = vunpack.c.l.b16 %v3178
    %v3640 = vunpack.c.h.b16 %v3178
    %v3641 = vunpack.c.l.b16 %v3179
    %v3642 = vunpack.c.h.b16 %v3179
    %v3643 = vunpack.c.l.b16 %v3180
    %v3644 = vunpack.c.h.b16 %v3180
    %v3645 = vunpack.c.l.b16 %v3181
    %v3646 = vunpack.c.h.b16 %v3181
    %v3647 = vunpack.c.l.b16 %v3182
    %v3648 = vunpack.c.h.b16 %v3182
    %v3649 = vunpack.c.l.b16 %v3183
    %v3650 = vunpack.c.h.b16 %v3183
    %v3651 = vunpack.c.l.b16 %v3184
    %v3652 = vunpack.c.l.b16 %v3185
    %v3653 = vunpack.c.h.b16 %v3185
    %v3654 = vunpack.c.l.b16 %v3186
    %v3655 = vunpack.c.h.b16 %v3186
    %v3656 = vunpack.c.l.b16 %v3187
    %v3657 = vunpack.c.h.b16 %v3187
    %v3658 = vunpack.c.l.b16 %v3188
    %v3659 = vunpack.c.h.b16 %v3188
    %v3660 = vunpack.c.l.b16 %v3189
    %v3661 = vunpack.c.h.b16 %v3189
    %v3662 = vunpack.c.l.b16 %v3190
    %v3663 = vunpack.c.h.b16 %v3190
    %v3664 = vunpack.c.l.b16 %v3191
    %v3665 = vunpack.c.l.b16 %v3192
    %v3666 = vunpack.c.h.b16 %v3192
    %v3667 = vunpack.c.l.b16 %v3193
    %v3668 = vunpack.c.h.b16 %v3193
    %v3669 = vunpack.c.l.b16 %v3194
    %v3670 = vunpack.c.h.b16 %v3194
    %v3671 = vunpack.c.l.b16 %v3195
    %v3672 = vunpack.c.h.b16 %v3195
    %v3673 = vunpack.c.l.b16 %v3196
    %v3674 = vunpack.c.h.b16 %v3196
    %v3675 = vunpack.c.l.b16 %v3197
    %v3676 = vunpack.c.h.b16 %v3197
    %v3677 = vunpack.c.l.b16 %v3198
    %v3678 = vunpack.c.l.b16 %v3199
    %v3679 = vunpack.c.h.b16 %v3199
    %v3680 = vunpack.c.l.b16 %v3200
    %v3681 = vunpack.c.h.b16 %v3200
    %v3682 = vunpack.c.l.b16 %v3201
    %v3683 = vunpack.c.h.b16 %v3201
    %v3684 = vunpack.c.l.b16 %v3202
    %v3685 = vunpack.c.h.b16 %v3202
    %v3686 = vunpack.c.l.b16 %v3203
    %v3687 = vunpack.c.h.b16 %v3203
    %v3688 = vunpack.c.l.b16 %v3204
    %v3689 = vunpack.c.h.b16 %v3204
    %v3690 = vunpack.c.l.b16 %v3205
    %v3691 = vunpack.c.l.b16 %v3206
    %v3692 = vunpack.c.h.b16 %v3206
    %v3693 = vunpack.c.l.b16 %v3207
    %v3694 = vunpack.c.h.b16 %v3207
    %v3695 = vunpack.c.l.b16 %v3208
    %v3696 = vunpack.c.h.b16 %v3208
    %v3697 = vunpack.c.l.b16 %v3209
    %v3698 = vunpack.c.h.b16 %v3209
    %v3699 = vunpack.c.l.b16 %v3210
    %v3700 = vunpack.c.h.b16 %v3210
    %v3701 = vunpack.c.l.b16 %v3211
    %v3702 = vunpack.c.h.b16 %v3211
    %v3703 = vunpack.c.l.b16 %v3212
    %v3704 = vunpack.c.l.b16 %v3213
    %v3705 = vunpack.c.h.b16 %v3213
    %v3706 = vunpack.c.l.b16 %v3214
    %v3707 = vunpack.c.h.b16 %v3214
    %v3708 = vunpack.c.l.b16 %v3215
    %v3709 = vunpack.c.h.b16 %v3215
    %v3710 = vunpack.c.l.b16 %v3216
    %v3711 = vunpack.c.h.b16 %v3216
    %v3712 = vunpack.c.l.b16 %v3217
    %v3713 = vunpack.c.h.b16 %v3217
    %v3714 = vunpack.c.l.b16 %v3218
    %v3715 = vunpack.c.h.b16 %v3218
    %v3716 = vunpack.c.l.b16 %v3219
    %v3717 = vunpack.c.l.b16 %v3220
    %v3718 = vunpack.c.h.b16 %v3220
    %v3719 = vunpack.c.l.b16 %v3221
    %v3720 = vunpack.c.h.b16 %v3221
    %v3721 = vunpack.c.l.b16 %v3222
    %v3722 = vunpack.c.h.b16 %v3222
    %v3723 = vunpack.c.l.b16 %v3223
    %v3724 = vunpack.c.h.b16 %v3223
    %v3725 = vunpack.c.l.b16 %v3224
    %v3726 = vunpack.c.h.b16 %v3224
    %v3727 = vunpack.c.l.b16 %v3225
    %v3728 = vunpack.c.h.b16 %v3225
    %v3729 = vunpack.c.l.b16 %v3226
    %v3730 = vunpack.c.l.b16 %v3227
    %v3731 = vunpack.c.h.b16 %v3227
    %v3732 = vunpack.c.l.b16 %v3228
    %v3733 = vunpack.c.h.b16 %v3228
    %v3734 = vunpack.c.l.b16 %v3229
    %v3735 = vunpack.c.h.b16 %v3229
    %v3736 = vunpack.c.l.b16 %v3230
    %v3737 = vunpack.c.h.b16 %v3230
    %v3738 = vunpack.c.l.b16 %v3231
    %v3739 = vunpack.c.h.b16 %v3231
    %v3740 = vunpack.c.l.b16 %v3232
    %v3741 = vunpack.c.h.b16 %v3232
    %v3742 = vunpack.c.l.b16 %v3233
    %v3743 = vunpack.c.l.b16 %v3234
    %v3744 = vunpack.c.h.b16 %v3234
    %v3745 = vunpack.c.l.b16 %v3235
    %v3746 = vunpack.c.h.b16 %v3235
    %v3747 = vunpack.c.l.b16 %v3236
    %v3748 = vunpack.c.h.b16 %v3236
    %v3749 = vunpack.c.l.b16 %v3237
    %v3750 = vunpack.c.h.b16 %v3237
    %v3751 = vunpack.c.l.b16 %v3238
    %v3752 = vunpack.c.h.b16 %v3238
    %v3753 = vunpack.c.l.b16 %v3239
    %v3754 = vunpack.c.h.b16 %v3239
    %v3755 = vunpack.c.l.b16 %v3240
    %v3756 = vunpack.c.l.b16 %v3241
    %v3757 = vunpack.c.h.b16 %v3241
    %v3758 = vunpack.c.l.b16 %v3242
    %v3759 = vunpack.c.h.b16 %v3242
    %v3760 = vunpack.c.l.b16 %v3243
    %v3761 = vunpack.c.h.b16 %v3243
    %v3762 = vunpack.c.l.b16 %v3244
    %v3763 = vunpack.c.h.b16 %v3244
    %v3764 = vunpack.c.l.b16 %v3245
    %v3765 = vunpack.c.h.b16 %v3245
    %v3766 = vunpack.c.l.b16 %v3246
    %v3767 = vunpack.c.h.b16 %v3246
    %v3768 = vunpack.c.l.b16 %v3247
    %v3769 = vunpack.c.l.b16 %v3248
    %v3770 = vunpack.c.h.b16 %v3248
    %v3771 = vunpack.c.l.b16 %v3249
    %v3772 = vunpack.c.h.b16 %v3249
    %v3773 = vunpack.c.l.b16 %v3250
    %v3774 = vunpack.c.h.b16 %v3250
    %v3775 = vunpack.c.l.b16 %v3251
    %v3776 = vunpack.c.h.b16 %v3251
    %v3777 = vunpack.c.l.b16 %v3252
    %v3778 = vunpack.c.h.b16 %v3252
    %v3779 = vunpack.c.l.b16 %v3253
    %v3780 = vunpack.c.h.b16 %v3253
    %v3781 = vunpack.c.l.b16 %v3254
    %v3782 = vpack.c.b16 %v3587, %v3574
    %v3783 = vpack.c.b16 %v3588, %v3575
    %v3784 = vpack.c.b16 %v3589, %v3576
    %v3785 = vpack.c.b16 %v3590, %v3577
    %v3786 = vpack.c.b16 %v3591, %v3578
    %v3787 = vpack.c.b16 %v3592, %v3579
    %v3788 = vpack.c.b16 %v3593, %v3580
    %v3789 = vpack.c.b16 %v3594, %v3581
    %v3790 = vpack.c.b16 %v3595, %v3582
    %v3791 = vpack.c.b16 %v3596, %v3583
    %v3792 = vpack.c.b16 %v3597, %v3584
    %v3793 = vpack.c.b16 %v3598, %v3585
    %v3794 = vpack.c.b16 %v3599, %v3586
    %v3795 = vpack.c.b16 %v3613, %v3600
    %v3796 = vpack.c.b16 %v3614, %v3601
    %v3797 = vpack.c.b16 %v3615, %v3602
    %v3798 = vpack.c.b16 %v3616, %v3603
    %v3799 = vpack.c.b16 %v3617, %v3604
    %v3800 = vpack.c.b16 %v3618, %v3605
    %v3801 = vpack.c.b16 %v3619, %v3606
    %v3802 = vpack.c.b16 %v3620, %v3607
    %v3803 = vpack.c.b16 %v3621, %v3608
    %v3804 = vpack.c.b16 %v3622, %v3609
    %v3805 = vpack.c.b16 %v3623, %v3610
    %v3806 = vpack.c.b16 %v3624, %v3611
    %v3807 = vpack.c.b16 %v3625, %v3612
    %v3808 = vpack.c.b16 %v3639, %v3626
    %v3809 = vpack.c.b16 %v3640, %v3627
    %v3810 = vpack.c.b16 %v3641, %v3628
    %v3811 = vpack.c.b16 %v3642, %v3629
    %v3812 = vpack.c.b16 %v3643, %v3630
    %v3813 = vpack.c.b16 %v3644, %v3631
    %v3814 = vpack.c.b16 %v3645, %v3632
    %v3815 = vpack.c.b16 %v3646, %v3633
    %v3816 = vpack.c.b16 %v3647, %v3634
    %v3817 = vpack.c.b16 %v3648, %v3635
    %v3818 = vpack.c.b16 %v3649, %v3636
    %v3819 = vpack.c.b16 %v3650, %v3637
    %v3820 = vpack.c.b16 %v3651, %v3638
    %v3821 = vpack.c.b16 %v3665, %v3652
    %v3822 = vpack.c.b16 %v3666, %v3653
    %v3823 = vpack.c.b16 %v3667, %v3654
    %v3824 = vpack.c.b16 %v3668, %v3655
    %v3825 = vpack.c.b16 %v3669, %v3656
    %v3826 = vpack.c.b16 %v3670, %v3657
    %v3827 = vpack.c.b16 %v3671, %v3658
    %v3828 = vpack.c.b16 %v3672, %v3659
    %v3829 = vpack.c.b16 %v3673, %v3660
    %v3830 = vpack.c.b16 %v3674, %v3661
    %v3831 = vpack.c.b16 %v3675, %v3662
    %v3832 = vpack.c.b16 %v3676, %v3663
    %v3833 = vpack.c.b16 %v3677, %v3664
    %v3834 = vpack.c.b16 %v3691, %v3678
    %v3835 = vpack.c.b16 %v3692, %v3679
    %v3836 = vpack.c.b16 %v3693, %v3680
    %v3837 = vpack.c.b16 %v3694, %v3681
    %v3838 = vpack.c.b16 %v3695, %v3682
    %v3839 = vpack.c.b16 %v3696, %v3683
    %v3840 = vpack.c.b16 %v3697, %v3684
    %v3841 = vpack.c.b16 %v3698, %v3685
    %v3842 = vpack.c.b16 %v3699, %v3686
    %v3843 = vpack.c.b16 %v3700, %v3687
    %v3844 = vpack.c.b16 %v3701, %v3688
    %v3845 = vpack.c.b16 %v3702, %v3689
    %v3846 = vpack.c.b16 %v3703, %v3690
    %v3847 = vpack.c.b16 %v3717, %v3704
    %v3848 = vpack.c.b16 %v3718, %v3705
    %v3849 = vpack.c.b16 %v3719, %v3706
    %v3850 = vpack.c.b16 %v3720, %v3707
    %v3851 = vpack.c.b16 %v3721, %v3708
    %v3852 = vpack.c.b16 %v3722, %v3709
    %v3853 = vpack.c.b16 %v3723, %v3710
    %v3854 = vpack.c.b16 %v3724, %v3711
    %v3855 = vpack.c.b16 %v3725, %v3712
    %v3856 = vpack.c.b16 %v3726, %v3713
    %v3857 = vpack.c.b16 %v3727, %v3714
    %v3858 = vpack.c.b16 %v3728, %v3715
    %v3859 = vpack.c.b16 %v3729, %v3716
    %v3860 = vpack.c.b16 %v3743, %v3730
    %v3861 = vpack.c.b16 %v3744, %v3731
    %v3862 = vpack.c.b16 %v3745, %v3732
    %v3863 = vpack.c.b16 %v3746, %v3733
    %v3864 = vpack.c.b16 %v3747, %v3734
    %v3865 = vpack.c.b16 %v3748, %v3735
    %v3866 = vpack.c.b16 %v3749, %v3736
    %v3867 = vpack.c.b16 %v3750, %v3737
    %v3868 = vpack.c.b16 %v3751, %v3738
    %v3869 = vpack.c.b16 %v3752, %v3739
    %v3870 = vpack.c.b16 %v3753, %v3740
    %v3871 = vpack.c.b16 %v3754, %v3741
    %v3872 = vpack.c.b16 %v3755, %v3742
    %v3873 = vpack.c.b16 %v3769, %v3756
    %v3874 = vpack.c.b16 %v3770, %v3757
    %v3875 = vpack.c.b16 %v3771, %v3758
    %v3876 = vpack.c.b16 %v3772, %v3759
    %v3877 = vpack.c.b16 %v3773, %v3760
    %v3878 = vpack.c.b16 %v3774, %v3761
    %v3879 = vpack.c.b16 %v3775, %v3762
    %v3880 = vpack.c.b16 %v3776, %v3763
    %v3881 = vpack.c.b16 %v3777, %v3764
    %v3882 = vpack.c.b16 %v3778, %v3765
    %v3883 = vpack.c.b16 %v3779, %v3766
    %v3884 = vpack.c.b16 %v3780, %v3767
    %v3885 = vpack.c.b16 %v3781, %v3768
    %v4182 = vunpack.c.l.b16 %v3255
    %v4183 = vunpack.c.l.b16 %v3256
    %v4184 = vunpack.c.l.b16 %v3257
    %v4185 = vunpack.c.l.b16 %v3258
    %v4186 = vunpack.c.l.b16 %v3259
    %v4187 = vunpack.c.l.b16 %v3260
    %v4188 = vunpack.c.l.b16 %v3261
    %v4189 = vunpack.c.l.b16 %v3262
    %v4190 = vunpack.c.l.b16 %v3263
    %v4191 = vunpack.c.l.b16 %v3264
    %v4192 = vunpack.c.l.b16 %v3265
    %v4193 = vunpack.c.l.b16 %v3266
    %v4194 = vunpack.c.l.b16 %v3267
    %v4195 = vunpack.c.l.b16 %v3268
    %v4196 = vunpack.c.l.b16 %v3269
    %v4197 = vunpack.c.l.b16 %v3270
    %v4198 = vunpack.c.l.b16 %v3271
    %v4199 = vunpack.c.l.b16 %v3272
    %v4200 = vunpack.c.l.b16 %v3273
    %v4201 = vunpack.c.l.b16 %v3274
    %v4202 = vunpack.c.l.b16 %v3275
    %v4203 = vunpack.c.l.b16 %v3276
    %v4204 = vunpack.c.l.b16 %v3277
    %v4205 = vunpack.c.l.b16 %v3278
    %v4206 = vunpack.c.l.b16 %v3279
    %v4207 = vunpack.c.l.b16 %v3280
    %v4208 = vunpack.c.l.b16 %v3281
    %v4209 = vunpack.c.l.b16 %v3282
    %v4210 = vunpack.c.l.b16 %v3283
    %v4211 = vunpack.c.l.b16 %v3284
    %v4212 = vunpack.c.l.b16 %v3285
    %v4213 = vunpack.c.l.b16 %v3286
    %v4214 = vunpack.c.l.b16 %v3287
    %v4215 = vunpack.c.l.b16 %v3288
    %v4216 = vunpack.c.l.b16 %v3289
    %v4217 = vunpack.c.l.b16 %v3290
    %v4218 = vunpack.c.l.b16 %v3291
    %v4219 = vunpack.c.l.b16 %v3292
    %v4220 = vunpack.c.l.b16 %v3293
    %v4221 = vunpack.c.l.b16 %v3294
    %v4222 = vunpack.c.l.b16 %v3295
    %v4223 = vunpack.c.l.b16 %v3296
    %v4224 = vunpack.c.l.b16 %v3297
    %v4225 = vunpack.c.l.b16 %v3298
    %v4226 = vunpack.c.l.b16 %v3299
    %v4227 = vunpack.c.l.b16 %v3300
    %v4228 = vunpack.c.l.b16 %v3301
    %v4229 = vunpack.c.l.b16 %v3302
    %v4230 = vunpack.c.l.b16 %v3303
    %v4231 = vunpack.c.l.b16 %v3304
    %v4232 = vunpack.c.l.b16 %v3305
    %v4233 = vunpack.c.l.b16 %v3306
    %v4234 = vunpack.c.l.b16 %v3307
    %v4235 = vunpack.c.l.b16 %v3308
    %v4236 = vunpack.c.l.b16 %v3309
    %v4237 = vunpack.c.l.b16 %v3310
    %v4238 = vunpack.c.l.b16 %v3311
    %v4239 = vunpack.c.l.b16 %v3312
    %v4240 = vunpack.c.l.b16 %v3313
    %v4241 = vunpack.c.l.b16 %v3314
    %v4242 = vunpack.c.l.b16 %v3315
    %v4243 = vunpack.c.l.b16 %v3316
    %v4244 = vunpack.c.l.b16 %v3317
    %v4245 = vunpack.c.l.b16 %v3318
    %v4246 = vunpack.c.l.b16 %v3319
    %v4247 = vunpack.c.l.b16 %v3320
    %v4248 = vunpack.c.l.b16 %v3321
    %v4249 = vunpack.c.l.b16 %v3322
    %v4250 = vunpack.c.l.b16 %v3323
    %v4251 = vunpack.c.l.b16 %v3324
    %v4252 = vunpack.c.l.b16 %v3325
    %v4253 = vunpack.c.l.b16 %v3326
    %v4254 = vunpack.c.l.b16 %v3327
    %v4255 = vunpack.c.l.b16 %v3328
    %v4256 = vunpack.c.l.b16 %v3329
    %v4257 = vunpack.c.l.b16 %v3330
    %v4258 = vunpack.c.l.b16 %v3331
    %v4259 = vunpack.c.l.b16 %v3332
    %v4260 = vunpack.c.l.b16 %v3333
    %v4261 = vunpack.c.l.b16 %v3334
    %v4262 = vunpack.c.l.b16 %v3335
    %v4263 = vunpack.c.l.b16 %v3336
    %v4264 = vunpack.c.l.b16 %v3337
    %v4265 = vunpack.c.l.b16 %v3338
    %v4266 = vunpack.c.l.b16 %v3339
    %v4267 = vunpack.c.l.b16 %v3340
    %v4268 = vunpack.c.l.b16 %v3341
    %v4269 = vunpack.c.l.b16 %v3342
    %v4270 = vunpack.c.l.b16 %v3343
    %v4271 = vunpack.c.l.b16 %v3344
    %v4272 = vunpack.c.l.b16 %v3345
    %v4273 = vunpack.c.l.b16 %v3346
    %v4274 = vunpack.c.l.b16 %v3347
    %v4275 = vunpack.c.l.b16 %v3348
    %v4276 = vunpack.c.l.b16 %v3349
    %v4277 = vunpack.c.l.b16 %v3350
    %v4278 = vunpack.c.l.b16 %v3351
    %v4279 = vunpack.c.l.b16 %v3352
    %v4280 = vunpack.c.l.b16 %v3353
    %v4281 = vunpack.c.l.b16 %v3354
    %v4282 = vunpack.c.l.b16 %v3355
    %v4283 = vunpack.c.l.b16 %v3356
    %v4284 = vunpack.c.l.b16 %v3357
    %v4285 = vunpack.c.l.b16 %v3358
    %v4286 = vunpack.c.l.b16 %v3359
    %v4287 = vunpack.c.l.b16 %v3360
    %v4288 = vunpack.c.l.b16 %v3361
    %v4289 = vunpack.c.l.b16 %v3362
    %v4290 = vunpack.c.l.b16 %v3363
    %v4291 = vunpack.c.l.b16 %v3364
    %v4292 = vunpack.c.l.b16 %v3365
    %v4293 = vunpack.c.l.b16 %v3366
    %v4294 = vunpack.c.l.b16 %v3367
    %v4295 = vunpack.c.l.b16 %v3368
    %v4296 = vunpack.c.l.b16 %v3369
    %v4297 = vunpack.c.l.b16 %v3370
    %v4298 = vunpack.c.l.b16 %v3371
    %v4299 = vunpack.c.l.b16 %v3372
    %v4300 = vunpack.c.l.b16 %v3373
    %v4301 = vunpack.c.l.b16 %v3374
    %v4302 = vunpack.c.l.b16 %v3375
    %v4303 = vunpack.c.l.b16 %v3376
    %v4304 = vunpack.c.l.b16 %v3377
    %v4305 = vunpack.c.l.b16 %v3378
    %v4306 = vunpack.c.l.b16 %v3379
    %v4307 = vunpack.c.l.b16 %v3380
    %v4308 = vunpack.c.l.b16 %v3381
    %v4309 = vunpack.c.l.b16 %v3382
    %v4310 = vunpack.c.l.b16 %v3383
    %v4311 = vunpack.c.l.b16 %v3384
    %v4312 = vunpack.c.l.b16 %v3385
    %v4313 = vunpack.c.l.b16 %v3386
    %v4314 = vunpack.c.l.b16 %v3387
    %v4315 = vunpack.c.l.b16 %v3388
    %v4316 = vunpack.c.l.b16 %v3389
    %v4317 = vunpack.c.l.b16 %v3390
    %v4318 = vunpack.c.l.b16 %v3391
    %v4319 = vunpack.c.l.b16 %v3392
    %v4320 = vunpack.c.l.b16 %v3393
    %v4321 = vunpack.c.l.b16 %v3394
    %v4322 = vunpack.c.l.b16 %v3395
    %v4323 = vunpack.c.l.b16 %v3396
    %v4324 = vunpack.c.l.b16 %v3397
    %v4325 = vunpack.c.l.b16 %v3398
    %v4326 = vunpack.c.l.b16 %v3399
    %v4327 = vunpack.c.l.b16 %v3400
    %v4328 = vunpack.c.l.b16 %v3401
    %v4329 = vunpack.c.l.b16 %v3402
    %v4330 = vunpack.c.l.b16 %v3403
    %v4331 = vunpack.c.l.b16 %v3404
    %v4332 = vunpack.c.l.b16 %v3405
    %v4333 = vunpack.c.l.b16 %v3406
    %v4334 = vunpack.c.l.b16 %v3407
    %v4335 = vunpack.c.l.b16 %v3408
    %v4336 = vunpack.c.l.b16 %v3409
    %v4337 = vunpack.c.l.b16 %v3410
    %v4338 = vunpack.c.l.b16 %v3411
    %v4339 = vunpack.c.l.b16 %v3412
    %v4340 = vunpack.c.l.b16 %v3413
    %v4341 = vunpack.c.l.b16 %v3414
    %v4342 = vunpack.c.l.b16 %v3415
    %v4343 = vunpack.c.l.b16 %v3416
    %v4344 = vunpack.c.l.b16 %v3417
    %v4345 = vunpack.c.l.b16 %v3418
    %v4346 = vunpack.c.l.b16 %v3419
    %v4347 = vunpack.c.l.b16 %v3420
    %v4348 = vunpack.c.l.b16 %v3421
    %v4349 = vunpack.c.l.b16 %v3422
    %v4350 = vunpack.c.l.b16 %v3423
    %v4351 = vunpack.c.l.b16 %v3424
    %v4352 = vunpack.c.l.b16 %v3425
    %v4353 = vunpack.c.l.b16 %v3426
    %v4354 = vunpack.c.l.b16 %v3427
    %v4355 = vunpack.c.l.b16 %v3428
    %v4356 = vunpack.c.l.b16 %v3429
    %v4357 = vunpack.c.l.b16 %v3430
    %v4358 = vunpack.c.l.b16 %v3431
    %v4359 = vunpack.c.l.b16 %v3432
    %v4360 = vunpack.c.l.b16 %v3433
    %v4361 = vunpack.c.l.b16 %v3434
    %v4362 = vunpack.c.l.b16 %v3435
    %v4363 = vunpack.c.l.b16 %v3436
    %v4364 = vunpack.c.l.b16 %v3437
    %v4365 = vunpack.c.l.b16 %v3438
    %v4366 = vunpack.c.l.b16 %v3439
    %v4367 = vunpack.c.l.b16 %v3440
    %v4368 = vunpack.c.l.b16 %v3441
    %v4369 = vunpack.c.l.b16 %v3442
    %v4370 = vunpack.c.l.b16 %v3443
    %v4371 = vunpack.c.l.b16 %v3444
    %v4372 = vunpack.c.l.b16 %v3445
    %v4373 = vunpack.c.l.b16 %v3446
    %v4374 = vunpack.c.l.b16 %v3447
    %v4375 = vunpack.c.l.b16 %v3448
    %v4376 = vunpack.c.l.b16 %v3449
    %v4377 = vunpack.c.l.b16 %v3450
    %v4378 = vunpack.c.l.b16 %v3451
    %v4379 = vunpack.c.l.b16 %v3452
    %v4380 = vunpack.c.l.b16 %v3453
    %v4381 = vunpack.c.l.b16 %v3454
    %v4382 = vpack.c.b16 %v4183, %v4182
    %v4383 = vpack.c.b16 %v4185, %v4184
    %v4384 = vpack.c.b16 %v4187, %v4186
    %v4385 = vpack.c.b16 %v4189, %v4188
    %v4386 = vpack.c.b16 %v4191, %v4190
    %v4387 = vpack.c.b16 %v4193, %v4192
    %v4388 = vpack.c.b16 %v4195, %v4194
    %v4389 = vpack.c.b16 %v4197, %v4196
    %v4390 = vpack.c.b16 %v4199, %v4198
    %v4391 = vpack.c.b16 %v4201, %v4200
    %v4392 = vpack.c.b16 %v4203, %v4202
    %v4393 = vpack.c.b16 %v4205, %v4204
    %v4394 = vpack.c.b16 %v4207, %v4206
    %v4395 = vpack.c.b16 %v4209, %v4208
    %v4396 = vpack.c.b16 %v4211, %v4210
    %v4397 = vpack.c.b16 %v4213, %v4212
    %v4398 = vpack.c.b16 %v4215, %v4214
    %v4399 = vpack.c.b16 %v4217, %v4216
    %v4400 = vpack.c.b16 %v4219, %v4218
    %v4401 = vpack.c.b16 %v4221, %v4220
    %v4402 = vpack.c.b16 %v4223, %v4222
    %v4403 = vpack.c.b16 %v4225, %v4224
    %v4404 = vpack.c.b16 %v4227, %v4226
    %v4405 = vpack.c.b16 %v4229, %v4228
    %v4406 = vpack.c.b16 %v4231, %v4230
    %v4407 = vpack.c.b16 %v4233, %v4232
    %v4408 = vpack.c.b16 %v4235, %v4234
    %v4409 = vpack.c.b16 %v4237, %v4236
    %v4410 = vpack.c.b16 %v4239, %v4238
    %v4411 = vpack.c.b16 %v4241, %v4240
    %v4412 = vpack.c.b16 %v4243, %v4242
    %v4413 = vpack.c.b16 %v4245, %v4244
    %v4414 = vpack.c.b16 %v4247, %v4246
    %v4415 = vpack.c.b16 %v4249, %v4248
    %v4416 = vpack.c.b16 %v4251, %v4250
    %v4417 = vpack.c.b16 %v4253, %v4252
    %v4418 = vpack.c.b16 %v4255, %v4254
    %v4419 = vpack.c.b16 %v4257, %v4256
    %v4420 = vpack.c.b16 %v4259, %v4258
    %v4421 = vpack.c.b16 %v4261, %v4260
    %v4422 = vpack.c.b16 %v4263, %v4262
    %v4423 = vpack.c.b16 %v4265, %v4264
    %v4424 = vpack.c.b16 %v4267, %v4266
    %v4425 = vpack.c.b16 %v4269, %v4268
    %v4426 = vpack.c.b16 %v4271, %v4270
    %v4427 = vpack.c.b16 %v4273, %v4272
    %v4428 = vpack.c.b16 %v4275, %v4274
    %v4429 = vpack.c.b16 %v4277, %v4276
    %v4430 = vpack.c.b16 %v4279, %v4278
    %v4431 = vpack.c.b16 %v4281, %v4280
    %v4432 = vpack.c.b16 %v4283, %v4282
    %v4433 = vpack.c.b16 %v4285, %v4284
    %v4434 = vpack.c.b16 %v4287, %v4286
    %v4435 = vpack.c.b16 %v4289, %v4288
    %v4436 = vpack.c.b16 %v4291, %v4290
    %v4437 = vpack.c.b16 %v4293, %v4292
    %v4438 = vpack.c.b16 %v4295, %v4294
    %v4439 = vpack.c.b16 %v4297, %v4296
    %v4440 = vpack.c.b16 %v4299, %v4298
    %v4441 = vpack.c.b16 %v4301, %v4300
    %v4442 = vpack.c.b16 %v4303, %v4302
    %v4443 = vpack.c.b16 %v4305, %v4304
    %v4444 = vpack.c.b16 %v4307, %v4306
    %v4445 = vpack.c.b16 %v4309, %v4308
    %v4446 = vpack.c.b16 %v4311, %v4310
    %v4447 = vpack.c.b16 %v4313, %v4312
    %v4448 = vpack.c.b16 %v4315, %v4314
    %v4449 = vpack.c.b16 %v4317, %v4316
    %v4450 = vpack.c.b16 %v4319, %v4318
    %v4451 = vpack.c.b16 %v4321, %v4320
    %v4452 = vpack.c.b16 %v4323, %v4322
    %v4453 = vpack.c.b16 %v4325, %v4324
    %v4454 = vpack.c.b16 %v4327, %v4326
    %v4455 = vpack.c.b16 %v4329, %v4328
    %v4456 = vpack.c.b16 %v4331, %v4330
    %v4457 = vpack.c.b16 %v4333, %v4332
    %v4458 = vpack.c.b16 %v4335, %v4334
    %v4459 = vpack.c.b16 %v4337, %v4336
    %v4460 = vpack.c.b16 %v4339, %v4338
    %v4461 = vpack.c.b16 %v4341, %v4340
    %v4462 = vpack.c.b16 %v4343, %v4342
    %v4463 = vpack.c.b16 %v4345, %v4344
    %v4464 = vpack.c.b16 %v4347, %v4346
    %v4465 = vpack.c.b16 %v4349, %v4348
    %v4466 = vpack.c.b16 %v4351, %v4350
    %v4467 = vpack.c.b16 %v4353, %v4352
    %v4468 = vpack.c.b16 %v4355, %v4354
    %v4469 = vpack.c.b16 %v4357, %v4356
    %v4470 = vpack.c.b16 %v4359, %v4358
    %v4471 = vpack.c.b16 %v4361, %v4360
    %v4472 = vpack.c.b16 %v4363, %v4362
    %v4473 = vpack.c.b16 %v4365, %v4364
    %v4474 = vpack.c.b16 %v4367, %v4366
    %v4475 = vpack.c.b16 %v4369, %v4368
    %v4476 = vpack.c.b16 %v4371, %v4370
    %v4477 = vpack.c.b16 %v4373, %v4372
    %v4478 = vpack.c.b16 %v4375, %v4374
    %v4479 = vpack.c.b16 %v4377, %v4376
    %v4480 = vpack.c.b16 %v4379, %v4378
    %v4481 = vpack.c.b16 %v4381, %v4380
    %v4583 = vsel %vm288, %v3794, 0
    %v4586 = vsel %vm288, %v3807, 0
    %v4589 = vsel %vm288, %v3820, 0
    %v4592 = vsel %vm288, %v3833, 0
    %v4595 = vsel %vm288, %v3846, 0
    %v4598 = vsel %vm288, %v3859, 0
    %v4601 = vsel %vm288, %v3872, 0
    %v4604 = vsel %vm288, %v3885, 0
    %4606 = vmatprep.subr.bf16.mxu0 0
    %4607 = vmatpush1.bf16.msra.mxu0 %v4389
    %4608 = vmatprep.subr.bf16.mxu0 0
    %4609 = vmatpush1.bf16.msra.mxu0 %v4388
    %4610 = vmatprep.subr.bf16.mxu0 0
    %4611 = vmatpush1.bf16.msra.mxu0 %v4387
    %4612 = vmatprep.subr.bf16.mxu0 0
    %4613 = vmatpush1.bf16.msra.mxu0 %v4386
    %4614 = vmatprep.subr.bf16.mxu0 0
    %4615 = vmatpush1.bf16.msra.mxu0 %v4385
    %4616 = vmatprep.subr.bf16.mxu0 0
    %4617 = vmatpush1.bf16.msra.mxu0 %v4384
    %4618 = vmatprep.subr.bf16.mxu0 0
    %4619 = vmatpush1.bf16.msra.mxu0 %v4383
    %4620 = vmatprep.subr.bf16.mxu0 0
    %4621 = vmatpush1.bf16.msra.mxu0 %v4382
    %4622 = vmatprep.subr.bf16.mxu0 0
    %4623 = vmatpush2.bf16.msra.mxu0 %v4397
    %4624 = vmatprep.subr.bf16.mxu0 0
    %4625 = vmatpush2.bf16.msra.mxu0 %v4396
    %4626 = vmatprep.subr.bf16.mxu0 0
    %4627 = vmatpush2.bf16.msra.mxu0 %v4395
    %4628 = vmatprep.subr.bf16.mxu0 0
    %4629 = vmatpush2.bf16.msra.mxu0 %v4394
    %4630 = vmatprep.subr.bf16.mxu0 0
    %4631 = vmatpush2.bf16.msra.mxu0 %v4393
    %4632 = vmatprep.subr.bf16.mxu0 0
    %4633 = vmatpush2.bf16.msra.mxu0 %v4392
    %4634 = vmatprep.subr.bf16.mxu0 0
    %4635 = vmatpush2.bf16.msra.mxu0 %v4391
    %4636 = vmatprep.subr.bf16.mxu0 0
    %4637 = vmatpush2.bf16.msra.mxu0 %v4390
    %4638 = vmatprep.mubr.bf16.mxu0 %v3783
    %4639 = vmatmul.mubr.bf16.gmra.mxu0 %v3782
    %v4640 = vpop.f32.mrf.mxu0
    %v4641 = vadd.f32 %v3461, %v4640
    %v4642 = vpop.f32.mrf.mxu0
    %v4643 = vpop.f32.mrf.mxu0
    %v4644 = vadd.f32 %v3461, %v4643
    %v4645 = vpop.f32.mrf.mxu0
    %4646 = vmatprep.mubr.bf16.mxu0 %v3796
    %4647 = vmatmul.mubr.bf16.gmra.mxu0 %v3795
    %v4648 = vpop.f32.mrf.mxu0
    %v4649 = vadd.f32 %v3461, %v4648
    %v4650 = vpop.f32.mrf.mxu0
    %v4651 = vpop.f32.mrf.mxu0
    %v4652 = vadd.f32 %v3461, %v4651
    %v4653 = vpop.f32.mrf.mxu0
    %4654 = vmatprep.mubr.bf16.mxu0 %v3809
    %4655 = vmatmul.mubr.bf16.gmra.mxu0 %v3808
    %v4656 = vpop.f32.mrf.mxu0
    %v4657 = vadd.f32 %v3461, %v4656
    %v4658 = vpop.f32.mrf.mxu0
    %v4659 = vpop.f32.mrf.mxu0
    %v4660 = vadd.f32 %v3461, %v4659
    %v4661 = vpop.f32.mrf.mxu0
    %4662 = vmatprep.mubr.bf16.mxu0 %v3822
    %4663 = vmatmul.mubr.bf16.gmra.mxu0 %v3821
    %v4664 = vpop.f32.mrf.mxu0
    %v4665 = vadd.f32 %v3461, %v4664
    %v4666 = vpop.f32.mrf.mxu0
    %v4667 = vpop.f32.mrf.mxu0
    %v4668 = vadd.f32 %v3461, %v4667
    %v4669 = vpop.f32.mrf.mxu0
    %4670 = vmatprep.mubr.bf16.mxu0 %v3835
    %4671 = vmatmul.mubr.bf16.gmra.mxu0 %v3834
    %v4672 = vpop.f32.mrf.mxu0
    %v4673 = vadd.f32 %v3461, %v4672
    %v4674 = vpop.f32.mrf.mxu0
    %v4675 = vpop.f32.mrf.mxu0
    %v4676 = vadd.f32 %v3461, %v4675
    %v4677 = vpop.f32.mrf.mxu0
    %4678 = vmatprep.mubr.bf16.mxu0 %v3848
    %4679 = vmatmul.mubr.bf16.gmra.mxu0 %v3847
    %v4680 = vpop.f32.mrf.mxu0
    %v4681 = vadd.f32 %v3461, %v4680
    %v4682 = vpop.f32.mrf.mxu0
    %v4683 = vpop.f32.mrf.mxu0
    %v4684 = vadd.f32 %v3461, %v4683
    %v4685 = vpop.f32.mrf.mxu0
    %4686 = vmatprep.mubr.bf16.mxu0 %v3861
    %4687 = vmatmul.mubr.bf16.gmra.mxu0 %v3860
    %v4688 = vpop.f32.mrf.mxu0
    %v4689 = vadd.f32 %v3461, %v4688
    %v4690 = vpop.f32.mrf.mxu0
    %v4691 = vpop.f32.mrf.mxu0
    %v4692 = vadd.f32 %v3461, %v4691
    %v4693 = vpop.f32.mrf.mxu0
    %4694 = vmatprep.mubr.bf16.mxu0 %v3874
    %4695 = vmatmul.mubr.bf16.gmra.mxu0 %v3873
    %v4696 = vpop.f32.mrf.mxu0
    %v4697 = vadd.f32 %v3461, %v4696
    %v4698 = vpop.f32.mrf.mxu0
    %v4699 = vpop.f32.mrf.mxu0
    %v4700 = vadd.f32 %v3461, %v4699
    %v4701 = vpop.f32.mrf.mxu0
    %4702 = vdwg.mxu0
    %4703 = vmatprep.subr.bf16.mxu0 0
    %4704 = vmatpush1.bf16.msra.mxu0 %v4405
    %4705 = vmatprep.subr.bf16.mxu0 0
    %4706 = vmatpush1.bf16.msra.mxu0 %v4404
    %4707 = vmatprep.subr.bf16.mxu0 0
    %4708 = vmatpush1.bf16.msra.mxu0 %v4403
    %4709 = vmatprep.subr.bf16.mxu0 0
    %4710 = vmatpush1.bf16.msra.mxu0 %v4402
    %4711 = vmatprep.subr.bf16.mxu0 0
    %4712 = vmatpush1.bf16.msra.mxu0 %v4401
    %4713 = vmatprep.subr.bf16.mxu0 0
    %4714 = vmatpush1.bf16.msra.mxu0 %v4400
    %4715 = vmatprep.subr.bf16.mxu0 0
    %4716 = vmatpush1.bf16.msra.mxu0 %v4399
    %4717 = vmatprep.subr.bf16.mxu0 0
    %4718 = vmatpush1.bf16.msra.mxu0 %v4398
    %4719 = vmatprep.subr.bf16.mxu0 0
    %4720 = vmatpush2.bf16.msra.mxu0 %v4413
    %4721 = vmatprep.subr.bf16.mxu0 0
    %4722 = vmatpush2.bf16.msra.mxu0 %v4412
    %4723 = vmatprep.subr.bf16.mxu0 0
    %4724 = vmatpush2.bf16.msra.mxu0 %v4411
    %4725 = vmatprep.subr.bf16.mxu0 0
    %4726 = vmatpush2.bf16.msra.mxu0 %v4410
    %4727 = vmatprep.subr.bf16.mxu0 0
    %4728 = vmatpush2.bf16.msra.mxu0 %v4409
    %4729 = vmatprep.subr.bf16.mxu0 0
    %4730 = vmatpush2.bf16.msra.mxu0 %v4408
    %4731 = vmatprep.subr.bf16.mxu0 0
    %4732 = vmatpush2.bf16.msra.mxu0 %v4407
    %4733 = vmatprep.subr.bf16.mxu0 0
    %4734 = vmatpush2.bf16.msra.mxu0 %v4406
    %4735 = vmatprep.mubr.bf16.mxu0 %v3785
    %4736 = vmatmul.mubr.bf16.gmra.mxu0 %v3784
    %v4737 = vpop.f32.mrf.mxu0
    %v4738 = vadd.f32 %v4641, %v4737
    %v4739 = vpop.f32.mrf.mxu0
    %v4740 = vpop.f32.mrf.mxu0
    %v4741 = vadd.f32 %v4644, %v4740
    %v4742 = vpop.f32.mrf.mxu0
    %4743 = vmatprep.mubr.bf16.mxu0 %v3798
    %4744 = vmatmul.mubr.bf16.gmra.mxu0 %v3797
    %v4745 = vpop.f32.mrf.mxu0
    %v4746 = vadd.f32 %v4649, %v4745
    %v4747 = vpop.f32.mrf.mxu0
    %v4748 = vpop.f32.mrf.mxu0
    %v4749 = vadd.f32 %v4652, %v4748
    %v4750 = vpop.f32.mrf.mxu0
    %4751 = vmatprep.mubr.bf16.mxu0 %v3811
    %4752 = vmatmul.mubr.bf16.gmra.mxu0 %v3810
    %v4753 = vpop.f32.mrf.mxu0
    %v4754 = vadd.f32 %v4657, %v4753
    %v4755 = vpop.f32.mrf.mxu0
    %v4756 = vpop.f32.mrf.mxu0
    %v4757 = vadd.f32 %v4660, %v4756
    %v4758 = vpop.f32.mrf.mxu0
    %4759 = vmatprep.mubr.bf16.mxu0 %v3824
    %4760 = vmatmul.mubr.bf16.gmra.mxu0 %v3823
    %v4761 = vpop.f32.mrf.mxu0
    %v4762 = vadd.f32 %v4665, %v4761
    %v4763 = vpop.f32.mrf.mxu0
    %v4764 = vpop.f32.mrf.mxu0
    %v4765 = vadd.f32 %v4668, %v4764
    %v4766 = vpop.f32.mrf.mxu0
    %4767 = vmatprep.mubr.bf16.mxu0 %v3837
    %4768 = vmatmul.mubr.bf16.gmra.mxu0 %v3836
    %v4769 = vpop.f32.mrf.mxu0
    %v4770 = vadd.f32 %v4673, %v4769
    %v4771 = vpop.f32.mrf.mxu0
    %v4772 = vpop.f32.mrf.mxu0
    %v4773 = vadd.f32 %v4676, %v4772
    %v4774 = vpop.f32.mrf.mxu0
    %4775 = vmatprep.mubr.bf16.mxu0 %v3850
    %4776 = vmatmul.mubr.bf16.gmra.mxu0 %v3849
    %v4777 = vpop.f32.mrf.mxu0
    %v4778 = vadd.f32 %v4681, %v4777
    %v4779 = vpop.f32.mrf.mxu0
    %v4780 = vpop.f32.mrf.mxu0
    %v4781 = vadd.f32 %v4684, %v4780
    %v4782 = vpop.f32.mrf.mxu0
    %4783 = vmatprep.mubr.bf16.mxu0 %v3863
    %4784 = vmatmul.mubr.bf16.gmra.mxu0 %v3862
    %v4785 = vpop.f32.mrf.mxu0
    %v4786 = vadd.f32 %v4689, %v4785
    %v4787 = vpop.f32.mrf.mxu0
    %v4788 = vpop.f32.mrf.mxu0
    %v4789 = vadd.f32 %v4692, %v4788
    %v4790 = vpop.f32.mrf.mxu0
    %4791 = vmatprep.mubr.bf16.mxu0 %v3876
    %4792 = vmatmul.mubr.bf16.gmra.mxu0 %v3875
    %v4793 = vpop.f32.mrf.mxu0
    %v4794 = vadd.f32 %v4697, %v4793
    %v4795 = vpop.f32.mrf.mxu0
    %v4796 = vpop.f32.mrf.mxu0
    %v4797 = vadd.f32 %v4700, %v4796
    %v4798 = vpop.f32.mrf.mxu0
    %4799 = vdwg.mxu0
    %4800 = vmatprep.subr.bf16.mxu0 0
    %4801 = vmatpush1.bf16.msra.mxu0 %v4421
    %4802 = vmatprep.subr.bf16.mxu0 0
    %4803 = vmatpush1.bf16.msra.mxu0 %v4420
    %4804 = vmatprep.subr.bf16.mxu0 0
    %4805 = vmatpush1.bf16.msra.mxu0 %v4419
    %4806 = vmatprep.subr.bf16.mxu0 0
    %4807 = vmatpush1.bf16.msra.mxu0 %v4418
    %4808 = vmatprep.subr.bf16.mxu0 0
    %4809 = vmatpush1.bf16.msra.mxu0 %v4417
    %4810 = vmatprep.subr.bf16.mxu0 0
    %4811 = vmatpush1.bf16.msra.mxu0 %v4416
    %4812 = vmatprep.subr.bf16.mxu0 0
    %4813 = vmatpush1.bf16.msra.mxu0 %v4415
    %4814 = vmatprep.subr.bf16.mxu0 0
    %4815 = vmatpush1.bf16.msra.mxu0 %v4414
    %4816 = vmatprep.subr.bf16.mxu0 0
    %4817 = vmatpush2.bf16.msra.mxu0 %v4429
    %4818 = vmatprep.subr.bf16.mxu0 0
    %4819 = vmatpush2.bf16.msra.mxu0 %v4428
    %4820 = vmatprep.subr.bf16.mxu0 0
    %4821 = vmatpush2.bf16.msra.mxu0 %v4427
    %4822 = vmatprep.subr.bf16.mxu0 0
    %4823 = vmatpush2.bf16.msra.mxu0 %v4426
    %4824 = vmatprep.subr.bf16.mxu0 0
    %4825 = vmatpush2.bf16.msra.mxu0 %v4425
    %4826 = vmatprep.subr.bf16.mxu0 0
    %4827 = vmatpush2.bf16.msra.mxu0 %v4424
    %4828 = vmatprep.subr.bf16.mxu0 0
    %4829 = vmatpush2.bf16.msra.mxu0 %v4423
    %4830 = vmatprep.subr.bf16.mxu0 0
    %4831 = vmatpush2.bf16.msra.mxu0 %v4422
    %4832 = vmatprep.mubr.bf16.mxu0 %v3787
    %4833 = vmatmul.mubr.bf16.gmra.mxu0 %v3786
    %v4834 = vpop.f32.mrf.mxu0
    %v4835 = vadd.f32 %v4738, %v4834
    %v4836 = vpop.f32.mrf.mxu0
    %v4837 = vpop.f32.mrf.mxu0
    %v4838 = vadd.f32 %v4741, %v4837
    %v4839 = vpop.f32.mrf.mxu0
    %4840 = vmatprep.mubr.bf16.mxu0 %v3800
    %4841 = vmatmul.mubr.bf16.gmra.mxu0 %v3799
    %v4842 = vpop.f32.mrf.mxu0
    %v4843 = vadd.f32 %v4746, %v4842
    %v4844 = vpop.f32.mrf.mxu0
    %v4845 = vpop.f32.mrf.mxu0
    %v4846 = vadd.f32 %v4749, %v4845
    %v4847 = vpop.f32.mrf.mxu0
    %4848 = vmatprep.mubr.bf16.mxu0 %v3813
    %4849 = vmatmul.mubr.bf16.gmra.mxu0 %v3812
    %v4850 = vpop.f32.mrf.mxu0
    %v4851 = vadd.f32 %v4754, %v4850
    %v4852 = vpop.f32.mrf.mxu0
    %v4853 = vpop.f32.mrf.mxu0
    %v4854 = vadd.f32 %v4757, %v4853
    %v4855 = vpop.f32.mrf.mxu0
    %4856 = vmatprep.mubr.bf16.mxu0 %v3826
    %4857 = vmatmul.mubr.bf16.gmra.mxu0 %v3825
    %v4858 = vpop.f32.mrf.mxu0
    %v4859 = vadd.f32 %v4762, %v4858
    %v4860 = vpop.f32.mrf.mxu0
    %v4861 = vpop.f32.mrf.mxu0
    %v4862 = vadd.f32 %v4765, %v4861
    %v4863 = vpop.f32.mrf.mxu0
    %4864 = vmatprep.mubr.bf16.mxu0 %v3839
    %4865 = vmatmul.mubr.bf16.gmra.mxu0 %v3838
    %v4866 = vpop.f32.mrf.mxu0
    %v4867 = vadd.f32 %v4770, %v4866
    %v4868 = vpop.f32.mrf.mxu0
    %v4869 = vpop.f32.mrf.mxu0
    %v4870 = vadd.f32 %v4773, %v4869
    %v4871 = vpop.f32.mrf.mxu0
    %4872 = vmatprep.mubr.bf16.mxu0 %v3852
    %4873 = vmatmul.mubr.bf16.gmra.mxu0 %v3851
    %v4874 = vpop.f32.mrf.mxu0
    %v4875 = vadd.f32 %v4778, %v4874
    %v4876 = vpop.f32.mrf.mxu0
    %v4877 = vpop.f32.mrf.mxu0
    %v4878 = vadd.f32 %v4781, %v4877
    %v4879 = vpop.f32.mrf.mxu0
    %4880 = vmatprep.mubr.bf16.mxu0 %v3865
    %4881 = vmatmul.mubr.bf16.gmra.mxu0 %v3864
    %v4882 = vpop.f32.mrf.mxu0
    %v4883 = vadd.f32 %v4786, %v4882
    %v4884 = vpop.f32.mrf.mxu0
    %v4885 = vpop.f32.mrf.mxu0
    %v4886 = vadd.f32 %v4789, %v4885
    %v4887 = vpop.f32.mrf.mxu0
    %4888 = vmatprep.mubr.bf16.mxu0 %v3878
    %4889 = vmatmul.mubr.bf16.gmra.mxu0 %v3877
    %v4890 = vpop.f32.mrf.mxu0
    %v4891 = vadd.f32 %v4794, %v4890
    %v4892 = vpop.f32.mrf.mxu0
    %v4893 = vpop.f32.mrf.mxu0
    %v4894 = vadd.f32 %v4797, %v4893
    %v4895 = vpop.f32.mrf.mxu0
    %4896 = vdwg.mxu0
    %4897 = vmatprep.subr.bf16.mxu0 0
    %4898 = vmatpush1.bf16.msra.mxu0 %v4437
    %4899 = vmatprep.subr.bf16.mxu0 0
    %4900 = vmatpush1.bf16.msra.mxu0 %v4436
    %4901 = vmatprep.subr.bf16.mxu0 0
    %4902 = vmatpush1.bf16.msra.mxu0 %v4435
    %4903 = vmatprep.subr.bf16.mxu0 0
    %4904 = vmatpush1.bf16.msra.mxu0 %v4434
    %4905 = vmatprep.subr.bf16.mxu0 0
    %4906 = vmatpush1.bf16.msra.mxu0 %v4433
    %4907 = vmatprep.subr.bf16.mxu0 0
    %4908 = vmatpush1.bf16.msra.mxu0 %v4432
    %4909 = vmatprep.subr.bf16.mxu0 0
    %4910 = vmatpush1.bf16.msra.mxu0 %v4431
    %4911 = vmatprep.subr.bf16.mxu0 0
    %4912 = vmatpush1.bf16.msra.mxu0 %v4430
    %4913 = vmatprep.subr.bf16.mxu0 0
    %4914 = vmatpush2.bf16.msra.mxu0 %v4445
    %4915 = vmatprep.subr.bf16.mxu0 0
    %4916 = vmatpush2.bf16.msra.mxu0 %v4444
    %4917 = vmatprep.subr.bf16.mxu0 0
    %4918 = vmatpush2.bf16.msra.mxu0 %v4443
    %4919 = vmatprep.subr.bf16.mxu0 0
    %4920 = vmatpush2.bf16.msra.mxu0 %v4442
    %4921 = vmatprep.subr.bf16.mxu0 0
    %4922 = vmatpush2.bf16.msra.mxu0 %v4441
    %4923 = vmatprep.subr.bf16.mxu0 0
    %4924 = vmatpush2.bf16.msra.mxu0 %v4440
    %4925 = vmatprep.subr.bf16.mxu0 0
    %4926 = vmatpush2.bf16.msra.mxu0 %v4439
    %4927 = vmatprep.subr.bf16.mxu0 0
    %4928 = vmatpush2.bf16.msra.mxu0 %v4438
    %4929 = vmatprep.mubr.bf16.mxu0 %v3789
    %4930 = vmatmul.mubr.bf16.gmra.mxu0 %v3788
    %v4931 = vpop.f32.mrf.mxu0
    %v4932 = vadd.f32 %v4835, %v4931
    %v4933 = vpop.f32.mrf.mxu0
    %v4934 = vpop.f32.mrf.mxu0
    %v4935 = vadd.f32 %v4838, %v4934
    %v4936 = vpop.f32.mrf.mxu0
    %4937 = vmatprep.mubr.bf16.mxu0 %v3802
    %4938 = vmatmul.mubr.bf16.gmra.mxu0 %v3801
    %v4939 = vpop.f32.mrf.mxu0
    %v4940 = vadd.f32 %v4843, %v4939
    %v4941 = vpop.f32.mrf.mxu0
    %v4942 = vpop.f32.mrf.mxu0
    %v4943 = vadd.f32 %v4846, %v4942
    %v4944 = vpop.f32.mrf.mxu0
    %4945 = vmatprep.mubr.bf16.mxu0 %v3815
    %4946 = vmatmul.mubr.bf16.gmra.mxu0 %v3814
    %v4947 = vpop.f32.mrf.mxu0
    %v4948 = vadd.f32 %v4851, %v4947
    %v4949 = vpop.f32.mrf.mxu0
    %v4950 = vpop.f32.mrf.mxu0
    %v4951 = vadd.f32 %v4854, %v4950
    %v4952 = vpop.f32.mrf.mxu0
    %4953 = vmatprep.mubr.bf16.mxu0 %v3828
    %4954 = vmatmul.mubr.bf16.gmra.mxu0 %v3827
    %v4955 = vpop.f32.mrf.mxu0
    %v4956 = vadd.f32 %v4859, %v4955
    %v4957 = vpop.f32.mrf.mxu0
    %v4958 = vpop.f32.mrf.mxu0
    %v4959 = vadd.f32 %v4862, %v4958
    %v4960 = vpop.f32.mrf.mxu0
    %4961 = vmatprep.mubr.bf16.mxu0 %v3841
    %4962 = vmatmul.mubr.bf16.gmra.mxu0 %v3840
    %v4963 = vpop.f32.mrf.mxu0
    %v4964 = vadd.f32 %v4867, %v4963
    %v4965 = vpop.f32.mrf.mxu0
    %v4966 = vpop.f32.mrf.mxu0
    %v4967 = vadd.f32 %v4870, %v4966
    %v4968 = vpop.f32.mrf.mxu0
    %4969 = vmatprep.mubr.bf16.mxu0 %v3854
    %4970 = vmatmul.mubr.bf16.gmra.mxu0 %v3853
    %v4971 = vpop.f32.mrf.mxu0
    %v4972 = vadd.f32 %v4875, %v4971
    %v4973 = vpop.f32.mrf.mxu0
    %v4974 = vpop.f32.mrf.mxu0
    %v4975 = vadd.f32 %v4878, %v4974
    %v4976 = vpop.f32.mrf.mxu0
    %4977 = vmatprep.mubr.bf16.mxu0 %v3867
    %4978 = vmatmul.mubr.bf16.gmra.mxu0 %v3866
    %v4979 = vpop.f32.mrf.mxu0
    %v4980 = vadd.f32 %v4883, %v4979
    %v4981 = vpop.f32.mrf.mxu0
    %v4982 = vpop.f32.mrf.mxu0
    %v4983 = vadd.f32 %v4886, %v4982
    %v4984 = vpop.f32.mrf.mxu0
    %4985 = vmatprep.mubr.bf16.mxu0 %v3880
    %4986 = vmatmul.mubr.bf16.gmra.mxu0 %v3879
    %v4987 = vpop.f32.mrf.mxu0
    %v4988 = vadd.f32 %v4891, %v4987
    %v4989 = vpop.f32.mrf.mxu0
    %v4990 = vpop.f32.mrf.mxu0
    %v4991 = vadd.f32 %v4894, %v4990
    %v4992 = vpop.f32.mrf.mxu0
    %4993 = vdwg.mxu0
    %4994 = vmatprep.subr.bf16.mxu0 0
    %4995 = vmatpush1.bf16.msra.mxu0 %v4453
    %4996 = vmatprep.subr.bf16.mxu0 0
    %4997 = vmatpush1.bf16.msra.mxu0 %v4452
    %4998 = vmatprep.subr.bf16.mxu0 0
    %4999 = vmatpush1.bf16.msra.mxu0 %v4451
    %5000 = vmatprep.subr.bf16.mxu0 0
    %5001 = vmatpush1.bf16.msra.mxu0 %v4450
    %5002 = vmatprep.subr.bf16.mxu0 0
    %5003 = vmatpush1.bf16.msra.mxu0 %v4449
    %5004 = vmatprep.subr.bf16.mxu0 0
    %5005 = vmatpush1.bf16.msra.mxu0 %v4448
    %5006 = vmatprep.subr.bf16.mxu0 0
    %5007 = vmatpush1.bf16.msra.mxu0 %v4447
    %5008 = vmatprep.subr.bf16.mxu0 0
    %5009 = vmatpush1.bf16.msra.mxu0 %v4446
    %5010 = vmatprep.subr.bf16.mxu0 0
    %5011 = vmatpush2.bf16.msra.mxu0 %v4461
    %5012 = vmatprep.subr.bf16.mxu0 0
    %5013 = vmatpush2.bf16.msra.mxu0 %v4460
    %5014 = vmatprep.subr.bf16.mxu0 0
    %5015 = vmatpush2.bf16.msra.mxu0 %v4459
    %5016 = vmatprep.subr.bf16.mxu0 0
    %5017 = vmatpush2.bf16.msra.mxu0 %v4458
    %5018 = vmatprep.subr.bf16.mxu0 0
    %5019 = vmatpush2.bf16.msra.mxu0 %v4457
    %5020 = vmatprep.subr.bf16.mxu0 0
    %5021 = vmatpush2.bf16.msra.mxu0 %v4456
    %5022 = vmatprep.subr.bf16.mxu0 0
    %5023 = vmatpush2.bf16.msra.mxu0 %v4455
    %5024 = vmatprep.subr.bf16.mxu0 0
    %5025 = vmatpush2.bf16.msra.mxu0 %v4454
    %5026 = vmatprep.mubr.bf16.mxu0 %v3791
    %5027 = vmatmul.mubr.bf16.gmra.mxu0 %v3790
    %v5028 = vpop.f32.mrf.mxu0
    %v5029 = vadd.f32 %v4932, %v5028
    %v5030 = vpop.f32.mrf.mxu0
    %v5031 = vpop.f32.mrf.mxu0
    %v5032 = vadd.f32 %v4935, %v5031
    %v5033 = vpop.f32.mrf.mxu0
    %5034 = vmatprep.mubr.bf16.mxu0 %v3804
    %5035 = vmatmul.mubr.bf16.gmra.mxu0 %v3803
    %v5036 = vpop.f32.mrf.mxu0
    %v5037 = vadd.f32 %v4940, %v5036
    %v5038 = vpop.f32.mrf.mxu0
    %v5039 = vpop.f32.mrf.mxu0
    %v5040 = vadd.f32 %v4943, %v5039
    %v5041 = vpop.f32.mrf.mxu0
    %5042 = vmatprep.mubr.bf16.mxu0 %v3817
    %5043 = vmatmul.mubr.bf16.gmra.mxu0 %v3816
    %v5044 = vpop.f32.mrf.mxu0
    %v5045 = vadd.f32 %v4948, %v5044
    %v5046 = vpop.f32.mrf.mxu0
    %v5047 = vpop.f32.mrf.mxu0
    %v5048 = vadd.f32 %v4951, %v5047
    %v5049 = vpop.f32.mrf.mxu0
    %5050 = vmatprep.mubr.bf16.mxu0 %v3830
    %5051 = vmatmul.mubr.bf16.gmra.mxu0 %v3829
    %v5052 = vpop.f32.mrf.mxu0
    %v5053 = vadd.f32 %v4956, %v5052
    %v5054 = vpop.f32.mrf.mxu0
    %v5055 = vpop.f32.mrf.mxu0
    %v5056 = vadd.f32 %v4959, %v5055
    %v5057 = vpop.f32.mrf.mxu0
    %5058 = vmatprep.mubr.bf16.mxu0 %v3843
    %5059 = vmatmul.mubr.bf16.gmra.mxu0 %v3842
    %v5060 = vpop.f32.mrf.mxu0
    %v5061 = vadd.f32 %v4964, %v5060
    %v5062 = vpop.f32.mrf.mxu0
    %v5063 = vpop.f32.mrf.mxu0
    %v5064 = vadd.f32 %v4967, %v5063
    %v5065 = vpop.f32.mrf.mxu0
    %5066 = vmatprep.mubr.bf16.mxu0 %v3856
    %5067 = vmatmul.mubr.bf16.gmra.mxu0 %v3855
    %v5068 = vpop.f32.mrf.mxu0
    %v5069 = vadd.f32 %v4972, %v5068
    %v5070 = vpop.f32.mrf.mxu0
    %v5071 = vpop.f32.mrf.mxu0
    %v5072 = vadd.f32 %v4975, %v5071
    %v5073 = vpop.f32.mrf.mxu0
    %5074 = vmatprep.mubr.bf16.mxu0 %v3869
    %5075 = vmatmul.mubr.bf16.gmra.mxu0 %v3868
    %v5076 = vpop.f32.mrf.mxu0
    %v5077 = vadd.f32 %v4980, %v5076
    %v5078 = vpop.f32.mrf.mxu0
    %v5079 = vpop.f32.mrf.mxu0
    %v5080 = vadd.f32 %v4983, %v5079
    %v5081 = vpop.f32.mrf.mxu0
    %5082 = vmatprep.mubr.bf16.mxu0 %v3882
    %5083 = vmatmul.mubr.bf16.gmra.mxu0 %v3881
    %v5084 = vpop.f32.mrf.mxu0
    %v5085 = vadd.f32 %v4988, %v5084
    %v5086 = vpop.f32.mrf.mxu0
    %v5087 = vpop.f32.mrf.mxu0
    %v5088 = vadd.f32 %v4991, %v5087
    %v5089 = vpop.f32.mrf.mxu0
    %5090 = vdwg.mxu0
    %5091 = vmatprep.subr.bf16.mxu0 0
    %5092 = vmatpush1.bf16.msra.mxu0 %v4469
    %5093 = vmatprep.subr.bf16.mxu0 0
    %5094 = vmatpush1.bf16.msra.mxu0 %v4468
    %5095 = vmatprep.subr.bf16.mxu0 0
    %5096 = vmatpush1.bf16.msra.mxu0 %v4467
    %5097 = vmatprep.subr.bf16.mxu0 0
    %5098 = vmatpush1.bf16.msra.mxu0 %v4466
    %5099 = vmatprep.subr.bf16.mxu0 0
    %5100 = vmatpush1.bf16.msra.mxu0 %v4465
    %5101 = vmatprep.subr.bf16.mxu0 0
    %5102 = vmatpush1.bf16.msra.mxu0 %v4464
    %5103 = vmatprep.subr.bf16.mxu0 0
    %5104 = vmatpush1.bf16.msra.mxu0 %v4463
    %5105 = vmatprep.subr.bf16.mxu0 0
    %5106 = vmatpush1.bf16.msra.mxu0 %v4462
    %5107 = vmatprep.subr.bf16.mxu0 0
    %5108 = vmatpush2.bf16.msra.mxu0 %v4477
    %5109 = vmatprep.subr.bf16.mxu0 0
    %5110 = vmatpush2.bf16.msra.mxu0 %v4476
    %5111 = vmatprep.subr.bf16.mxu0 0
    %5112 = vmatpush2.bf16.msra.mxu0 %v4475
    %5113 = vmatprep.subr.bf16.mxu0 0
    %5114 = vmatpush2.bf16.msra.mxu0 %v4474
    %5115 = vmatprep.subr.bf16.mxu0 0
    %5116 = vmatpush2.bf16.msra.mxu0 %v4473
    %5117 = vmatprep.subr.bf16.mxu0 0
    %5118 = vmatpush2.bf16.msra.mxu0 %v4472
    %5119 = vmatprep.subr.bf16.mxu0 0
    %5120 = vmatpush2.bf16.msra.mxu0 %v4471
    %5121 = vmatprep.subr.bf16.mxu0 0
    %5122 = vmatpush2.bf16.msra.mxu0 %v4470
    %5123 = vmatprep.mubr.bf16.mxu0 %v3793
    %5124 = vmatmul.mubr.bf16.gmra.mxu0 %v3792
    %v5125 = vpop.f32.mrf.mxu0
    %v5126 = vadd.f32 %v5029, %v5125
    %v5127 = vpop.f32.mrf.mxu0
    %v5128 = vpop.f32.mrf.mxu0
    %v5129 = vadd.f32 %v5032, %v5128
    %v5130 = vpop.f32.mrf.mxu0
    %5131 = vmatprep.mubr.bf16.mxu0 %v3806
    %5132 = vmatmul.mubr.bf16.gmra.mxu0 %v3805
    %v5133 = vpop.f32.mrf.mxu0
    %v5134 = vadd.f32 %v5037, %v5133
    %v5135 = vpop.f32.mrf.mxu0
    %v5136 = vpop.f32.mrf.mxu0
    %v5137 = vadd.f32 %v5040, %v5136
    %v5138 = vpop.f32.mrf.mxu0
    %5139 = vmatprep.mubr.bf16.mxu0 %v3819
    %5140 = vmatmul.mubr.bf16.gmra.mxu0 %v3818
    %v5141 = vpop.f32.mrf.mxu0
    %v5142 = vadd.f32 %v5045, %v5141
    %v5143 = vpop.f32.mrf.mxu0
    %v5144 = vpop.f32.mrf.mxu0
    %v5145 = vadd.f32 %v5048, %v5144
    %v5146 = vpop.f32.mrf.mxu0
    %5147 = vmatprep.mubr.bf16.mxu0 %v3832
    %5148 = vmatmul.mubr.bf16.gmra.mxu0 %v3831
    %v5149 = vpop.f32.mrf.mxu0
    %v5150 = vadd.f32 %v5053, %v5149
    %v5151 = vpop.f32.mrf.mxu0
    %v5152 = vpop.f32.mrf.mxu0
    %v5153 = vadd.f32 %v5056, %v5152
    %v5154 = vpop.f32.mrf.mxu0
    %5155 = vmatprep.mubr.bf16.mxu0 %v3845
    %5156 = vmatmul.mubr.bf16.gmra.mxu0 %v3844
    %v5157 = vpop.f32.mrf.mxu0
    %v5158 = vadd.f32 %v5061, %v5157
    %v5159 = vpop.f32.mrf.mxu0
    %v5160 = vpop.f32.mrf.mxu0
    %v5161 = vadd.f32 %v5064, %v5160
    %v5162 = vpop.f32.mrf.mxu0
    %5163 = vmatprep.mubr.bf16.mxu0 %v3858
    %5164 = vmatmul.mubr.bf16.gmra.mxu0 %v3857
    %v5165 = vpop.f32.mrf.mxu0
    %v5166 = vadd.f32 %v5069, %v5165
    %v5167 = vpop.f32.mrf.mxu0
    %v5168 = vpop.f32.mrf.mxu0
    %v5169 = vadd.f32 %v5072, %v5168
    %v5170 = vpop.f32.mrf.mxu0
    %5171 = vmatprep.mubr.bf16.mxu0 %v3871
    %5172 = vmatmul.mubr.bf16.gmra.mxu0 %v3870
    %v5173 = vpop.f32.mrf.mxu0
    %v5174 = vadd.f32 %v5077, %v5173
    %v5175 = vpop.f32.mrf.mxu0
    %v5176 = vpop.f32.mrf.mxu0
    %v5177 = vadd.f32 %v5080, %v5176
    %v5178 = vpop.f32.mrf.mxu0
    %5179 = vmatprep.mubr.bf16.mxu0 %v3884
    %5180 = vmatmul.mubr.bf16.gmra.mxu0 %v3883
    %v5181 = vpop.f32.mrf.mxu0
    %v5182 = vadd.f32 %v5085, %v5181
    %v5183 = vpop.f32.mrf.mxu0
    %v5184 = vpop.f32.mrf.mxu0
    %v5185 = vadd.f32 %v5088, %v5184
    %v5186 = vpop.f32.mrf.mxu0
    %5187 = vdwg.mxu0
    %5188 = vmatprep.subr.bf16.mxu0 0
    %5189 = vmatpush1.bf16.msra.mxu0 0
    %5190 = vmatprep.subr.bf16.mxu0 0
    %5191 = vmatpush1.bf16.msra.mxu0 0
    %5192 = vmatprep.subr.bf16.mxu0 0
    %5193 = vmatpush1.bf16.msra.mxu0 0
    %5194 = vmatprep.subr.bf16.mxu0 0
    %5195 = vmatpush1.bf16.msra.mxu0 0
    %5196 = vmatprep.subr.bf16.mxu0 0
    %5197 = vmatpush1.bf16.msra.mxu0 %v4481
    %5198 = vmatprep.subr.bf16.mxu0 0
    %5199 = vmatpush1.bf16.msra.mxu0 %v4480
    %5200 = vmatprep.subr.bf16.mxu0 0
    %5201 = vmatpush1.bf16.msra.mxu0 %v4479
    %5202 = vmatprep.subr.bf16.mxu0 0
    %5203 = vmatpush1.bf16.msra.mxu0 %v4478
    %5204 = vmatprep.subr.bf16.mxu0 0
    %5205 = vmatpush2.bf16.msra.mxu0 0
    %5206 = vmatprep.subr.bf16.mxu0 0
    %5207 = vmatpush2.bf16.msra.mxu0 0
    %5208 = vmatprep.subr.bf16.mxu0 0
    %5209 = vmatpush2.bf16.msra.mxu0 0
    %5210 = vmatprep.subr.bf16.mxu0 0
    %5211 = vmatpush2.bf16.msra.mxu0 0
    %5212 = vmatprep.subr.bf16.mxu0 0
    %5213 = vmatpush2.bf16.msra.mxu0 0
    %5214 = vmatprep.subr.bf16.mxu0 0
    %5215 = vmatpush2.bf16.msra.mxu0 0
    %5216 = vmatprep.subr.bf16.mxu0 0
    %5217 = vmatpush2.bf16.msra.mxu0 0
    %5218 = vmatprep.subr.bf16.mxu0 0
    %5219 = vmatpush2.bf16.msra.mxu0 0
    %5220 = vmatprep.mubr.bf16.mxu0 0
    %5221 = vmatmul.mubr.bf16.gmra.mxu0 %v4583
    %v5222 = vpop.f32.mrf.mxu0
    %v5223 = vadd.f32 %v5126, %v5222
    %v5224 = vpop.f32.mrf.mxu0
    %v5225 = vpop.f32.mrf.mxu0
    %v5226 = vadd.f32 %v5129, %v5225
    %v5227 = vpop.f32.mrf.mxu0
    %5228 = vmatprep.mubr.bf16.mxu0 0
    %5229 = vmatmul.mubr.bf16.gmra.mxu0 %v4586
    %v5230 = vpop.f32.mrf.mxu0
    %v5231 = vadd.f32 %v5134, %v5230
    %v5232 = vpop.f32.mrf.mxu0
    %v5233 = vpop.f32.mrf.mxu0
    %v5234 = vadd.f32 %v5137, %v5233
    %v5235 = vpop.f32.mrf.mxu0
    %5236 = vmatprep.mubr.bf16.mxu0 0
    %5237 = vmatmul.mubr.bf16.gmra.mxu0 %v4589
    %v5238 = vpop.f32.mrf.mxu0
    %v5239 = vadd.f32 %v5142, %v5238
    %v5240 = vpop.f32.mrf.mxu0
    %v5241 = vpop.f32.mrf.mxu0
    %v5242 = vadd.f32 %v5145, %v5241
    %v5243 = vpop.f32.mrf.mxu0
    %5244 = vmatprep.mubr.bf16.mxu0 0
    %5245 = vmatmul.mubr.bf16.gmra.mxu0 %v4592
    %v5246 = vpop.f32.mrf.mxu0
    %v5247 = vadd.f32 %v5150, %v5246
    %v5248 = vpop.f32.mrf.mxu0
    %v5249 = vpop.f32.mrf.mxu0
    %v5250 = vadd.f32 %v5153, %v5249
    %v5251 = vpop.f32.mrf.mxu0
    %5252 = vmatprep.mubr.bf16.mxu0 0
    %5253 = vmatmul.mubr.bf16.gmra.mxu0 %v4595
    %v5254 = vpop.f32.mrf.mxu0
    %v5255 = vadd.f32 %v5158, %v5254
    %v5256 = vpop.f32.mrf.mxu0
    %v5257 = vpop.f32.mrf.mxu0
    %v5258 = vadd.f32 %v5161, %v5257
    %v5259 = vpop.f32.mrf.mxu0
    %5260 = vmatprep.mubr.bf16.mxu0 0
    %5261 = vmatmul.mubr.bf16.gmra.mxu0 %v4598
    %v5262 = vpop.f32.mrf.mxu0
    %v5263 = vadd.f32 %v5166, %v5262
    %v5264 = vpop.f32.mrf.mxu0
    %v5265 = vpop.f32.mrf.mxu0
    %v5266 = vadd.f32 %v5169, %v5265
    %v5267 = vpop.f32.mrf.mxu0
    %5268 = vmatprep.mubr.bf16.mxu0 0
    %5269 = vmatmul.mubr.bf16.gmra.mxu0 %v4601
    %v5270 = vpop.f32.mrf.mxu0
    %v5271 = vadd.f32 %v5174, %v5270
    %v5272 = vpop.f32.mrf.mxu0
    %v5273 = vpop.f32.mrf.mxu0
    %v5274 = vadd.f32 %v5177, %v5273
    %v5275 = vpop.f32.mrf.mxu0
    %5276 = vmatprep.mubr.bf16.mxu0 0
    %5277 = vmatmul.mubr.bf16.gmra.mxu0 %v4604
    %v5278 = vpop.f32.mrf.mxu0
    %v5279 = vadd.f32 %v5182, %v5278
    %v5280 = vpop.f32.mrf.mxu0
    %v5281 = vpop.f32.mrf.mxu0
    %v5282 = vadd.f32 %v5185, %v5281
    %v5283 = vpop.f32.mrf.mxu0
    %5284 = vdwg.mxu0
    %v5285 = vmax.f32 %v5223, 0.0
    %v5286 = vmax.f32 %v5226, 0.0
    %v5287 = vmax.f32 %v5231, 0.0
    %v5288 = vmax.f32 %v5234, 0.0
    %v5289 = vmax.f32 %v5239, 0.0
    %v5290 = vmax.f32 %v5242, 0.0
    %v5291 = vmax.f32 %v5247, 0.0
    %v5292 = vmax.f32 %v5250, 0.0
    %v5293 = vmax.f32 %v5255, 0.0
    %v5294 = vmax.f32 %v5258, 0.0
    %v5295 = vmax.f32 %v5263, 0.0
    %v5296 = vmax.f32 %v5266, 0.0
    %v5297 = vmax.f32 %v5271, 0.0
    %v5298 = vmax.f32 %v5274, 0.0
    %v5299 = vmax.f32 %v5279, 0.0
    %v5300 = vmax.f32 %v5282, 0.0
    %v5301 = vlaneseq
    %v5302 = vshrl.u32 %v5301, 7
    %v5303 = vsub.s32 0, %v5302
    %v5304 = vrot.slane %v3456, %v5303
    %v5305 = vmul.f32 %v5285, %v5304
    %v5306 = vmul.f32 %v5286, %v5304
    %v5307 = vmul.f32 %v5287, %v5304
    %v5308 = vmul.f32 %v5288, %v5304
    %v5309 = vmul.f32 %v5289, %v5304
    %v5310 = vmul.f32 %v5290, %v5304
    %v5311 = vmul.f32 %v5291, %v5304
    %v5312 = vmul.f32 %v5292, %v5304
    %v5313 = vmul.f32 %v5293, %v5304
    %v5314 = vmul.f32 %v5294, %v5304
    %v5315 = vmul.f32 %v5295, %v5304
    %v5316 = vmul.f32 %v5296, %v5304
    %v5317 = vmul.f32 %v5297, %v5304
    %v5318 = vmul.f32 %v5298, %v5304
    %v5319 = vmul.f32 %v5299, %v5304
    %v5320 = vmul.f32 %v5300, %v5304
    %v5321 = vlaneseq
    %v5322 = vshrl.u32 %v5321, 7
    %v5323 = vsub.s32 0, %v5322
    %v5324 = vrot.slane %v3457, %v5323
    %v5325 = vadd.f32 %v5305, %v5324
    %v5326 = vadd.f32 %v5306, %v5324
    %v5327 = vadd.f32 %v5307, %v5324
    %v5328 = vadd.f32 %v5308, %v5324
    %v5329 = vadd.f32 %v5309, %v5324
    %v5330 = vadd.f32 %v5310, %v5324
    %v5331 = vadd.f32 %v5311, %v5324
    %v5332 = vadd.f32 %v5312, %v5324
    %v5333 = vadd.f32 %v5313, %v5324
    %v5334 = vadd.f32 %v5314, %v5324
    %v5335 = vadd.f32 %v5315, %v5324
    %v5336 = vadd.f32 %v5316, %v5324
    %v5337 = vadd.f32 %v5317, %v5324
    %v5338 = vadd.f32 %v5318, %v5324
    %v5339 = vadd.f32 %v5319, %v5324
    %v5340 = vadd.f32 %v5320, %v5324
    %vm5341 = vcmask 516096
    %5342 = vst.msk [vmem:[#allocation4] sm:$0x1] %vm5341, %v5325
    %v5345 = vunpack.c.l.s4 1983009808
    %v5346 = vunpack.c.0.s8 %v5345
    %v5347 = vlaneseq
    %v5348 = vshrl.u32 %v5347, 7
    %v5349 = vsub.s32 %v5346, %v5348
    %v5350 = vrot.slane %v5325, %v5349
    %v5351 = vrot.slane %v5350, 7
    %v5352 = vrot.slane %v5351, 2
    %5353 = vrot.lane.b32.xlu0 %v5352, 64
    %v5354 = vpop.permute.xlu0 %5353
    %vm5356 = vcmask 1040896
    %5357 = vst.msk [vmem:[#allocation4] sm:$0x1] %vm5356, %v5354
    %v5358 = vcombine.high %v5350, %v5350
    %5360 = vst.msk [vmem:[#allocation4 + $0x2] sm:$0x1] %vm5341, %v5358
    %v5361 = vrot.slane %v5358, 7
    %v5362 = vrot.slane %v5361, 2
    %5363 = vrot.lane.b32.xlu0 %v5362, 64
    %v5364 = vpop.permute.xlu0 %5363
    %5366 = vst.msk [vmem:[#allocation4 + $0x2] sm:$0x1] %vm5356, %v5364
    %v5367 = vcombine.high %v5325, %v5325
    %v5369 = vunpack.c.l.s4 1983009808
    %v5370 = vunpack.c.0.s8 %v5369
    %v5371 = vlaneseq
    %v5372 = vshrl.u32 %v5371, 7
    %v5373 = vsub.s32 %v5370, %v5372
    %v5374 = vrot.slane %v5367, %v5373
    %5376 = vst.msk [vmem:[#allocation4 + $0x4] sm:$0x1] %vm5341, %v5374
    %v5377 = vrot.slane %v5374, 7
    %v5378 = vrot.slane %v5377, 2
    %5379 = vrot.lane.b32.xlu0 %v5378, 64
    %v5380 = vpop.permute.xlu0 %5379
    %5382 = vst.msk [vmem:[#allocation4 + $0x4] sm:$0x1] %vm5356, %v5380
    %v5383 = vcombine.high %v5374, %v5374
    %5385 = vst.msk [vmem:[#allocation4 + $0x6] sm:$0x1] %vm5341, %v5383
    %v5386 = vrot.slane %v5383, 7
    %v5387 = vrot.slane %v5386, 2
    %5388 = vrot.lane.b32.xlu0 %v5387, 64
    %v5389 = vpop.permute.xlu0 %5388
    %5391 = vst.msk [vmem:[#allocation4 + $0x6] sm:$0x1] %vm5356, %v5389
    %5392 = vst.msk [vmem:[#allocation4 + $0x8] sm:$0x1] %vm5341, %v5326
    %v5395 = vunpack.c.l.s4 1983009808
    %v5396 = vunpack.c.0.s8 %v5395
    %v5397 = vlaneseq
    %v5398 = vshrl.u32 %v5397, 7
    %v5399 = vsub.s32 %v5396, %v5398
    %v5400 = vrot.slane %v5326, %v5399
    %v5401 = vrot.slane %v5400, 7
    %v5402 = vrot.slane %v5401, 2
    %5403 = vrot.lane.b32.xlu0 %v5402, 64
    %v5404 = vpop.permute.xlu0 %5403
    %5406 = vst.msk [vmem:[#allocation4 + $0x8] sm:$0x1] %vm5356, %v5404
    %v5407 = vcombine.high %v5400, %v5400
    %5409 = vst.msk [vmem:[#allocation4 + $0xa] sm:$0x1] %vm5341, %v5407
    %v5410 = vrot.slane %v5407, 7
    %v5411 = vrot.slane %v5410, 2
    %5412 = vrot.lane.b32.xlu0 %v5411, 64
    %v5413 = vpop.permute.xlu0 %5412
    %5415 = vst.msk [vmem:[#allocation4 + $0xa] sm:$0x1] %vm5356, %v5413
    %v5416 = vcombine.high %v5326, %v5326
    %v5418 = vunpack.c.l.s4 1983009808
    %v5419 = vunpack.c.0.s8 %v5418
    %v5420 = vlaneseq
    %v5421 = vshrl.u32 %v5420, 7
    %v5422 = vsub.s32 %v5419, %v5421
    %v5423 = vrot.slane %v5416, %v5422
    %5425 = vst.msk [vmem:[#allocation4 + $0xc] sm:$0x1] %vm5341, %v5423
    %v5426 = vrot.slane %v5423, 7
    %v5427 = vrot.slane %v5426, 2
    %5428 = vrot.lane.b32.xlu0 %v5427, 64
    %v5429 = vpop.permute.xlu0 %5428
    %5431 = vst.msk [vmem:[#allocation4 + $0xc] sm:$0x1] %vm5356, %v5429
    %v5432 = vcombine.high %v5423, %v5423
    %5434 = vst.msk [vmem:[#allocation4 + $0xe] sm:$0x1] %vm5341, %v5432
    %v5435 = vrot.slane %v5432, 7
    %v5436 = vrot.slane %v5435, 2
    %5437 = vrot.lane.b32.xlu0 %v5436, 64
    %v5438 = vpop.permute.xlu0 %5437
    %5440 = vst.msk [vmem:[#allocation4 + $0xe] sm:$0x1] %vm5356, %v5438
    %5441 = vst.msk [vmem:[#allocation4 + $0x10] sm:$0x1] %vm5341, %v5327
    %v5444 = vunpack.c.l.s4 1983009808
    %v5445 = vunpack.c.0.s8 %v5444
    %v5446 = vlaneseq
    %v5447 = vshrl.u32 %v5446, 7
    %v5448 = vsub.s32 %v5445, %v5447
    %v5449 = vrot.slane %v5327, %v5448
    %v5450 = vrot.slane %v5449, 7
    %v5451 = vrot.slane %v5450, 2
    %5452 = vrot.lane.b32.xlu0 %v5451, 64
    %v5453 = vpop.permute.xlu0 %5452
    %5455 = vst.msk [vmem:[#allocation4 + $0x10] sm:$0x1] %vm5356, %v5453
    %v5456 = vcombine.high %v5449, %v5449
    %5458 = vst.msk [vmem:[#allocation4 + $0x12] sm:$0x1] %vm5341, %v5456
    %v5459 = vrot.slane %v5456, 7
    %v5460 = vrot.slane %v5459, 2
    %5461 = vrot.lane.b32.xlu0 %v5460, 64
    %v5462 = vpop.permute.xlu0 %5461
    %5464 = vst.msk [vmem:[#allocation4 + $0x12] sm:$0x1] %vm5356, %v5462
    %v5465 = vcombine.high %v5327, %v5327
    %v5467 = vunpack.c.l.s4 1983009808
    %v5468 = vunpack.c.0.s8 %v5467
    %v5469 = vlaneseq
    %v5470 = vshrl.u32 %v5469, 7
    %v5471 = vsub.s32 %v5468, %v5470
    %v5472 = vrot.slane %v5465, %v5471
    %5474 = vst.msk [vmem:[#allocation4 + $0x14] sm:$0x1] %vm5341, %v5472
    %v5475 = vrot.slane %v5472, 7
    %v5476 = vrot.slane %v5475, 2
    %5477 = vrot.lane.b32.xlu0 %v5476, 64
    %v5478 = vpop.permute.xlu0 %5477
    %5480 = vst.msk [vmem:[#allocation4 + $0x14] sm:$0x1] %vm5356, %v5478
    %v5481 = vcombine.high %v5472, %v5472
    %5483 = vst.msk [vmem:[#allocation4 + $0x16] sm:$0x1] %vm5341, %v5481
    %v5484 = vrot.slane %v5481, 7
    %v5485 = vrot.slane %v5484, 2
    %5486 = vrot.lane.b32.xlu0 %v5485, 64
    %v5487 = vpop.permute.xlu0 %5486
    %5489 = vst.msk [vmem:[#allocation4 + $0x16] sm:$0x1] %vm5356, %v5487
    %5490 = vst.msk [vmem:[#allocation4 + $0x18] sm:$0x1] %vm5341, %v5328
    %v5493 = vunpack.c.l.s4 1983009808
    %v5494 = vunpack.c.0.s8 %v5493
    %v5495 = vlaneseq
    %v5496 = vshrl.u32 %v5495, 7
    %v5497 = vsub.s32 %v5494, %v5496
    %v5498 = vrot.slane %v5328, %v5497
    %v5499 = vrot.slane %v5498, 7
    %v5500 = vrot.slane %v5499, 2
    %5501 = vrot.lane.b32.xlu0 %v5500, 64
    %v5502 = vpop.permute.xlu0 %5501
    %5504 = vst.msk [vmem:[#allocation4 + $0x18] sm:$0x1] %vm5356, %v5502
    %v5505 = vcombine.high %v5498, %v5498
    %5507 = vst.msk [vmem:[#allocation4 + $0x1a] sm:$0x1] %vm5341, %v5505
    %v5508 = vrot.slane %v5505, 7
    %v5509 = vrot.slane %v5508, 2
    %5510 = vrot.lane.b32.xlu0 %v5509, 64
    %v5511 = vpop.permute.xlu0 %5510
    %5513 = vst.msk [vmem:[#allocation4 + $0x1a] sm:$0x1] %vm5356, %v5511
    %v5514 = vcombine.high %v5328, %v5328
    %v5516 = vunpack.c.l.s4 1983009808
    %v5517 = vunpack.c.0.s8 %v5516
    %v5518 = vlaneseq
    %v5519 = vshrl.u32 %v5518, 7
    %v5520 = vsub.s32 %v5517, %v5519
    %v5521 = vrot.slane %v5514, %v5520
    %5523 = vst.msk [vmem:[#allocation4 + $0x1c] sm:$0x1] %vm5341, %v5521
    %v5524 = vrot.slane %v5521, 7
    %v5525 = vrot.slane %v5524, 2
    %5526 = vrot.lane.b32.xlu0 %v5525, 64
    %v5527 = vpop.permute.xlu0 %5526
    %5529 = vst.msk [vmem:[#allocation4 + $0x1c] sm:$0x1] %vm5356, %v5527
    %v5530 = vcombine.high %v5521, %v5521
    %5532 = vst.msk [vmem:[#allocation4 + $0x1e] sm:$0x1] %vm5341, %v5530
    %v5533 = vrot.slane %v5530, 7
    %v5534 = vrot.slane %v5533, 2
    %5535 = vrot.lane.b32.xlu0 %v5534, 64
    %v5536 = vpop.permute.xlu0 %5535
    %5538 = vst.msk [vmem:[#allocation4 + $0x1e] sm:$0x1] %vm5356, %v5536
    %5539 = vst.msk [vmem:[#allocation4 + $0x20] sm:$0x1] %vm5341, %v5329
    %v5542 = vunpack.c.l.s4 1983009808
    %v5543 = vunpack.c.0.s8 %v5542
    %v5544 = vlaneseq
    %v5545 = vshrl.u32 %v5544, 7
    %v5546 = vsub.s32 %v5543, %v5545
    %v5547 = vrot.slane %v5329, %v5546
    %v5548 = vrot.slane %v5547, 7
    %v5549 = vrot.slane %v5548, 2
    %5550 = vrot.lane.b32.xlu0 %v5549, 64
    %v5551 = vpop.permute.xlu0 %5550
    %5553 = vst.msk [vmem:[#allocation4 + $0x20] sm:$0x1] %vm5356, %v5551
    %v5554 = vcombine.high %v5547, %v5547
    %5556 = vst.msk [vmem:[#allocation4 + $0x22] sm:$0x1] %vm5341, %v5554
    %v5557 = vrot.slane %v5554, 7
    %v5558 = vrot.slane %v5557, 2
    %5559 = vrot.lane.b32.xlu0 %v5558, 64
    %v5560 = vpop.permute.xlu0 %5559
    %5562 = vst.msk [vmem:[#allocation4 + $0x22] sm:$0x1] %vm5356, %v5560
    %v5563 = vcombine.high %v5329, %v5329
    %v5565 = vunpack.c.l.s4 1983009808
    %v5566 = vunpack.c.0.s8 %v5565
    %v5567 = vlaneseq
    %v5568 = vshrl.u32 %v5567, 7
    %v5569 = vsub.s32 %v5566, %v5568
    %v5570 = vrot.slane %v5563, %v5569
    %5572 = vst.msk [vmem:[#allocation4 + $0x24] sm:$0x1] %vm5341, %v5570
    %v5573 = vrot.slane %v5570, 7
    %v5574 = vrot.slane %v5573, 2
    %5575 = vrot.lane.b32.xlu0 %v5574, 64
    %v5576 = vpop.permute.xlu0 %5575
    %5578 = vst.msk [vmem:[#allocation4 + $0x24] sm:$0x1] %vm5356, %v5576
    %v5579 = vcombine.high %v5570, %v5570
    %5581 = vst.msk [vmem:[#allocation4 + $0x26] sm:$0x1] %vm5341, %v5579
    %v5582 = vrot.slane %v5579, 7
    %v5583 = vrot.slane %v5582, 2
    %5584 = vrot.lane.b32.xlu0 %v5583, 64
    %v5585 = vpop.permute.xlu0 %5584
    %5587 = vst.msk [vmem:[#allocation4 + $0x26] sm:$0x1] %vm5356, %v5585
    %5588 = vst.msk [vmem:[#allocation4 + $0x28] sm:$0x1] %vm5341, %v5330
    %v5591 = vunpack.c.l.s4 1983009808
    %v5592 = vunpack.c.0.s8 %v5591
    %v5593 = vlaneseq
    %v5594 = vshrl.u32 %v5593, 7
    %v5595 = vsub.s32 %v5592, %v5594
    %v5596 = vrot.slane %v5330, %v5595
    %v5597 = vrot.slane %v5596, 7
    %v5598 = vrot.slane %v5597, 2
    %5599 = vrot.lane.b32.xlu0 %v5598, 64
    %v5600 = vpop.permute.xlu0 %5599
    %5602 = vst.msk [vmem:[#allocation4 + $0x28] sm:$0x1] %vm5356, %v5600
    %v5603 = vcombine.high %v5596, %v5596
    %5605 = vst.msk [vmem:[#allocation4 + $0x2a] sm:$0x1] %vm5341, %v5603
    %v5606 = vrot.slane %v5603, 7
    %v5607 = vrot.slane %v5606, 2
    %5608 = vrot.lane.b32.xlu0 %v5607, 64
    %v5609 = vpop.permute.xlu0 %5608
    %5611 = vst.msk [vmem:[#allocation4 + $0x2a] sm:$0x1] %vm5356, %v5609
    %v5612 = vcombine.high %v5330, %v5330
    %v5614 = vunpack.c.l.s4 1983009808
    %v5615 = vunpack.c.0.s8 %v5614
    %v5616 = vlaneseq
    %v5617 = vshrl.u32 %v5616, 7
    %v5618 = vsub.s32 %v5615, %v5617
    %v5619 = vrot.slane %v5612, %v5618
    %5621 = vst.msk [vmem:[#allocation4 + $0x2c] sm:$0x1] %vm5341, %v5619
    %v5622 = vrot.slane %v5619, 7
    %v5623 = vrot.slane %v5622, 2
    %5624 = vrot.lane.b32.xlu0 %v5623, 64
    %v5625 = vpop.permute.xlu0 %5624
    %5627 = vst.msk [vmem:[#allocation4 + $0x2c] sm:$0x1] %vm5356, %v5625
    %v5628 = vcombine.high %v5619, %v5619
    %5630 = vst.msk [vmem:[#allocation4 + $0x2e] sm:$0x1] %vm5341, %v5628
    %v5631 = vrot.slane %v5628, 7
    %v5632 = vrot.slane %v5631, 2
    %5633 = vrot.lane.b32.xlu0 %v5632, 64
    %v5634 = vpop.permute.xlu0 %5633
    %5636 = vst.msk [vmem:[#allocation4 + $0x2e] sm:$0x1] %vm5356, %v5634
    %5637 = vst.msk [vmem:[#allocation4 + $0x30] sm:$0x1] %vm5341, %v5331
    %v5640 = vunpack.c.l.s4 1983009808
    %v5641 = vunpack.c.0.s8 %v5640
    %v5642 = vlaneseq
    %v5643 = vshrl.u32 %v5642, 7
    %v5644 = vsub.s32 %v5641, %v5643
    %v5645 = vrot.slane %v5331, %v5644
    %v5646 = vrot.slane %v5645, 7
    %v5647 = vrot.slane %v5646, 2
    %5648 = vrot.lane.b32.xlu0 %v5647, 64
    %v5649 = vpop.permute.xlu0 %5648
    %5651 = vst.msk [vmem:[#allocation4 + $0x30] sm:$0x1] %vm5356, %v5649
    %v5652 = vcombine.high %v5645, %v5645
    %5654 = vst.msk [vmem:[#allocation4 + $0x32] sm:$0x1] %vm5341, %v5652
    %v5655 = vrot.slane %v5652, 7
    %v5656 = vrot.slane %v5655, 2
    %5657 = vrot.lane.b32.xlu0 %v5656, 64
    %v5658 = vpop.permute.xlu0 %5657
    %5660 = vst.msk [vmem:[#allocation4 + $0x32] sm:$0x1] %vm5356, %v5658
    %v5661 = vcombine.high %v5331, %v5331
    %v5663 = vunpack.c.l.s4 1983009808
    %v5664 = vunpack.c.0.s8 %v5663
    %v5665 = vlaneseq
    %v5666 = vshrl.u32 %v5665, 7
    %v5667 = vsub.s32 %v5664, %v5666
    %v5668 = vrot.slane %v5661, %v5667
    %5670 = vst.msk [vmem:[#allocation4 + $0x34] sm:$0x1] %vm5341, %v5668
    %v5671 = vrot.slane %v5668, 7
    %v5672 = vrot.slane %v5671, 2
    %5673 = vrot.lane.b32.xlu0 %v5672, 64
    %v5674 = vpop.permute.xlu0 %5673
    %5676 = vst.msk [vmem:[#allocation4 + $0x34] sm:$0x1] %vm5356, %v5674
    %v5677 = vcombine.high %v5668, %v5668
    %5679 = vst.msk [vmem:[#allocation4 + $0x36] sm:$0x1] %vm5341, %v5677
    %v5680 = vrot.slane %v5677, 7
    %v5681 = vrot.slane %v5680, 2
    %5682 = vrot.lane.b32.xlu0 %v5681, 64
    %v5683 = vpop.permute.xlu0 %5682
    %5685 = vst.msk [vmem:[#allocation4 + $0x36] sm:$0x1] %vm5356, %v5683
    %5686 = vst.msk [vmem:[#allocation4 + $0x38] sm:$0x1] %vm5341, %v5332
    %v5689 = vunpack.c.l.s4 1983009808
    %v5690 = vunpack.c.0.s8 %v5689
    %v5691 = vlaneseq
    %v5692 = vshrl.u32 %v5691, 7
    %v5693 = vsub.s32 %v5690, %v5692
    %v5694 = vrot.slane %v5332, %v5693
    %v5695 = vrot.slane %v5694, 7
    %v5696 = vrot.slane %v5695, 2
    %5697 = vrot.lane.b32.xlu0 %v5696, 64
    %v5698 = vpop.permute.xlu0 %5697
    %5700 = vst.msk [vmem:[#allocation4 + $0x38] sm:$0x1] %vm5356, %v5698
    %v5701 = vcombine.high %v5694, %v5694
    %5703 = vst.msk [vmem:[#allocation4 + $0x3a] sm:$0x1] %vm5341, %v5701
    %v5704 = vrot.slane %v5701, 7
    %v5705 = vrot.slane %v5704, 2
    %5706 = vrot.lane.b32.xlu0 %v5705, 64
    %v5707 = vpop.permute.xlu0 %5706
    %5709 = vst.msk [vmem:[#allocation4 + $0x3a] sm:$0x1] %vm5356, %v5707
    %v5710 = vcombine.high %v5332, %v5332
    %v5712 = vunpack.c.l.s4 1983009808
    %v5713 = vunpack.c.0.s8 %v5712
    %v5714 = vlaneseq
    %v5715 = vshrl.u32 %v5714, 7
    %v5716 = vsub.s32 %v5713, %v5715
    %v5717 = vrot.slane %v5710, %v5716
    %5719 = vst.msk [vmem:[#allocation4 + $0x3c] sm:$0x1] %vm5341, %v5717
    %v5720 = vrot.slane %v5717, 7
    %v5721 = vrot.slane %v5720, 2
    %5722 = vrot.lane.b32.xlu0 %v5721, 64
    %v5723 = vpop.permute.xlu0 %5722
    %5725 = vst.msk [vmem:[#allocation4 + $0x3c] sm:$0x1] %vm5356, %v5723
    %v5726 = vcombine.high %v5717, %v5717
    %5728 = vst.msk [vmem:[#allocation4 + $0x3e] sm:$0x1] %vm5341, %v5726
    %v5729 = vrot.slane %v5726, 7
    %v5730 = vrot.slane %v5729, 2
    %5731 = vrot.lane.b32.xlu0 %v5730, 64
    %v5732 = vpop.permute.xlu0 %5731
    %5734 = vst.msk [vmem:[#allocation4 + $0x3e] sm:$0x1] %vm5356, %v5732
    %5735 = vst.msk [vmem:[#allocation4 + $0x1] sm:$0x1] %vm5341, %v5333
    %v5738 = vunpack.c.l.s4 1983009808
    %v5739 = vunpack.c.0.s8 %v5738
    %v5740 = vlaneseq
    %v5741 = vshrl.u32 %v5740, 7
    %v5742 = vsub.s32 %v5739, %v5741
    %v5743 = vrot.slane %v5333, %v5742
    %v5744 = vrot.slane %v5743, 7
    %v5745 = vrot.slane %v5744, 2
    %5746 = vrot.lane.b32.xlu0 %v5745, 64
    %v5747 = vpop.permute.xlu0 %5746
    %5749 = vst.msk [vmem:[#allocation4 + $0x1] sm:$0x1] %vm5356, %v5747
    %v5750 = vcombine.high %v5743, %v5743
    %5752 = vst.msk [vmem:[#allocation4 + $0x3] sm:$0x1] %vm5341, %v5750
    %v5753 = vrot.slane %v5750, 7
    %v5754 = vrot.slane %v5753, 2
    %5755 = vrot.lane.b32.xlu0 %v5754, 64
    %v5756 = vpop.permute.xlu0 %5755
    %5758 = vst.msk [vmem:[#allocation4 + $0x3] sm:$0x1] %vm5356, %v5756
    %v5759 = vcombine.high %v5333, %v5333
    %v5761 = vunpack.c.l.s4 1983009808
    %v5762 = vunpack.c.0.s8 %v5761
    %v5763 = vlaneseq
    %v5764 = vshrl.u32 %v5763, 7
    %v5765 = vsub.s32 %v5762, %v5764
    %v5766 = vrot.slane %v5759, %v5765
    %5768 = vst.msk [vmem:[#allocation4 + $0x5] sm:$0x1] %vm5341, %v5766
    %v5769 = vrot.slane %v5766, 7
    %v5770 = vrot.slane %v5769, 2
    %5771 = vrot.lane.b32.xlu0 %v5770, 64
    %v5772 = vpop.permute.xlu0 %5771
    %5774 = vst.msk [vmem:[#allocation4 + $0x5] sm:$0x1] %vm5356, %v5772
    %v5775 = vcombine.high %v5766, %v5766
    %5777 = vst.msk [vmem:[#allocation4 + $0x7] sm:$0x1] %vm5341, %v5775
    %v5778 = vrot.slane %v5775, 7
    %v5779 = vrot.slane %v5778, 2
    %5780 = vrot.lane.b32.xlu0 %v5779, 64
    %v5781 = vpop.permute.xlu0 %5780
    %5783 = vst.msk [vmem:[#allocation4 + $0x7] sm:$0x1] %vm5356, %v5781
    %5784 = vst.msk [vmem:[#allocation4 + $0x9] sm:$0x1] %vm5341, %v5334
    %v5787 = vunpack.c.l.s4 1983009808
    %v5788 = vunpack.c.0.s8 %v5787
    %v5789 = vlaneseq
    %v5790 = vshrl.u32 %v5789, 7
    %v5791 = vsub.s32 %v5788, %v5790
    %v5792 = vrot.slane %v5334, %v5791
    %v5793 = vrot.slane %v5792, 7
    %v5794 = vrot.slane %v5793, 2
    %5795 = vrot.lane.b32.xlu0 %v5794, 64
    %v5796 = vpop.permute.xlu0 %5795
    %5798 = vst.msk [vmem:[#allocation4 + $0x9] sm:$0x1] %vm5356, %v5796
    %v5799 = vcombine.high %v5792, %v5792
    %5801 = vst.msk [vmem:[#allocation4 + $0xb] sm:$0x1] %vm5341, %v5799
    %v5802 = vrot.slane %v5799, 7
    %v5803 = vrot.slane %v5802, 2
    %5804 = vrot.lane.b32.xlu0 %v5803, 64
    %v5805 = vpop.permute.xlu0 %5804
    %5807 = vst.msk [vmem:[#allocation4 + $0xb] sm:$0x1] %vm5356, %v5805
    %v5808 = vcombine.high %v5334, %v5334
    %v5810 = vunpack.c.l.s4 1983009808
    %v5811 = vunpack.c.0.s8 %v5810
    %v5812 = vlaneseq
    %v5813 = vshrl.u32 %v5812, 7
    %v5814 = vsub.s32 %v5811, %v5813
    %v5815 = vrot.slane %v5808, %v5814
    %5817 = vst.msk [vmem:[#allocation4 + $0xd] sm:$0x1] %vm5341, %v5815
    %v5818 = vrot.slane %v5815, 7
    %v5819 = vrot.slane %v5818, 2
    %5820 = vrot.lane.b32.xlu0 %v5819, 64
    %v5821 = vpop.permute.xlu0 %5820
    %5823 = vst.msk [vmem:[#allocation4 + $0xd] sm:$0x1] %vm5356, %v5821
    %v5824 = vcombine.high %v5815, %v5815
    %5826 = vst.msk [vmem:[#allocation4 + $0xf] sm:$0x1] %vm5341, %v5824
    %v5827 = vrot.slane %v5824, 7
    %v5828 = vrot.slane %v5827, 2
    %5829 = vrot.lane.b32.xlu0 %v5828, 64
    %v5830 = vpop.permute.xlu0 %5829
    %5832 = vst.msk [vmem:[#allocation4 + $0xf] sm:$0x1] %vm5356, %v5830
    %5833 = vst.msk [vmem:[#allocation4 + $0x11] sm:$0x1] %vm5341, %v5335
    %v5836 = vunpack.c.l.s4 1983009808
    %v5837 = vunpack.c.0.s8 %v5836
    %v5838 = vlaneseq
    %v5839 = vshrl.u32 %v5838, 7
    %v5840 = vsub.s32 %v5837, %v5839
    %v5841 = vrot.slane %v5335, %v5840
    %v5842 = vrot.slane %v5841, 7
    %v5843 = vrot.slane %v5842, 2
    %5844 = vrot.lane.b32.xlu0 %v5843, 64
    %v5845 = vpop.permute.xlu0 %5844
    %5847 = vst.msk [vmem:[#allocation4 + $0x11] sm:$0x1] %vm5356, %v5845
    %v5848 = vcombine.high %v5841, %v5841
    %5850 = vst.msk [vmem:[#allocation4 + $0x13] sm:$0x1] %vm5341, %v5848
    %v5851 = vrot.slane %v5848, 7
    %v5852 = vrot.slane %v5851, 2
    %5853 = vrot.lane.b32.xlu0 %v5852, 64
    %v5854 = vpop.permute.xlu0 %5853
    %5856 = vst.msk [vmem:[#allocation4 + $0x13] sm:$0x1] %vm5356, %v5854
    %v5857 = vcombine.high %v5335, %v5335
    %v5859 = vunpack.c.l.s4 1983009808
    %v5860 = vunpack.c.0.s8 %v5859
    %v5861 = vlaneseq
    %v5862 = vshrl.u32 %v5861, 7
    %v5863 = vsub.s32 %v5860, %v5862
    %v5864 = vrot.slane %v5857, %v5863
    %5866 = vst.msk [vmem:[#allocation4 + $0x15] sm:$0x1] %vm5341, %v5864
    %v5867 = vrot.slane %v5864, 7
    %v5868 = vrot.slane %v5867, 2
    %5869 = vrot.lane.b32.xlu0 %v5868, 64
    %v5870 = vpop.permute.xlu0 %5869
    %5872 = vst.msk [vmem:[#allocation4 + $0x15] sm:$0x1] %vm5356, %v5870
    %v5873 = vcombine.high %v5864, %v5864
    %5875 = vst.msk [vmem:[#allocation4 + $0x17] sm:$0x1] %vm5341, %v5873
    %v5876 = vrot.slane %v5873, 7
    %v5877 = vrot.slane %v5876, 2
    %5878 = vrot.lane.b32.xlu0 %v5877, 64
    %v5879 = vpop.permute.xlu0 %5878
    %5881 = vst.msk [vmem:[#allocation4 + $0x17] sm:$0x1] %vm5356, %v5879
    %5882 = vst.msk [vmem:[#allocation4 + $0x19] sm:$0x1] %vm5341, %v5336
    %v5885 = vunpack.c.l.s4 1983009808
    %v5886 = vunpack.c.0.s8 %v5885
    %v5887 = vlaneseq
    %v5888 = vshrl.u32 %v5887, 7
    %v5889 = vsub.s32 %v5886, %v5888
    %v5890 = vrot.slane %v5336, %v5889
    %v5891 = vrot.slane %v5890, 7
    %v5892 = vrot.slane %v5891, 2
    %5893 = vrot.lane.b32.xlu0 %v5892, 64
    %v5894 = vpop.permute.xlu0 %5893
    %5896 = vst.msk [vmem:[#allocation4 + $0x19] sm:$0x1] %vm5356, %v5894
    %v5897 = vcombine.high %v5890, %v5890
    %5899 = vst.msk [vmem:[#allocation4 + $0x1b] sm:$0x1] %vm5341, %v5897
    %v5900 = vrot.slane %v5897, 7
    %v5901 = vrot.slane %v5900, 2
    %5902 = vrot.lane.b32.xlu0 %v5901, 64
    %v5903 = vpop.permute.xlu0 %5902
    %5905 = vst.msk [vmem:[#allocation4 + $0x1b] sm:$0x1] %vm5356, %v5903
    %v5906 = vcombine.high %v5336, %v5336
    %v5908 = vunpack.c.l.s4 1983009808
    %v5909 = vunpack.c.0.s8 %v5908
    %v5910 = vlaneseq
    %v5911 = vshrl.u32 %v5910, 7
    %v5912 = vsub.s32 %v5909, %v5911
    %v5913 = vrot.slane %v5906, %v5912
    %5915 = vst.msk [vmem:[#allocation4 + $0x1d] sm:$0x1] %vm5341, %v5913
    %v5916 = vrot.slane %v5913, 7
    %v5917 = vrot.slane %v5916, 2
    %5918 = vrot.lane.b32.xlu0 %v5917, 64
    %v5919 = vpop.permute.xlu0 %5918
    %5921 = vst.msk [vmem:[#allocation4 + $0x1d] sm:$0x1] %vm5356, %v5919
    %v5922 = vcombine.high %v5913, %v5913
    %5924 = vst.msk [vmem:[#allocation4 + $0x1f] sm:$0x1] %vm5341, %v5922
    %v5925 = vrot.slane %v5922, 7
    %v5926 = vrot.slane %v5925, 2
    %5927 = vrot.lane.b32.xlu0 %v5926, 64
    %v5928 = vpop.permute.xlu0 %5927
    %5930 = vst.msk [vmem:[#allocation4 + $0x1f] sm:$0x1] %vm5356, %v5928
    %5931 = vst.msk [vmem:[#allocation4 + $0x21] sm:$0x1] %vm5341, %v5337
    %v5934 = vunpack.c.l.s4 1983009808
    %v5935 = vunpack.c.0.s8 %v5934
    %v5936 = vlaneseq
    %v5937 = vshrl.u32 %v5936, 7
    %v5938 = vsub.s32 %v5935, %v5937
    %v5939 = vrot.slane %v5337, %v5938
    %v5940 = vrot.slane %v5939, 7
    %v5941 = vrot.slane %v5940, 2
    %5942 = vrot.lane.b32.xlu0 %v5941, 64
    %v5943 = vpop.permute.xlu0 %5942
    %5945 = vst.msk [vmem:[#allocation4 + $0x21] sm:$0x1] %vm5356, %v5943
    %v5946 = vcombine.high %v5939, %v5939
    %5948 = vst.msk [vmem:[#allocation4 + $0x23] sm:$0x1] %vm5341, %v5946
    %v5949 = vrot.slane %v5946, 7
    %v5950 = vrot.slane %v5949, 2
    %5951 = vrot.lane.b32.xlu0 %v5950, 64
    %v5952 = vpop.permute.xlu0 %5951
    %5954 = vst.msk [vmem:[#allocation4 + $0x23] sm:$0x1] %vm5356, %v5952
    %v5955 = vcombine.high %v5337, %v5337
    %v5957 = vunpack.c.l.s4 1983009808
    %v5958 = vunpack.c.0.s8 %v5957
    %v5959 = vlaneseq
    %v5960 = vshrl.u32 %v5959, 7
    %v5961 = vsub.s32 %v5958, %v5960
    %v5962 = vrot.slane %v5955, %v5961
    %5964 = vst.msk [vmem:[#allocation4 + $0x25] sm:$0x1] %vm5341, %v5962
    %v5965 = vrot.slane %v5962, 7
    %v5966 = vrot.slane %v5965, 2
    %5967 = vrot.lane.b32.xlu0 %v5966, 64
    %v5968 = vpop.permute.xlu0 %5967
    %5970 = vst.msk [vmem:[#allocation4 + $0x25] sm:$0x1] %vm5356, %v5968
    %v5971 = vcombine.high %v5962, %v5962
    %5973 = vst.msk [vmem:[#allocation4 + $0x27] sm:$0x1] %vm5341, %v5971
    %v5974 = vrot.slane %v5971, 7
    %v5975 = vrot.slane %v5974, 2
    %5976 = vrot.lane.b32.xlu0 %v5975, 64
    %v5977 = vpop.permute.xlu0 %5976
    %5979 = vst.msk [vmem:[#allocation4 + $0x27] sm:$0x1] %vm5356, %v5977
    %5980 = vst.msk [vmem:[#allocation4 + $0x29] sm:$0x1] %vm5341, %v5338
    %v5983 = vunpack.c.l.s4 1983009808
    %v5984 = vunpack.c.0.s8 %v5983
    %v5985 = vlaneseq
    %v5986 = vshrl.u32 %v5985, 7
    %v5987 = vsub.s32 %v5984, %v5986
    %v5988 = vrot.slane %v5338, %v5987
    %v5989 = vrot.slane %v5988, 7
    %v5990 = vrot.slane %v5989, 2
    %5991 = vrot.lane.b32.xlu0 %v5990, 64
    %v5992 = vpop.permute.xlu0 %5991
    %5994 = vst.msk [vmem:[#allocation4 + $0x29] sm:$0x1] %vm5356, %v5992
    %v5995 = vcombine.high %v5988, %v5988
    %5997 = vst.msk [vmem:[#allocation4 + $0x2b] sm:$0x1] %vm5341, %v5995
    %v5998 = vrot.slane %v5995, 7
    %v5999 = vrot.slane %v5998, 2
    %6000 = vrot.lane.b32.xlu0 %v5999, 64
    %v6001 = vpop.permute.xlu0 %6000
    %6003 = vst.msk [vmem:[#allocation4 + $0x2b] sm:$0x1] %vm5356, %v6001
    %v6004 = vcombine.high %v5338, %v5338
    %v6006 = vunpack.c.l.s4 1983009808
    %v6007 = vunpack.c.0.s8 %v6006
    %v6008 = vlaneseq
    %v6009 = vshrl.u32 %v6008, 7
    %v6010 = vsub.s32 %v6007, %v6009
    %v6011 = vrot.slane %v6004, %v6010
    %6013 = vst.msk [vmem:[#allocation4 + $0x2d] sm:$0x1] %vm5341, %v6011
    %v6014 = vrot.slane %v6011, 7
    %v6015 = vrot.slane %v6014, 2
    %6016 = vrot.lane.b32.xlu0 %v6015, 64
    %v6017 = vpop.permute.xlu0 %6016
    %6019 = vst.msk [vmem:[#allocation4 + $0x2d] sm:$0x1] %vm5356, %v6017
    %v6020 = vcombine.high %v6011, %v6011
    %6022 = vst.msk [vmem:[#allocation4 + $0x2f] sm:$0x1] %vm5341, %v6020
    %v6023 = vrot.slane %v6020, 7
    %v6024 = vrot.slane %v6023, 2
    %6025 = vrot.lane.b32.xlu0 %v6024, 64
    %v6026 = vpop.permute.xlu0 %6025
    %6028 = vst.msk [vmem:[#allocation4 + $0x2f] sm:$0x1] %vm5356, %v6026
    %6029 = vst.msk [vmem:[#allocation4 + $0x31] sm:$0x1] %vm5341, %v5339
    %v6032 = vunpack.c.l.s4 1983009808
    %v6033 = vunpack.c.0.s8 %v6032
    %v6034 = vlaneseq
    %v6035 = vshrl.u32 %v6034, 7
    %v6036 = vsub.s32 %v6033, %v6035
    %v6037 = vrot.slane %v5339, %v6036
    %v6038 = vrot.slane %v6037, 7
    %v6039 = vrot.slane %v6038, 2
    %6040 = vrot.lane.b32.xlu0 %v6039, 64
    %v6041 = vpop.permute.xlu0 %6040
    %6043 = vst.msk [vmem:[#allocation4 + $0x31] sm:$0x1] %vm5356, %v6041
    %v6044 = vcombine.high %v6037, %v6037
    %6046 = vst.msk [vmem:[#allocation4 + $0x33] sm:$0x1] %vm5341, %v6044
    %v6047 = vrot.slane %v6044, 7
    %v6048 = vrot.slane %v6047, 2
    %6049 = vrot.lane.b32.xlu0 %v6048, 64
    %v6050 = vpop.permute.xlu0 %6049
    %6052 = vst.msk [vmem:[#allocation4 + $0x33] sm:$0x1] %vm5356, %v6050
    %v6053 = vcombine.high %v5339, %v5339
    %v6055 = vunpack.c.l.s4 1983009808
    %v6056 = vunpack.c.0.s8 %v6055
    %v6057 = vlaneseq
    %v6058 = vshrl.u32 %v6057, 7
    %v6059 = vsub.s32 %v6056, %v6058
    %v6060 = vrot.slane %v6053, %v6059
    %6062 = vst.msk [vmem:[#allocation4 + $0x35] sm:$0x1] %vm5341, %v6060
    %v6063 = vrot.slane %v6060, 7
    %v6064 = vrot.slane %v6063, 2
    %6065 = vrot.lane.b32.xlu0 %v6064, 64
    %v6066 = vpop.permute.xlu0 %6065
    %6068 = vst.msk [vmem:[#allocation4 + $0x35] sm:$0x1] %vm5356, %v6066
    %v6069 = vcombine.high %v6060, %v6060
    %6071 = vst.msk [vmem:[#allocation4 + $0x37] sm:$0x1] %vm5341, %v6069
    %v6072 = vrot.slane %v6069, 7
    %v6073 = vrot.slane %v6072, 2
    %6074 = vrot.lane.b32.xlu0 %v6073, 64
    %v6075 = vpop.permute.xlu0 %6074
    %6077 = vst.msk [vmem:[#allocation4 + $0x37] sm:$0x1] %vm5356, %v6075
    %6078 = vst.msk [vmem:[#allocation4 + $0x39] sm:$0x1] %vm5341, %v5340
    %v6081 = vunpack.c.l.s4 1983009808
    %v6082 = vunpack.c.0.s8 %v6081
    %v6083 = vlaneseq
    %v6084 = vshrl.u32 %v6083, 7
    %v6085 = vsub.s32 %v6082, %v6084
    %v6086 = vrot.slane %v5340, %v6085
    %v6087 = vrot.slane %v6086, 7
    %v6088 = vrot.slane %v6087, 2
    %6089 = vrot.lane.b32.xlu0 %v6088, 64
    %v6090 = vpop.permute.xlu0 %6089
    %6092 = vst.msk [vmem:[#allocation4 + $0x39] sm:$0x1] %vm5356, %v6090
    %v6093 = vcombine.high %v6086, %v6086
    %6095 = vst.msk [vmem:[#allocation4 + $0x3b] sm:$0x1] %vm5341, %v6093
    %v6096 = vrot.slane %v6093, 7
    %v6097 = vrot.slane %v6096, 2
    %6098 = vrot.lane.b32.xlu0 %v6097, 64
    %v6099 = vpop.permute.xlu0 %6098
    %6101 = vst.msk [vmem:[#allocation4 + $0x3b] sm:$0x1] %vm5356, %v6099
    %v6102 = vcombine.high %v5340, %v5340
    %v6104 = vunpack.c.l.s4 1983009808
    %v6105 = vunpack.c.0.s8 %v6104
    %v6106 = vlaneseq
    %v6107 = vshrl.u32 %v6106, 7
    %v6108 = vsub.s32 %v6105, %v6107
    %v6109 = vrot.slane %v6102, %v6108
    %6111 = vst.msk [vmem:[#allocation4 + $0x3d] sm:$0x1] %vm5341, %v6109
    %v6112 = vrot.slane %v6109, 7
    %v6113 = vrot.slane %v6112, 2
    %6114 = vrot.lane.b32.xlu0 %v6113, 64
    %v6115 = vpop.permute.xlu0 %6114
    %6117 = vst.msk [vmem:[#allocation4 + $0x3d] sm:$0x1] %vm5356, %v6115
    %v6118 = vcombine.high %v6109, %v6109
    %6120 = vst.msk [vmem:[#allocation4 + $0x3f] sm:$0x1] %vm5341, %v6118
    %v6121 = vrot.slane %v6118, 7
    %v6122 = vrot.slane %v6121, 2
    %6123 = vrot.lane.b32.xlu0 %v6122, 64
    %v6124 = vpop.permute.xlu0 %6123
    %6126 = vst.msk [vmem:[#allocation4 + $0x3f] sm:$0x1] %vm5356, %v6124
    %v6127 = vld [vmem:[#allocation4] sm:$0xff]
    %v6128 = vld [vmem:[#allocation4 + $0x8] sm:$0xff]
    %v6129 = vld [vmem:[#allocation4 + $0x10] sm:$0xff]
    %v6130 = vld [vmem:[#allocation4 + $0x18] sm:$0xff]
    %v6131 = vld [vmem:[#allocation4 + $0x20] sm:$0xff]
    %v6132 = vld [vmem:[#allocation4 + $0x28] sm:$0xff]
    %v6133 = vld [vmem:[#allocation4 + $0x30] sm:$0xff]
    %v6134 = vld [vmem:[#allocation4 + $0x38] sm:$0xff]
    %v6143 = vcombine.high %v6127, %v6127
    %v6145 = vunpack.c.l.s4 1983009808
    %v6146 = vunpack.c.0.s8 %v6145
    %v6147 = vlaneseq
    %v6148 = vshrl.u32 %v6147, 7
    %v6149 = vsub.s32 %v6146, %v6148
    %v6150 = vrot.slane %v6127, %v6149
    %v6152 = vunpack.c.l.s4 1983009808
    %v6153 = vunpack.c.0.s8 %v6152
    %v6154 = vlaneseq
    %v6155 = vshrl.u32 %v6154, 7
    %v6156 = vsub.s32 %v6153, %v6155
    %v6157 = vrot.slane %v6143, %v6156
    %v6158 = vcombine.high %v6150, %v6150
    %v6159 = vcombine.high %v6157, %v6157
    %v6160 = vcombine.high %v6128, %v6128
    %v6162 = vunpack.c.l.s4 1983009808
    %v6163 = vunpack.c.0.s8 %v6162
    %v6164 = vlaneseq
    %v6165 = vshrl.u32 %v6164, 7
    %v6166 = vsub.s32 %v6163, %v6165
    %v6167 = vrot.slane %v6128, %v6166
    %v6169 = vunpack.c.l.s4 1983009808
    %v6170 = vunpack.c.0.s8 %v6169
    %v6171 = vlaneseq
    %v6172 = vshrl.u32 %v6171, 7
    %v6173 = vsub.s32 %v6170, %v6172
    %v6174 = vrot.slane %v6160, %v6173
    %v6175 = vcombine.high %v6167, %v6167
    %v6176 = vcombine.high %v6174, %v6174
    %v6177 = vcombine.high %v6129, %v6129
    %v6179 = vunpack.c.l.s4 1983009808
    %v6180 = vunpack.c.0.s8 %v6179
    %v6181 = vlaneseq
    %v6182 = vshrl.u32 %v6181, 7
    %v6183 = vsub.s32 %v6180, %v6182
    %v6184 = vrot.slane %v6129, %v6183
    %v6186 = vunpack.c.l.s4 1983009808
    %v6187 = vunpack.c.0.s8 %v6186
    %v6188 = vlaneseq
    %v6189 = vshrl.u32 %v6188, 7
    %v6190 = vsub.s32 %v6187, %v6189
    %v6191 = vrot.slane %v6177, %v6190
    %v6192 = vcombine.high %v6184, %v6184
    %v6193 = vcombine.high %v6191, %v6191
    %v6194 = vcombine.high %v6130, %v6130
    %v6196 = vunpack.c.l.s4 1983009808
    %v6197 = vunpack.c.0.s8 %v6196
    %v6198 = vlaneseq
    %v6199 = vshrl.u32 %v6198, 7
    %v6200 = vsub.s32 %v6197, %v6199
    %v6201 = vrot.slane %v6130, %v6200
    %v6203 = vunpack.c.l.s4 1983009808
    %v6204 = vunpack.c.0.s8 %v6203
    %v6205 = vlaneseq
    %v6206 = vshrl.u32 %v6205, 7
    %v6207 = vsub.s32 %v6204, %v6206
    %v6208 = vrot.slane %v6194, %v6207
    %v6209 = vcombine.high %v6201, %v6201
    %v6210 = vcombine.high %v6208, %v6208
    %v6211 = vcombine.high %v6131, %v6131
    %v6213 = vunpack.c.l.s4 1983009808
    %v6214 = vunpack.c.0.s8 %v6213
    %v6215 = vlaneseq
    %v6216 = vshrl.u32 %v6215, 7
    %v6217 = vsub.s32 %v6214, %v6216
    %v6218 = vrot.slane %v6131, %v6217
    %v6220 = vunpack.c.l.s4 1983009808
    %v6221 = vunpack.c.0.s8 %v6220
    %v6222 = vlaneseq
    %v6223 = vshrl.u32 %v6222, 7
    %v6224 = vsub.s32 %v6221, %v6223
    %v6225 = vrot.slane %v6211, %v6224
    %v6226 = vcombine.high %v6218, %v6218
    %v6227 = vcombine.high %v6225, %v6225
    %v6228 = vcombine.high %v6132, %v6132
    %v6230 = vunpack.c.l.s4 1983009808
    %v6231 = vunpack.c.0.s8 %v6230
    %v6232 = vlaneseq
    %v6233 = vshrl.u32 %v6232, 7
    %v6234 = vsub.s32 %v6231, %v6233
    %v6235 = vrot.slane %v6132, %v6234
    %v6237 = vunpack.c.l.s4 1983009808
    %v6238 = vunpack.c.0.s8 %v6237
    %v6239 = vlaneseq
    %v6240 = vshrl.u32 %v6239, 7
    %v6241 = vsub.s32 %v6238, %v6240
    %v6242 = vrot.slane %v6228, %v6241
    %v6243 = vcombine.high %v6235, %v6235
    %v6244 = vcombine.high %v6242, %v6242
    %v6245 = vcombine.high %v6133, %v6133
    %v6247 = vunpack.c.l.s4 1983009808
    %v6248 = vunpack.c.0.s8 %v6247
    %v6249 = vlaneseq
    %v6250 = vshrl.u32 %v6249, 7
    %v6251 = vsub.s32 %v6248, %v6250
    %v6252 = vrot.slane %v6133, %v6251
    %v6254 = vunpack.c.l.s4 1983009808
    %v6255 = vunpack.c.0.s8 %v6254
    %v6256 = vlaneseq
    %v6257 = vshrl.u32 %v6256, 7
    %v6258 = vsub.s32 %v6255, %v6257
    %v6259 = vrot.slane %v6245, %v6258
    %v6260 = vcombine.high %v6252, %v6252
    %v6261 = vcombine.high %v6259, %v6259
    %v6262 = vcombine.high %v6134, %v6134
    %v6264 = vunpack.c.l.s4 1983009808
    %v6265 = vunpack.c.0.s8 %v6264
    %v6266 = vlaneseq
    %v6267 = vshrl.u32 %v6266, 7
    %v6268 = vsub.s32 %v6265, %v6267
    %v6269 = vrot.slane %v6134, %v6268
    %v6271 = vunpack.c.l.s4 1983009808
    %v6272 = vunpack.c.0.s8 %v6271
    %v6273 = vlaneseq
    %v6274 = vshrl.u32 %v6273, 7
    %v6275 = vsub.s32 %v6272, %v6274
    %v6276 = vrot.slane %v6262, %v6275
    %v6277 = vcombine.high %v6269, %v6269
    %v6278 = vcombine.high %v6276, %v6276
    %v6311 = vpack.c.bf16 %v6150, %v6150
    %v6312 = vpack.c.bf16 %v6158, %v6158
    %v6313 = vpack.c.bf16 %v6157, %v6157
    %v6314 = vpack.c.bf16 %v6159, %v6159
    %v6315 = vpack.c.bf16 %v6167, %v6167
    %v6316 = vpack.c.bf16 %v6175, %v6175
    %v6317 = vpack.c.bf16 %v6174, %v6174
    %v6318 = vpack.c.bf16 %v6176, %v6176
    %v6319 = vpack.c.bf16 %v6184, %v6184
    %v6320 = vpack.c.bf16 %v6192, %v6192
    %v6321 = vpack.c.bf16 %v6191, %v6191
    %v6322 = vpack.c.bf16 %v6193, %v6193
    %v6323 = vpack.c.bf16 %v6201, %v6201
    %v6324 = vpack.c.bf16 %v6209, %v6209
    %v6325 = vpack.c.bf16 %v6208, %v6208
    %v6326 = vpack.c.bf16 %v6210, %v6210
    %v6327 = vpack.c.bf16 %v6218, %v6218
    %v6328 = vpack.c.bf16 %v6226, %v6226
    %v6329 = vpack.c.bf16 %v6225, %v6225
    %v6330 = vpack.c.bf16 %v6227, %v6227
    %v6331 = vpack.c.bf16 %v6235, %v6235
    %v6332 = vpack.c.bf16 %v6243, %v6243
    %v6333 = vpack.c.bf16 %v6242, %v6242
    %v6334 = vpack.c.bf16 %v6244, %v6244
    %v6335 = vpack.c.bf16 %v6252, %v6252
    %v6336 = vpack.c.bf16 %v6260, %v6260
    %v6337 = vpack.c.bf16 %v6259, %v6259
    %v6338 = vpack.c.bf16 %v6261, %v6261
    %v6339 = vpack.c.bf16 %v6269, %v6269
    %v6340 = vpack.c.bf16 %v6277, %v6277
    %v6341 = vpack.c.bf16 %v6276, %v6276
    %v6342 = vpack.c.bf16 %v6278, %v6278
    %v6343 = vld [vmem:[%s5] sm:$0xf]
    %v6344 = vld [vmem:[%s5 + $0x4] sm:$0xf]
    %v6345 = vld [vmem:[%s5 + $0x8] sm:$0xf]
    %v6346 = vld [vmem:[%s5 + $0xc] sm:$0xf]
    %v6347 = vld [vmem:[%s5 + $0x10] sm:$0xf]
    %v6348 = vld [vmem:[%s5 + $0x14] sm:$0xf]
    %v6349 = vld [vmem:[%s5 + $0x18] sm:$0xf]
    %v6350 = vld [vmem:[%s5 + $0x1c] sm:$0xf]
    %v6351 = vld [vmem:[%s5 + $0x20] sm:$0xf]
    %v6352 = vld [vmem:[%s5 + $0x24] sm:$0xf]
    %v6353 = vld [vmem:[%s5 + $0x28] sm:$0xf]
    %v6354 = vld [vmem:[%s5 + $0x2c] sm:$0xf]
    %v6355 = vld [vmem:[%s5 + $0x30] sm:$0xf]
    %v6356 = vld [vmem:[%s5 + $0x34] sm:$0xf]
    %v6357 = vld [vmem:[%s5 + $0x38] sm:$0xf]
    %v6358 = vld [vmem:[%s5 + $0x3c] sm:$0xf]
    %v6359 = vld [vmem:[%s5 + $0x40] sm:$0xf]
    %v6360 = vld [vmem:[%s5 + $0x44] sm:$0xf]
    %v6361 = vld [vmem:[%s5 + $0x48] sm:$0xf]
    %v6362 = vld [vmem:[%s5 + $0x4c] sm:$0xf]
    %v6363 = vld [vmem:[%s5 + $0x50] sm:$0xf]
    %v6364 = vld [vmem:[%s5 + $0x54] sm:$0xf]
    %v6365 = vld [vmem:[%s5 + $0x58] sm:$0xf]
    %v6366 = vld [vmem:[%s5 + $0x5c] sm:$0xf]
    %v6367 = vld [vmem:[%s5 + $0x60] sm:$0xf]
    %v6368 = vld [vmem:[%s5 + $0x64] sm:$0xf]
    %v6369 = vld [vmem:[%s5 + $0x68] sm:$0xf]
    %v6370 = vld [vmem:[%s5 + $0x6c] sm:$0xf]
    %v6371 = vld [vmem:[%s5 + $0x70] sm:$0xf]
    %v6372 = vld [vmem:[%s5 + $0x74] sm:$0xf]
    %v6373 = vld [vmem:[%s5 + $0x78] sm:$0xf]
    %v6374 = vld [vmem:[%s5 + $0x7c] sm:$0xf]
    %v6375 = vld [vmem:[%s5 + $0x80] sm:$0xf]
    %v6376 = vld [vmem:[%s5 + $0x84] sm:$0xf]
    %v6377 = vld [vmem:[%s5 + $0x88] sm:$0xf]
    %v6378 = vld [vmem:[%s5 + $0x8c] sm:$0xf]
    %v6379 = vld [vmem:[%s5 + $0x90] sm:$0xf]
    %v6380 = vld [vmem:[%s5 + $0x94] sm:$0xf]
    %v6381 = vld [vmem:[%s5 + $0x98] sm:$0xf]
    %v6382 = vld [vmem:[%s5 + $0x9c] sm:$0xf]
    %v6383 = vld [vmem:[%s5 + $0xa0] sm:$0xf]
    %v6384 = vld [vmem:[%s5 + $0xa4] sm:$0xf]
    %v6385 = vld [vmem:[%s5 + $0xa8] sm:$0xf]
    %v6386 = vld [vmem:[%s5 + $0xac] sm:$0xf]
    %v6387 = vld [vmem:[%s5 + $0xb0] sm:$0xf]
    %v6388 = vld [vmem:[%s5 + $0xb4] sm:$0xf]
    %v6389 = vld [vmem:[%s5 + $0xb8] sm:$0xf]
    %v6390 = vld [vmem:[%s5 + $0xbc] sm:$0xf]
    %v6391 = vld [vmem:[%s5 + $0xc0] sm:$0xf]
    %v6392 = vld [vmem:[%s5 + $0xc4] sm:$0xf]
    %v6393 = vld [vmem:[%s5 + $0xc8] sm:$0xf]
    %v6394 = vld [vmem:[%s5 + $0xcc] sm:$0xf]
    %v6395 = vld [vmem:[%s5 + $0xd0] sm:$0xf]
    %v6396 = vld [vmem:[%s5 + $0xd4] sm:$0xf]
    %v6397 = vld [vmem:[%s5 + $0xd8] sm:$0xf]
    %v6398 = vld [vmem:[%s5 + $0xdc] sm:$0xf]
    %v6399 = vld [vmem:[%s5 + $0xe0] sm:$0xf]
    %v6400 = vld [vmem:[%s5 + $0xe4] sm:$0xf]
    %v6401 = vld [vmem:[%s5 + $0xe8] sm:$0xf]
    %v6402 = vld [vmem:[%s5 + $0xec] sm:$0xf]
    %v6403 = vld [vmem:[%s5 + $0xf0] sm:$0xf]
    %v6404 = vld [vmem:[%s5 + $0xf4] sm:$0xf]
    %v6405 = vld [vmem:[%s5 + $0xf8] sm:$0xf]
    %v6406 = vld [vmem:[%s5 + $0xfc] sm:$0xf]
    %v6407 = vld [vmem:[%s5 + $0x100] sm:$0xf]
    %v6408 = vld [vmem:[%s5 + $0x104] sm:$0xf]
    %v6409 = vld [vmem:[%s5 + $0x108] sm:$0xf]
    %v6410 = vld [vmem:[%s5 + $0x10c] sm:$0xf]
    %v6411 = vld [vmem:[%s5 + $0x110] sm:$0xf]
    %v6412 = vld [vmem:[%s5 + $0x114] sm:$0xf]
    %v6413 = vld [vmem:[%s5 + $0x118] sm:$0xf]
    %v6414 = vld [vmem:[%s5 + $0x11c] sm:$0xf]
    %v6415 = vld [vmem:[%s5 + $0x120] sm:$0xf]
    %v6416 = vld [vmem:[%s5 + $0x124] sm:$0xf]
    %v6417 = vld [vmem:[%s5 + $0x128] sm:$0xf]
    %v6418 = vld [vmem:[%s5 + $0x12c] sm:$0xf]
    %v6419 = vld [vmem:[%s5 + $0x130] sm:$0xf]
    %v6420 = vld [vmem:[%s5 + $0x134] sm:$0xf]
    %v6421 = vld [vmem:[%s5 + $0x138] sm:$0xf]
    %v6422 = vld [vmem:[%s5 + $0x13c] sm:$0xf]
    %v6423 = vld [vmem:[%s5 + $0x140] sm:$0xf]
    %v6424 = vld [vmem:[%s5 + $0x144] sm:$0xf]
    %v6425 = vld [vmem:[%s5 + $0x148] sm:$0xf]
    %v6426 = vld [vmem:[%s5 + $0x14c] sm:$0xf]
    %v6427 = vld [vmem:[%s5 + $0x150] sm:$0xf]
    %v6428 = vld [vmem:[%s5 + $0x154] sm:$0xf]
    %v6429 = vld [vmem:[%s5 + $0x158] sm:$0xf]
    %v6430 = vld [vmem:[%s5 + $0x15c] sm:$0xf]
    %v6431 = vld [vmem:[%s5 + $0x160] sm:$0xf]
    %v6432 = vld [vmem:[%s5 + $0x164] sm:$0xf]
    %v6433 = vld [vmem:[%s5 + $0x168] sm:$0xf]
    %v6434 = vld [vmem:[%s5 + $0x16c] sm:$0xf]
    %v6435 = vld [vmem:[%s5 + $0x170] sm:$0xf]
    %v6436 = vld [vmem:[%s5 + $0x174] sm:$0xf]
    %v6437 = vld [vmem:[%s5 + $0x178] sm:$0xf]
    %v6438 = vld [vmem:[%s5 + $0x17c] sm:$0xf]
    %v6439 = vld [vmem:[%s5 + $0x180] sm:$0xf]
    %v6440 = vld [vmem:[%s5 + $0x184] sm:$0xf]
    %v6441 = vld [vmem:[%s5 + $0x188] sm:$0xf]
    %v6442 = vld [vmem:[%s5 + $0x18c] sm:$0xf]
    %v6443 = vld [vmem:[%s5 + $0x190] sm:$0xf]
    %v6444 = vld [vmem:[%s5 + $0x194] sm:$0xf]
    %v6445 = vld [vmem:[%s5 + $0x198] sm:$0xf]
    %v6446 = vld [vmem:[%s5 + $0x19c] sm:$0xf]
    %v6447 = vld [vmem:[%s5 + $0x1a0] sm:$0xf]
    %v6448 = vld [vmem:[%s5 + $0x1a4] sm:$0xf]
    %v6449 = vld [vmem:[%s5 + $0x1a8] sm:$0xf]
    %v6450 = vld [vmem:[%s5 + $0x1ac] sm:$0xf]
    %v6451 = vld [vmem:[%s5 + $0x1b0] sm:$0xf]
    %v6452 = vld [vmem:[%s5 + $0x1b4] sm:$0xf]
    %v6453 = vld [vmem:[%s5 + $0x1b8] sm:$0xf]
    %v6454 = vld [vmem:[%s5 + $0x1bc] sm:$0xf]
    %v6455 = vld [vmem:[%s5 + $0x1c0] sm:$0xf]
    %v6456 = vld [vmem:[%s5 + $0x1c4] sm:$0xf]
    %v6457 = vld [vmem:[%s5 + $0x1c8] sm:$0xf]
    %v6458 = vld [vmem:[%s5 + $0x1cc] sm:$0xf]
    %v6459 = vld [vmem:[%s5 + $0x1d0] sm:$0xf]
    %v6460 = vld [vmem:[%s5 + $0x1d4] sm:$0xf]
    %v6461 = vld [vmem:[%s5 + $0x1d8] sm:$0xf]
    %v6462 = vld [vmem:[%s5 + $0x1dc] sm:$0xf]
    %v6463 = vld [vmem:[%s5 + $0x1e0] sm:$0xf]
    %v6464 = vld [vmem:[%s5 + $0x1e4] sm:$0xf]
    %v6465 = vld [vmem:[%s5 + $0x1e8] sm:$0xf]
    %v6466 = vld [vmem:[%s5 + $0x1ec] sm:$0xf]
    %v6467 = vld [vmem:[%s5 + $0x1f0] sm:$0xf]
    %v6468 = vld [vmem:[%s5 + $0x1f4] sm:$0xf]
    %v6469 = vld [vmem:[%s5 + $0x1f8] sm:$0xf]
    %v6470 = vld [vmem:[%s5 + $0x1fc] sm:$0xf]
    %v6471 = vld [vmem:[%s5 + $0x200] sm:$0xf]
    %v6472 = vld [vmem:[%s5 + $0x204] sm:$0xf]
    %v6473 = vld [vmem:[%s5 + $0x208] sm:$0xf]
    %v6474 = vld [vmem:[%s5 + $0x20c] sm:$0xf]
    %v6475 = vld [vmem:[%s5 + $0x210] sm:$0xf]
    %v6476 = vld [vmem:[%s5 + $0x214] sm:$0xf]
    %v6477 = vld [vmem:[%s5 + $0x218] sm:$0xf]
    %v6478 = vld [vmem:[%s5 + $0x21c] sm:$0xf]
    %v6479 = vld [vmem:[%s5 + $0x220] sm:$0xf]
    %v6480 = vld [vmem:[%s5 + $0x224] sm:$0xf]
    %v6481 = vld [vmem:[%s5 + $0x228] sm:$0xf]
    %v6482 = vld [vmem:[%s5 + $0x22c] sm:$0xf]
    %v6483 = vld [vmem:[%s5 + $0x230] sm:$0xf]
    %v6484 = vld [vmem:[%s5 + $0x234] sm:$0xf]
    %v6485 = vld [vmem:[%s5 + $0x238] sm:$0xf]
    %v6486 = vld [vmem:[%s5 + $0x23c] sm:$0xf]
    %v6487 = vld [vmem:[%s5 + $0x240] sm:$0xf]
    %v6488 = vld [vmem:[%s5 + $0x244] sm:$0xf]
    %v6489 = vld [vmem:[%s5 + $0x248] sm:$0xf]
    %v6490 = vld [vmem:[%s5 + $0x24c] sm:$0xf]
    %v6491 = vld [vmem:[%s5 + $0x250] sm:$0xf]
    %v6492 = vld [vmem:[%s5 + $0x254] sm:$0xf]
    %v6493 = vld [vmem:[%s5 + $0x258] sm:$0xf]
    %v6494 = vld [vmem:[%s5 + $0x25c] sm:$0xf]
    %v6495 = vld [vmem:[%s5 + $0x260] sm:$0xf]
    %v6496 = vld [vmem:[%s5 + $0x264] sm:$0xf]
    %v6497 = vld [vmem:[%s5 + $0x268] sm:$0xf]
    %v6498 = vld [vmem:[%s5 + $0x26c] sm:$0xf]
    %v6499 = vld [vmem:[%s5 + $0x270] sm:$0xf]
    %v6500 = vld [vmem:[%s5 + $0x274] sm:$0xf]
    %v6501 = vld [vmem:[%s5 + $0x278] sm:$0xf]
    %v6502 = vld [vmem:[%s5 + $0x27c] sm:$0xf]
    %v6503 = vld [vmem:[%s5 + $0x280] sm:$0xf]
    %v6504 = vld [vmem:[%s5 + $0x284] sm:$0xf]
    %v6505 = vld [vmem:[%s5 + $0x288] sm:$0xf]
    %v6506 = vld [vmem:[%s5 + $0x28c] sm:$0xf]
    %v6507 = vld [vmem:[%s5 + $0x290] sm:$0xf]
    %v6508 = vld [vmem:[%s5 + $0x294] sm:$0xf]
    %v6509 = vld [vmem:[%s5 + $0x298] sm:$0xf]
    %v6510 = vld [vmem:[%s5 + $0x29c] sm:$0xf]
    %v6511 = vld [vmem:[%s5 + $0x2a0] sm:$0xf]
    %v6512 = vld [vmem:[%s5 + $0x2a4] sm:$0xf]
    %v6513 = vld [vmem:[%s5 + $0x2a8] sm:$0xf]
    %v6514 = vld [vmem:[%s5 + $0x2ac] sm:$0xf]
    %v6515 = vld [vmem:[%s5 + $0x2b0] sm:$0xf]
    %v6516 = vld [vmem:[%s5 + $0x2b4] sm:$0xf]
    %v6517 = vld [vmem:[%s5 + $0x2b8] sm:$0xf]
    %v6518 = vld [vmem:[%s5 + $0x2bc] sm:$0xf]
    %v6519 = vld [vmem:[%s5 + $0x2c0] sm:$0xf]
    %v6520 = vld [vmem:[%s5 + $0x2c4] sm:$0xf]
    %v6521 = vld [vmem:[%s5 + $0x2c8] sm:$0xf]
    %v6522 = vld [vmem:[%s5 + $0x2cc] sm:$0xf]
    %v6523 = vld [vmem:[%s5 + $0x2d0] sm:$0xf]
    %v6524 = vld [vmem:[%s5 + $0x2d4] sm:$0xf]
    %v6525 = vld [vmem:[%s5 + $0x2d8] sm:$0xf]
    %v6526 = vld [vmem:[%s5 + $0x2dc] sm:$0xf]
    %v6527 = vld [vmem:[%s5 + $0x2e0] sm:$0xf]
    %v6528 = vld [vmem:[%s5 + $0x2e4] sm:$0xf]
    %v6529 = vld [vmem:[%s5 + $0x2e8] sm:$0xf]
    %v6530 = vld [vmem:[%s5 + $0x2ec] sm:$0xf]
    %v6531 = vld [vmem:[%s5 + $0x2f0] sm:$0xf]
    %v6532 = vld [vmem:[%s5 + $0x2f4] sm:$0xf]
    %v6533 = vld [vmem:[%s5 + $0x2f8] sm:$0xf]
    %v6534 = vld [vmem:[%s5 + $0x2fc] sm:$0xf]
    %v6535 = vld [vmem:[%s5 + $0x300] sm:$0xf]
    %v6536 = vld [vmem:[%s5 + $0x304] sm:$0xf]
    %v6537 = vld [vmem:[%s5 + $0x308] sm:$0xf]
    %v6538 = vld [vmem:[%s5 + $0x30c] sm:$0xf]
    %v6539 = vld [vmem:[%s5 + $0x310] sm:$0xf]
    %v6540 = vld [vmem:[%s5 + $0x314] sm:$0xf]
    %v6541 = vld [vmem:[%s5 + $0x318] sm:$0xf]
    %v6542 = vld [vmem:[%s5 + $0x31c] sm:$0xf]
    %v6543 = vld [vmem:[%s5 + $0x320] sm:$0xf]
    %v6544 = vld [vmem:[%s5 + $0x324] sm:$0xf]
    %v6545 = vld [vmem:[%s5 + $0x328] sm:$0xf]
    %v6546 = vld [vmem:[%s5 + $0x32c] sm:$0xf]
    %v6547 = vld [vmem:[%s5 + $0x330] sm:$0xf]
    %v6548 = vld [vmem:[%s5 + $0x334] sm:$0xf]
    %v6549 = vld [vmem:[%s5 + $0x338] sm:$0xf]
    %v6550 = vld [vmem:[%s5 + $0x33c] sm:$0xf]
    %v6551 = vld [vmem:[%s5 + $0x340] sm:$0xf]
    %v6552 = vld [vmem:[%s5 + $0x344] sm:$0xf]
    %v6553 = vld [vmem:[%s5 + $0x348] sm:$0xf]
    %v6554 = vld [vmem:[%s5 + $0x34c] sm:$0xf]
    %v6555 = vld [vmem:[%s5 + $0x350] sm:$0xf]
    %v6556 = vld [vmem:[%s5 + $0x354] sm:$0xf]
    %v6557 = vld [vmem:[%s5 + $0x358] sm:$0xf]
    %v6558 = vld [vmem:[%s5 + $0x35c] sm:$0xf]
    %v6559 = vld [vmem:[%s5 + $0x360] sm:$0xf]
    %v6560 = vld [vmem:[%s5 + $0x364] sm:$0xf]
    %v6561 = vld [vmem:[%s5 + $0x368] sm:$0xf]
    %v6562 = vld [vmem:[%s5 + $0x36c] sm:$0xf]
    %v6563 = vld [vmem:[%s5 + $0x370] sm:$0xf]
    %v6564 = vld [vmem:[%s5 + $0x374] sm:$0xf]
    %v6565 = vld [vmem:[%s5 + $0x378] sm:$0xf]
    %v6566 = vld [vmem:[%s5 + $0x37c] sm:$0xf]
    %v6567 = vld [vmem:[%s5 + $0x380] sm:$0xf]
    %v6568 = vld [vmem:[%s5 + $0x384] sm:$0xf]
    %v6569 = vld [vmem:[%s5 + $0x388] sm:$0xf]
    %v6570 = vld [vmem:[%s5 + $0x38c] sm:$0xf]
    %v6571 = vld [vmem:[%s5 + $0x390] sm:$0xf]
    %v6572 = vld [vmem:[%s5 + $0x394] sm:$0xf]
    %v6573 = vld [vmem:[%s5 + $0x398] sm:$0xf]
    %v6574 = vld [vmem:[%s5 + $0x39c] sm:$0xf]
    %v6575 = vld [vmem:[%s5 + $0x3a0] sm:$0xf]
    %v6576 = vld [vmem:[%s5 + $0x3a4] sm:$0xf]
    %v6577 = vld [vmem:[%s5 + $0x3a8] sm:$0xf]
    %v6578 = vld [vmem:[%s5 + $0x3ac] sm:$0xf]
    %v6579 = vld [vmem:[%s5 + $0x3b0] sm:$0xf]
    %v6580 = vld [vmem:[%s5 + $0x3b4] sm:$0xf]
    %v6581 = vld [vmem:[%s5 + $0x3b8] sm:$0xf]
    %v6582 = vld [vmem:[%s5 + $0x3bc] sm:$0xf]
    %v6583 = vld [vmem:[%s5 + $0x3c0] sm:$0xf]
    %v6584 = vld [vmem:[%s5 + $0x3c4] sm:$0xf]
    %v6585 = vld [vmem:[%s5 + $0x3c8] sm:$0xf]
    %v6586 = vld [vmem:[%s5 + $0x3cc] sm:$0xf]
    %v6587 = vld [vmem:[%s5 + $0x3d0] sm:$0xf]
    %v6588 = vld [vmem:[%s5 + $0x3d4] sm:$0xf]
    %v6589 = vld [vmem:[%s5 + $0x3d8] sm:$0xf]
    %v6590 = vld [vmem:[%s5 + $0x3dc] sm:$0xf]
    %v6591 = vld [vmem:[%s5 + $0x3e0] sm:$0xf]
    %v6592 = vld [vmem:[%s5 + $0x3e4] sm:$0xf]
    %v6593 = vld [vmem:[%s5 + $0x3e8] sm:$0xf]
    %v6594 = vld [vmem:[%s5 + $0x3ec] sm:$0xf]
    %v6595 = vld [vmem:[%s5 + $0x3f0] sm:$0xf]
    %v6596 = vld [vmem:[%s5 + $0x3f4] sm:$0xf]
    %v6597 = vld [vmem:[%s5 + $0x3f8] sm:$0xf]
    %v6598 = vld [vmem:[%s5 + $0x3fc] sm:$0xf]
    %v6599 = vld [vmem:[%s5 + $0x400] sm:$0xf]
    %v6600 = vld [vmem:[%s5 + $0x404] sm:$0xf]
    %v6601 = vld [vmem:[%s5 + $0x408] sm:$0xf]
    %v6602 = vld [vmem:[%s5 + $0x40c] sm:$0xf]
    %v6603 = vld [vmem:[%s5 + $0x410] sm:$0xf]
    %v6604 = vld [vmem:[%s5 + $0x414] sm:$0xf]
    %v6605 = vld [vmem:[%s5 + $0x418] sm:$0xf]
    %v6606 = vld [vmem:[%s5 + $0x41c] sm:$0xf]
    %v6607 = vld [vmem:[%s5 + $0x420] sm:$0xf]
    %v6608 = vld [vmem:[%s5 + $0x424] sm:$0xf]
    %v6609 = vld [vmem:[%s5 + $0x428] sm:$0xf]
    %v6610 = vld [vmem:[%s5 + $0x42c] sm:$0xf]
    %v6611 = vld [vmem:[%s5 + $0x430] sm:$0xf]
    %v6612 = vld [vmem:[%s5 + $0x434] sm:$0xf]
    %v6613 = vld [vmem:[%s5 + $0x438] sm:$0xf]
    %v6614 = vld [vmem:[%s5 + $0x43c] sm:$0xf]
    %v6615 = vld [vmem:[%s5 + $0x440] sm:$0xf]
    %v6616 = vld [vmem:[%s5 + $0x444] sm:$0xf]
    %v6617 = vld [vmem:[%s5 + $0x448] sm:$0xf]
    %v6618 = vld [vmem:[%s5 + $0x44c] sm:$0xf]
    %v6619 = vld [vmem:[%s5 + $0x450] sm:$0xf]
    %v6620 = vld [vmem:[%s5 + $0x454] sm:$0xf]
    %v6621 = vld [vmem:[%s5 + $0x458] sm:$0xf]
    %v6622 = vld [vmem:[%s5 + $0x45c] sm:$0xf]
    %v6623 = vld [vmem:[%s5 + $0x460] sm:$0xf]
    %v6624 = vld [vmem:[%s5 + $0x464] sm:$0xf]
    %v6625 = vld [vmem:[%s5 + $0x468] sm:$0xf]
    %v6626 = vld [vmem:[%s5 + $0x46c] sm:$0xf]
    %v6627 = vld [vmem:[%s5 + $0x470] sm:$0xf]
    %v6628 = vld [vmem:[%s5 + $0x474] sm:$0xf]
    %v6629 = vld [vmem:[%s5 + $0x478] sm:$0xf]
    %v6630 = vld [vmem:[%s5 + $0x47c] sm:$0xf]
    %v6631 = vld [vmem:[%s5 + $0x480] sm:$0xf]
    %v6632 = vld [vmem:[%s5 + $0x484] sm:$0xf]
    %v6633 = vld [vmem:[%s5 + $0x488] sm:$0xf]
    %v6634 = vld [vmem:[%s5 + $0x48c] sm:$0xf]
    %v6635 = vld [vmem:[%s5 + $0x490] sm:$0xf]
    %v6636 = vld [vmem:[%s5 + $0x494] sm:$0xf]
    %v6637 = vld [vmem:[%s5 + $0x498] sm:$0xf]
    %v6638 = vld [vmem:[%s5 + $0x49c] sm:$0xf]
    %v6639 = vld [vmem:[%s5 + $0x4a0] sm:$0xf]
    %v6640 = vld [vmem:[%s5 + $0x4a4] sm:$0xf]
    %v6641 = vld [vmem:[%s5 + $0x4a8] sm:$0xf]
    %v6642 = vld [vmem:[%s5 + $0x4ac] sm:$0xf]
    %v6643 = vld [vmem:[%s5 + $0x4b0] sm:$0xf]
    %v6644 = vld [vmem:[%s5 + $0x4b4] sm:$0xf]
    %v6645 = vld [vmem:[%s5 + $0x4b8] sm:$0xf]
    %v6646 = vld [vmem:[%s5 + $0x4bc] sm:$0xf]
    %v6647 = vld [vmem:[%s5 + $0x4c0] sm:$0xf]
    %v6648 = vld [vmem:[%s5 + $0x4c4] sm:$0xf]
    %v6649 = vld [vmem:[%s5 + $0x4c8] sm:$0xf]
    %v6650 = vld [vmem:[%s5 + $0x4cc] sm:$0xf]
    %v6651 = vld [vmem:[%s5 + $0x4d0] sm:$0xf]
    %v6652 = vld [vmem:[%s5 + $0x4d4] sm:$0xf]
    %v6653 = vld [vmem:[%s5 + $0x4d8] sm:$0xf]
    %v6654 = vld [vmem:[%s5 + $0x4dc] sm:$0xf]
    %v6655 = vld [vmem:[%s5 + $0x4e0] sm:$0xf]
    %v6656 = vld [vmem:[%s5 + $0x4e4] sm:$0xf]
    %v6657 = vld [vmem:[%s5 + $0x4e8] sm:$0xf]
    %v6658 = vld [vmem:[%s5 + $0x4ec] sm:$0xf]
    %v6659 = vld [vmem:[%s5 + $0x4f0] sm:$0xf]
    %v6660 = vld [vmem:[%s5 + $0x4f4] sm:$0xf]
    %v6661 = vld [vmem:[%s5 + $0x4f8] sm:$0xf]
    %v6662 = vld [vmem:[%s5 + $0x4fc] sm:$0xf]
    %v6663 = vld [vmem:[%s5 + $0x500] sm:$0xf]
    %v6664 = vld [vmem:[%s5 + $0x504] sm:$0xf]
    %v6665 = vld [vmem:[%s5 + $0x508] sm:$0xf]
    %v6666 = vld [vmem:[%s5 + $0x50c] sm:$0xf]
    %v6667 = vld [vmem:[%s5 + $0x510] sm:$0xf]
    %v6668 = vld [vmem:[%s5 + $0x514] sm:$0xf]
    %v6669 = vld [vmem:[%s5 + $0x518] sm:$0xf]
    %v6670 = vld [vmem:[%s5 + $0x51c] sm:$0xf]
    %v6671 = vld [vmem:[%s5 + $0x520] sm:$0xf]
    %v6672 = vld [vmem:[%s5 + $0x524] sm:$0xf]
    %v6673 = vld [vmem:[%s5 + $0x528] sm:$0xf]
    %v6674 = vld [vmem:[%s5 + $0x52c] sm:$0xf]
    %v6675 = vld [vmem:[%s5 + $0x530] sm:$0xf]
    %v6676 = vld [vmem:[%s5 + $0x534] sm:$0xf]
    %v6677 = vld [vmem:[%s5 + $0x538] sm:$0xf]
    %v6678 = vld [vmem:[%s5 + $0x53c] sm:$0xf]
    %v6679 = vld [vmem:[%s5 + $0x540] sm:$0xf]
    %v6680 = vld [vmem:[%s5 + $0x544] sm:$0xf]
    %v6681 = vld [vmem:[%s5 + $0x548] sm:$0xf]
    %v6682 = vld [vmem:[%s5 + $0x54c] sm:$0xf]
    %v6683 = vld [vmem:[%s5 + $0x550] sm:$0xf]
    %v6684 = vld [vmem:[%s5 + $0x554] sm:$0xf]
    %v6685 = vld [vmem:[%s5 + $0x558] sm:$0xf]
    %v6686 = vld [vmem:[%s5 + $0x55c] sm:$0xf]
    %v6687 = vld [vmem:[%s5 + $0x560] sm:$0xf]
    %v6688 = vld [vmem:[%s5 + $0x564] sm:$0xf]
    %v6689 = vld [vmem:[%s5 + $0x568] sm:$0xf]
    %v6690 = vld [vmem:[%s5 + $0x56c] sm:$0xf]
    %v6691 = vld [vmem:[%s5 + $0x570] sm:$0xf]
    %v6692 = vld [vmem:[%s5 + $0x574] sm:$0xf]
    %v6693 = vld [vmem:[%s5 + $0x578] sm:$0xf]
    %v6694 = vld [vmem:[%s5 + $0x57c] sm:$0xf]
    %v6695 = vld [vmem:[%s5 + $0x580] sm:$0xf]
    %v6696 = vld [vmem:[%s5 + $0x584] sm:$0xf]
    %v6697 = vld [vmem:[%s5 + $0x588] sm:$0xf]
    %v6698 = vld [vmem:[%s5 + $0x58c] sm:$0xf]
    %v6699 = vld [vmem:[%s5 + $0x590] sm:$0xf]
    %v6700 = vld [vmem:[%s5 + $0x594] sm:$0xf]
    %v6701 = vld [vmem:[%s5 + $0x598] sm:$0xf]
    %v6702 = vld [vmem:[%s5 + $0x59c] sm:$0xf]
    %v6703 = vld [vmem:[%s5 + $0x5a0] sm:$0xf]
    %v6704 = vld [vmem:[%s5 + $0x5a4] sm:$0xf]
    %v6705 = vld [vmem:[%s5 + $0x5a8] sm:$0xf]
    %v6706 = vld [vmem:[%s5 + $0x5ac] sm:$0xf]
    %v6707 = vld [vmem:[%s5 + $0x5b0] sm:$0xf]
    %v6708 = vld [vmem:[%s5 + $0x5b4] sm:$0xf]
    %v6709 = vld [vmem:[%s5 + $0x5b8] sm:$0xf]
    %v6710 = vld [vmem:[%s5 + $0x5bc] sm:$0xf]
    %v6711 = vld [vmem:[%s5 + $0x5c0] sm:$0xf]
    %v6712 = vld [vmem:[%s5 + $0x5c4] sm:$0xf]
    %v6713 = vld [vmem:[%s5 + $0x5c8] sm:$0xf]
    %v6714 = vld [vmem:[%s5 + $0x5cc] sm:$0xf]
    %v6715 = vld [vmem:[%s5 + $0x5d0] sm:$0xf]
    %v6716 = vld [vmem:[%s5 + $0x5d4] sm:$0xf]
    %v6717 = vld [vmem:[%s5 + $0x5d8] sm:$0xf]
    %v6718 = vld [vmem:[%s5 + $0x5dc] sm:$0xf]
    %v6719 = vld [vmem:[%s5 + $0x5e0] sm:$0xf]
    %v6720 = vld [vmem:[%s5 + $0x5e4] sm:$0xf]
    %v6721 = vld [vmem:[%s5 + $0x5e8] sm:$0xf]
    %v6722 = vld [vmem:[%s5 + $0x5ec] sm:$0xf]
    %v6723 = vld [vmem:[%s5 + $0x5f0] sm:$0xf]
    %v6724 = vld [vmem:[%s5 + $0x5f4] sm:$0xf]
    %v6725 = vld [vmem:[%s5 + $0x5f8] sm:$0xf]
    %v6726 = vld [vmem:[%s5 + $0x5fc] sm:$0xf]
    %v6727 = vld [vmem:[%s5 + $0x600] sm:$0xf]
    %v6728 = vld [vmem:[%s5 + $0x604] sm:$0xf]
    %v6729 = vld [vmem:[%s5 + $0x608] sm:$0xf]
    %v6730 = vld [vmem:[%s5 + $0x60c] sm:$0xf]
    %v6731 = vld [vmem:[%s5 + $0x610] sm:$0xf]
    %v6732 = vld [vmem:[%s5 + $0x614] sm:$0xf]
    %v6733 = vld [vmem:[%s5 + $0x618] sm:$0xf]
    %v6734 = vld [vmem:[%s5 + $0x61c] sm:$0xf]
    %v6735 = vld [vmem:[%s5 + $0x620] sm:$0xf]
    %v6736 = vld [vmem:[%s5 + $0x624] sm:$0xf]
    %v6737 = vld [vmem:[%s5 + $0x628] sm:$0xf]
    %v6738 = vld [vmem:[%s5 + $0x62c] sm:$0xf]
    %v6739 = vld [vmem:[%s5 + $0x630] sm:$0xf]
    %v6740 = vld [vmem:[%s5 + $0x634] sm:$0xf]
    %v6741 = vld [vmem:[%s5 + $0x638] sm:$0xf]
    %v6742 = vld [vmem:[%s5 + $0x63c] sm:$0xf]
    %v6743 = vld [vmem:[%s5 + $0x640] sm:$0xf]
    %v6744 = vld [vmem:[%s5 + $0x644] sm:$0xf]
    %v6745 = vld [vmem:[%s5 + $0x648] sm:$0xf]
    %v6746 = vld [vmem:[%s5 + $0x64c] sm:$0xf]
    %v6747 = vld [vmem:[%s5 + $0x650] sm:$0xf]
    %v6748 = vld [vmem:[%s5 + $0x654] sm:$0xf]
    %v6749 = vld [vmem:[%s5 + $0x658] sm:$0xf]
    %v6750 = vld [vmem:[%s5 + $0x65c] sm:$0xf]
    %v6751 = vld [vmem:[%s5 + $0x660] sm:$0xf]
    %v6752 = vld [vmem:[%s5 + $0x664] sm:$0xf]
    %v6753 = vld [vmem:[%s5 + $0x668] sm:$0xf]
    %v6754 = vld [vmem:[%s5 + $0x66c] sm:$0xf]
    %v6755 = vld [vmem:[%s5 + $0x670] sm:$0xf]
    %v6756 = vld [vmem:[%s5 + $0x674] sm:$0xf]
    %v6757 = vld [vmem:[%s5 + $0x678] sm:$0xf]
    %v6758 = vld [vmem:[%s5 + $0x67c] sm:$0xf]
    %v6759 = vld [vmem:[%s5 + $0x680] sm:$0xf]
    %v6760 = vld [vmem:[%s5 + $0x684] sm:$0xf]
    %v6761 = vld [vmem:[%s5 + $0x688] sm:$0xf]
    %v6762 = vld [vmem:[%s5 + $0x68c] sm:$0xf]
    %v6763 = vld [vmem:[%s5 + $0x690] sm:$0xf]
    %v6764 = vld [vmem:[%s5 + $0x694] sm:$0xf]
    %v6765 = vld [vmem:[%s5 + $0x698] sm:$0xf]
    %v6766 = vld [vmem:[%s5 + $0x69c] sm:$0xf]
    %v6767 = vld [vmem:[%s5 + $0x6a0] sm:$0xf]
    %v6768 = vld [vmem:[%s5 + $0x6a4] sm:$0xf]
    %v6769 = vld [vmem:[%s5 + $0x6a8] sm:$0xf]
    %v6770 = vld [vmem:[%s5 + $0x6ac] sm:$0xf]
    %v6771 = vld [vmem:[%s5 + $0x6b0] sm:$0xf]
    %v6772 = vld [vmem:[%s5 + $0x6b4] sm:$0xf]
    %v6773 = vld [vmem:[%s5 + $0x6b8] sm:$0xf]
    %v6774 = vld [vmem:[%s5 + $0x6bc] sm:$0xf]
    %v6775 = vld [vmem:[%s5 + $0x6c0] sm:$0xf]
    %v6776 = vld [vmem:[%s5 + $0x6c4] sm:$0xf]
    %v6777 = vld [vmem:[%s5 + $0x6c8] sm:$0xf]
    %v6778 = vld [vmem:[%s5 + $0x6cc] sm:$0xf]
    %v6779 = vld [vmem:[%s5 + $0x6d0] sm:$0xf]
    %v6780 = vld [vmem:[%s5 + $0x6d4] sm:$0xf]
    %v6781 = vld [vmem:[%s5 + $0x6d8] sm:$0xf]
    %v6782 = vld [vmem:[%s5 + $0x6dc] sm:$0xf]
    %v6783 = vld [vmem:[%s5 + $0x6e0] sm:$0xf]
    %v6784 = vld [vmem:[%s5 + $0x6e4] sm:$0xf]
    %v6785 = vld [vmem:[%s5 + $0x6e8] sm:$0xf]
    %v6786 = vld [vmem:[%s5 + $0x6ec] sm:$0xf]
    %v6787 = vld [vmem:[%s5 + $0x6f0] sm:$0xf]
    %v6788 = vld [vmem:[%s5 + $0x6f4] sm:$0xf]
    %v6789 = vld [vmem:[%s5 + $0x6f8] sm:$0xf]
    %v6790 = vld [vmem:[%s5 + $0x6fc] sm:$0xf]
    %v6791 = vld [vmem:[%s5 + $0x700] sm:$0xf]
    %v6792 = vld [vmem:[%s5 + $0x704] sm:$0xf]
    %v6793 = vld [vmem:[%s5 + $0x708] sm:$0xf]
    %v6794 = vld [vmem:[%s5 + $0x70c] sm:$0xf]
    %v6795 = vld [vmem:[%s5 + $0x710] sm:$0xf]
    %v6796 = vld [vmem:[%s5 + $0x714] sm:$0xf]
    %v6797 = vld [vmem:[%s5 + $0x718] sm:$0xf]
    %v6798 = vld [vmem:[%s5 + $0x71c] sm:$0xf]
    %v6799 = vld [vmem:[%s5 + $0x720] sm:$0xf]
    %v6800 = vld [vmem:[%s5 + $0x724] sm:$0xf]
    %v6801 = vld [vmem:[%s5 + $0x728] sm:$0xf]
    %v6802 = vld [vmem:[%s5 + $0x72c] sm:$0xf]
    %v6803 = vld [vmem:[%s5 + $0x730] sm:$0xf]
    %v6804 = vld [vmem:[%s5 + $0x734] sm:$0xf]
    %v6805 = vld [vmem:[%s5 + $0x738] sm:$0xf]
    %v6806 = vld [vmem:[%s5 + $0x73c] sm:$0xf]
    %v6807 = vld [vmem:[%s5 + $0x740] sm:$0xf]
    %v6808 = vld [vmem:[%s5 + $0x744] sm:$0xf]
    %v6809 = vld [vmem:[%s5 + $0x748] sm:$0xf]
    %v6810 = vld [vmem:[%s5 + $0x74c] sm:$0xf]
    %v6811 = vld [vmem:[%s5 + $0x750] sm:$0xf]
    %v6812 = vld [vmem:[%s5 + $0x754] sm:$0xf]
    %v6813 = vld [vmem:[%s5 + $0x758] sm:$0xf]
    %v6814 = vld [vmem:[%s5 + $0x75c] sm:$0xf]
    %v6815 = vld [vmem:[%s5 + $0x760] sm:$0xf]
    %v6816 = vld [vmem:[%s5 + $0x764] sm:$0xf]
    %v6817 = vld [vmem:[%s5 + $0x768] sm:$0xf]
    %v6818 = vld [vmem:[%s5 + $0x76c] sm:$0xf]
    %v6819 = vld [vmem:[%s5 + $0x770] sm:$0xf]
    %v6820 = vld [vmem:[%s5 + $0x774] sm:$0xf]
    %v6821 = vld [vmem:[%s5 + $0x778] sm:$0xf]
    %v6822 = vld [vmem:[%s5 + $0x77c] sm:$0xf]
    %v6823 = vld [vmem:[%s5 + $0x780] sm:$0xf]
    %v6824 = vld [vmem:[%s5 + $0x784] sm:$0xf]
    %v6825 = vld [vmem:[%s5 + $0x788] sm:$0xf]
    %v6826 = vld [vmem:[%s5 + $0x78c] sm:$0xf]
    %v6827 = vld [vmem:[%s5 + $0x790] sm:$0xf]
    %v6828 = vld [vmem:[%s5 + $0x794] sm:$0xf]
    %v6829 = vld [vmem:[%s5 + $0x798] sm:$0xf]
    %v6830 = vld [vmem:[%s5 + $0x79c] sm:$0xf]
    %v6831 = vld [vmem:[%s5 + $0x7a0] sm:$0xf]
    %v6832 = vld [vmem:[%s5 + $0x7a4] sm:$0xf]
    %v6833 = vld [vmem:[%s5 + $0x7a8] sm:$0xf]
    %v6834 = vld [vmem:[%s5 + $0x7ac] sm:$0xf]
    %v6835 = vld [vmem:[%s5 + $0x7b0] sm:$0xf]
    %v6836 = vld [vmem:[%s5 + $0x7b4] sm:$0xf]
    %v6837 = vld [vmem:[%s5 + $0x7b8] sm:$0xf]
    %v6838 = vld [vmem:[%s5 + $0x7bc] sm:$0xf]
    %v6839 = vld [vmem:[%s5 + $0x7c0] sm:$0xf]
    %v6840 = vld [vmem:[%s5 + $0x7c4] sm:$0xf]
    %v6841 = vld [vmem:[%s5 + $0x7c8] sm:$0xf]
    %v6842 = vld [vmem:[%s5 + $0x7cc] sm:$0xf]
    %v6843 = vld [vmem:[%s5 + $0x7d0] sm:$0xf]
    %v6844 = vld [vmem:[%s5 + $0x7d4] sm:$0xf]
    %v6845 = vld [vmem:[%s5 + $0x7d8] sm:$0xf]
    %v6846 = vld [vmem:[%s5 + $0x7dc] sm:$0xf]
    %v6847 = vld [vmem:[%s5 + $0x7e0] sm:$0xf]
    %v6848 = vld [vmem:[%s5 + $0x7e4] sm:$0xf]
    %v6849 = vld [vmem:[%s5 + $0x7e8] sm:$0xf]
    %v6850 = vld [vmem:[%s5 + $0x7ec] sm:$0xf]
    %v6851 = vld [vmem:[%s5 + $0x7f0] sm:$0xf]
    %v6852 = vld [vmem:[%s5 + $0x7f4] sm:$0xf]
    %v6853 = vld [vmem:[%s5 + $0x7f8] sm:$0xf]
    %v6854 = vld [vmem:[%s5 + $0x7fc] sm:$0xf]
    %v6855 = vld [vmem:[%s6] sm:$0x1]
    %v6856 = vld [vmem:[%s6 + $0x1] sm:$0x1]
    %v6857 = vld [vmem:[%s6 + $0x2] sm:$0x1]
    %v6858 = vlaneseq
    %v6859 = vshrl.u32 %v6858, 7
    %v6860 = vsub.s32 0, %v6859
    %v6861 = vrot.slane %v6855, %v6860
    %v7374 = vunpack.c.l.b16 %v6343
    %v7375 = vunpack.c.l.b16 %v6344
    %v7376 = vunpack.c.l.b16 %v6345
    %v7377 = vunpack.c.l.b16 %v6346
    %v7378 = vunpack.c.l.b16 %v6347
    %v7379 = vunpack.c.l.b16 %v6348
    %v7380 = vunpack.c.l.b16 %v6349
    %v7381 = vunpack.c.l.b16 %v6350
    %v7382 = vunpack.c.l.b16 %v6351
    %v7383 = vunpack.c.l.b16 %v6352
    %v7384 = vunpack.c.l.b16 %v6353
    %v7385 = vunpack.c.l.b16 %v6354
    %v7386 = vunpack.c.l.b16 %v6355
    %v7387 = vunpack.c.l.b16 %v6356
    %v7388 = vunpack.c.l.b16 %v6357
    %v7389 = vunpack.c.l.b16 %v6358
    %v7390 = vunpack.c.l.b16 %v6359
    %v7391 = vunpack.c.l.b16 %v6360
    %v7392 = vunpack.c.l.b16 %v6361
    %v7393 = vunpack.c.l.b16 %v6362
    %v7394 = vunpack.c.l.b16 %v6363
    %v7395 = vunpack.c.l.b16 %v6364
    %v7396 = vunpack.c.l.b16 %v6365
    %v7397 = vunpack.c.l.b16 %v6366
    %v7398 = vunpack.c.l.b16 %v6367
    %v7399 = vunpack.c.l.b16 %v6368
    %v7400 = vunpack.c.l.b16 %v6369
    %v7401 = vunpack.c.l.b16 %v6370
    %v7402 = vunpack.c.l.b16 %v6371
    %v7403 = vunpack.c.l.b16 %v6372
    %v7404 = vunpack.c.l.b16 %v6373
    %v7405 = vunpack.c.l.b16 %v6374
    %v7406 = vunpack.c.l.b16 %v6375
    %v7407 = vunpack.c.l.b16 %v6376
    %v7408 = vunpack.c.l.b16 %v6377
    %v7409 = vunpack.c.l.b16 %v6378
    %v7410 = vunpack.c.l.b16 %v6379
    %v7411 = vunpack.c.l.b16 %v6380
    %v7412 = vunpack.c.l.b16 %v6381
    %v7413 = vunpack.c.l.b16 %v6382
    %v7414 = vunpack.c.l.b16 %v6383
    %v7415 = vunpack.c.l.b16 %v6384
    %v7416 = vunpack.c.l.b16 %v6385
    %v7417 = vunpack.c.l.b16 %v6386
    %v7418 = vunpack.c.l.b16 %v6387
    %v7419 = vunpack.c.l.b16 %v6388
    %v7420 = vunpack.c.l.b16 %v6389
    %v7421 = vunpack.c.l.b16 %v6390
    %v7422 = vunpack.c.l.b16 %v6391
    %v7423 = vunpack.c.l.b16 %v6392
    %v7424 = vunpack.c.l.b16 %v6393
    %v7425 = vunpack.c.l.b16 %v6394
    %v7426 = vunpack.c.l.b16 %v6395
    %v7427 = vunpack.c.l.b16 %v6396
    %v7428 = vunpack.c.l.b16 %v6397
    %v7429 = vunpack.c.l.b16 %v6398
    %v7430 = vunpack.c.l.b16 %v6399
    %v7431 = vunpack.c.l.b16 %v6400
    %v7432 = vunpack.c.l.b16 %v6401
    %v7433 = vunpack.c.l.b16 %v6402
    %v7434 = vunpack.c.l.b16 %v6403
    %v7435 = vunpack.c.l.b16 %v6404
    %v7436 = vunpack.c.l.b16 %v6405
    %v7437 = vunpack.c.l.b16 %v6406
    %v7438 = vunpack.c.l.b16 %v6407
    %v7439 = vunpack.c.l.b16 %v6408
    %v7440 = vunpack.c.l.b16 %v6409
    %v7441 = vunpack.c.l.b16 %v6410
    %v7442 = vunpack.c.l.b16 %v6411
    %v7443 = vunpack.c.l.b16 %v6412
    %v7444 = vunpack.c.l.b16 %v6413
    %v7445 = vunpack.c.l.b16 %v6414
    %v7446 = vunpack.c.l.b16 %v6415
    %v7447 = vunpack.c.l.b16 %v6416
    %v7448 = vunpack.c.l.b16 %v6417
    %v7449 = vunpack.c.l.b16 %v6418
    %v7450 = vunpack.c.l.b16 %v6419
    %v7451 = vunpack.c.l.b16 %v6420
    %v7452 = vunpack.c.l.b16 %v6421
    %v7453 = vunpack.c.l.b16 %v6422
    %v7454 = vunpack.c.l.b16 %v6423
    %v7455 = vunpack.c.l.b16 %v6424
    %v7456 = vunpack.c.l.b16 %v6425
    %v7457 = vunpack.c.l.b16 %v6426
    %v7458 = vunpack.c.l.b16 %v6427
    %v7459 = vunpack.c.l.b16 %v6428
    %v7460 = vunpack.c.l.b16 %v6429
    %v7461 = vunpack.c.l.b16 %v6430
    %v7462 = vunpack.c.l.b16 %v6431
    %v7463 = vunpack.c.l.b16 %v6432
    %v7464 = vunpack.c.l.b16 %v6433
    %v7465 = vunpack.c.l.b16 %v6434
    %v7466 = vunpack.c.l.b16 %v6435
    %v7467 = vunpack.c.l.b16 %v6436
    %v7468 = vunpack.c.l.b16 %v6437
    %v7469 = vunpack.c.l.b16 %v6438
    %v7470 = vunpack.c.l.b16 %v6439
    %v7471 = vunpack.c.l.b16 %v6440
    %v7472 = vunpack.c.l.b16 %v6441
    %v7473 = vunpack.c.l.b16 %v6442
    %v7474 = vunpack.c.l.b16 %v6443
    %v7475 = vunpack.c.l.b16 %v6444
    %v7476 = vunpack.c.l.b16 %v6445
    %v7477 = vunpack.c.l.b16 %v6446
    %v7478 = vunpack.c.l.b16 %v6447
    %v7479 = vunpack.c.l.b16 %v6448
    %v7480 = vunpack.c.l.b16 %v6449
    %v7481 = vunpack.c.l.b16 %v6450
    %v7482 = vunpack.c.l.b16 %v6451
    %v7483 = vunpack.c.l.b16 %v6452
    %v7484 = vunpack.c.l.b16 %v6453
    %v7485 = vunpack.c.l.b16 %v6454
    %v7486 = vunpack.c.l.b16 %v6455
    %v7487 = vunpack.c.l.b16 %v6456
    %v7488 = vunpack.c.l.b16 %v6457
    %v7489 = vunpack.c.l.b16 %v6458
    %v7490 = vunpack.c.l.b16 %v6459
    %v7491 = vunpack.c.l.b16 %v6460
    %v7492 = vunpack.c.l.b16 %v6461
    %v7493 = vunpack.c.l.b16 %v6462
    %v7494 = vunpack.c.l.b16 %v6463
    %v7495 = vunpack.c.l.b16 %v6464
    %v7496 = vunpack.c.l.b16 %v6465
    %v7497 = vunpack.c.l.b16 %v6466
    %v7498 = vunpack.c.l.b16 %v6467
    %v7499 = vunpack.c.l.b16 %v6468
    %v7500 = vunpack.c.l.b16 %v6469
    %v7501 = vunpack.c.l.b16 %v6470
    %v7502 = vunpack.c.l.b16 %v6471
    %v7503 = vunpack.c.l.b16 %v6472
    %v7504 = vunpack.c.l.b16 %v6473
    %v7505 = vunpack.c.l.b16 %v6474
    %v7506 = vunpack.c.l.b16 %v6475
    %v7507 = vunpack.c.l.b16 %v6476
    %v7508 = vunpack.c.l.b16 %v6477
    %v7509 = vunpack.c.l.b16 %v6478
    %v7510 = vunpack.c.l.b16 %v6479
    %v7511 = vunpack.c.l.b16 %v6480
    %v7512 = vunpack.c.l.b16 %v6481
    %v7513 = vunpack.c.l.b16 %v6482
    %v7514 = vunpack.c.l.b16 %v6483
    %v7515 = vunpack.c.l.b16 %v6484
    %v7516 = vunpack.c.l.b16 %v6485
    %v7517 = vunpack.c.l.b16 %v6486
    %v7518 = vunpack.c.l.b16 %v6487
    %v7519 = vunpack.c.l.b16 %v6488
    %v7520 = vunpack.c.l.b16 %v6489
    %v7521 = vunpack.c.l.b16 %v6490
    %v7522 = vunpack.c.l.b16 %v6491
    %v7523 = vunpack.c.l.b16 %v6492
    %v7524 = vunpack.c.l.b16 %v6493
    %v7525 = vunpack.c.l.b16 %v6494
    %v7526 = vunpack.c.l.b16 %v6495
    %v7527 = vunpack.c.l.b16 %v6496
    %v7528 = vunpack.c.l.b16 %v6497
    %v7529 = vunpack.c.l.b16 %v6498
    %v7530 = vunpack.c.l.b16 %v6499
    %v7531 = vunpack.c.l.b16 %v6500
    %v7532 = vunpack.c.l.b16 %v6501
    %v7533 = vunpack.c.l.b16 %v6502
    %v7534 = vunpack.c.l.b16 %v6503
    %v7535 = vunpack.c.l.b16 %v6504
    %v7536 = vunpack.c.l.b16 %v6505
    %v7537 = vunpack.c.l.b16 %v6506
    %v7538 = vunpack.c.l.b16 %v6507
    %v7539 = vunpack.c.l.b16 %v6508
    %v7540 = vunpack.c.l.b16 %v6509
    %v7541 = vunpack.c.l.b16 %v6510
    %v7542 = vunpack.c.l.b16 %v6511
    %v7543 = vunpack.c.l.b16 %v6512
    %v7544 = vunpack.c.l.b16 %v6513
    %v7545 = vunpack.c.l.b16 %v6514
    %v7546 = vunpack.c.l.b16 %v6515
    %v7547 = vunpack.c.l.b16 %v6516
    %v7548 = vunpack.c.l.b16 %v6517
    %v7549 = vunpack.c.l.b16 %v6518
    %v7550 = vunpack.c.l.b16 %v6519
    %v7551 = vunpack.c.l.b16 %v6520
    %v7552 = vunpack.c.l.b16 %v6521
    %v7553 = vunpack.c.l.b16 %v6522
    %v7554 = vunpack.c.l.b16 %v6523
    %v7555 = vunpack.c.l.b16 %v6524
    %v7556 = vunpack.c.l.b16 %v6525
    %v7557 = vunpack.c.l.b16 %v6526
    %v7558 = vunpack.c.l.b16 %v6527
    %v7559 = vunpack.c.l.b16 %v6528
    %v7560 = vunpack.c.l.b16 %v6529
    %v7561 = vunpack.c.l.b16 %v6530
    %v7562 = vunpack.c.l.b16 %v6531
    %v7563 = vunpack.c.l.b16 %v6532
    %v7564 = vunpack.c.l.b16 %v6533
    %v7565 = vunpack.c.l.b16 %v6534
    %v7566 = vunpack.c.l.b16 %v6535
    %v7567 = vunpack.c.l.b16 %v6536
    %v7568 = vunpack.c.l.b16 %v6537
    %v7569 = vunpack.c.l.b16 %v6538
    %v7570 = vunpack.c.l.b16 %v6539
    %v7571 = vunpack.c.l.b16 %v6540
    %v7572 = vunpack.c.l.b16 %v6541
    %v7573 = vunpack.c.l.b16 %v6542
    %v7574 = vunpack.c.l.b16 %v6543
    %v7575 = vunpack.c.l.b16 %v6544
    %v7576 = vunpack.c.l.b16 %v6545
    %v7577 = vunpack.c.l.b16 %v6546
    %v7578 = vunpack.c.l.b16 %v6547
    %v7579 = vunpack.c.l.b16 %v6548
    %v7580 = vunpack.c.l.b16 %v6549
    %v7581 = vunpack.c.l.b16 %v6550
    %v7582 = vunpack.c.l.b16 %v6551
    %v7583 = vunpack.c.l.b16 %v6552
    %v7584 = vunpack.c.l.b16 %v6553
    %v7585 = vunpack.c.l.b16 %v6554
    %v7586 = vunpack.c.l.b16 %v6555
    %v7587 = vunpack.c.l.b16 %v6556
    %v7588 = vunpack.c.l.b16 %v6557
    %v7589 = vunpack.c.l.b16 %v6558
    %v7590 = vunpack.c.l.b16 %v6559
    %v7591 = vunpack.c.l.b16 %v6560
    %v7592 = vunpack.c.l.b16 %v6561
    %v7593 = vunpack.c.l.b16 %v6562
    %v7594 = vunpack.c.l.b16 %v6563
    %v7595 = vunpack.c.l.b16 %v6564
    %v7596 = vunpack.c.l.b16 %v6565
    %v7597 = vunpack.c.l.b16 %v6566
    %v7598 = vunpack.c.l.b16 %v6567
    %v7599 = vunpack.c.l.b16 %v6568
    %v7600 = vunpack.c.l.b16 %v6569
    %v7601 = vunpack.c.l.b16 %v6570
    %v7602 = vunpack.c.l.b16 %v6571
    %v7603 = vunpack.c.l.b16 %v6572
    %v7604 = vunpack.c.l.b16 %v6573
    %v7605 = vunpack.c.l.b16 %v6574
    %v7606 = vunpack.c.l.b16 %v6575
    %v7607 = vunpack.c.l.b16 %v6576
    %v7608 = vunpack.c.l.b16 %v6577
    %v7609 = vunpack.c.l.b16 %v6578
    %v7610 = vunpack.c.l.b16 %v6579
    %v7611 = vunpack.c.l.b16 %v6580
    %v7612 = vunpack.c.l.b16 %v6581
    %v7613 = vunpack.c.l.b16 %v6582
    %v7614 = vunpack.c.l.b16 %v6583
    %v7615 = vunpack.c.l.b16 %v6584
    %v7616 = vunpack.c.l.b16 %v6585
    %v7617 = vunpack.c.l.b16 %v6586
    %v7618 = vunpack.c.l.b16 %v6587
    %v7619 = vunpack.c.l.b16 %v6588
    %v7620 = vunpack.c.l.b16 %v6589
    %v7621 = vunpack.c.l.b16 %v6590
    %v7622 = vunpack.c.l.b16 %v6591
    %v7623 = vunpack.c.l.b16 %v6592
    %v7624 = vunpack.c.l.b16 %v6593
    %v7625 = vunpack.c.l.b16 %v6594
    %v7626 = vunpack.c.l.b16 %v6595
    %v7627 = vunpack.c.l.b16 %v6596
    %v7628 = vunpack.c.l.b16 %v6597
    %v7629 = vunpack.c.l.b16 %v6598
    %v7630 = vunpack.c.l.b16 %v6599
    %v7631 = vunpack.c.l.b16 %v6600
    %v7632 = vunpack.c.l.b16 %v6601
    %v7633 = vunpack.c.l.b16 %v6602
    %v7634 = vunpack.c.l.b16 %v6603
    %v7635 = vunpack.c.l.b16 %v6604
    %v7636 = vunpack.c.l.b16 %v6605
    %v7637 = vunpack.c.l.b16 %v6606
    %v7638 = vunpack.c.l.b16 %v6607
    %v7639 = vunpack.c.l.b16 %v6608
    %v7640 = vunpack.c.l.b16 %v6609
    %v7641 = vunpack.c.l.b16 %v6610
    %v7642 = vunpack.c.l.b16 %v6611
    %v7643 = vunpack.c.l.b16 %v6612
    %v7644 = vunpack.c.l.b16 %v6613
    %v7645 = vunpack.c.l.b16 %v6614
    %v7646 = vunpack.c.l.b16 %v6615
    %v7647 = vunpack.c.l.b16 %v6616
    %v7648 = vunpack.c.l.b16 %v6617
    %v7649 = vunpack.c.l.b16 %v6618
    %v7650 = vunpack.c.l.b16 %v6619
    %v7651 = vunpack.c.l.b16 %v6620
    %v7652 = vunpack.c.l.b16 %v6621
    %v7653 = vunpack.c.l.b16 %v6622
    %v7654 = vunpack.c.l.b16 %v6623
    %v7655 = vunpack.c.l.b16 %v6624
    %v7656 = vunpack.c.l.b16 %v6625
    %v7657 = vunpack.c.l.b16 %v6626
    %v7658 = vunpack.c.l.b16 %v6627
    %v7659 = vunpack.c.l.b16 %v6628
    %v7660 = vunpack.c.l.b16 %v6629
    %v7661 = vunpack.c.l.b16 %v6630
    %v7662 = vunpack.c.l.b16 %v6631
    %v7663 = vunpack.c.l.b16 %v6632
    %v7664 = vunpack.c.l.b16 %v6633
    %v7665 = vunpack.c.l.b16 %v6634
    %v7666 = vunpack.c.l.b16 %v6635
    %v7667 = vunpack.c.l.b16 %v6636
    %v7668 = vunpack.c.l.b16 %v6637
    %v7669 = vunpack.c.l.b16 %v6638
    %v7670 = vunpack.c.l.b16 %v6639
    %v7671 = vunpack.c.l.b16 %v6640
    %v7672 = vunpack.c.l.b16 %v6641
    %v7673 = vunpack.c.l.b16 %v6642
    %v7674 = vunpack.c.l.b16 %v6643
    %v7675 = vunpack.c.l.b16 %v6644
    %v7676 = vunpack.c.l.b16 %v6645
    %v7677 = vunpack.c.l.b16 %v6646
    %v7678 = vunpack.c.l.b16 %v6647
    %v7679 = vunpack.c.l.b16 %v6648
    %v7680 = vunpack.c.l.b16 %v6649
    %v7681 = vunpack.c.l.b16 %v6650
    %v7682 = vunpack.c.l.b16 %v6651
    %v7683 = vunpack.c.l.b16 %v6652
    %v7684 = vunpack.c.l.b16 %v6653
    %v7685 = vunpack.c.l.b16 %v6654
    %v7686 = vunpack.c.l.b16 %v6655
    %v7687 = vunpack.c.l.b16 %v6656
    %v7688 = vunpack.c.l.b16 %v6657
    %v7689 = vunpack.c.l.b16 %v6658
    %v7690 = vunpack.c.l.b16 %v6659
    %v7691 = vunpack.c.l.b16 %v6660
    %v7692 = vunpack.c.l.b16 %v6661
    %v7693 = vunpack.c.l.b16 %v6662
    %v7694 = vunpack.c.l.b16 %v6663
    %v7695 = vunpack.c.l.b16 %v6664
    %v7696 = vunpack.c.l.b16 %v6665
    %v7697 = vunpack.c.l.b16 %v6666
    %v7698 = vunpack.c.l.b16 %v6667
    %v7699 = vunpack.c.l.b16 %v6668
    %v7700 = vunpack.c.l.b16 %v6669
    %v7701 = vunpack.c.l.b16 %v6670
    %v7702 = vunpack.c.l.b16 %v6671
    %v7703 = vunpack.c.l.b16 %v6672
    %v7704 = vunpack.c.l.b16 %v6673
    %v7705 = vunpack.c.l.b16 %v6674
    %v7706 = vunpack.c.l.b16 %v6675
    %v7707 = vunpack.c.l.b16 %v6676
    %v7708 = vunpack.c.l.b16 %v6677
    %v7709 = vunpack.c.l.b16 %v6678
    %v7710 = vunpack.c.l.b16 %v6679
    %v7711 = vunpack.c.l.b16 %v6680
    %v7712 = vunpack.c.l.b16 %v6681
    %v7713 = vunpack.c.l.b16 %v6682
    %v7714 = vunpack.c.l.b16 %v6683
    %v7715 = vunpack.c.l.b16 %v6684
    %v7716 = vunpack.c.l.b16 %v6685
    %v7717 = vunpack.c.l.b16 %v6686
    %v7718 = vunpack.c.l.b16 %v6687
    %v7719 = vunpack.c.l.b16 %v6688
    %v7720 = vunpack.c.l.b16 %v6689
    %v7721 = vunpack.c.l.b16 %v6690
    %v7722 = vunpack.c.l.b16 %v6691
    %v7723 = vunpack.c.l.b16 %v6692
    %v7724 = vunpack.c.l.b16 %v6693
    %v7725 = vunpack.c.l.b16 %v6694
    %v7726 = vunpack.c.l.b16 %v6695
    %v7727 = vunpack.c.l.b16 %v6696
    %v7728 = vunpack.c.l.b16 %v6697
    %v7729 = vunpack.c.l.b16 %v6698
    %v7730 = vunpack.c.l.b16 %v6699
    %v7731 = vunpack.c.l.b16 %v6700
    %v7732 = vunpack.c.l.b16 %v6701
    %v7733 = vunpack.c.l.b16 %v6702
    %v7734 = vunpack.c.l.b16 %v6703
    %v7735 = vunpack.c.l.b16 %v6704
    %v7736 = vunpack.c.l.b16 %v6705
    %v7737 = vunpack.c.l.b16 %v6706
    %v7738 = vunpack.c.l.b16 %v6707
    %v7739 = vunpack.c.l.b16 %v6708
    %v7740 = vunpack.c.l.b16 %v6709
    %v7741 = vunpack.c.l.b16 %v6710
    %v7742 = vunpack.c.l.b16 %v6711
    %v7743 = vunpack.c.l.b16 %v6712
    %v7744 = vunpack.c.l.b16 %v6713
    %v7745 = vunpack.c.l.b16 %v6714
    %v7746 = vunpack.c.l.b16 %v6715
    %v7747 = vunpack.c.l.b16 %v6716
    %v7748 = vunpack.c.l.b16 %v6717
    %v7749 = vunpack.c.l.b16 %v6718
    %v7750 = vunpack.c.l.b16 %v6719
    %v7751 = vunpack.c.l.b16 %v6720
    %v7752 = vunpack.c.l.b16 %v6721
    %v7753 = vunpack.c.l.b16 %v6722
    %v7754 = vunpack.c.l.b16 %v6723
    %v7755 = vunpack.c.l.b16 %v6724
    %v7756 = vunpack.c.l.b16 %v6725
    %v7757 = vunpack.c.l.b16 %v6726
    %v7758 = vunpack.c.l.b16 %v6727
    %v7759 = vunpack.c.l.b16 %v6728
    %v7760 = vunpack.c.l.b16 %v6729
    %v7761 = vunpack.c.l.b16 %v6730
    %v7762 = vunpack.c.l.b16 %v6731
    %v7763 = vunpack.c.l.b16 %v6732
    %v7764 = vunpack.c.l.b16 %v6733
    %v7765 = vunpack.c.l.b16 %v6734
    %v7766 = vunpack.c.l.b16 %v6735
    %v7767 = vunpack.c.l.b16 %v6736
    %v7768 = vunpack.c.l.b16 %v6737
    %v7769 = vunpack.c.l.b16 %v6738
    %v7770 = vunpack.c.l.b16 %v6739
    %v7771 = vunpack.c.l.b16 %v6740
    %v7772 = vunpack.c.l.b16 %v6741
    %v7773 = vunpack.c.l.b16 %v6742
    %v7774 = vunpack.c.l.b16 %v6743
    %v7775 = vunpack.c.l.b16 %v6744
    %v7776 = vunpack.c.l.b16 %v6745
    %v7777 = vunpack.c.l.b16 %v6746
    %v7778 = vunpack.c.l.b16 %v6747
    %v7779 = vunpack.c.l.b16 %v6748
    %v7780 = vunpack.c.l.b16 %v6749
    %v7781 = vunpack.c.l.b16 %v6750
    %v7782 = vunpack.c.l.b16 %v6751
    %v7783 = vunpack.c.l.b16 %v6752
    %v7784 = vunpack.c.l.b16 %v6753
    %v7785 = vunpack.c.l.b16 %v6754
    %v7786 = vunpack.c.l.b16 %v6755
    %v7787 = vunpack.c.l.b16 %v6756
    %v7788 = vunpack.c.l.b16 %v6757
    %v7789 = vunpack.c.l.b16 %v6758
    %v7790 = vunpack.c.l.b16 %v6759
    %v7791 = vunpack.c.l.b16 %v6760
    %v7792 = vunpack.c.l.b16 %v6761
    %v7793 = vunpack.c.l.b16 %v6762
    %v7794 = vunpack.c.l.b16 %v6763
    %v7795 = vunpack.c.l.b16 %v6764
    %v7796 = vunpack.c.l.b16 %v6765
    %v7797 = vunpack.c.l.b16 %v6766
    %v7798 = vunpack.c.l.b16 %v6767
    %v7799 = vunpack.c.l.b16 %v6768
    %v7800 = vunpack.c.l.b16 %v6769
    %v7801 = vunpack.c.l.b16 %v6770
    %v7802 = vunpack.c.l.b16 %v6771
    %v7803 = vunpack.c.l.b16 %v6772
    %v7804 = vunpack.c.l.b16 %v6773
    %v7805 = vunpack.c.l.b16 %v6774
    %v7806 = vunpack.c.l.b16 %v6775
    %v7807 = vunpack.c.l.b16 %v6776
    %v7808 = vunpack.c.l.b16 %v6777
    %v7809 = vunpack.c.l.b16 %v6778
    %v7810 = vunpack.c.l.b16 %v6779
    %v7811 = vunpack.c.l.b16 %v6780
    %v7812 = vunpack.c.l.b16 %v6781
    %v7813 = vunpack.c.l.b16 %v6782
    %v7814 = vunpack.c.l.b16 %v6783
    %v7815 = vunpack.c.l.b16 %v6784
    %v7816 = vunpack.c.l.b16 %v6785
    %v7817 = vunpack.c.l.b16 %v6786
    %v7818 = vunpack.c.l.b16 %v6787
    %v7819 = vunpack.c.l.b16 %v6788
    %v7820 = vunpack.c.l.b16 %v6789
    %v7821 = vunpack.c.l.b16 %v6790
    %v7822 = vunpack.c.l.b16 %v6791
    %v7823 = vunpack.c.l.b16 %v6792
    %v7824 = vunpack.c.l.b16 %v6793
    %v7825 = vunpack.c.l.b16 %v6794
    %v7826 = vunpack.c.l.b16 %v6795
    %v7827 = vunpack.c.l.b16 %v6796
    %v7828 = vunpack.c.l.b16 %v6797
    %v7829 = vunpack.c.l.b16 %v6798
    %v7830 = vunpack.c.l.b16 %v6799
    %v7831 = vunpack.c.l.b16 %v6800
    %v7832 = vunpack.c.l.b16 %v6801
    %v7833 = vunpack.c.l.b16 %v6802
    %v7834 = vunpack.c.l.b16 %v6803
    %v7835 = vunpack.c.l.b16 %v6804
    %v7836 = vunpack.c.l.b16 %v6805
    %v7837 = vunpack.c.l.b16 %v6806
    %v7838 = vunpack.c.l.b16 %v6807
    %v7839 = vunpack.c.l.b16 %v6808
    %v7840 = vunpack.c.l.b16 %v6809
    %v7841 = vunpack.c.l.b16 %v6810
    %v7842 = vunpack.c.l.b16 %v6811
    %v7843 = vunpack.c.l.b16 %v6812
    %v7844 = vunpack.c.l.b16 %v6813
    %v7845 = vunpack.c.l.b16 %v6814
    %v7846 = vunpack.c.l.b16 %v6815
    %v7847 = vunpack.c.l.b16 %v6816
    %v7848 = vunpack.c.l.b16 %v6817
    %v7849 = vunpack.c.l.b16 %v6818
    %v7850 = vunpack.c.l.b16 %v6819
    %v7851 = vunpack.c.l.b16 %v6820
    %v7852 = vunpack.c.l.b16 %v6821
    %v7853 = vunpack.c.l.b16 %v6822
    %v7854 = vunpack.c.l.b16 %v6823
    %v7855 = vunpack.c.l.b16 %v6824
    %v7856 = vunpack.c.l.b16 %v6825
    %v7857 = vunpack.c.l.b16 %v6826
    %v7858 = vunpack.c.l.b16 %v6827
    %v7859 = vunpack.c.l.b16 %v6828
    %v7860 = vunpack.c.l.b16 %v6829
    %v7861 = vunpack.c.l.b16 %v6830
    %v7862 = vunpack.c.l.b16 %v6831
    %v7863 = vunpack.c.l.b16 %v6832
    %v7864 = vunpack.c.l.b16 %v6833
    %v7865 = vunpack.c.l.b16 %v6834
    %v7866 = vunpack.c.l.b16 %v6835
    %v7867 = vunpack.c.l.b16 %v6836
    %v7868 = vunpack.c.l.b16 %v6837
    %v7869 = vunpack.c.l.b16 %v6838
    %v7870 = vunpack.c.l.b16 %v6839
    %v7871 = vunpack.c.l.b16 %v6840
    %v7872 = vunpack.c.l.b16 %v6841
    %v7873 = vunpack.c.l.b16 %v6842
    %v7874 = vunpack.c.l.b16 %v6843
    %v7875 = vunpack.c.l.b16 %v6844
    %v7876 = vunpack.c.l.b16 %v6845
    %v7877 = vunpack.c.l.b16 %v6846
    %v7878 = vunpack.c.l.b16 %v6847
    %v7879 = vunpack.c.l.b16 %v6848
    %v7880 = vunpack.c.l.b16 %v6849
    %v7881 = vunpack.c.l.b16 %v6850
    %v7882 = vunpack.c.l.b16 %v6851
    %v7883 = vunpack.c.l.b16 %v6852
    %v7884 = vunpack.c.l.b16 %v6853
    %v7885 = vunpack.c.l.b16 %v6854
    %v7886 = vpack.c.b16 %v7375, %v7374
    %v7887 = vpack.c.b16 %v7377, %v7376
    %v7888 = vpack.c.b16 %v7379, %v7378
    %v7889 = vpack.c.b16 %v7381, %v7380
    %v7890 = vpack.c.b16 %v7383, %v7382
    %v7891 = vpack.c.b16 %v7385, %v7384
    %v7892 = vpack.c.b16 %v7387, %v7386
    %v7893 = vpack.c.b16 %v7389, %v7388
    %v7894 = vpack.c.b16 %v7391, %v7390
    %v7895 = vpack.c.b16 %v7393, %v7392
    %v7896 = vpack.c.b16 %v7395, %v7394
    %v7897 = vpack.c.b16 %v7397, %v7396
    %v7898 = vpack.c.b16 %v7399, %v7398
    %v7899 = vpack.c.b16 %v7401, %v7400
    %v7900 = vpack.c.b16 %v7403, %v7402
    %v7901 = vpack.c.b16 %v7405, %v7404
    %v7902 = vpack.c.b16 %v7407, %v7406
    %v7903 = vpack.c.b16 %v7409, %v7408
    %v7904 = vpack.c.b16 %v7411, %v7410
    %v7905 = vpack.c.b16 %v7413, %v7412
    %v7906 = vpack.c.b16 %v7415, %v7414
    %v7907 = vpack.c.b16 %v7417, %v7416
    %v7908 = vpack.c.b16 %v7419, %v7418
    %v7909 = vpack.c.b16 %v7421, %v7420
    %v7910 = vpack.c.b16 %v7423, %v7422
    %v7911 = vpack.c.b16 %v7425, %v7424
    %v7912 = vpack.c.b16 %v7427, %v7426
    %v7913 = vpack.c.b16 %v7429, %v7428
    %v7914 = vpack.c.b16 %v7431, %v7430
    %v7915 = vpack.c.b16 %v7433, %v7432
    %v7916 = vpack.c.b16 %v7435, %v7434
    %v7917 = vpack.c.b16 %v7437, %v7436
    %v7918 = vpack.c.b16 %v7439, %v7438
    %v7919 = vpack.c.b16 %v7441, %v7440
    %v7920 = vpack.c.b16 %v7443, %v7442
    %v7921 = vpack.c.b16 %v7445, %v7444
    %v7922 = vpack.c.b16 %v7447, %v7446
    %v7923 = vpack.c.b16 %v7449, %v7448
    %v7924 = vpack.c.b16 %v7451, %v7450
    %v7925 = vpack.c.b16 %v7453, %v7452
    %v7926 = vpack.c.b16 %v7455, %v7454
    %v7927 = vpack.c.b16 %v7457, %v7456
    %v7928 = vpack.c.b16 %v7459, %v7458
    %v7929 = vpack.c.b16 %v7461, %v7460
    %v7930 = vpack.c.b16 %v7463, %v7462
    %v7931 = vpack.c.b16 %v7465, %v7464
    %v7932 = vpack.c.b16 %v7467, %v7466
    %v7933 = vpack.c.b16 %v7469, %v7468
    %v7934 = vpack.c.b16 %v7471, %v7470
    %v7935 = vpack.c.b16 %v7473, %v7472
    %v7936 = vpack.c.b16 %v7475, %v7474
    %v7937 = vpack.c.b16 %v7477, %v7476
    %v7938 = vpack.c.b16 %v7479, %v7478
    %v7939 = vpack.c.b16 %v7481, %v7480
    %v7940 = vpack.c.b16 %v7483, %v7482
    %v7941 = vpack.c.b16 %v7485, %v7484
    %v7942 = vpack.c.b16 %v7487, %v7486
    %v7943 = vpack.c.b16 %v7489, %v7488
    %v7944 = vpack.c.b16 %v7491, %v7490
    %v7945 = vpack.c.b16 %v7493, %v7492
    %v7946 = vpack.c.b16 %v7495, %v7494
    %v7947 = vpack.c.b16 %v7497, %v7496
    %v7948 = vpack.c.b16 %v7499, %v7498
    %v7949 = vpack.c.b16 %v7501, %v7500
    %v7950 = vpack.c.b16 %v7503, %v7502
    %v7951 = vpack.c.b16 %v7505, %v7504
    %v7952 = vpack.c.b16 %v7507, %v7506
    %v7953 = vpack.c.b16 %v7509, %v7508
    %v7954 = vpack.c.b16 %v7511, %v7510
    %v7955 = vpack.c.b16 %v7513, %v7512
    %v7956 = vpack.c.b16 %v7515, %v7514
    %v7957 = vpack.c.b16 %v7517, %v7516
    %v7958 = vpack.c.b16 %v7519, %v7518
    %v7959 = vpack.c.b16 %v7521, %v7520
    %v7960 = vpack.c.b16 %v7523, %v7522
    %v7961 = vpack.c.b16 %v7525, %v7524
    %v7962 = vpack.c.b16 %v7527, %v7526
    %v7963 = vpack.c.b16 %v7529, %v7528
    %v7964 = vpack.c.b16 %v7531, %v7530
    %v7965 = vpack.c.b16 %v7533, %v7532
    %v7966 = vpack.c.b16 %v7535, %v7534
    %v7967 = vpack.c.b16 %v7537, %v7536
    %v7968 = vpack.c.b16 %v7539, %v7538
    %v7969 = vpack.c.b16 %v7541, %v7540
    %v7970 = vpack.c.b16 %v7543, %v7542
    %v7971 = vpack.c.b16 %v7545, %v7544
    %v7972 = vpack.c.b16 %v7547, %v7546
    %v7973 = vpack.c.b16 %v7549, %v7548
    %v7974 = vpack.c.b16 %v7551, %v7550
    %v7975 = vpack.c.b16 %v7553, %v7552
    %v7976 = vpack.c.b16 %v7555, %v7554
    %v7977 = vpack.c.b16 %v7557, %v7556
    %v7978 = vpack.c.b16 %v7559, %v7558
    %v7979 = vpack.c.b16 %v7561, %v7560
    %v7980 = vpack.c.b16 %v7563, %v7562
    %v7981 = vpack.c.b16 %v7565, %v7564
    %v7982 = vpack.c.b16 %v7567, %v7566
    %v7983 = vpack.c.b16 %v7569, %v7568
    %v7984 = vpack.c.b16 %v7571, %v7570
    %v7985 = vpack.c.b16 %v7573, %v7572
    %v7986 = vpack.c.b16 %v7575, %v7574
    %v7987 = vpack.c.b16 %v7577, %v7576
    %v7988 = vpack.c.b16 %v7579, %v7578
    %v7989 = vpack.c.b16 %v7581, %v7580
    %v7990 = vpack.c.b16 %v7583, %v7582
    %v7991 = vpack.c.b16 %v7585, %v7584
    %v7992 = vpack.c.b16 %v7587, %v7586
    %v7993 = vpack.c.b16 %v7589, %v7588
    %v7994 = vpack.c.b16 %v7591, %v7590
    %v7995 = vpack.c.b16 %v7593, %v7592
    %v7996 = vpack.c.b16 %v7595, %v7594
    %v7997 = vpack.c.b16 %v7597, %v7596
    %v7998 = vpack.c.b16 %v7599, %v7598
    %v7999 = vpack.c.b16 %v7601, %v7600
    %v8000 = vpack.c.b16 %v7603, %v7602
    %v8001 = vpack.c.b16 %v7605, %v7604
    %v8002 = vpack.c.b16 %v7607, %v7606
    %v8003 = vpack.c.b16 %v7609, %v7608
    %v8004 = vpack.c.b16 %v7611, %v7610
    %v8005 = vpack.c.b16 %v7613, %v7612
    %v8006 = vpack.c.b16 %v7615, %v7614
    %v8007 = vpack.c.b16 %v7617, %v7616
    %v8008 = vpack.c.b16 %v7619, %v7618
    %v8009 = vpack.c.b16 %v7621, %v7620
    %v8010 = vpack.c.b16 %v7623, %v7622
    %v8011 = vpack.c.b16 %v7625, %v7624
    %v8012 = vpack.c.b16 %v7627, %v7626
    %v8013 = vpack.c.b16 %v7629, %v7628
    %v8014 = vpack.c.b16 %v7631, %v7630
    %v8015 = vpack.c.b16 %v7633, %v7632
    %v8016 = vpack.c.b16 %v7635, %v7634
    %v8017 = vpack.c.b16 %v7637, %v7636
    %v8018 = vpack.c.b16 %v7639, %v7638
    %v8019 = vpack.c.b16 %v7641, %v7640
    %v8020 = vpack.c.b16 %v7643, %v7642
    %v8021 = vpack.c.b16 %v7645, %v7644
    %v8022 = vpack.c.b16 %v7647, %v7646
    %v8023 = vpack.c.b16 %v7649, %v7648
    %v8024 = vpack.c.b16 %v7651, %v7650
    %v8025 = vpack.c.b16 %v7653, %v7652
    %v8026 = vpack.c.b16 %v7655, %v7654
    %v8027 = vpack.c.b16 %v7657, %v7656
    %v8028 = vpack.c.b16 %v7659, %v7658
    %v8029 = vpack.c.b16 %v7661, %v7660
    %v8030 = vpack.c.b16 %v7663, %v7662
    %v8031 = vpack.c.b16 %v7665, %v7664
    %v8032 = vpack.c.b16 %v7667, %v7666
    %v8033 = vpack.c.b16 %v7669, %v7668
    %v8034 = vpack.c.b16 %v7671, %v7670
    %v8035 = vpack.c.b16 %v7673, %v7672
    %v8036 = vpack.c.b16 %v7675, %v7674
    %v8037 = vpack.c.b16 %v7677, %v7676
    %v8038 = vpack.c.b16 %v7679, %v7678
    %v8039 = vpack.c.b16 %v7681, %v7680
    %v8040 = vpack.c.b16 %v7683, %v7682
    %v8041 = vpack.c.b16 %v7685, %v7684
    %v8042 = vpack.c.b16 %v7687, %v7686
    %v8043 = vpack.c.b16 %v7689, %v7688
    %v8044 = vpack.c.b16 %v7691, %v7690
    %v8045 = vpack.c.b16 %v7693, %v7692
    %v8046 = vpack.c.b16 %v7695, %v7694
    %v8047 = vpack.c.b16 %v7697, %v7696
    %v8048 = vpack.c.b16 %v7699, %v7698
    %v8049 = vpack.c.b16 %v7701, %v7700
    %v8050 = vpack.c.b16 %v7703, %v7702
    %v8051 = vpack.c.b16 %v7705, %v7704
    %v8052 = vpack.c.b16 %v7707, %v7706
    %v8053 = vpack.c.b16 %v7709, %v7708
    %v8054 = vpack.c.b16 %v7711, %v7710
    %v8055 = vpack.c.b16 %v7713, %v7712
    %v8056 = vpack.c.b16 %v7715, %v7714
    %v8057 = vpack.c.b16 %v7717, %v7716
    %v8058 = vpack.c.b16 %v7719, %v7718
    %v8059 = vpack.c.b16 %v7721, %v7720
    %v8060 = vpack.c.b16 %v7723, %v7722
    %v8061 = vpack.c.b16 %v7725, %v7724
    %v8062 = vpack.c.b16 %v7727, %v7726
    %v8063 = vpack.c.b16 %v7729, %v7728
    %v8064 = vpack.c.b16 %v7731, %v7730
    %v8065 = vpack.c.b16 %v7733, %v7732
    %v8066 = vpack.c.b16 %v7735, %v7734
    %v8067 = vpack.c.b16 %v7737, %v7736
    %v8068 = vpack.c.b16 %v7739, %v7738
    %v8069 = vpack.c.b16 %v7741, %v7740
    %v8070 = vpack.c.b16 %v7743, %v7742
    %v8071 = vpack.c.b16 %v7745, %v7744
    %v8072 = vpack.c.b16 %v7747, %v7746
    %v8073 = vpack.c.b16 %v7749, %v7748
    %v8074 = vpack.c.b16 %v7751, %v7750
    %v8075 = vpack.c.b16 %v7753, %v7752
    %v8076 = vpack.c.b16 %v7755, %v7754
    %v8077 = vpack.c.b16 %v7757, %v7756
    %v8078 = vpack.c.b16 %v7759, %v7758
    %v8079 = vpack.c.b16 %v7761, %v7760
    %v8080 = vpack.c.b16 %v7763, %v7762
    %v8081 = vpack.c.b16 %v7765, %v7764
    %v8082 = vpack.c.b16 %v7767, %v7766
    %v8083 = vpack.c.b16 %v7769, %v7768
    %v8084 = vpack.c.b16 %v7771, %v7770
    %v8085 = vpack.c.b16 %v7773, %v7772
    %v8086 = vpack.c.b16 %v7775, %v7774
    %v8087 = vpack.c.b16 %v7777, %v7776
    %v8088 = vpack.c.b16 %v7779, %v7778
    %v8089 = vpack.c.b16 %v7781, %v7780
    %v8090 = vpack.c.b16 %v7783, %v7782
    %v8091 = vpack.c.b16 %v7785, %v7784
    %v8092 = vpack.c.b16 %v7787, %v7786
    %v8093 = vpack.c.b16 %v7789, %v7788
    %v8094 = vpack.c.b16 %v7791, %v7790
    %v8095 = vpack.c.b16 %v7793, %v7792
    %v8096 = vpack.c.b16 %v7795, %v7794
    %v8097 = vpack.c.b16 %v7797, %v7796
    %v8098 = vpack.c.b16 %v7799, %v7798
    %v8099 = vpack.c.b16 %v7801, %v7800
    %v8100 = vpack.c.b16 %v7803, %v7802
    %v8101 = vpack.c.b16 %v7805, %v7804
    %v8102 = vpack.c.b16 %v7807, %v7806
    %v8103 = vpack.c.b16 %v7809, %v7808
    %v8104 = vpack.c.b16 %v7811, %v7810
    %v8105 = vpack.c.b16 %v7813, %v7812
    %v8106 = vpack.c.b16 %v7815, %v7814
    %v8107 = vpack.c.b16 %v7817, %v7816
    %v8108 = vpack.c.b16 %v7819, %v7818
    %v8109 = vpack.c.b16 %v7821, %v7820
    %v8110 = vpack.c.b16 %v7823, %v7822
    %v8111 = vpack.c.b16 %v7825, %v7824
    %v8112 = vpack.c.b16 %v7827, %v7826
    %v8113 = vpack.c.b16 %v7829, %v7828
    %v8114 = vpack.c.b16 %v7831, %v7830
    %v8115 = vpack.c.b16 %v7833, %v7832
    %v8116 = vpack.c.b16 %v7835, %v7834
    %v8117 = vpack.c.b16 %v7837, %v7836
    %v8118 = vpack.c.b16 %v7839, %v7838
    %v8119 = vpack.c.b16 %v7841, %v7840
    %v8120 = vpack.c.b16 %v7843, %v7842
    %v8121 = vpack.c.b16 %v7845, %v7844
    %v8122 = vpack.c.b16 %v7847, %v7846
    %v8123 = vpack.c.b16 %v7849, %v7848
    %v8124 = vpack.c.b16 %v7851, %v7850
    %v8125 = vpack.c.b16 %v7853, %v7852
    %v8126 = vpack.c.b16 %v7855, %v7854
    %v8127 = vpack.c.b16 %v7857, %v7856
    %v8128 = vpack.c.b16 %v7859, %v7858
    %v8129 = vpack.c.b16 %v7861, %v7860
    %v8130 = vpack.c.b16 %v7863, %v7862
    %v8131 = vpack.c.b16 %v7865, %v7864
    %v8132 = vpack.c.b16 %v7867, %v7866
    %v8133 = vpack.c.b16 %v7869, %v7868
    %v8134 = vpack.c.b16 %v7871, %v7870
    %v8135 = vpack.c.b16 %v7873, %v7872
    %v8136 = vpack.c.b16 %v7875, %v7874
    %v8137 = vpack.c.b16 %v7877, %v7876
    %v8138 = vpack.c.b16 %v7879, %v7878
    %v8139 = vpack.c.b16 %v7881, %v7880
    %v8140 = vpack.c.b16 %v7883, %v7882
    %v8141 = vpack.c.b16 %v7885, %v7884
    %8398 = vmatprep.subr.bf16.mxu0 0
    %8399 = vmatpush1.bf16.msra.mxu0 %v7893
    %8400 = vmatprep.subr.bf16.mxu0 0
    %8401 = vmatpush1.bf16.msra.mxu0 %v7892
    %8402 = vmatprep.subr.bf16.mxu0 0
    %8403 = vmatpush1.bf16.msra.mxu0 %v7891
    %8404 = vmatprep.subr.bf16.mxu0 0
    %8405 = vmatpush1.bf16.msra.mxu0 %v7890
    %8406 = vmatprep.subr.bf16.mxu0 0
    %8407 = vmatpush1.bf16.msra.mxu0 %v7889
    %8408 = vmatprep.subr.bf16.mxu0 0
    %8409 = vmatpush1.bf16.msra.mxu0 %v7888
    %8410 = vmatprep.subr.bf16.mxu0 0
    %8411 = vmatpush1.bf16.msra.mxu0 %v7887
    %8412 = vmatprep.subr.bf16.mxu0 0
    %8413 = vmatpush1.bf16.msra.mxu0 %v7886
    %8414 = vmatprep.subr.bf16.mxu0 0
    %8415 = vmatpush2.bf16.msra.mxu0 %v7901
    %8416 = vmatprep.subr.bf16.mxu0 0
    %8417 = vmatpush2.bf16.msra.mxu0 %v7900
    %8418 = vmatprep.subr.bf16.mxu0 0
    %8419 = vmatpush2.bf16.msra.mxu0 %v7899
    %8420 = vmatprep.subr.bf16.mxu0 0
    %8421 = vmatpush2.bf16.msra.mxu0 %v7898
    %8422 = vmatprep.subr.bf16.mxu0 0
    %8423 = vmatpush2.bf16.msra.mxu0 %v7897
    %8424 = vmatprep.subr.bf16.mxu0 0
    %8425 = vmatpush2.bf16.msra.mxu0 %v7896
    %8426 = vmatprep.subr.bf16.mxu0 0
    %8427 = vmatpush2.bf16.msra.mxu0 %v7895
    %8428 = vmatprep.subr.bf16.mxu0 0
    %8429 = vmatpush2.bf16.msra.mxu0 %v7894
    %8430 = vmatprep.mubr.bf16.mxu0 %v6312
    %8431 = vmatmul.mubr.bf16.gmra.mxu0 %v6311
    %v8432 = vpop.f32.mrf.mxu0
    %v8433 = vadd.f32 %v6861, %v8432
    %v8434 = vpop.f32.mrf.mxu0
    %v8435 = vpop.f32.mrf.mxu0
    %v8436 = vpop.f32.mrf.mxu0
    %8437 = vdwg.mxu0
    %8438 = vmatprep.subr.bf16.mxu0 0
    %8439 = vmatpush1.bf16.msra.mxu0 %v7909
    %8440 = vmatprep.subr.bf16.mxu0 0
    %8441 = vmatpush1.bf16.msra.mxu0 %v7908
    %8442 = vmatprep.subr.bf16.mxu0 0
    %8443 = vmatpush1.bf16.msra.mxu0 %v7907
    %8444 = vmatprep.subr.bf16.mxu0 0
    %8445 = vmatpush1.bf16.msra.mxu0 %v7906
    %8446 = vmatprep.subr.bf16.mxu0 0
    %8447 = vmatpush1.bf16.msra.mxu0 %v7905
    %8448 = vmatprep.subr.bf16.mxu0 0
    %8449 = vmatpush1.bf16.msra.mxu0 %v7904
    %8450 = vmatprep.subr.bf16.mxu0 0
    %8451 = vmatpush1.bf16.msra.mxu0 %v7903
    %8452 = vmatprep.subr.bf16.mxu0 0
    %8453 = vmatpush1.bf16.msra.mxu0 %v7902
    %8454 = vmatprep.subr.bf16.mxu0 0
    %8455 = vmatpush2.bf16.msra.mxu0 %v7917
    %8456 = vmatprep.subr.bf16.mxu0 0
    %8457 = vmatpush2.bf16.msra.mxu0 %v7916
    %8458 = vmatprep.subr.bf16.mxu0 0
    %8459 = vmatpush2.bf16.msra.mxu0 %v7915
    %8460 = vmatprep.subr.bf16.mxu0 0
    %8461 = vmatpush2.bf16.msra.mxu0 %v7914
    %8462 = vmatprep.subr.bf16.mxu0 0
    %8463 = vmatpush2.bf16.msra.mxu0 %v7913
    %8464 = vmatprep.subr.bf16.mxu0 0
    %8465 = vmatpush2.bf16.msra.mxu0 %v7912
    %8466 = vmatprep.subr.bf16.mxu0 0
    %8467 = vmatpush2.bf16.msra.mxu0 %v7911
    %8468 = vmatprep.subr.bf16.mxu0 0
    %8469 = vmatpush2.bf16.msra.mxu0 %v7910
    %8470 = vmatprep.mubr.bf16.mxu0 %v6314
    %8471 = vmatmul.mubr.bf16.gmra.mxu0 %v6313
    %v8472 = vpop.f32.mrf.mxu0
    %v8473 = vadd.f32 %v8433, %v8472
    %v8474 = vpop.f32.mrf.mxu0
    %v8475 = vpop.f32.mrf.mxu0
    %v8476 = vpop.f32.mrf.mxu0
    %8477 = vdwg.mxu0
    %8478 = vmatprep.subr.bf16.mxu0 0
    %8479 = vmatpush1.bf16.msra.mxu0 %v7925
    %8480 = vmatprep.subr.bf16.mxu0 0
    %8481 = vmatpush1.bf16.msra.mxu0 %v7924
    %8482 = vmatprep.subr.bf16.mxu0 0
    %8483 = vmatpush1.bf16.msra.mxu0 %v7923
    %8484 = vmatprep.subr.bf16.mxu0 0
    %8485 = vmatpush1.bf16.msra.mxu0 %v7922
    %8486 = vmatprep.subr.bf16.mxu0 0
    %8487 = vmatpush1.bf16.msra.mxu0 %v7921
    %8488 = vmatprep.subr.bf16.mxu0 0
    %8489 = vmatpush1.bf16.msra.mxu0 %v7920
    %8490 = vmatprep.subr.bf16.mxu0 0
    %8491 = vmatpush1.bf16.msra.mxu0 %v7919
    %8492 = vmatprep.subr.bf16.mxu0 0
    %8493 = vmatpush1.bf16.msra.mxu0 %v7918
    %8494 = vmatprep.subr.bf16.mxu0 0
    %8495 = vmatpush2.bf16.msra.mxu0 %v7933
    %8496 = vmatprep.subr.bf16.mxu0 0
    %8497 = vmatpush2.bf16.msra.mxu0 %v7932
    %8498 = vmatprep.subr.bf16.mxu0 0
    %8499 = vmatpush2.bf16.msra.mxu0 %v7931
    %8500 = vmatprep.subr.bf16.mxu0 0
    %8501 = vmatpush2.bf16.msra.mxu0 %v7930
    %8502 = vmatprep.subr.bf16.mxu0 0
    %8503 = vmatpush2.bf16.msra.mxu0 %v7929
    %8504 = vmatprep.subr.bf16.mxu0 0
    %8505 = vmatpush2.bf16.msra.mxu0 %v7928
    %8506 = vmatprep.subr.bf16.mxu0 0
    %8507 = vmatpush2.bf16.msra.mxu0 %v7927
    %8508 = vmatprep.subr.bf16.mxu0 0
    %8509 = vmatpush2.bf16.msra.mxu0 %v7926
    %8510 = vmatprep.mubr.bf16.mxu0 %v6316
    %8511 = vmatmul.mubr.bf16.gmra.mxu0 %v6315
    %v8512 = vpop.f32.mrf.mxu0
    %v8513 = vadd.f32 %v8473, %v8512
    %v8514 = vpop.f32.mrf.mxu0
    %v8515 = vpop.f32.mrf.mxu0
    %v8516 = vpop.f32.mrf.mxu0
    %8517 = vdwg.mxu0
    %8518 = vmatprep.subr.bf16.mxu0 0
    %8519 = vmatpush1.bf16.msra.mxu0 %v7941
    %8520 = vmatprep.subr.bf16.mxu0 0
    %8521 = vmatpush1.bf16.msra.mxu0 %v7940
    %8522 = vmatprep.subr.bf16.mxu0 0
    %8523 = vmatpush1.bf16.msra.mxu0 %v7939
    %8524 = vmatprep.subr.bf16.mxu0 0
    %8525 = vmatpush1.bf16.msra.mxu0 %v7938
    %8526 = vmatprep.subr.bf16.mxu0 0
    %8527 = vmatpush1.bf16.msra.mxu0 %v7937
    %8528 = vmatprep.subr.bf16.mxu0 0
    %8529 = vmatpush1.bf16.msra.mxu0 %v7936
    %8530 = vmatprep.subr.bf16.mxu0 0
    %8531 = vmatpush1.bf16.msra.mxu0 %v7935
    %8532 = vmatprep.subr.bf16.mxu0 0
    %8533 = vmatpush1.bf16.msra.mxu0 %v7934
    %8534 = vmatprep.subr.bf16.mxu0 0
    %8535 = vmatpush2.bf16.msra.mxu0 %v7949
    %8536 = vmatprep.subr.bf16.mxu0 0
    %8537 = vmatpush2.bf16.msra.mxu0 %v7948
    %8538 = vmatprep.subr.bf16.mxu0 0
    %8539 = vmatpush2.bf16.msra.mxu0 %v7947
    %8540 = vmatprep.subr.bf16.mxu0 0
    %8541 = vmatpush2.bf16.msra.mxu0 %v7946
    %8542 = vmatprep.subr.bf16.mxu0 0
    %8543 = vmatpush2.bf16.msra.mxu0 %v7945
    %8544 = vmatprep.subr.bf16.mxu0 0
    %8545 = vmatpush2.bf16.msra.mxu0 %v7944
    %8546 = vmatprep.subr.bf16.mxu0 0
    %8547 = vmatpush2.bf16.msra.mxu0 %v7943
    %8548 = vmatprep.subr.bf16.mxu0 0
    %8549 = vmatpush2.bf16.msra.mxu0 %v7942
    %8550 = vmatprep.mubr.bf16.mxu0 %v6318
    %8551 = vmatmul.mubr.bf16.gmra.mxu0 %v6317
    %v8552 = vpop.f32.mrf.mxu0
    %v8553 = vadd.f32 %v8513, %v8552
    %v8554 = vpop.f32.mrf.mxu0
    %v8555 = vpop.f32.mrf.mxu0
    %v8556 = vpop.f32.mrf.mxu0
    %8557 = vdwg.mxu0
    %8558 = vmatprep.subr.bf16.mxu0 0
    %8559 = vmatpush1.bf16.msra.mxu0 %v7957
    %8560 = vmatprep.subr.bf16.mxu0 0
    %8561 = vmatpush1.bf16.msra.mxu0 %v7956
    %8562 = vmatprep.subr.bf16.mxu0 0
    %8563 = vmatpush1.bf16.msra.mxu0 %v7955
    %8564 = vmatprep.subr.bf16.mxu0 0
    %8565 = vmatpush1.bf16.msra.mxu0 %v7954
    %8566 = vmatprep.subr.bf16.mxu0 0
    %8567 = vmatpush1.bf16.msra.mxu0 %v7953
    %8568 = vmatprep.subr.bf16.mxu0 0
    %8569 = vmatpush1.bf16.msra.mxu0 %v7952
    %8570 = vmatprep.subr.bf16.mxu0 0
    %8571 = vmatpush1.bf16.msra.mxu0 %v7951
    %8572 = vmatprep.subr.bf16.mxu0 0
    %8573 = vmatpush1.bf16.msra.mxu0 %v7950
    %8574 = vmatprep.subr.bf16.mxu0 0
    %8575 = vmatpush2.bf16.msra.mxu0 %v7965
    %8576 = vmatprep.subr.bf16.mxu0 0
    %8577 = vmatpush2.bf16.msra.mxu0 %v7964
    %8578 = vmatprep.subr.bf16.mxu0 0
    %8579 = vmatpush2.bf16.msra.mxu0 %v7963
    %8580 = vmatprep.subr.bf16.mxu0 0
    %8581 = vmatpush2.bf16.msra.mxu0 %v7962
    %8582 = vmatprep.subr.bf16.mxu0 0
    %8583 = vmatpush2.bf16.msra.mxu0 %v7961
    %8584 = vmatprep.subr.bf16.mxu0 0
    %8585 = vmatpush2.bf16.msra.mxu0 %v7960
    %8586 = vmatprep.subr.bf16.mxu0 0
    %8587 = vmatpush2.bf16.msra.mxu0 %v7959
    %8588 = vmatprep.subr.bf16.mxu0 0
    %8589 = vmatpush2.bf16.msra.mxu0 %v7958
    %8590 = vmatprep.mubr.bf16.mxu0 %v6320
    %8591 = vmatmul.mubr.bf16.gmra.mxu0 %v6319
    %v8592 = vpop.f32.mrf.mxu0
    %v8593 = vadd.f32 %v8553, %v8592
    %v8594 = vpop.f32.mrf.mxu0
    %v8595 = vpop.f32.mrf.mxu0
    %v8596 = vpop.f32.mrf.mxu0
    %8597 = vdwg.mxu0
    %8598 = vmatprep.subr.bf16.mxu0 0
    %8599 = vmatpush1.bf16.msra.mxu0 %v7973
    %8600 = vmatprep.subr.bf16.mxu0 0
    %8601 = vmatpush1.bf16.msra.mxu0 %v7972
    %8602 = vmatprep.subr.bf16.mxu0 0
    %8603 = vmatpush1.bf16.msra.mxu0 %v7971
    %8604 = vmatprep.subr.bf16.mxu0 0
    %8605 = vmatpush1.bf16.msra.mxu0 %v7970
    %8606 = vmatprep.subr.bf16.mxu0 0
    %8607 = vmatpush1.bf16.msra.mxu0 %v7969
    %8608 = vmatprep.subr.bf16.mxu0 0
    %8609 = vmatpush1.bf16.msra.mxu0 %v7968
    %8610 = vmatprep.subr.bf16.mxu0 0
    %8611 = vmatpush1.bf16.msra.mxu0 %v7967
    %8612 = vmatprep.subr.bf16.mxu0 0
    %8613 = vmatpush1.bf16.msra.mxu0 %v7966
    %8614 = vmatprep.subr.bf16.mxu0 0
    %8615 = vmatpush2.bf16.msra.mxu0 %v7981
    %8616 = vmatprep.subr.bf16.mxu0 0
    %8617 = vmatpush2.bf16.msra.mxu0 %v7980
    %8618 = vmatprep.subr.bf16.mxu0 0
    %8619 = vmatpush2.bf16.msra.mxu0 %v7979
    %8620 = vmatprep.subr.bf16.mxu0 0
    %8621 = vmatpush2.bf16.msra.mxu0 %v7978
    %8622 = vmatprep.subr.bf16.mxu0 0
    %8623 = vmatpush2.bf16.msra.mxu0 %v7977
    %8624 = vmatprep.subr.bf16.mxu0 0
    %8625 = vmatpush2.bf16.msra.mxu0 %v7976
    %8626 = vmatprep.subr.bf16.mxu0 0
    %8627 = vmatpush2.bf16.msra.mxu0 %v7975
    %8628 = vmatprep.subr.bf16.mxu0 0
    %8629 = vmatpush2.bf16.msra.mxu0 %v7974
    %8630 = vmatprep.mubr.bf16.mxu0 %v6322
    %8631 = vmatmul.mubr.bf16.gmra.mxu0 %v6321
    %v8632 = vpop.f32.mrf.mxu0
    %v8633 = vadd.f32 %v8593, %v8632
    %v8634 = vpop.f32.mrf.mxu0
    %v8635 = vpop.f32.mrf.mxu0
    %v8636 = vpop.f32.mrf.mxu0
    %8637 = vdwg.mxu0
    %8638 = vmatprep.subr.bf16.mxu0 0
    %8639 = vmatpush1.bf16.msra.mxu0 %v7989
    %8640 = vmatprep.subr.bf16.mxu0 0
    %8641 = vmatpush1.bf16.msra.mxu0 %v7988
    %8642 = vmatprep.subr.bf16.mxu0 0
    %8643 = vmatpush1.bf16.msra.mxu0 %v7987
    %8644 = vmatprep.subr.bf16.mxu0 0
    %8645 = vmatpush1.bf16.msra.mxu0 %v7986
    %8646 = vmatprep.subr.bf16.mxu0 0
    %8647 = vmatpush1.bf16.msra.mxu0 %v7985
    %8648 = vmatprep.subr.bf16.mxu0 0
    %8649 = vmatpush1.bf16.msra.mxu0 %v7984
    %8650 = vmatprep.subr.bf16.mxu0 0
    %8651 = vmatpush1.bf16.msra.mxu0 %v7983
    %8652 = vmatprep.subr.bf16.mxu0 0
    %8653 = vmatpush1.bf16.msra.mxu0 %v7982
    %8654 = vmatprep.subr.bf16.mxu0 0
    %8655 = vmatpush2.bf16.msra.mxu0 %v7997
    %8656 = vmatprep.subr.bf16.mxu0 0
    %8657 = vmatpush2.bf16.msra.mxu0 %v7996
    %8658 = vmatprep.subr.bf16.mxu0 0
    %8659 = vmatpush2.bf16.msra.mxu0 %v7995
    %8660 = vmatprep.subr.bf16.mxu0 0
    %8661 = vmatpush2.bf16.msra.mxu0 %v7994
    %8662 = vmatprep.subr.bf16.mxu0 0
    %8663 = vmatpush2.bf16.msra.mxu0 %v7993
    %8664 = vmatprep.subr.bf16.mxu0 0
    %8665 = vmatpush2.bf16.msra.mxu0 %v7992
    %8666 = vmatprep.subr.bf16.mxu0 0
    %8667 = vmatpush2.bf16.msra.mxu0 %v7991
    %8668 = vmatprep.subr.bf16.mxu0 0
    %8669 = vmatpush2.bf16.msra.mxu0 %v7990
    %8670 = vmatprep.mubr.bf16.mxu0 %v6324
    %8671 = vmatmul.mubr.bf16.gmra.mxu0 %v6323
    %v8672 = vpop.f32.mrf.mxu0
    %v8673 = vadd.f32 %v8633, %v8672
    %v8674 = vpop.f32.mrf.mxu0
    %v8675 = vpop.f32.mrf.mxu0
    %v8676 = vpop.f32.mrf.mxu0
    %8677 = vdwg.mxu0
    %8678 = vmatprep.subr.bf16.mxu0 0
    %8679 = vmatpush1.bf16.msra.mxu0 %v8005
    %8680 = vmatprep.subr.bf16.mxu0 0
    %8681 = vmatpush1.bf16.msra.mxu0 %v8004
    %8682 = vmatprep.subr.bf16.mxu0 0
    %8683 = vmatpush1.bf16.msra.mxu0 %v8003
    %8684 = vmatprep.subr.bf16.mxu0 0
    %8685 = vmatpush1.bf16.msra.mxu0 %v8002
    %8686 = vmatprep.subr.bf16.mxu0 0
    %8687 = vmatpush1.bf16.msra.mxu0 %v8001
    %8688 = vmatprep.subr.bf16.mxu0 0
    %8689 = vmatpush1.bf16.msra.mxu0 %v8000
    %8690 = vmatprep.subr.bf16.mxu0 0
    %8691 = vmatpush1.bf16.msra.mxu0 %v7999
    %8692 = vmatprep.subr.bf16.mxu0 0
    %8693 = vmatpush1.bf16.msra.mxu0 %v7998
    %8694 = vmatprep.subr.bf16.mxu0 0
    %8695 = vmatpush2.bf16.msra.mxu0 %v8013
    %8696 = vmatprep.subr.bf16.mxu0 0
    %8697 = vmatpush2.bf16.msra.mxu0 %v8012
    %8698 = vmatprep.subr.bf16.mxu0 0
    %8699 = vmatpush2.bf16.msra.mxu0 %v8011
    %8700 = vmatprep.subr.bf16.mxu0 0
    %8701 = vmatpush2.bf16.msra.mxu0 %v8010
    %8702 = vmatprep.subr.bf16.mxu0 0
    %8703 = vmatpush2.bf16.msra.mxu0 %v8009
    %8704 = vmatprep.subr.bf16.mxu0 0
    %8705 = vmatpush2.bf16.msra.mxu0 %v8008
    %8706 = vmatprep.subr.bf16.mxu0 0
    %8707 = vmatpush2.bf16.msra.mxu0 %v8007
    %8708 = vmatprep.subr.bf16.mxu0 0
    %8709 = vmatpush2.bf16.msra.mxu0 %v8006
    %8710 = vmatprep.mubr.bf16.mxu0 %v6326
    %8711 = vmatmul.mubr.bf16.gmra.mxu0 %v6325
    %v8712 = vpop.f32.mrf.mxu0
    %v8713 = vadd.f32 %v8673, %v8712
    %v8714 = vpop.f32.mrf.mxu0
    %v8715 = vpop.f32.mrf.mxu0
    %v8716 = vpop.f32.mrf.mxu0
    %8717 = vdwg.mxu0
    %8718 = vmatprep.subr.bf16.mxu0 0
    %8719 = vmatpush1.bf16.msra.mxu0 %v8021
    %8720 = vmatprep.subr.bf16.mxu0 0
    %8721 = vmatpush1.bf16.msra.mxu0 %v8020
    %8722 = vmatprep.subr.bf16.mxu0 0
    %8723 = vmatpush1.bf16.msra.mxu0 %v8019
    %8724 = vmatprep.subr.bf16.mxu0 0
    %8725 = vmatpush1.bf16.msra.mxu0 %v8018
    %8726 = vmatprep.subr.bf16.mxu0 0
    %8727 = vmatpush1.bf16.msra.mxu0 %v8017
    %8728 = vmatprep.subr.bf16.mxu0 0
    %8729 = vmatpush1.bf16.msra.mxu0 %v8016
    %8730 = vmatprep.subr.bf16.mxu0 0
    %8731 = vmatpush1.bf16.msra.mxu0 %v8015
    %8732 = vmatprep.subr.bf16.mxu0 0
    %8733 = vmatpush1.bf16.msra.mxu0 %v8014
    %8734 = vmatprep.subr.bf16.mxu0 0
    %8735 = vmatpush2.bf16.msra.mxu0 %v8029
    %8736 = vmatprep.subr.bf16.mxu0 0
    %8737 = vmatpush2.bf16.msra.mxu0 %v8028
    %8738 = vmatprep.subr.bf16.mxu0 0
    %8739 = vmatpush2.bf16.msra.mxu0 %v8027
    %8740 = vmatprep.subr.bf16.mxu0 0
    %8741 = vmatpush2.bf16.msra.mxu0 %v8026
    %8742 = vmatprep.subr.bf16.mxu0 0
    %8743 = vmatpush2.bf16.msra.mxu0 %v8025
    %8744 = vmatprep.subr.bf16.mxu0 0
    %8745 = vmatpush2.bf16.msra.mxu0 %v8024
    %8746 = vmatprep.subr.bf16.mxu0 0
    %8747 = vmatpush2.bf16.msra.mxu0 %v8023
    %8748 = vmatprep.subr.bf16.mxu0 0
    %8749 = vmatpush2.bf16.msra.mxu0 %v8022
    %8750 = vmatprep.mubr.bf16.mxu0 %v6328
    %8751 = vmatmul.mubr.bf16.gmra.mxu0 %v6327
    %v8752 = vpop.f32.mrf.mxu0
    %v8753 = vadd.f32 %v8713, %v8752
    %v8754 = vpop.f32.mrf.mxu0
    %v8755 = vpop.f32.mrf.mxu0
    %v8756 = vpop.f32.mrf.mxu0
    %8757 = vdwg.mxu0
    %8758 = vmatprep.subr.bf16.mxu0 0
    %8759 = vmatpush1.bf16.msra.mxu0 %v8037
    %8760 = vmatprep.subr.bf16.mxu0 0
    %8761 = vmatpush1.bf16.msra.mxu0 %v8036
    %8762 = vmatprep.subr.bf16.mxu0 0
    %8763 = vmatpush1.bf16.msra.mxu0 %v8035
    %8764 = vmatprep.subr.bf16.mxu0 0
    %8765 = vmatpush1.bf16.msra.mxu0 %v8034
    %8766 = vmatprep.subr.bf16.mxu0 0
    %8767 = vmatpush1.bf16.msra.mxu0 %v8033
    %8768 = vmatprep.subr.bf16.mxu0 0
    %8769 = vmatpush1.bf16.msra.mxu0 %v8032
    %8770 = vmatprep.subr.bf16.mxu0 0
    %8771 = vmatpush1.bf16.msra.mxu0 %v8031
    %8772 = vmatprep.subr.bf16.mxu0 0
    %8773 = vmatpush1.bf16.msra.mxu0 %v8030
    %8774 = vmatprep.subr.bf16.mxu0 0
    %8775 = vmatpush2.bf16.msra.mxu0 %v8045
    %8776 = vmatprep.subr.bf16.mxu0 0
    %8777 = vmatpush2.bf16.msra.mxu0 %v8044
    %8778 = vmatprep.subr.bf16.mxu0 0
    %8779 = vmatpush2.bf16.msra.mxu0 %v8043
    %8780 = vmatprep.subr.bf16.mxu0 0
    %8781 = vmatpush2.bf16.msra.mxu0 %v8042
    %8782 = vmatprep.subr.bf16.mxu0 0
    %8783 = vmatpush2.bf16.msra.mxu0 %v8041
    %8784 = vmatprep.subr.bf16.mxu0 0
    %8785 = vmatpush2.bf16.msra.mxu0 %v8040
    %8786 = vmatprep.subr.bf16.mxu0 0
    %8787 = vmatpush2.bf16.msra.mxu0 %v8039
    %8788 = vmatprep.subr.bf16.mxu0 0
    %8789 = vmatpush2.bf16.msra.mxu0 %v8038
    %8790 = vmatprep.mubr.bf16.mxu0 %v6330
    %8791 = vmatmul.mubr.bf16.gmra.mxu0 %v6329
    %v8792 = vpop.f32.mrf.mxu0
    %v8793 = vadd.f32 %v8753, %v8792
    %v8794 = vpop.f32.mrf.mxu0
    %v8795 = vpop.f32.mrf.mxu0
    %v8796 = vpop.f32.mrf.mxu0
    %8797 = vdwg.mxu0
    %8798 = vmatprep.subr.bf16.mxu0 0
    %8799 = vmatpush1.bf16.msra.mxu0 %v8053
    %8800 = vmatprep.subr.bf16.mxu0 0
    %8801 = vmatpush1.bf16.msra.mxu0 %v8052
    %8802 = vmatprep.subr.bf16.mxu0 0
    %8803 = vmatpush1.bf16.msra.mxu0 %v8051
    %8804 = vmatprep.subr.bf16.mxu0 0
    %8805 = vmatpush1.bf16.msra.mxu0 %v8050
    %8806 = vmatprep.subr.bf16.mxu0 0
    %8807 = vmatpush1.bf16.msra.mxu0 %v8049
    %8808 = vmatprep.subr.bf16.mxu0 0
    %8809 = vmatpush1.bf16.msra.mxu0 %v8048
    %8810 = vmatprep.subr.bf16.mxu0 0
    %8811 = vmatpush1.bf16.msra.mxu0 %v8047
    %8812 = vmatprep.subr.bf16.mxu0 0
    %8813 = vmatpush1.bf16.msra.mxu0 %v8046
    %8814 = vmatprep.subr.bf16.mxu0 0
    %8815 = vmatpush2.bf16.msra.mxu0 %v8061
    %8816 = vmatprep.subr.bf16.mxu0 0
    %8817 = vmatpush2.bf16.msra.mxu0 %v8060
    %8818 = vmatprep.subr.bf16.mxu0 0
    %8819 = vmatpush2.bf16.msra.mxu0 %v8059
    %8820 = vmatprep.subr.bf16.mxu0 0
    %8821 = vmatpush2.bf16.msra.mxu0 %v8058
    %8822 = vmatprep.subr.bf16.mxu0 0
    %8823 = vmatpush2.bf16.msra.mxu0 %v8057
    %8824 = vmatprep.subr.bf16.mxu0 0
    %8825 = vmatpush2.bf16.msra.mxu0 %v8056
    %8826 = vmatprep.subr.bf16.mxu0 0
    %8827 = vmatpush2.bf16.msra.mxu0 %v8055
    %8828 = vmatprep.subr.bf16.mxu0 0
    %8829 = vmatpush2.bf16.msra.mxu0 %v8054
    %8830 = vmatprep.mubr.bf16.mxu0 %v6332
    %8831 = vmatmul.mubr.bf16.gmra.mxu0 %v6331
    %v8832 = vpop.f32.mrf.mxu0
    %v8833 = vadd.f32 %v8793, %v8832
    %v8834 = vpop.f32.mrf.mxu0
    %v8835 = vpop.f32.mrf.mxu0
    %v8836 = vpop.f32.mrf.mxu0
    %8837 = vdwg.mxu0
    %8838 = vmatprep.subr.bf16.mxu0 0
    %8839 = vmatpush1.bf16.msra.mxu0 %v8069
    %8840 = vmatprep.subr.bf16.mxu0 0
    %8841 = vmatpush1.bf16.msra.mxu0 %v8068
    %8842 = vmatprep.subr.bf16.mxu0 0
    %8843 = vmatpush1.bf16.msra.mxu0 %v8067
    %8844 = vmatprep.subr.bf16.mxu0 0
    %8845 = vmatpush1.bf16.msra.mxu0 %v8066
    %8846 = vmatprep.subr.bf16.mxu0 0
    %8847 = vmatpush1.bf16.msra.mxu0 %v8065
    %8848 = vmatprep.subr.bf16.mxu0 0
    %8849 = vmatpush1.bf16.msra.mxu0 %v8064
    %8850 = vmatprep.subr.bf16.mxu0 0
    %8851 = vmatpush1.bf16.msra.mxu0 %v8063
    %8852 = vmatprep.subr.bf16.mxu0 0
    %8853 = vmatpush1.bf16.msra.mxu0 %v8062
    %8854 = vmatprep.subr.bf16.mxu0 0
    %8855 = vmatpush2.bf16.msra.mxu0 %v8077
    %8856 = vmatprep.subr.bf16.mxu0 0
    %8857 = vmatpush2.bf16.msra.mxu0 %v8076
    %8858 = vmatprep.subr.bf16.mxu0 0
    %8859 = vmatpush2.bf16.msra.mxu0 %v8075
    %8860 = vmatprep.subr.bf16.mxu0 0
    %8861 = vmatpush2.bf16.msra.mxu0 %v8074
    %8862 = vmatprep.subr.bf16.mxu0 0
    %8863 = vmatpush2.bf16.msra.mxu0 %v8073
    %8864 = vmatprep.subr.bf16.mxu0 0
    %8865 = vmatpush2.bf16.msra.mxu0 %v8072
    %8866 = vmatprep.subr.bf16.mxu0 0
    %8867 = vmatpush2.bf16.msra.mxu0 %v8071
    %8868 = vmatprep.subr.bf16.mxu0 0
    %8869 = vmatpush2.bf16.msra.mxu0 %v8070
    %8870 = vmatprep.mubr.bf16.mxu0 %v6334
    %8871 = vmatmul.mubr.bf16.gmra.mxu0 %v6333
    %v8872 = vpop.f32.mrf.mxu0
    %v8873 = vadd.f32 %v8833, %v8872
    %v8874 = vpop.f32.mrf.mxu0
    %v8875 = vpop.f32.mrf.mxu0
    %v8876 = vpop.f32.mrf.mxu0
    %8877 = vdwg.mxu0
    %8878 = vmatprep.subr.bf16.mxu0 0
    %8879 = vmatpush1.bf16.msra.mxu0 %v8085
    %8880 = vmatprep.subr.bf16.mxu0 0
    %8881 = vmatpush1.bf16.msra.mxu0 %v8084
    %8882 = vmatprep.subr.bf16.mxu0 0
    %8883 = vmatpush1.bf16.msra.mxu0 %v8083
    %8884 = vmatprep.subr.bf16.mxu0 0
    %8885 = vmatpush1.bf16.msra.mxu0 %v8082
    %8886 = vmatprep.subr.bf16.mxu0 0
    %8887 = vmatpush1.bf16.msra.mxu0 %v8081
    %8888 = vmatprep.subr.bf16.mxu0 0
    %8889 = vmatpush1.bf16.msra.mxu0 %v8080
    %8890 = vmatprep.subr.bf16.mxu0 0
    %8891 = vmatpush1.bf16.msra.mxu0 %v8079
    %8892 = vmatprep.subr.bf16.mxu0 0
    %8893 = vmatpush1.bf16.msra.mxu0 %v8078
    %8894 = vmatprep.subr.bf16.mxu0 0
    %8895 = vmatpush2.bf16.msra.mxu0 %v8093
    %8896 = vmatprep.subr.bf16.mxu0 0
    %8897 = vmatpush2.bf16.msra.mxu0 %v8092
    %8898 = vmatprep.subr.bf16.mxu0 0
    %8899 = vmatpush2.bf16.msra.mxu0 %v8091
    %8900 = vmatprep.subr.bf16.mxu0 0
    %8901 = vmatpush2.bf16.msra.mxu0 %v8090
    %8902 = vmatprep.subr.bf16.mxu0 0
    %8903 = vmatpush2.bf16.msra.mxu0 %v8089
    %8904 = vmatprep.subr.bf16.mxu0 0
    %8905 = vmatpush2.bf16.msra.mxu0 %v8088
    %8906 = vmatprep.subr.bf16.mxu0 0
    %8907 = vmatpush2.bf16.msra.mxu0 %v8087
    %8908 = vmatprep.subr.bf16.mxu0 0
    %8909 = vmatpush2.bf16.msra.mxu0 %v8086
    %8910 = vmatprep.mubr.bf16.mxu0 %v6336
    %8911 = vmatmul.mubr.bf16.gmra.mxu0 %v6335
    %v8912 = vpop.f32.mrf.mxu0
    %v8913 = vadd.f32 %v8873, %v8912
    %v8914 = vpop.f32.mrf.mxu0
    %v8915 = vpop.f32.mrf.mxu0
    %v8916 = vpop.f32.mrf.mxu0
    %8917 = vdwg.mxu0
    %8918 = vmatprep.subr.bf16.mxu0 0
    %8919 = vmatpush1.bf16.msra.mxu0 %v8101
    %8920 = vmatprep.subr.bf16.mxu0 0
    %8921 = vmatpush1.bf16.msra.mxu0 %v8100
    %8922 = vmatprep.subr.bf16.mxu0 0
    %8923 = vmatpush1.bf16.msra.mxu0 %v8099
    %8924 = vmatprep.subr.bf16.mxu0 0
    %8925 = vmatpush1.bf16.msra.mxu0 %v8098
    %8926 = vmatprep.subr.bf16.mxu0 0
    %8927 = vmatpush1.bf16.msra.mxu0 %v8097
    %8928 = vmatprep.subr.bf16.mxu0 0
    %8929 = vmatpush1.bf16.msra.mxu0 %v8096
    %8930 = vmatprep.subr.bf16.mxu0 0
    %8931 = vmatpush1.bf16.msra.mxu0 %v8095
    %8932 = vmatprep.subr.bf16.mxu0 0
    %8933 = vmatpush1.bf16.msra.mxu0 %v8094
    %8934 = vmatprep.subr.bf16.mxu0 0
    %8935 = vmatpush2.bf16.msra.mxu0 %v8109
    %8936 = vmatprep.subr.bf16.mxu0 0
    %8937 = vmatpush2.bf16.msra.mxu0 %v8108
    %8938 = vmatprep.subr.bf16.mxu0 0
    %8939 = vmatpush2.bf16.msra.mxu0 %v8107
    %8940 = vmatprep.subr.bf16.mxu0 0
    %8941 = vmatpush2.bf16.msra.mxu0 %v8106
    %8942 = vmatprep.subr.bf16.mxu0 0
    %8943 = vmatpush2.bf16.msra.mxu0 %v8105
    %8944 = vmatprep.subr.bf16.mxu0 0
    %8945 = vmatpush2.bf16.msra.mxu0 %v8104
    %8946 = vmatprep.subr.bf16.mxu0 0
    %8947 = vmatpush2.bf16.msra.mxu0 %v8103
    %8948 = vmatprep.subr.bf16.mxu0 0
    %8949 = vmatpush2.bf16.msra.mxu0 %v8102
    %8950 = vmatprep.mubr.bf16.mxu0 %v6338
    %8951 = vmatmul.mubr.bf16.gmra.mxu0 %v6337
    %v8952 = vpop.f32.mrf.mxu0
    %v8953 = vadd.f32 %v8913, %v8952
    %v8954 = vpop.f32.mrf.mxu0
    %v8955 = vpop.f32.mrf.mxu0
    %v8956 = vpop.f32.mrf.mxu0
    %8957 = vdwg.mxu0
    %8958 = vmatprep.subr.bf16.mxu0 0
    %8959 = vmatpush1.bf16.msra.mxu0 %v8117
    %8960 = vmatprep.subr.bf16.mxu0 0
    %8961 = vmatpush1.bf16.msra.mxu0 %v8116
    %8962 = vmatprep.subr.bf16.mxu0 0
    %8963 = vmatpush1.bf16.msra.mxu0 %v8115
    %8964 = vmatprep.subr.bf16.mxu0 0
    %8965 = vmatpush1.bf16.msra.mxu0 %v8114
    %8966 = vmatprep.subr.bf16.mxu0 0
    %8967 = vmatpush1.bf16.msra.mxu0 %v8113
    %8968 = vmatprep.subr.bf16.mxu0 0
    %8969 = vmatpush1.bf16.msra.mxu0 %v8112
    %8970 = vmatprep.subr.bf16.mxu0 0
    %8971 = vmatpush1.bf16.msra.mxu0 %v8111
    %8972 = vmatprep.subr.bf16.mxu0 0
    %8973 = vmatpush1.bf16.msra.mxu0 %v8110
    %8974 = vmatprep.subr.bf16.mxu0 0
    %8975 = vmatpush2.bf16.msra.mxu0 %v8125
    %8976 = vmatprep.subr.bf16.mxu0 0
    %8977 = vmatpush2.bf16.msra.mxu0 %v8124
    %8978 = vmatprep.subr.bf16.mxu0 0
    %8979 = vmatpush2.bf16.msra.mxu0 %v8123
    %8980 = vmatprep.subr.bf16.mxu0 0
    %8981 = vmatpush2.bf16.msra.mxu0 %v8122
    %8982 = vmatprep.subr.bf16.mxu0 0
    %8983 = vmatpush2.bf16.msra.mxu0 %v8121
    %8984 = vmatprep.subr.bf16.mxu0 0
    %8985 = vmatpush2.bf16.msra.mxu0 %v8120
    %8986 = vmatprep.subr.bf16.mxu0 0
    %8987 = vmatpush2.bf16.msra.mxu0 %v8119
    %8988 = vmatprep.subr.bf16.mxu0 0
    %8989 = vmatpush2.bf16.msra.mxu0 %v8118
    %8990 = vmatprep.mubr.bf16.mxu0 %v6340
    %8991 = vmatmul.mubr.bf16.gmra.mxu0 %v6339
    %v8992 = vpop.f32.mrf.mxu0
    %v8993 = vadd.f32 %v8953, %v8992
    %v8994 = vpop.f32.mrf.mxu0
    %v8995 = vpop.f32.mrf.mxu0
    %v8996 = vpop.f32.mrf.mxu0
    %8997 = vdwg.mxu0
    %8998 = vmatprep.subr.bf16.mxu0 0
    %8999 = vmatpush1.bf16.msra.mxu0 %v8133
    %9000 = vmatprep.subr.bf16.mxu0 0
    %9001 = vmatpush1.bf16.msra.mxu0 %v8132
    %9002 = vmatprep.subr.bf16.mxu0 0
    %9003 = vmatpush1.bf16.msra.mxu0 %v8131
    %9004 = vmatprep.subr.bf16.mxu0 0
    %9005 = vmatpush1.bf16.msra.mxu0 %v8130
    %9006 = vmatprep.subr.bf16.mxu0 0
    %9007 = vmatpush1.bf16.msra.mxu0 %v8129
    %9008 = vmatprep.subr.bf16.mxu0 0
    %9009 = vmatpush1.bf16.msra.mxu0 %v8128
    %9010 = vmatprep.subr.bf16.mxu0 0
    %9011 = vmatpush1.bf16.msra.mxu0 %v8127
    %9012 = vmatprep.subr.bf16.mxu0 0
    %9013 = vmatpush1.bf16.msra.mxu0 %v8126
    %9014 = vmatprep.subr.bf16.mxu0 0
    %9015 = vmatpush2.bf16.msra.mxu0 %v8141
    %9016 = vmatprep.subr.bf16.mxu0 0
    %9017 = vmatpush2.bf16.msra.mxu0 %v8140
    %9018 = vmatprep.subr.bf16.mxu0 0
    %9019 = vmatpush2.bf16.msra.mxu0 %v8139
    %9020 = vmatprep.subr.bf16.mxu0 0
    %9021 = vmatpush2.bf16.msra.mxu0 %v8138
    %9022 = vmatprep.subr.bf16.mxu0 0
    %9023 = vmatpush2.bf16.msra.mxu0 %v8137
    %9024 = vmatprep.subr.bf16.mxu0 0
    %9025 = vmatpush2.bf16.msra.mxu0 %v8136
    %9026 = vmatprep.subr.bf16.mxu0 0
    %9027 = vmatpush2.bf16.msra.mxu0 %v8135
    %9028 = vmatprep.subr.bf16.mxu0 0
    %9029 = vmatpush2.bf16.msra.mxu0 %v8134
    %9030 = vmatprep.mubr.bf16.mxu0 %v6342
    %9031 = vmatmul.mubr.bf16.gmra.mxu0 %v6341
    %v9032 = vpop.f32.mrf.mxu0
    %v9033 = vadd.f32 %v8993, %v9032
    %v9034 = vpop.f32.mrf.mxu0
    %v9035 = vpop.f32.mrf.mxu0
    %v9036 = vpop.f32.mrf.mxu0
    %9037 = vdwg.mxu0
    %v9038 = vmax.f32 %v9033, 0.0
    %v9039 = vlaneseq
    %v9040 = vshrl.u32 %v9039, 7
    %v9041 = vsub.s32 0, %v9040
    %v9042 = vrot.slane %v6856, %v9041
    %v9043 = vmul.f32 %v9038, %v9042
    %v9044 = vlaneseq
    %v9045 = vshrl.u32 %v9044, 7
    %v9046 = vsub.s32 0, %v9045
    %v9047 = vrot.slane %v6857, %v9046
    %v9048 = vadd.f32 %v9043, %v9047
    %v9049 = vpack.c.bf16 %v9048, %v9048
    %v9050 = vld [vmem:[%s7] sm:$0xf]
    %v9051 = vld [vmem:[%s7 + $0x4] sm:$0xf]
    %v9052 = vld [vmem:[%s7 + $0x8] sm:$0xf]
    %v9053 = vld [vmem:[%s7 + $0xc] sm:$0xf]
    %v9054 = vld [vmem:[%s7 + $0x10] sm:$0xf]
    %v9055 = vld [vmem:[%s7 + $0x14] sm:$0xf]
    %v9056 = vld [vmem:[%s7 + $0x18] sm:$0xf]
    %v9057 = vld [vmem:[%s7 + $0x1c] sm:$0xf]
    %v9058 = vld [vmem:[%s7 + $0x20] sm:$0xf]
    %v9059 = vld [vmem:[%s7 + $0x24] sm:$0xf]
    %v9060 = vld [vmem:[%s7 + $0x28] sm:$0xf]
    %v9061 = vld [vmem:[%s7 + $0x2c] sm:$0xf]
    %v9062 = vld [vmem:[%s7 + $0x30] sm:$0xf]
    %v9063 = vld [vmem:[%s7 + $0x34] sm:$0xf]
    %v9064 = vld [vmem:[%s7 + $0x38] sm:$0xf]
    %v9065 = vld [vmem:[%s7 + $0x3c] sm:$0xf]
    %v9066 = vld [vmem:[%s8] sm:$0x1]
    %v9067 = vld [vmem:[%s8 + $0x1] sm:$0x1]
    %v9068 = vld [vmem:[%s8 + $0x2] sm:$0x1]
    %v9069 = vlaneseq
    %v9070 = vshrl.u32 %v9069, 7
    %v9071 = vsub.s32 0, %v9070
    %v9072 = vrot.slane %v9066, %v9071
    %v9089 = vunpack.c.l.b16 %v9050
    %v9090 = vunpack.c.l.b16 %v9051
    %v9091 = vunpack.c.l.b16 %v9052
    %v9092 = vunpack.c.l.b16 %v9053
    %v9093 = vunpack.c.l.b16 %v9054
    %v9094 = vunpack.c.l.b16 %v9055
    %v9095 = vunpack.c.l.b16 %v9056
    %v9096 = vunpack.c.l.b16 %v9057
    %v9097 = vunpack.c.l.b16 %v9058
    %v9098 = vunpack.c.l.b16 %v9059
    %v9099 = vunpack.c.l.b16 %v9060
    %v9100 = vunpack.c.l.b16 %v9061
    %v9101 = vunpack.c.l.b16 %v9062
    %v9102 = vunpack.c.l.b16 %v9063
    %v9103 = vunpack.c.l.b16 %v9064
    %v9104 = vunpack.c.l.b16 %v9065
    %v9105 = vpack.c.b16 %v9090, %v9089
    %v9106 = vpack.c.b16 %v9092, %v9091
    %v9107 = vpack.c.b16 %v9094, %v9093
    %v9108 = vpack.c.b16 %v9096, %v9095
    %v9109 = vpack.c.b16 %v9098, %v9097
    %v9110 = vpack.c.b16 %v9100, %v9099
    %v9111 = vpack.c.b16 %v9102, %v9101
    %v9112 = vpack.c.b16 %v9104, %v9103
    %9121 = vmatprep.subr.bf16.mxu0 0
    %9122 = vmatpush1.bf16.msra.mxu0 %v9112
    %9123 = vmatprep.subr.bf16.mxu0 0
    %9124 = vmatpush1.bf16.msra.mxu0 %v9111
    %9125 = vmatprep.subr.bf16.mxu0 0
    %9126 = vmatpush1.bf16.msra.mxu0 %v9110
    %9127 = vmatprep.subr.bf16.mxu0 0
    %9128 = vmatpush1.bf16.msra.mxu0 %v9109
    %9129 = vmatprep.subr.bf16.mxu0 0
    %9130 = vmatpush1.bf16.msra.mxu0 %v9108
    %9131 = vmatprep.subr.bf16.mxu0 0
    %9132 = vmatpush1.bf16.msra.mxu0 %v9107
    %9133 = vmatprep.subr.bf16.mxu0 0
    %9134 = vmatpush1.bf16.msra.mxu0 %v9106
    %9135 = vmatprep.subr.bf16.mxu0 0
    %9136 = vmatpush1.bf16.msra.mxu0 %v9105
    %9137 = vmatprep.subr.bf16.mxu0 0
    %9138 = vmatpush2.bf16.msra.mxu0 0
    %9139 = vmatprep.subr.bf16.mxu0 0
    %9140 = vmatpush2.bf16.msra.mxu0 0
    %9141 = vmatprep.subr.bf16.mxu0 0
    %9142 = vmatpush2.bf16.msra.mxu0 0
    %9143 = vmatprep.subr.bf16.mxu0 0
    %9144 = vmatpush2.bf16.msra.mxu0 0
    %9145 = vmatprep.subr.bf16.mxu0 0
    %9146 = vmatpush2.bf16.msra.mxu0 0
    %9147 = vmatprep.subr.bf16.mxu0 0
    %9148 = vmatpush2.bf16.msra.mxu0 0
    %9149 = vmatprep.subr.bf16.mxu0 0
    %9150 = vmatpush2.bf16.msra.mxu0 0
    %9151 = vmatprep.subr.bf16.mxu0 0
    %9152 = vmatpush2.bf16.msra.mxu0 0
    %9153 = vmatprep.mubr.bf16.mxu0 0
    %9154 = vmatmul.mubr.bf16.gmra.mxu0 %v9049
    %v9155 = vpop.f32.mrf.mxu0
    %v9156 = vadd.f32 %v9072, %v9155
    %v9157 = vpop.f32.mrf.mxu0
    %v9158 = vpop.f32.mrf.mxu0
    %v9159 = vpop.f32.mrf.mxu0
    %9160 = vdwg.mxu0
    %v9161 = vmax.f32 %v9156, 0.0
    %v9162 = vlaneseq
    %v9163 = vshrl.u32 %v9162, 7
    %v9164 = vsub.s32 0, %v9163
    %v9165 = vrot.slane %v9067, %v9164
    %v9166 = vmul.f32 %v9161, %v9165
    %v9167 = vlaneseq
    %v9168 = vshrl.u32 %v9167, 7
    %v9169 = vsub.s32 0, %v9168
    %v9170 = vrot.slane %v9068, %v9169
    %v9171 = vadd.f32 %v9166, %v9170
    %v9172 = vpack.c.bf16 %v9171, %v9171
    %v9173 = vld [vmem:[%s9] sm:$0xf]
    %v9174 = vld [vmem:[%s9 + $0x4] sm:$0xf]
    %v9175 = vld [vmem:[%s9 + $0x8] sm:$0xf]
    %v9176 = vld [vmem:[%s9 + $0xc] sm:$0xf]
    %v9177 = vld [vmem:[%s9 + $0x10] sm:$0xf]
    %v9178 = vld [vmem:[%s9 + $0x14] sm:$0xf]
    %v9179 = vld [vmem:[%s9 + $0x18] sm:$0xf]
    %v9180 = vld [vmem:[%s9 + $0x1c] sm:$0xf]
    %v9181 = vld [vmem:[%s9 + $0x20] sm:$0xf]
    %v9182 = vld [vmem:[%s9 + $0x24] sm:$0xf]
    %v9183 = vld [vmem:[%s9 + $0x28] sm:$0xf]
    %v9184 = vld [vmem:[%s9 + $0x2c] sm:$0xf]
    %v9185 = vld [vmem:[%s9 + $0x30] sm:$0xf]
    %v9186 = vld [vmem:[%s9 + $0x34] sm:$0xf]
    %v9187 = vld [vmem:[%s9 + $0x38] sm:$0xf]
    %v9188 = vld [vmem:[%s9 + $0x3c] sm:$0xf]
    %v9189 = vld [vmem:[%s10] sm:$0x1]
    %v9191 = vlaneseq
    %v9192 = vshrl.u32 %v9191, 7
    %v9193 = vsub.s32 0, %v9192
    %v9194 = vrot.slane %v9189, %v9193
    %v9212 = vunpack.c.l.b16 %v9173
    %v9213 = vunpack.c.l.b16 %v9174
    %v9214 = vunpack.c.l.b16 %v9175
    %v9215 = vunpack.c.l.b16 %v9176
    %v9216 = vunpack.c.l.b16 %v9177
    %v9217 = vunpack.c.l.b16 %v9178
    %v9218 = vunpack.c.l.b16 %v9179
    %v9219 = vunpack.c.l.b16 %v9180
    %v9220 = vunpack.c.l.b16 %v9181
    %v9221 = vunpack.c.l.b16 %v9182
    %v9222 = vunpack.c.l.b16 %v9183
    %v9223 = vunpack.c.l.b16 %v9184
    %v9224 = vunpack.c.l.b16 %v9185
    %v9225 = vunpack.c.l.b16 %v9186
    %v9226 = vunpack.c.l.b16 %v9187
    %v9227 = vunpack.c.l.b16 %v9188
    %v9228 = vpack.c.b16 %v9213, %v9212
    %v9229 = vpack.c.b16 %v9215, %v9214
    %v9230 = vpack.c.b16 %v9217, %v9216
    %v9231 = vpack.c.b16 %v9219, %v9218
    %v9232 = vpack.c.b16 %v9221, %v9220
    %v9233 = vpack.c.b16 %v9223, %v9222
    %v9234 = vpack.c.b16 %v9225, %v9224
    %v9235 = vpack.c.b16 %v9227, %v9226
    %9244 = vmatprep.subr.bf16.mxu0 0
    %9245 = vmatpush1.bf16.msra.mxu0 %v9235
    %9246 = vmatprep.subr.bf16.mxu0 0
    %9247 = vmatpush1.bf16.msra.mxu0 %v9234
    %9248 = vmatprep.subr.bf16.mxu0 0
    %9249 = vmatpush1.bf16.msra.mxu0 %v9233
    %9250 = vmatprep.subr.bf16.mxu0 0
    %9251 = vmatpush1.bf16.msra.mxu0 %v9232
    %9252 = vmatprep.subr.bf16.mxu0 0
    %9253 = vmatpush1.bf16.msra.mxu0 %v9231
    %9254 = vmatprep.subr.bf16.mxu0 0
    %9255 = vmatpush1.bf16.msra.mxu0 %v9230
    %9256 = vmatprep.subr.bf16.mxu0 0
    %9257 = vmatpush1.bf16.msra.mxu0 %v9229
    %9258 = vmatprep.subr.bf16.mxu0 0
    %9259 = vmatpush1.bf16.msra.mxu0 %v9228
    %9260 = vmatprep.subr.bf16.mxu0 0
    %9261 = vmatpush2.bf16.msra.mxu0 0
    %9262 = vmatprep.subr.bf16.mxu0 0
    %9263 = vmatpush2.bf16.msra.mxu0 0
    %9264 = vmatprep.subr.bf16.mxu0 0
    %9265 = vmatpush2.bf16.msra.mxu0 0
    %9266 = vmatprep.subr.bf16.mxu0 0
    %9267 = vmatpush2.bf16.msra.mxu0 0
    %9268 = vmatprep.subr.bf16.mxu0 0
    %9269 = vmatpush2.bf16.msra.mxu0 0
    %9270 = vmatprep.subr.bf16.mxu0 0
    %9271 = vmatpush2.bf16.msra.mxu0 0
    %9272 = vmatprep.subr.bf16.mxu0 0
    %9273 = vmatpush2.bf16.msra.mxu0 0
    %9274 = vmatprep.subr.bf16.mxu0 0
    %9275 = vmatpush2.bf16.msra.mxu0 0
    %9276 = vmatprep.mubr.bf16.mxu0 0
    %9277 = vmatmul.mubr.bf16.gmra.mxu0 %v9172
    %v9278 = vpop.f32.mrf.mxu0
    %v9279 = vadd.f32 %v9194, %v9278
    %v9280 = vpop.f32.mrf.mxu0
    %v9281 = vpop.f32.mrf.mxu0
    %v9282 = vpop.f32.mrf.mxu0
    %9283 = vdwg.mxu0
    %vm9284 = vcmask 17408
    %9285 = vst.msk [vmem:[#allocation5] sm:$0x3] %vm9284, %v9279
    // Predicated region
    $region46: #{regression_fc_forward.1} parent=1 // pred_check
      _
    $region47: #{regression_fc_forward.1} parent=1 // pred_check_branch
      %9287 = sbr.rel (0) target = $region49
    $region48: #{regression_fc_forward.1} parent=1 // pred_region
      %s9289 = ssub.s32 32, 32
      %9290 = vsyncadd [#allocation6], %s9289
      %s9292 = sshll.u32 [#allocation5], 4
      %s9293 = int_to_ptr.vmem [resolvable:$true] %s9292
      %9295 = dma.vmem_to_hbm [thread:$0]  %s9293, 32, %s11, [#allocation6]
    $region49: #{regression_fc_forward.1} parent=1 // pred_fallthru
      _
    // Predicated region
    $region50: #{regression_fc_forward.1} parent=1 // pred_check
      _
    $region51: #{regression_fc_forward.1} parent=1 // pred_check_branch
      %9297 = sbr.rel (0) target = $region53
    $region52: #{regression_fc_forward.1} parent=1 // pred_region
      %9298 = dma.done [#allocation6], 32
    $region53: #{regression_fc_forward.1} parent=1 // pred_fallthru
      _
    %9299 = vsyncpa [#allocation6], 1

</llo_original>
